<compile_context>
chip_gen: v6e
topology: v6e:2x2x1
jax: 0.10.0
libtpu: 0.0.40
codegen_flags: <defaults>
</compile_context>

<pallas_src>
import jax
import jax.numpy as jnp
from jax.experimental import pallas as pl
from jax.experimental.pallas import tpu as pltpu


# ----------------------------------------------------------------------------
# In-kernel stages
# ----------------------------------------------------------------------------
def _conv_shuffle_stage(x_bf16, bw_ref, l_ref, bias_ref):
    """(H, W*Cin) bf16 -> (2H, 2W*(Cout//4)) f32: conv3x3(pad1) + PixelShuffle(2).

    bw:   (W*Cin, 6*width)  bf16, 6 blocks ordered (dy, parity), shuffle lanes folded in
    l:    (2H, 6H)          f32 0/1, applies the +/-1 row shifts + row interleave
    bias: (2H, width)       f32, per-row-parity permuted bias
    """
    width = bias_ref.shape[-1]
    y = jnp.dot(x_bf16, bw_ref[...], preferred_element_type=jnp.float32)   # (H, 6*width)
    stacked = jnp.concatenate(
        [y[:, k * width:(k + 1) * width] for k in range(6)], axis=0)       # (6H, width)
    out = jnp.dot(l_ref[...], stacked, preferred_element_type=jnp.float32)  # (2H, width)
    return out + bias_ref[...]


def _final_conv_stage(x_bf16, bw_ref, l_ref, bias_ref):
    """(H, W*Cin) bf16 -> (H, 4W) f32: conv3x3(pad1, Cout=1) with the bilinear x4
    column factor folded into the bands."""
    width = bias_ref.shape[-1]
    y = jnp.dot(x_bf16, bw_ref[...], preferred_element_type=jnp.float32)   # (H, 3*width)
    stacked = jnp.concatenate(
        [y[:, k * width:(k + 1) * width] for k in range(3)], axis=0)       # (3H, width)
    out = jnp.dot(l_ref[...], stacked, preferred_element_type=jnp.float32)  # (H, width)
    return out + bias_ref[...]


def _fused_kernel(x_ref,
                  bw1, l1, c1, bw2, l2, c2, bw3, l3, c3, bw4, l4, c4,
                  a_ref, o_ref):
    h = x_ref[0].astype(jnp.bfloat16)                                # (8, 768)
    h = _conv_shuffle_stage(h, bw1, l1, c1).astype(jnp.bfloat16)     # (16, 256)
    h = _conv_shuffle_stage(h, bw2, l2, c2).astype(jnp.bfloat16)     # (32, 256)
    h = _conv_shuffle_stage(h, bw3, l3, c3).astype(jnp.bfloat16)     # (64, 256)
    tmp = _final_conv_stage(h, bw4, l4, c4).astype(jnp.bfloat16)     # (64, 256)
    # Bilinear row factor applied in 64-row tiles -> no (256,256) f32 live value.
    rows = a_ref.shape[0]
    tile_r = rows // 4
    for i in range(4):                                               # static unroll
        a_tile = a_ref[pl.ds(i * tile_r, tile_r), :]                 # (64, 64) bf16
        out_tile = jnp.dot(a_tile, tmp, preferred_element_type=jnp.float32)
        o_ref[0, pl.ds(i * tile_r, tile_r), :] = out_tile.astype(o_ref.dtype)


# ----------------------------------------------------------------------------
# One-time weight preprocessing (plain JAX, outside the jitted hot path)
# ----------------------------------------------------------------------------
def _bilinear_matrix(in_size, out_size):
    # PyTorch F.interpolate(mode='bilinear', align_corners=False) source rule.
    scale = in_size / out_size
    dst = jnp.arange(out_size, dtype=jnp.float32)
    src = jnp.maximum((dst + 0.5) * scale - 0.5, 0.0)
    i0 = jnp.minimum(jnp.floor(src).astype(jnp.int32), in_size - 1)
    i1 = jnp.minimum(i0 + 1, in_size - 1)
    w1 = src - i0.astype(jnp.float32)
    w0 = 1.0 - w1
    oh0 = jax.nn.one_hot(i0, in_size, dtype=jnp.float32)
    oh1 = jax.nn.one_hot(i1, in_size, dtype=jnp.float32)
    return w0[:, None] * oh0 + w1[:, None] * oh1                     # (out_size, in_size)


def _conv_bands(w_oihw, H, W):
    """B_dy (dy=0..2): (W*Cin, W*Cout) banded matrices holding the 3 horizontal taps."""
    del H
    cout, cin = int(w_oihw.shape[0]), int(w_oihw.shape[1])
    k_hwio = jnp.transpose(w_oihw, (2, 3, 1, 0)).astype(jnp.float32)  # (3,3,Cin,Cout)
    bands = []
    for dy in range(3):
        bd = jnp.zeros((W * cin, W * cout), jnp.float32)
        for dx in range(3):
            # picks input column w+dx-1 for output column w (zero pad at edges)
            shift = jnp.eye(W, W, 1 - dx, dtype=jnp.float32)
            bd = bd + jnp.kron(shift, k_hwio[dy, dx])
        bands.append(bd)
    return bands


def _shuffle_perms(W, cout):
    """P_p (parity p=0,1): (W*cout, 2*W*cn) 0/1 lane permutation of PixelShuffle(2)."""
    cn = cout // 4
    dst = jnp.arange(2 * W * cn)
    c = dst % cn
    wj = dst // cn
    j = wj % 2
    w = wj // 2
    perms = []
    for p in range(2):
        # in-channel of PixelShuffle output (c, row-parity p, col-parity j) is c*4 + 2p + j
        src = w * cout + 4 * c + 2 * p + j
        perms.append(jax.nn.one_hot(src, W * cout, dtype=jnp.float32).T)
    return perms


def _combine_matrix(H, with_shuffle):
    """0/1 matrix applying the 3 vertical conv taps (+/-1 row shifts with zero pad)
    and, if with_shuffle, the PixelShuffle(2) row interleave, to the row-stacked
    per-(dy[,parity]) partial products."""
    hs = jnp.arange(H)
    rows_out = 2 * H if with_shuffle else H
    blocks = []
    for dy in range(3):
        src_h = hs + dy - 1
        valid = ((src_h >= 0) & (src_h < H)).astype(jnp.float32)
        sel = jax.nn.one_hot(jnp.clip(src_h, 0, H - 1), H, dtype=jnp.float32) * valid[:, None]
        if with_shuffle:
            for p in range(2):
                lift = jax.nn.one_hot(2 * hs + p, rows_out, dtype=jnp.float32).T  # (2H, H)
                blocks.append(lift @ sel)
        else:
            blocks.append(sel)
    return jnp.concatenate(blocks, axis=1)      # (2H, 6H) or (H, 3H), exact 0/1


def init_params(key, num_classes=1):
    # Deterministic synthetic weights, PyTorch OIHW layout: (Cout, Cin, 3, 3).
    def conv_p(k, cin, cout):
        kw, kb = jax.random.split(k)
        s = 1.0 / jnp.sqrt(jnp.float32(cin * 9))
        w = jax.random.normal(kw, (cout, cin, 3, 3), jnp.float32) * s
        b = jax.random.normal(kb, (cout,), jnp.float32) * s
        return w, b

    k1, k2, k3, k4 = jax.random.split(key, 4)
    p = {}
    p["w1"], p["b1"] = conv_p(k1, 96, 64)           # UpsamplingBlock(96, 64)
    p["w2"], p["b2"] = conv_p(k2, 16, 32)           # UpsamplingBlock(.., 32) post-shuffle
    p["w3"], p["b3"] = conv_p(k3, 8, 16)            # UpsamplingBlock(.., 16) post-shuffle
    p["w4"], p["b4"] = conv_p(k4, 4, num_classes)   # final 3x3 conv
    return p


def precompute_constants(params, H0, W0):
    consts = {}
    H, W = H0, W0
    # Stages 1..3: conv3x3(pad1) + PixelShuffle(2); shuffle lane permutation folded
    # into the conv bands (bf16), row-shift + row-interleave as one tiny f32 matrix.
    for idx, (wname, bname) in enumerate((("w1", "b1"), ("w2", "b2"), ("w3", "b3")), 1):
        w, b = params[wname], params[bname]
        cout = int(w.shape[0])
        cn = cout // 4
        bands = _conv_bands(w, H, W)
        perms = _shuffle_perms(W, cout)
        blocks = []
        for dy in range(3):
            for p in range(2):
                blocks.append(bands[dy] @ perms[p])          # (W*Cin, 2*W*cn)
        consts[f"Bw{idx}"] = jnp.concatenate(blocks, axis=1).astype(jnp.bfloat16)
        consts[f"L{idx}"] = _combine_matrix(H, with_shuffle=True)        # f32, exact 0/1
        bias_tiled = jnp.tile(b.astype(jnp.float32), W)[None, :]         # (1, W*cout)
        row_p = [(bias_tiled @ perms[p])[0] for p in range(2)]           # (2*W*cn,) each
        consts[f"c{idx}"] = jnp.tile(jnp.stack(row_p, axis=0), (H, 1))   # (2H, 2*W*cn) f32
        H, W = 2 * H, 2 * W
    # Final conv (Cout = num_classes = 1) with the bilinear x4 COLUMN factor folded
    # into its bands; the bilinear ROW factor stays as A (exact in bf16).
    w4, b4 = params["w4"], params["b4"]
    bands4 = _conv_bands(w4, H, W)
    bt = _bilinear_matrix(W, 4 * W).T                                    # (W, 4W)
    consts["Bw4"] = jnp.concatenate([bd @ bt for bd in bands4], axis=1).astype(jnp.bfloat16)
    consts["L4"] = _combine_matrix(H, with_shuffle=False)                # (H, 3H) f32
    bias4_tiled = jnp.tile(b4.astype(jnp.float32), W)[None, :]           # (1, W)  (Cout=1)
    consts["c4"] = bias4_tiled @ bt                                      # (1, 4W) f32
    consts["A"] = _bilinear_matrix(H, 4 * H).astype(jnp.bfloat16)        # (4H, H) exact bf16
    return consts


# ----------------------------------------------------------------------------
# Fused forward
# ----------------------------------------------------------------------------
_CONST_ORDER = ["Bw1", "L1", "c1", "Bw2", "L2", "c2",
                "Bw3", "L3", "c3", "Bw4", "L4", "c4", "A"]


@jax.jit
def swin_upsample_forward(x_nchw, consts):
    # SwinTransformer in the reference is an identity forward.
    N, C, H, W = x_nchw.shape
    # Lane-dense presentation of the tiny input: (N, H, W*C), channel minor.
    x_rows = jnp.transpose(x_nchw, (0, 2, 3, 1)).reshape(N, H, W * C)
    Hf = consts["A"].shape[0]
    Wf = consts["c4"].shape[1]
    const_args = [consts[k] for k in _CONST_ORDER]
    out = pl.pallas_call(
        _fused_kernel,
        out_shape=jax.ShapeDtypeStruct((N, Hf, Wf), jnp.float32),
        grid=(N,),
        in_specs=[pl.BlockSpec((1, H, W * C), lambda n: (n, 0, 0))]
                 + [pl.BlockSpec(a.shape, lambda n: (0, 0)) for a in const_args],
        out_specs=pl.BlockSpec((1, Hf, Wf), lambda n: (n, 0, 0)),
        compiler_params=pltpu.CompilerParams(
            dimension_semantics=("parallel",),
            vmem_limit_bytes=32 * 1024 * 1024),
    )(x_rows, *const_args)
    return out.reshape(N, 1, Hf, Wf)                  # NCHW, num_classes=1


# ----------------------------------------------------------------------------
# Pure-XLA f32 reference (for in-script validation only)
# ----------------------------------------------------------------------------
def reference_forward(x_nchw, params):
    hp = jax.lax.Precision.HIGHEST

    def conv(y, w, b):
        out = jax.lax.conv_general_dilated(
            y, w, window_strides=(1, 1), padding=((1, 1), (1, 1)),
            dimension_numbers=("NCHW", "OIHW", "NCHW"), precision=hp)
        return out + b[None, :, None, None]

    def pixel_shuffle(y, r=2):
        n, c, h, w = y.shape
        y = y.reshape(n, c // (r * r), r, r, h, w)
        y = y.transpose(0, 1, 4, 2, 5, 3)
        return y.reshape(n, c // (r * r), h * r, w * r)

    y = pixel_shuffle(conv(x_nchw, params["w1"], params["b1"]))
    y = pixel_shuffle(conv(y, params["w2"], params["b2"]))
    y = pixel_shuffle(conv(y, params["w3"], params["b3"]))
    y = conv(y, params["w4"], params["b4"])
    A = _bilinear_matrix(y.shape[2], 4 * y.shape[2])
    Bm = _bilinear_matrix(y.shape[3], 4 * y.shape[3])
    return jnp.einsum("uh,nchw,vw->ncuv", A, y, Bm, precision=hp)


if __name__ == "__main__":
    key = jax.random.PRNGKey(0)
    k_x, k_p = jax.random.split(key)

    N, C, H, W = 2, 96, 8, 8                        # NCHW, embed_dim=96 per the module
    x = jax.random.normal(k_x, (N, C, H, W), jnp.float32)
    params = init_params(k_p, num_classes=1)

    consts = precompute_constants(params, H, W)     # one-time weight preprocessing
    out = jax.block_until_ready(swin_upsample_forward(x, consts))

    expected = (N, 1, H * 8 * 4, W * 8 * 4)         # 3x PixelShuffle(2), then bilinear x4
    assert out.shape == expected, (out.shape, expected)
    assert out.dtype == jnp.float32

    ref = jax.block_until_ready(reference_forward(x, params))
    max_err = float(jnp.max(jnp.abs(out - ref)))
    mean_err = float(jnp.mean(jnp.abs(out - ref)))
    # bf16 weights/activations (f32 accumulation) vs f32 reference: expect ~1e-2
    # max / ~3e-3 mean error on O(1) values; structural bugs would be O(1).
    assert max_err < 5e-2, f"max abs error vs XLA reference: {max_err}"
    assert mean_err < 1e-2, f"mean abs error vs XLA reference: {mean_err}"
    print("KERNEL_OK")
</pallas_src>

<mosaic_0001>
module attributes {stable_mosaic.version = 11 : i64} {
  func.func @_fused_kernel(%arg0: i32, %arg1: memref<1x8x768xf32, #tpu.memory_space<vmem>>, %arg2: memref<768x1536xbf16, #tpu.memory_space<vmem>>, %arg3: memref<16x48xf32, #tpu.memory_space<vmem>>, %arg4: memref<16x256xf32, #tpu.memory_space<vmem>>, %arg5: memref<256x1536xbf16, #tpu.memory_space<vmem>>, %arg6: memref<32x96xf32, #tpu.memory_space<vmem>>, %arg7: memref<32x256xf32, #tpu.memory_space<vmem>>, %arg8: memref<256x1536xbf16, #tpu.memory_space<vmem>>, %arg9: memref<64x192xf32, #tpu.memory_space<vmem>>, %arg10: memref<64x256xf32, #tpu.memory_space<vmem>>, %arg11: memref<256x768xbf16, #tpu.memory_space<vmem>>, %arg12: memref<64x192xf32, #tpu.memory_space<vmem>>, %arg13: memref<1x256xf32, #tpu.memory_space<vmem>>, %arg14: memref<256x64xbf16, #tpu.memory_space<vmem>>, %arg15: memref<1x256x256xf32, #tpu.memory_space<vmem>>) attributes {dimension_semantics = [#tpu.dimension_semantics<parallel>], iteration_bounds = array<i64: 2>, scalar_prefetch = 0 : i64, scratch_operands = 0 : i64, tpu.core_type = #tpu.core_type<tc>, window_params = [{transform_indices = @transform_0, window_bounds = array<i64: 1, 8, 768>}, {pipeline_mode = #tpu.pipeline_mode<synchronous>, transform_indices = @transform_1, window_bounds = array<i64: 768, 1536>}, {pipeline_mode = #tpu.pipeline_mode<synchronous>, transform_indices = @transform_2, window_bounds = array<i64: 16, 48>}, {pipeline_mode = #tpu.pipeline_mode<synchronous>, transform_indices = @transform_3, window_bounds = array<i64: 16, 256>}, {pipeline_mode = #tpu.pipeline_mode<synchronous>, transform_indices = @transform_4, window_bounds = array<i64: 256, 1536>}, {pipeline_mode = #tpu.pipeline_mode<synchronous>, transform_indices = @transform_5, window_bounds = array<i64: 32, 96>}, {pipeline_mode = #tpu.pipeline_mode<synchronous>, transform_indices = @transform_6, window_bounds = array<i64: 32, 256>}, {pipeline_mode = #tpu.pipeline_mode<synchronous>, transform_indices = @transform_7, window_bounds = array<i64: 256, 1536>}, {pipeline_mode = #tpu.pipeline_mode<synchronous>, transform_indices = @transform_8, window_bounds = array<i64: 64, 192>}, {pipeline_mode = #tpu.pipeline_mode<synchronous>, transform_indices = @transform_9, window_bounds = array<i64: 64, 256>}, {pipeline_mode = #tpu.pipeline_mode<synchronous>, transform_indices = @transform_10, window_bounds = array<i64: 256, 768>}, {pipeline_mode = #tpu.pipeline_mode<synchronous>, transform_indices = @transform_11, window_bounds = array<i64: 64, 192>}, {pipeline_mode = #tpu.pipeline_mode<synchronous>, transform_indices = @transform_12, window_bounds = array<i64: 1, 256>}, {pipeline_mode = #tpu.pipeline_mode<synchronous>, transform_indices = @transform_13, window_bounds = array<i64: 256, 64>}, {transform_indices = @transform_14, window_bounds = array<i64: 1, 256, 256>}]} {
    %c0 = arith.constant 0 : index
    %c0_0 = arith.constant 0 : index
    %c0_1 = arith.constant 0 : index
    %0 = vector.load %arg1[%c0, %c0_0, %c0_1] : memref<1x8x768xf32, #tpu.memory_space<vmem>>, vector<1x8x768xf32>
    %1 = vector.shape_cast %0 : vector<1x8x768xf32> to vector<8x768xf32>
    %2 = arith.truncf %1 : vector<8x768xf32> to vector<8x768xbf16>
    %c0_2 = arith.constant 0 : index
    %c0_3 = arith.constant 0 : index
    %3 = vector.load %arg2[%c0_2, %c0_3] : memref<768x1536xbf16, #tpu.memory_space<vmem>>, vector<768x1536xbf16>
    %cst = arith.constant dense<0.000000e+00> : vector<8x1536xf32>
    %4 = tpu.matmul %2, %3, %cst {dimension_numbers = #tpu.dot_dimension_numbers<[1], [0], [0], [1], [0, 0, 1, 1], [], []>} : vector<8x768xbf16>, vector<768x1536xbf16>, vector<8x1536xf32> -> vector<8x1536xf32>
    %5 = vector.extract_strided_slice %4 {offsets = [0, 0], sizes = [8, 256], strides = [1, 1]} : vector<8x1536xf32> to vector<8x256xf32>
    %6 = vector.extract_strided_slice %4 {offsets = [0, 256], sizes = [8, 256], strides = [1, 1]} : vector<8x1536xf32> to vector<8x256xf32>
    %7 = vector.extract_strided_slice %4 {offsets = [0, 512], sizes = [8, 256], strides = [1, 1]} : vector<8x1536xf32> to vector<8x256xf32>
    %8 = vector.extract_strided_slice %4 {offsets = [0, 768], sizes = [8, 256], strides = [1, 1]} : vector<8x1536xf32> to vector<8x256xf32>
    %9 = vector.extract_strided_slice %4 {offsets = [0, 1024], sizes = [8, 256], strides = [1, 1]} : vector<8x1536xf32> to vector<8x256xf32>
    %10 = vector.extract_strided_slice %4 {offsets = [0, 1280], sizes = [8, 256], strides = [1, 1]} : vector<8x1536xf32> to vector<8x256xf32>
    %11 = tpu.concatenate %5, %6, %7, %8, %9, %10 in 0 : vector<8x256xf32>, vector<8x256xf32>, vector<8x256xf32>, vector<8x256xf32>, vector<8x256xf32>, vector<8x256xf32> -> vector<48x256xf32>
    %c0_4 = arith.constant 0 : index
    %c0_5 = arith.constant 0 : index
    %12 = vector.load %arg3[%c0_4, %c0_5] : memref<16x48xf32, #tpu.memory_space<vmem>>, vector<16x48xf32>
    %cst_6 = arith.constant dense<0.000000e+00> : vector<16x256xf32>
    %13 = tpu.matmul %12, %11, %cst_6 {dimension_numbers = #tpu.dot_dimension_numbers<[1], [0], [0], [1], [0, 0, 1, 1], [], []>} : vector<16x48xf32>, vector<48x256xf32>, vector<16x256xf32> -> vector<16x256xf32>
    %c0_7 = arith.constant 0 : index
    %c0_8 = arith.constant 0 : index
    %14 = vector.load %arg4[%c0_7, %c0_8] : memref<16x256xf32, #tpu.memory_space<vmem>>, vector<16x256xf32>
    %15 = arith.addf %13, %14 : vector<16x256xf32>
    %16 = arith.truncf %15 : vector<16x256xf32> to vector<16x256xbf16>
    %c0_9 = arith.constant 0 : index
    %c0_10 = arith.constant 0 : index
    %17 = vector.load %arg5[%c0_9, %c0_10] : memref<256x1536xbf16, #tpu.memory_space<vmem>>, vector<256x1536xbf16>
    %cst_11 = arith.constant dense<0.000000e+00> : vector<16x1536xf32>
    %18 = tpu.matmul %16, %17, %cst_11 {dimension_numbers = #tpu.dot_dimension_numbers<[1], [0], [0], [1], [0, 0, 1, 1], [], []>} : vector<16x256xbf16>, vector<256x1536xbf16>, vector<16x1536xf32> -> vector<16x1536xf32>
    %19 = vector.extract_strided_slice %18 {offsets = [0, 0], sizes = [16, 256], strides = [1, 1]} : vector<16x1536xf32> to vector<16x256xf32>
    %20 = vector.extract_strided_slice %18 {offsets = [0, 256], sizes = [16, 256], strides = [1, 1]} : vector<16x1536xf32> to vector<16x256xf32>
    %21 = vector.extract_strided_slice %18 {offsets = [0, 512], sizes = [16, 256], strides = [1, 1]} : vector<16x1536xf32> to vector<16x256xf32>
    %22 = vector.extract_strided_slice %18 {offsets = [0, 768], sizes = [16, 256], strides = [1, 1]} : vector<16x1536xf32> to vector<16x256xf32>
    %23 = vector.extract_strided_slice %18 {offsets = [0, 1024], sizes = [16, 256], strides = [1, 1]} : vector<16x1536xf32> to vector<16x256xf32>
    %24 = vector.extract_strided_slice %18 {offsets = [0, 1280], sizes = [16, 256], strides = [1, 1]} : vector<16x1536xf32> to vector<16x256xf32>
    %25 = tpu.concatenate %19, %20, %21, %22, %23, %24 in 0 : vector<16x256xf32>, vector<16x256xf32>, vector<16x256xf32>, vector<16x256xf32>, vector<16x256xf32>, vector<16x256xf32> -> vector<96x256xf32>
    %c0_12 = arith.constant 0 : index
    %c0_13 = arith.constant 0 : index
    %26 = vector.load %arg6[%c0_12, %c0_13] : memref<32x96xf32, #tpu.memory_space<vmem>>, vector<32x96xf32>
    %cst_14 = arith.constant dense<0.000000e+00> : vector<32x256xf32>
    %27 = tpu.matmul %26, %25, %cst_14 {dimension_numbers = #tpu.dot_dimension_numbers<[1], [0], [0], [1], [0, 0, 1, 1], [], []>} : vector<32x96xf32>, vector<96x256xf32>, vector<32x256xf32> -> vector<32x256xf32>
    %c0_15 = arith.constant 0 : index
    %c0_16 = arith.constant 0 : index
    %28 = vector.load %arg7[%c0_15, %c0_16] : memref<32x256xf32, #tpu.memory_space<vmem>>, vector<32x256xf32>
    %29 = arith.addf %27, %28 : vector<32x256xf32>
    %30 = arith.truncf %29 : vector<32x256xf32> to vector<32x256xbf16>
    %c0_17 = arith.constant 0 : index
    %c0_18 = arith.constant 0 : index
    %31 = vector.load %arg8[%c0_17, %c0_18] : memref<256x1536xbf16, #tpu.memory_space<vmem>>, vector<256x1536xbf16>
    %cst_19 = arith.constant dense<0.000000e+00> : vector<32x1536xf32>
    %32 = tpu.matmul %30, %31, %cst_19 {dimension_numbers = #tpu.dot_dimension_numbers<[1], [0], [0], [1], [0, 0, 1, 1], [], []>} : vector<32x256xbf16>, vector<256x1536xbf16>, vector<32x1536xf32> -> vector<32x1536xf32>
    %33 = vector.extract_strided_slice %32 {offsets = [0, 0], sizes = [32, 256], strides = [1, 1]} : vector<32x1536xf32> to vector<32x256xf32>
    %34 = vector.extract_strided_slice %32 {offsets = [0, 256], sizes = [32, 256], strides = [1, 1]} : vector<32x1536xf32> to vector<32x256xf32>
    %35 = vector.extract_strided_slice %32 {offsets = [0, 512], sizes = [32, 256], strides = [1, 1]} : vector<32x1536xf32> to vector<32x256xf32>
    %36 = vector.extract_strided_slice %32 {offsets = [0, 768], sizes = [32, 256], strides = [1, 1]} : vector<32x1536xf32> to vector<32x256xf32>
    %37 = vector.extract_strided_slice %32 {offsets = [0, 1024], sizes = [32, 256], strides = [1, 1]} : vector<32x1536xf32> to vector<32x256xf32>
    %38 = vector.extract_strided_slice %32 {offsets = [0, 1280], sizes = [32, 256], strides = [1, 1]} : vector<32x1536xf32> to vector<32x256xf32>
    %39 = tpu.concatenate %33, %34, %35, %36, %37, %38 in 0 : vector<32x256xf32>, vector<32x256xf32>, vector<32x256xf32>, vector<32x256xf32>, vector<32x256xf32>, vector<32x256xf32> -> vector<192x256xf32>
    %c0_20 = arith.constant 0 : index
    %c0_21 = arith.constant 0 : index
    %40 = vector.load %arg9[%c0_20, %c0_21] : memref<64x192xf32, #tpu.memory_space<vmem>>, vector<64x192xf32>
    %cst_22 = arith.constant dense<0.000000e+00> : vector<64x256xf32>
    %41 = tpu.matmul %40, %39, %cst_22 {dimension_numbers = #tpu.dot_dimension_numbers<[1], [0], [0], [1], [0, 0, 1, 1], [], []>} : vector<64x192xf32>, vector<192x256xf32>, vector<64x256xf32> -> vector<64x256xf32>
    %c0_23 = arith.constant 0 : index
    %c0_24 = arith.constant 0 : index
    %42 = vector.load %arg10[%c0_23, %c0_24] : memref<64x256xf32, #tpu.memory_space<vmem>>, vector<64x256xf32>
    %43 = arith.addf %41, %42 : vector<64x256xf32>
    %44 = arith.truncf %43 : vector<64x256xf32> to vector<64x256xbf16>
    %c0_25 = arith.constant 0 : index
    %c0_26 = arith.constant 0 : index
    %45 = vector.load %arg11[%c0_25, %c0_26] : memref<256x768xbf16, #tpu.memory_space<vmem>>, vector<256x768xbf16>
    %cst_27 = arith.constant dense<0.000000e+00> : vector<64x768xf32>
    %46 = tpu.matmul %44, %45, %cst_27 {dimension_numbers = #tpu.dot_dimension_numbers<[1], [0], [0], [1], [0, 0, 1, 1], [], []>} : vector<64x256xbf16>, vector<256x768xbf16>, vector<64x768xf32> -> vector<64x768xf32>
    %47 = vector.extract_strided_slice %46 {offsets = [0, 0], sizes = [64, 256], strides = [1, 1]} : vector<64x768xf32> to vector<64x256xf32>
    %48 = vector.extract_strided_slice %46 {offsets = [0, 256], sizes = [64, 256], strides = [1, 1]} : vector<64x768xf32> to vector<64x256xf32>
    %49 = vector.extract_strided_slice %46 {offsets = [0, 512], sizes = [64, 256], strides = [1, 1]} : vector<64x768xf32> to vector<64x256xf32>
    %50 = tpu.concatenate %47, %48, %49 in 0 : vector<64x256xf32>, vector<64x256xf32>, vector<64x256xf32> -> vector<192x256xf32>
    %c0_28 = arith.constant 0 : index
    %c0_29 = arith.constant 0 : index
    %51 = vector.load %arg12[%c0_28, %c0_29] : memref<64x192xf32, #tpu.memory_space<vmem>>, vector<64x192xf32>
    %cst_30 = arith.constant dense<0.000000e+00> : vector<64x256xf32>
    %52 = tpu.matmul %51, %50, %cst_30 {dimension_numbers = #tpu.dot_dimension_numbers<[1], [0], [0], [1], [0, 0, 1, 1], [], []>} : vector<64x192xf32>, vector<192x256xf32>, vector<64x256xf32> -> vector<64x256xf32>
    %c0_31 = arith.constant 0 : index
    %c0_32 = arith.constant 0 : index
    %53 = vector.load %arg13[%c0_31, %c0_32] : memref<1x256xf32, #tpu.memory_space<vmem>>, vector<1x256xf32>
    %54 = vector.broadcast %53 : vector<1x256xf32> to vector<64x256xf32>
    %55 = arith.addf %52, %54 : vector<64x256xf32>
    %56 = arith.truncf %55 : vector<64x256xf32> to vector<64x256xbf16>
    %c0_33 = arith.constant 0 : index
    %c0_34 = arith.constant 0 : index
    %57 = vector.load %arg14[%c0_33, %c0_34] : memref<256x64xbf16, #tpu.memory_space<vmem>>, vector<64x64xbf16>
    %cst_35 = arith.constant dense<0.000000e+00> : vector<64x256xf32>
    %58 = tpu.matmul %57, %56, %cst_35 {dimension_numbers = #tpu.dot_dimension_numbers<[1], [0], [0], [1], [0, 0, 1, 1], [], []>} : vector<64x64xbf16>, vector<64x256xbf16>, vector<64x256xf32> -> vector<64x256xf32>
    %c0_36 = arith.constant 0 : index
    %c0_37 = arith.constant 0 : index
    %c0_38 = arith.constant 0 : index
    %59 = vector.load %arg15[%c0_36, %c0_37, %c0_38] : memref<1x256x256xf32, #tpu.memory_space<vmem>>, vector<1x64x256xf32>
    %60 = vector.shape_cast %59 : vector<1x64x256xf32> to vector<64x256xf32>
    %61 = vector.shape_cast %58 : vector<64x256xf32> to vector<1x64x256xf32>
    tpu.vector_store %arg15[%c0_36, %c0_37, %c0_38], %61 {strides = array<i32>} : memref<1x256x256xf32, #tpu.memory_space<vmem>>, vector<1x64x256xf32>,
    %c64 = arith.constant 64 : index
    %c0_39 = arith.constant 0 : index
    %62 = vector.load %arg14[%c64, %c0_39] : memref<256x64xbf16, #tpu.memory_space<vmem>>, vector<64x64xbf16>
    %cst_40 = arith.constant dense<0.000000e+00> : vector<64x256xf32>
    %63 = tpu.matmul %62, %56, %cst_40 {dimension_numbers = #tpu.dot_dimension_numbers<[1], [0], [0], [1], [0, 0, 1, 1], [], []>} : vector<64x64xbf16>, vector<64x256xbf16>, vector<64x256xf32> -> vector<64x256xf32>
    %c0_41 = arith.constant 0 : index
    %c64_42 = arith.constant 64 : index
    %c0_43 = arith.constant 0 : index
    %64 = vector.load %arg15[%c0_41, %c64_42, %c0_43] : memref<1x256x256xf32, #tpu.memory_space<vmem>>, vector<1x64x256xf32>
    %65 = vector.shape_cast %64 : vector<1x64x256xf32> to vector<64x256xf32>
    %66 = vector.shape_cast %63 : vector<64x256xf32> to vector<1x64x256xf32>
    tpu.vector_store %arg15[%c0_41, %c64_42, %c0_43], %66 {strides = array<i32>} : memref<1x256x256xf32, #tpu.memory_space<vmem>>, vector<1x64x256xf32>,
    %c128 = arith.constant 128 : index
    %c0_44 = arith.constant 0 : index
    %67 = vector.load %arg14[%c128, %c0_44] : memref<256x64xbf16, #tpu.memory_space<vmem>>, vector<64x64xbf16>
    %cst_45 = arith.constant dense<0.000000e+00> : vector<64x256xf32>
    %68 = tpu.matmul %67, %56, %cst_45 {dimension_numbers = #tpu.dot_dimension_numbers<[1], [0], [0], [1], [0, 0, 1, 1], [], []>} : vector<64x64xbf16>, vector<64x256xbf16>, vector<64x256xf32> -> vector<64x256xf32>
    %c0_46 = arith.constant 0 : index
    %c128_47 = arith.constant 128 : index
    %c0_48 = arith.constant 0 : index
    %69 = vector.load %arg15[%c0_46, %c128_47, %c0_48] : memref<1x256x256xf32, #tpu.memory_space<vmem>>, vector<1x64x256xf32>
    %70 = vector.shape_cast %69 : vector<1x64x256xf32> to vector<64x256xf32>
    %71 = vector.shape_cast %68 : vector<64x256xf32> to vector<1x64x256xf32>
    tpu.vector_store %arg15[%c0_46, %c128_47, %c0_48], %71 {strides = array<i32>} : memref<1x256x256xf32, #tpu.memory_space<vmem>>, vector<1x64x256xf32>,
    %c192 = arith.constant 192 : index
    %c0_49 = arith.constant 0 : index
    %72 = vector.load %arg14[%c192, %c0_49] : memref<256x64xbf16, #tpu.memory_space<vmem>>, vector<64x64xbf16>
    %cst_50 = arith.constant dense<0.000000e+00> : vector<64x256xf32>
    %73 = tpu.matmul %72, %56, %cst_50 {dimension_numbers = #tpu.dot_dimension_numbers<[1], [0], [0], [1], [0, 0, 1, 1], [], []>} : vector<64x64xbf16>, vector<64x256xbf16>, vector<64x256xf32> -> vector<64x256xf32>
    %c0_51 = arith.constant 0 : index
    %c192_52 = arith.constant 192 : index
    %c0_53 = arith.constant 0 : index
    %74 = vector.load %arg15[%c0_51, %c192_52, %c0_53] : memref<1x256x256xf32, #tpu.memory_space<vmem>>, vector<1x64x256xf32>
    %75 = vector.shape_cast %74 : vector<1x64x256xf32> to vector<64x256xf32>
    %76 = vector.shape_cast %73 : vector<64x256xf32> to vector<1x64x256xf32>
    tpu.vector_store %arg15[%c0_51, %c192_52, %c0_53], %76 {strides = array<i32>} : memref<1x256x256xf32, #tpu.memory_space<vmem>>, vector<1x64x256xf32>,
    return
  }
  func.func @transform_0(%arg0: i32) -> (i32, i32, i32) {
    %c0_i32 = arith.constant 0 : i32
    %c0_i32_0 = arith.constant 0 : i32
    %c0_i32_1 = arith.constant 0 : i32
    return %arg0, %c0_i32, %c0_i32_0 : i32, i32, i32
  }
  func.func @transform_1(%arg0: i32) -> (i32, i32) {
    %c0_i32 = arith.constant 0 : i32
    %c0_i32_0 = arith.constant 0 : i32
    %c0_i32_1 = arith.constant 0 : i32
    return %c0_i32, %c0_i32_0 : i32, i32
  }
  func.func @transform_2(%arg0: i32) -> (i32, i32) {
    %c0_i32 = arith.constant 0 : i32
    %c0_i32_0 = arith.constant 0 : i32
    %c0_i32_1 = arith.constant 0 : i32
    return %c0_i32, %c0_i32_0 : i32, i32
  }
  func.func @transform_3(%arg0: i32) -> (i32, i32) {
    %c0_i32 = arith.constant 0 : i32
    %c0_i32_0 = arith.constant 0 : i32
    %c0_i32_1 = arith.constant 0 : i32
    return %c0_i32, %c0_i32_0 : i32, i32
  }
  func.func @transform_4(%arg0: i32) -> (i32, i32) {
    %c0_i32 = arith.constant 0 : i32
    %c0_i32_0 = arith.constant 0 : i32
    %c0_i32_1 = arith.constant 0 : i32
    return %c0_i32, %c0_i32_0 : i32, i32
  }
  func.func @transform_5(%arg0: i32) -> (i32, i32) {
    %c0_i32 = arith.constant 0 : i32
    %c0_i32_0 = arith.constant 0 : i32
    %c0_i32_1 = arith.constant 0 : i32
    return %c0_i32, %c0_i32_0 : i32, i32
  }
  func.func @transform_6(%arg0: i32) -> (i32, i32) {
    %c0_i32 = arith.constant 0 : i32
    %c0_i32_0 = arith.constant 0 : i32
    %c0_i32_1 = arith.constant 0 : i32
    return %c0_i32, %c0_i32_0 : i32, i32
  }
  func.func @transform_7(%arg0: i32) -> (i32, i32) {
    %c0_i32 = arith.constant 0 : i32
    %c0_i32_0 = arith.constant 0 : i32
    %c0_i32_1 = arith.constant 0 : i32
    return %c0_i32, %c0_i32_0 : i32, i32
  }
  func.func @transform_8(%arg0: i32) -> (i32, i32) {
    %c0_i32 = arith.constant 0 : i32
    %c0_i32_0 = arith.constant 0 : i32
    %c0_i32_1 = arith.constant 0 : i32
    return %c0_i32, %c0_i32_0 : i32, i32
  }
  func.func @transform_9(%arg0: i32) -> (i32, i32) {
    %c0_i32 = arith.constant 0 : i32
    %c0_i32_0 = arith.constant 0 : i32
    %c0_i32_1 = arith.constant 0 : i32
    return %c0_i32, %c0_i32_0 : i32, i32
  }
  func.func @transform_10(%arg0: i32) -> (i32, i32) {
    %c0_i32 = arith.constant 0 : i32
    %c0_i32_0 = arith.constant 0 : i32
    %c0_i32_1 = arith.constant 0 : i32
    return %c0_i32, %c0_i32_0 : i32, i32
  }
  func.func @transform_11(%arg0: i32) -> (i32, i32) {
    %c0_i32 = arith.constant 0 : i32
    %c0_i32_0 = arith.constant 0 : i32
    %c0_i32_1 = arith.constant 0 : i32
    return %c0_i32, %c0_i32_0 : i32, i32
  }
  func.func @transform_12(%arg0: i32) -> (i32, i32) {
    %c0_i32 = arith.constant 0 : i32
    %c0_i32_0 = arith.constant 0 : i32
    %c0_i32_1 = arith.constant 0 : i32
    return %c0_i32, %c0_i32_0 : i32, i32
  }
  func.func @transform_13(%arg0: i32) -> (i32, i32) {
    %c0_i32 = arith.constant 0 : i32
    %c0_i32_0 = arith.constant 0 : i32
    %c0_i32_1 = arith.constant 0 : i32
    return %c0_i32, %c0_i32_0 : i32, i32
  }
  func.func @transform_14(%arg0: i32) -> (i32, i32, i32) {
    %c0_i32 = arith.constant 0 : i32
    %c0_i32_0 = arith.constant 0 : i32
    %c0_i32_1 = arith.constant 0 : i32
    return %arg0, %c0_i32, %c0_i32_0 : i32, i32, i32
  }
}

</mosaic_0001>

<llo_original>
// kernel: swin_upsample_forward.1
$region0: #{swin_upsample_forward.1}
  #allocation0 [shape = 'u32[]', space=smem, size = 0x4, offset = 0x4, fixed_abs, tag = 'smem constant byte address 0x4 - core index']
  #allocation1 [shape = 'u32[144,128]{1,0:T(1,128)}', space=vmem, size = 0x12000, scoped, tag = 'internal scratch']
  %s0 = inlined_call_operand.vmem [shape: f32[2,8,768], index: 0, kind: input, shape index: {}]
  %s1 = inlined_call_operand.hbm [shape: bf16[768,1536], index: 1, kind: input, shape index: {}]
  %s2 = inlined_call_operand.hbm [shape: f32[16,48], index: 2, kind: input, shape index: {}]
  %s3 = inlined_call_operand.hbm [shape: f32[16,256], index: 3, kind: input, shape index: {}]
  %s4 = inlined_call_operand.hbm [shape: bf16[256,1536], index: 4, kind: input, shape index: {}]
  %s5 = inlined_call_operand.hbm [shape: f32[32,96], index: 5, kind: input, shape index: {}]
  %s6 = inlined_call_operand.hbm [shape: f32[32,256], index: 6, kind: input, shape index: {}]
  %s7 = inlined_call_operand.hbm [shape: bf16[256,1536], index: 7, kind: input, shape index: {}]
  %s8 = inlined_call_operand.hbm [shape: f32[64,192], index: 8, kind: input, shape index: {}]
  %s9 = inlined_call_operand.hbm [shape: f32[64,256], index: 9, kind: input, shape index: {}]
  %s10 = inlined_call_operand.hbm [shape: bf16[256,768], index: 10, kind: input, shape index: {}]
  %s11 = inlined_call_operand.hbm [shape: f32[64,192], index: 11, kind: input, shape index: {}]
  %s12 = inlined_call_operand.hbm [shape: f32[1,256], index: 12, kind: input, shape index: {}]
  %s13 = inlined_call_operand.vmem [shape: bf16[256,64], index: 13, kind: input, shape index: {}]
  %s14 = inlined_call_operand.hbm [shape: f32[2,256,256], index: 14, kind: output, shape index: {}]
  %s15 = sld [smem:[#allocation0]]
  $region137: #{swin_upsample_forward.1} parent=0
    _
  %s17 = ssub.s32 1, %s15
  %s18 = scalar_select 0, %s17, %s15
  $region1: #{swin_upsample_forward.1} parent=0
    #allocation2 [shape = 'u8[2359296]{0}', space=vmem, size = 0x240000, scoped, tag = 'input window, operand 1, single buffered']
    #allocation3 [shape = 's32[2]{0}', space=sflag, size = 0x8, scoped, tag = 'scoped memory for swin_upsample_forward.1']
    #allocation4 [shape = 's32[2]{0}', space=sflag, size = 0x8, scoped, tag = 'scoped memory for swin_upsample_forward.1']
    #allocation5 [shape = 'u8[8192]{0}', space=vmem, size = 0x2000, scoped, tag = 'input window, operand 2, single buffered']
    #allocation6 [shape = 's32[1]{0}', space=sflag, size = 0x4, scoped, tag = 'scoped memory for swin_upsample_forward.1']
    #allocation7 [shape = 'u8[16384]{0}', space=vmem, size = 0x4000, scoped, tag = 'input window, operand 3, single buffered']
    #allocation8 [shape = 'u8[786432]{0}', space=vmem, size = 0xc0000, scoped, tag = 'input window, operand 4, single buffered']
    #allocation9 [shape = 's32[1]{0}', space=sflag, size = 0x4, scoped, tag = 'scoped memory for swin_upsample_forward.1']
    #allocation10 [shape = 'u8[16384]{0}', space=vmem, size = 0x4000, scoped, tag = 'input window, operand 5, single buffered']
    #allocation11 [shape = 'u8[32768]{0}', space=vmem, size = 0x8000, scoped, tag = 'input window, operand 6, single buffered']
    #allocation12 [shape = 's32[1]{0}', space=sflag, size = 0x4, scoped, tag = 'scoped memory for swin_upsample_forward.1']
    #allocation13 [shape = 'u8[786432]{0}', space=vmem, size = 0xc0000, scoped, tag = 'input window, operand 7, single buffered']
    #allocation14 [shape = 'u8[65536]{0}', space=vmem, size = 0x10000, scoped, tag = 'input window, operand 8, single buffered']
    #allocation15 [shape = 's32[1]{0}', space=sflag, size = 0x4, scoped, tag = 'scoped memory for swin_upsample_forward.1']
    #allocation16 [shape = 'u8[65536]{0}', space=vmem, size = 0x10000, scoped, tag = 'input window, operand 9, single buffered']
    #allocation17 [shape = 'u8[393216]{0}', space=vmem, size = 0x60000, scoped, tag = 'input window, operand 10, single buffered']
    #allocation18 [shape = 's32[1]{0}', space=sflag, size = 0x4, scoped, tag = 'scoped memory for swin_upsample_forward.1']
    #allocation19 [shape = 'u8[65536]{0}', space=vmem, size = 0x10000, scoped, tag = 'input window, operand 11, single buffered']
    #allocation20 [shape = 'u8[1024]{0}', space=vmem, size = 0x400, scoped, tag = 'input window, operand 12, single buffered']
    #allocation21 [shape = 's32[1]{0}', space=sflag, size = 0x4, scoped, tag = 'scoped memory for swin_upsample_forward.1']
    #allocation22 [shape = 'u8[524288]{0}', space=vmem, size = 0x80000, scoped, tag = 'output window, operand 0']
    %19 = vsyncpa [#allocation3], 0
    %20 = vsyncpa [#allocation6], 0
    %21 = vsyncpa [#allocation9], 0
    %22 = vsyncpa [#allocation12], 0
    %23 = vsyncpa [#allocation15], 0
    %24 = vsyncpa [#allocation18], 0
    %25 = vsyncpa [#allocation21], 0
    %26 = vsyncpa [#allocation4], 0
    %s27 = scalar_lea.sflag [#allocation4], 1
    %28 = vsyncpa %s27, 0
    loop: start=0, step=1, limit=4
    $region2: #{swin_upsample_forward.1} parent=1 // loop_pre_header
      _
    $region3: #{swin_upsample_forward.1} parent=1 // loop_header
      %s30 = sphi 0, %s34
      %p31 = scmp.ge.s32.totalorder %s30, 4
      %s40 = sphi 0, %s42
      %s43 = sphi 0, %s40
      %s44 = sphi 0, %s43
      %s60 = sphi 0, %s44
      %s64 = sphi 0, %s64
      %s66 = sphi 0, %s64
      %s67 = sphi 0, %s66
      %s81 = sphi 0, %s67
      %s85 = sphi 0, %s85
      %s87 = sphi 0, %s85
      %s88 = sphi 0, %s87
      %s102 = sphi 0, %s88
      %s106 = sphi 0, %s106
      %s108 = sphi 0, %s106
      %s109 = sphi 0, %s108
      %s123 = sphi 0, %s109
      %s127 = sphi 0, %s127
      %s129 = sphi 0, %s127
      %s130 = sphi 0, %s129
      %s144 = sphi 0, %s130
      %s148 = sphi 0, %s148
      %s150 = sphi 0, %s148
      %s151 = sphi 0, %s150
      %s165 = sphi 0, %s151
      %s169 = sphi 0, %s169
      %s171 = sphi 0, %s169
      %s172 = sphi 0, %s171
      %s186 = sphi 0, %s172
      %s190 = sphi 0, %s190
      %s192 = sphi 0, %s190
      %s193 = sphi 0, %s192
      %s207 = sphi 0, %s193
      %s211 = sphi 0, %s211
      %s213 = sphi 0, %s211
      %s214 = sphi 0, %s213
      %s228 = sphi 0, %s214
      %s232 = sphi 0, %s232
      %s234 = sphi 0, %s232
      %s235 = sphi 0, %s234
      %s249 = sphi 0, %s235
      %s253 = sphi 0, %s253
      %s255 = sphi 0, %s253
      %s256 = sphi 0, %s255
      %s270 = sphi 0, %s256
      %s274 = sphi 0, %s274
      %s276 = sphi 0, %s274
      %s277 = sphi 0, %s276
      %s291 = sphi 0, %s277
      %s295 = sphi 0, %s295
      %s297 = sphi 0, %s295
      %s298 = sphi 0, %s297
      %s312 = sphi 0, %s298
      %s316 = sphi 0, %s316
      %s318 = sphi 0, %s316
      %s319 = sphi 0, %s318
      %s333 = sphi 0, %s319
      %s339 = sphi 0, %s341
      %s342 = sphi 0, %s339
      %s343 = sphi 0, %s342
      %s359 = sphi 0, %s343
    $region4: #{swin_upsample_forward.1} parent=1 // loop_header_branch
      %33 = sbr.rel (%p31) target = $region8
    $region5: #{swin_upsample_forward.1} parent=1 // loop_body
      %s35 = ssub.s32 %s30, 1
      %s36 = ssub.s32 %s30, 2
      %s37 = sadd.s32 %s30, 1
      %s38 = ssub.s32 %s30, %s37
      %p39 = scmp.eq.s32.totalorder %s38, 0
      %s41 = sadd.s32 %s40, 1
      %s42 = scalar_select %p39, %s40, %s41
      %p45 = pneg %p39
      %p46 = scmp.eq.s32.totalorder %s30, 1
      %p47 = por %p45, %p46
      %p48 = scmp.ne.s32.totalorder %s40, %s43
      %p49 = scmp.eq.s32.totalorder %s30, 0
      %p50 = por %p48, %p49
      %p51 = scmp.ne.s32.totalorder %s40, %s43
      %p52 = scmp.eq.s32.totalorder %s35, 1
      %p53 = por %p51, %p52
      %p54 = scmp.ne.s32.totalorder %s43, %s44
      %p55 = scmp.eq.s32.totalorder %s35, 0
      %p56 = por %p54, %p55
      %p57 = scmp.ne.s32.totalorder %s43, %s44
      %p58 = scmp.eq.s32.totalorder %s36, 1
      %p59 = por %p57, %p58
      %p61 = scmp.ne.s32.totalorder %s44, %s60
      %p62 = scmp.eq.s32.totalorder %s36, 0
      %p63 = por %p61, %p62
      %s65 = sadd.s32 %s64, 1
      %p68 = scmp.eq.s32.totalorder %s30, 1
      %p69 = scmp.ne.s32.totalorder %s64, %s66
      %p70 = scmp.eq.s32.totalorder %s30, 0
      %p71 = por %p69, %p70
      %p72 = scmp.ne.s32.totalorder %s64, %s66
      %p73 = scmp.eq.s32.totalorder %s35, 1
      %p74 = por %p72, %p73
      %p75 = scmp.ne.s32.totalorder %s66, %s67
      %p76 = scmp.eq.s32.totalorder %s35, 0
      %p77 = por %p75, %p76
      %p78 = scmp.ne.s32.totalorder %s66, %s67
      %p79 = scmp.eq.s32.totalorder %s36, 1
      %p80 = por %p78, %p79
      %p82 = scmp.ne.s32.totalorder %s67, %s81
      %p83 = scmp.eq.s32.totalorder %s36, 0
      %p84 = por %p82, %p83
      %s86 = sadd.s32 %s85, 1
      %p89 = scmp.eq.s32.totalorder %s30, 1
      %p90 = scmp.ne.s32.totalorder %s85, %s87
      %p91 = scmp.eq.s32.totalorder %s30, 0
      %p92 = por %p90, %p91
      %p93 = scmp.ne.s32.totalorder %s85, %s87
      %p94 = scmp.eq.s32.totalorder %s35, 1
      %p95 = por %p93, %p94
      %p96 = scmp.ne.s32.totalorder %s87, %s88
      %p97 = scmp.eq.s32.totalorder %s35, 0
      %p98 = por %p96, %p97
      %p99 = scmp.ne.s32.totalorder %s87, %s88
      %p100 = scmp.eq.s32.totalorder %s36, 1
      %p101 = por %p99, %p100
      %p103 = scmp.ne.s32.totalorder %s88, %s102
      %p104 = scmp.eq.s32.totalorder %s36, 0
      %p105 = por %p103, %p104
      %s107 = sadd.s32 %s106, 1
      %p110 = scmp.eq.s32.totalorder %s30, 1
      %p111 = scmp.ne.s32.totalorder %s106, %s108
      %p112 = scmp.eq.s32.totalorder %s30, 0
      %p113 = por %p111, %p112
      %p114 = scmp.ne.s32.totalorder %s106, %s108
      %p115 = scmp.eq.s32.totalorder %s35, 1
      %p116 = por %p114, %p115
      %p117 = scmp.ne.s32.totalorder %s108, %s109
      %p118 = scmp.eq.s32.totalorder %s35, 0
      %p119 = por %p117, %p118
      %p120 = scmp.ne.s32.totalorder %s108, %s109
      %p121 = scmp.eq.s32.totalorder %s36, 1
      %p122 = por %p120, %p121
      %p124 = scmp.ne.s32.totalorder %s109, %s123
      %p125 = scmp.eq.s32.totalorder %s36, 0
      %p126 = por %p124, %p125
      %s128 = sadd.s32 %s127, 1
      %p131 = scmp.eq.s32.totalorder %s30, 1
      %p132 = scmp.ne.s32.totalorder %s127, %s129
      %p133 = scmp.eq.s32.totalorder %s30, 0
      %p134 = por %p132, %p133
      %p135 = scmp.ne.s32.totalorder %s127, %s129
      %p136 = scmp.eq.s32.totalorder %s35, 1
      %p137 = por %p135, %p136
      %p138 = scmp.ne.s32.totalorder %s129, %s130
      %p139 = scmp.eq.s32.totalorder %s35, 0
      %p140 = por %p138, %p139
      %p141 = scmp.ne.s32.totalorder %s129, %s130
      %p142 = scmp.eq.s32.totalorder %s36, 1
      %p143 = por %p141, %p142
      %p145 = scmp.ne.s32.totalorder %s130, %s144
      %p146 = scmp.eq.s32.totalorder %s36, 0
      %p147 = por %p145, %p146
      %s149 = sadd.s32 %s148, 1
      %p152 = scmp.eq.s32.totalorder %s30, 1
      %p153 = scmp.ne.s32.totalorder %s148, %s150
      %p154 = scmp.eq.s32.totalorder %s30, 0
      %p155 = por %p153, %p154
      %p156 = scmp.ne.s32.totalorder %s148, %s150
      %p157 = scmp.eq.s32.totalorder %s35, 1
      %p158 = por %p156, %p157
      %p159 = scmp.ne.s32.totalorder %s150, %s151
      %p160 = scmp.eq.s32.totalorder %s35, 0
      %p161 = por %p159, %p160
      %p162 = scmp.ne.s32.totalorder %s150, %s151
      %p163 = scmp.eq.s32.totalorder %s36, 1
      %p164 = por %p162, %p163
      %p166 = scmp.ne.s32.totalorder %s151, %s165
      %p167 = scmp.eq.s32.totalorder %s36, 0
      %p168 = por %p166, %p167
      %s170 = sadd.s32 %s169, 1
      %p173 = scmp.eq.s32.totalorder %s30, 1
      %p174 = scmp.ne.s32.totalorder %s169, %s171
      %p175 = scmp.eq.s32.totalorder %s30, 0
      %p176 = por %p174, %p175
      %p177 = scmp.ne.s32.totalorder %s169, %s171
      %p178 = scmp.eq.s32.totalorder %s35, 1
      %p179 = por %p177, %p178
      %p180 = scmp.ne.s32.totalorder %s171, %s172
      %p181 = scmp.eq.s32.totalorder %s35, 0
      %p182 = por %p180, %p181
      %p183 = scmp.ne.s32.totalorder %s171, %s172
      %p184 = scmp.eq.s32.totalorder %s36, 1
      %p185 = por %p183, %p184
      %p187 = scmp.ne.s32.totalorder %s172, %s186
      %p188 = scmp.eq.s32.totalorder %s36, 0
      %p189 = por %p187, %p188
      %s191 = sadd.s32 %s190, 1
      %p194 = scmp.eq.s32.totalorder %s30, 1
      %p195 = scmp.ne.s32.totalorder %s190, %s192
      %p196 = scmp.eq.s32.totalorder %s30, 0
      %p197 = por %p195, %p196
      %p198 = scmp.ne.s32.totalorder %s190, %s192
      %p199 = scmp.eq.s32.totalorder %s35, 1
      %p200 = por %p198, %p199
      %p201 = scmp.ne.s32.totalorder %s192, %s193
      %p202 = scmp.eq.s32.totalorder %s35, 0
      %p203 = por %p201, %p202
      %p204 = scmp.ne.s32.totalorder %s192, %s193
      %p205 = scmp.eq.s32.totalorder %s36, 1
      %p206 = por %p204, %p205
      %p208 = scmp.ne.s32.totalorder %s193, %s207
      %p209 = scmp.eq.s32.totalorder %s36, 0
      %p210 = por %p208, %p209
      %s212 = sadd.s32 %s211, 1
      %p215 = scmp.eq.s32.totalorder %s30, 1
      %p216 = scmp.ne.s32.totalorder %s211, %s213
      %p217 = scmp.eq.s32.totalorder %s30, 0
      %p218 = por %p216, %p217
      %p219 = scmp.ne.s32.totalorder %s211, %s213
      %p220 = scmp.eq.s32.totalorder %s35, 1
      %p221 = por %p219, %p220
      %p222 = scmp.ne.s32.totalorder %s213, %s214
      %p223 = scmp.eq.s32.totalorder %s35, 0
      %p224 = por %p222, %p223
      %p225 = scmp.ne.s32.totalorder %s213, %s214
      %p226 = scmp.eq.s32.totalorder %s36, 1
      %p227 = por %p225, %p226
      %p229 = scmp.ne.s32.totalorder %s214, %s228
      %p230 = scmp.eq.s32.totalorder %s36, 0
      %p231 = por %p229, %p230
      %s233 = sadd.s32 %s232, 1
      %p236 = scmp.eq.s32.totalorder %s30, 1
      %p237 = scmp.ne.s32.totalorder %s232, %s234
      %p238 = scmp.eq.s32.totalorder %s30, 0
      %p239 = por %p237, %p238
      %p240 = scmp.ne.s32.totalorder %s232, %s234
      %p241 = scmp.eq.s32.totalorder %s35, 1
      %p242 = por %p240, %p241
      %p243 = scmp.ne.s32.totalorder %s234, %s235
      %p244 = scmp.eq.s32.totalorder %s35, 0
      %p245 = por %p243, %p244
      %p246 = scmp.ne.s32.totalorder %s234, %s235
      %p247 = scmp.eq.s32.totalorder %s36, 1
      %p248 = por %p246, %p247
      %p250 = scmp.ne.s32.totalorder %s235, %s249
      %p251 = scmp.eq.s32.totalorder %s36, 0
      %p252 = por %p250, %p251
      %s254 = sadd.s32 %s253, 1
      %p257 = scmp.eq.s32.totalorder %s30, 1
      %p258 = scmp.ne.s32.totalorder %s253, %s255
      %p259 = scmp.eq.s32.totalorder %s30, 0
      %p260 = por %p258, %p259
      %p261 = scmp.ne.s32.totalorder %s253, %s255
      %p262 = scmp.eq.s32.totalorder %s35, 1
      %p263 = por %p261, %p262
      %p264 = scmp.ne.s32.totalorder %s255, %s256
      %p265 = scmp.eq.s32.totalorder %s35, 0
      %p266 = por %p264, %p265
      %p267 = scmp.ne.s32.totalorder %s255, %s256
      %p268 = scmp.eq.s32.totalorder %s36, 1
      %p269 = por %p267, %p268
      %p271 = scmp.ne.s32.totalorder %s256, %s270
      %p272 = scmp.eq.s32.totalorder %s36, 0
      %p273 = por %p271, %p272
      %s275 = sadd.s32 %s274, 1
      %p278 = scmp.eq.s32.totalorder %s30, 1
      %p279 = scmp.ne.s32.totalorder %s274, %s276
      %p280 = scmp.eq.s32.totalorder %s30, 0
      %p281 = por %p279, %p280
      %p282 = scmp.ne.s32.totalorder %s274, %s276
      %p283 = scmp.eq.s32.totalorder %s35, 1
      %p284 = por %p282, %p283
      %p285 = scmp.ne.s32.totalorder %s276, %s277
      %p286 = scmp.eq.s32.totalorder %s35, 0
      %p287 = por %p285, %p286
      %p288 = scmp.ne.s32.totalorder %s276, %s277
      %p289 = scmp.eq.s32.totalorder %s36, 1
      %p290 = por %p288, %p289
      %p292 = scmp.ne.s32.totalorder %s277, %s291
      %p293 = scmp.eq.s32.totalorder %s36, 0
      %p294 = por %p292, %p293
      %s296 = sadd.s32 %s295, 1
      %p299 = scmp.eq.s32.totalorder %s30, 1
      %p300 = scmp.ne.s32.totalorder %s295, %s297
      %p301 = scmp.eq.s32.totalorder %s30, 0
      %p302 = por %p300, %p301
      %p303 = scmp.ne.s32.totalorder %s295, %s297
      %p304 = scmp.eq.s32.totalorder %s35, 1
      %p305 = por %p303, %p304
      %p306 = scmp.ne.s32.totalorder %s297, %s298
      %p307 = scmp.eq.s32.totalorder %s35, 0
      %p308 = por %p306, %p307
      %p309 = scmp.ne.s32.totalorder %s297, %s298
      %p310 = scmp.eq.s32.totalorder %s36, 1
      %p311 = por %p309, %p310
      %p313 = scmp.ne.s32.totalorder %s298, %s312
      %p314 = scmp.eq.s32.totalorder %s36, 0
      %p315 = por %p313, %p314
      %s317 = sadd.s32 %s316, 1
      %p320 = scmp.eq.s32.totalorder %s30, 1
      %p321 = scmp.ne.s32.totalorder %s316, %s318
      %p322 = scmp.eq.s32.totalorder %s30, 0
      %p323 = por %p321, %p322
      %p324 = scmp.ne.s32.totalorder %s316, %s318
      %p325 = scmp.eq.s32.totalorder %s35, 1
      %p326 = por %p324, %p325
      %p327 = scmp.ne.s32.totalorder %s318, %s319
      %p328 = scmp.eq.s32.totalorder %s35, 0
      %p329 = por %p327, %p328
      %p330 = scmp.ne.s32.totalorder %s318, %s319
      %p331 = scmp.eq.s32.totalorder %s36, 1
      %p332 = por %p330, %p331
      %p334 = scmp.ne.s32.totalorder %s319, %s333
      %p335 = scmp.eq.s32.totalorder %s36, 0
      %p336 = por %p334, %p335
      %s337 = ssub.s32 %s30, %s37
      %p338 = scmp.eq.s32.totalorder %s337, 0
      %s340 = sadd.s32 %s339, 1
      %s341 = scalar_select %p338, %s339, %s340
      %p344 = pneg %p338
      %p345 = scmp.eq.s32.totalorder %s30, 1
      %p346 = por %p344, %p345
      %p347 = scmp.ne.s32.totalorder %s339, %s342
      %p348 = scmp.eq.s32.totalorder %s30, 0
      %p349 = por %p347, %p348
      %p350 = scmp.ne.s32.totalorder %s339, %s342
      %p351 = scmp.eq.s32.totalorder %s35, 1
      %p352 = por %p350, %p351
      %p353 = scmp.ne.s32.totalorder %s342, %s343
      %p354 = scmp.eq.s32.totalorder %s35, 0
      %p355 = por %p353, %p354
      %p356 = scmp.ne.s32.totalorder %s342, %s343
      %p357 = scmp.eq.s32.totalorder %s36, 1
      %p358 = por %p356, %p357
      %p360 = scmp.ne.s32.totalorder %s343, %s359
      %p361 = scmp.eq.s32.totalorder %s36, 0
      %p362 = por %p360, %p361
      %p363 = scmp.le.s32.totalorder 1, %s30
      %p364 = scmp.lt.s32.totalorder %s30, 3
      %p365 = pnand %p363, %p364
      %p366 = pneg %p365
      // Predicated region
      $region9: #{swin_upsample_forward.1} parent=5 // pred_check
        _
      $region10: #{swin_upsample_forward.1} parent=5 // pred_check_branch
        %368 = sbr.rel (%p365) target = $region12
      $region11: #{swin_upsample_forward.1} parent=5 // pred_region
        %s369 = ssub.s32 %s30, 1
        // Predicated region
        $region13: #{swin_upsample_forward.1} parent=11 // pred_check
          %p370 = pneg %p77
        $region14: #{swin_upsample_forward.1} parent=11 // pred_check_branch
          %372 = sbr.rel (%p370) target = $region16
        $region15: #{swin_upsample_forward.1} parent=11 // pred_region
          %s374 = ssub.s32 73728, 73728
          %375 = vsyncadd [#allocation3], %s374
          %s376 = sshll.u32 [#allocation2], 4
          %s377 = int_to_ptr.vmem [resolvable:$true] %s376
          %382 = dma.hbm_to_vmem [thread:$0]  %s1, 73728, %s377, [#allocation3], 768, 768, 48
        $region16: #{swin_upsample_forward.1} parent=11 // pred_fallthru
          _
        // Predicated region
        $region17: #{swin_upsample_forward.1} parent=11 // pred_check
          %p383 = pneg %p98
        $region18: #{swin_upsample_forward.1} parent=11 // pred_check_branch
          %385 = sbr.rel (%p383) target = $region20
        $region19: #{swin_upsample_forward.1} parent=11 // pred_region
          %s387 = ssub.s32 256, 256
          %388 = vsyncadd [#allocation6], %s387
          %s389 = sshll.u32 [#allocation5], 4
          %s390 = int_to_ptr.vmem [resolvable:$true] %s389
          %395 = dma.hbm_to_vmem [thread:$0]  %s2, 256, %s390, [#allocation6], 128, 128, 8
        $region20: #{swin_upsample_forward.1} parent=11 // pred_fallthru
          _
        // Predicated region
        $region21: #{swin_upsample_forward.1} parent=11 // pred_check
          %p396 = pneg %p119
        $region22: #{swin_upsample_forward.1} parent=11 // pred_check_branch
          %398 = sbr.rel (%p396) target = $region24
        $region23: #{swin_upsample_forward.1} parent=11 // pred_region
          %s400 = ssub.s32 512, 512
          %401 = vsyncadd [#allocation6], %s400
          %s402 = sshll.u32 [#allocation7], 4
          %s403 = int_to_ptr.vmem [resolvable:$true] %s402
          %408 = dma.hbm_to_vmem [thread:$0]  %s3, 512, %s403, [#allocation6], 256, 256, 16
        $region24: #{swin_upsample_forward.1} parent=11 // pred_fallthru
          _
        // Predicated region
        $region25: #{swin_upsample_forward.1} parent=11 // pred_check
          %p409 = pneg %p140
        $region26: #{swin_upsample_forward.1} parent=11 // pred_check_branch
          %411 = sbr.rel (%p409) target = $region28
        $region27: #{swin_upsample_forward.1} parent=11 // pred_region
          %s413 = ssub.s32 24576, 24576
          %414 = vsyncadd [#allocation9], %s413
          %s415 = sshll.u32 [#allocation8], 4
          %s416 = int_to_ptr.vmem [resolvable:$true] %s415
          %421 = dma.hbm_to_vmem [thread:$0]  %s4, 24576, %s416, [#allocation9], 768, 768, 48
        $region28: #{swin_upsample_forward.1} parent=11 // pred_fallthru
          _
        // Predicated region
        $region29: #{swin_upsample_forward.1} parent=11 // pred_check
          %p422 = pneg %p161
        $region30: #{swin_upsample_forward.1} parent=11 // pred_check_branch
          %424 = sbr.rel (%p422) target = $region32
        $region31: #{swin_upsample_forward.1} parent=11 // pred_region
          %s426 = ssub.s32 512, 512
          %427 = vsyncadd [#allocation9], %s426
          %s428 = sshll.u32 [#allocation10], 4
          %s429 = int_to_ptr.vmem [resolvable:$true] %s428
          %434 = dma.hbm_to_vmem [thread:$0]  %s5, 512, %s429, [#allocation9], 128, 128, 8
        $region32: #{swin_upsample_forward.1} parent=11 // pred_fallthru
          _
        // Predicated region
        $region33: #{swin_upsample_forward.1} parent=11 // pred_check
          %p435 = pneg %p182
        $region34: #{swin_upsample_forward.1} parent=11 // pred_check_branch
          %437 = sbr.rel (%p435) target = $region36
        $region35: #{swin_upsample_forward.1} parent=11 // pred_region
          %s439 = ssub.s32 1024, 1024
          %440 = vsyncadd [#allocation12], %s439
          %s441 = sshll.u32 [#allocation11], 4
          %s442 = int_to_ptr.vmem [resolvable:$true] %s441
          %447 = dma.hbm_to_vmem [thread:$0]  %s6, 1024, %s442, [#allocation12], 256, 256, 16
        $region36: #{swin_upsample_forward.1} parent=11 // pred_fallthru
          _
        // Predicated region
        $region37: #{swin_upsample_forward.1} parent=11 // pred_check
          %p448 = pneg %p203
        $region38: #{swin_upsample_forward.1} parent=11 // pred_check_branch
          %450 = sbr.rel (%p448) target = $region40
        $region39: #{swin_upsample_forward.1} parent=11 // pred_region
          %s452 = ssub.s32 24576, 24576
          %453 = vsyncadd [#allocation12], %s452
          %s454 = sshll.u32 [#allocation13], 4
          %s455 = int_to_ptr.vmem [resolvable:$true] %s454
          %460 = dma.hbm_to_vmem [thread:$0]  %s7, 24576, %s455, [#allocation12], 768, 768, 48
        $region40: #{swin_upsample_forward.1} parent=11 // pred_fallthru
          _
        // Predicated region
        $region41: #{swin_upsample_forward.1} parent=11 // pred_check
          %p461 = pneg %p224
        $region42: #{swin_upsample_forward.1} parent=11 // pred_check_branch
          %463 = sbr.rel (%p461) target = $region44
        $region43: #{swin_upsample_forward.1} parent=11 // pred_region
          %s465 = ssub.s32 2048, 2048
          %466 = vsyncadd [#allocation15], %s465
          %s467 = sshll.u32 [#allocation14], 4
          %s468 = int_to_ptr.vmem [resolvable:$true] %s467
          %473 = dma.hbm_to_vmem [thread:$0]  %s8, 2048, %s468, [#allocation15], 256, 256, 16
        $region44: #{swin_upsample_forward.1} parent=11 // pred_fallthru
          _
        // Predicated region
        $region45: #{swin_upsample_forward.1} parent=11 // pred_check
          %p474 = pneg %p245
        $region46: #{swin_upsample_forward.1} parent=11 // pred_check_branch
          %476 = sbr.rel (%p474) target = $region48
        $region47: #{swin_upsample_forward.1} parent=11 // pred_region
          %s478 = ssub.s32 2048, 2048
          %479 = vsyncadd [#allocation15], %s478
          %s480 = sshll.u32 [#allocation16], 4
          %s481 = int_to_ptr.vmem [resolvable:$true] %s480
          %486 = dma.hbm_to_vmem [thread:$0]  %s9, 2048, %s481, [#allocation15], 256, 256, 16
        $region48: #{swin_upsample_forward.1} parent=11 // pred_fallthru
          _
        // Predicated region
        $region49: #{swin_upsample_forward.1} parent=11 // pred_check
          %p487 = pneg %p266
        $region50: #{swin_upsample_forward.1} parent=11 // pred_check_branch
          %489 = sbr.rel (%p487) target = $region52
        $region51: #{swin_upsample_forward.1} parent=11 // pred_region
          %s491 = ssub.s32 12288, 12288
          %492 = vsyncadd [#allocation18], %s491
          %s493 = sshll.u32 [#allocation17], 4
          %s494 = int_to_ptr.vmem [resolvable:$true] %s493
          %499 = dma.hbm_to_vmem [thread:$0]  %s10, 12288, %s494, [#allocation18], 384, 384, 24
        $region52: #{swin_upsample_forward.1} parent=11 // pred_fallthru
          _
        // Predicated region
        $region53: #{swin_upsample_forward.1} parent=11 // pred_check
          %p500 = pneg %p287
        $region54: #{swin_upsample_forward.1} parent=11 // pred_check_branch
          %502 = sbr.rel (%p500) target = $region56
        $region55: #{swin_upsample_forward.1} parent=11 // pred_region
          %s504 = ssub.s32 2048, 2048
          %505 = vsyncadd [#allocation18], %s504
          %s506 = sshll.u32 [#allocation19], 4
          %s507 = int_to_ptr.vmem [resolvable:$true] %s506
          %512 = dma.hbm_to_vmem [thread:$0]  %s11, 2048, %s507, [#allocation18], 256, 256, 16
        $region56: #{swin_upsample_forward.1} parent=11 // pred_fallthru
          _
        // Predicated region
        $region57: #{swin_upsample_forward.1} parent=11 // pred_check
          %p513 = pneg %p308
        $region58: #{swin_upsample_forward.1} parent=11 // pred_check_branch
          %515 = sbr.rel (%p513) target = $region60
        $region59: #{swin_upsample_forward.1} parent=11 // pred_region
          %s517 = ssub.s32 32, 32
          %518 = vsyncadd [#allocation21], %s517
          %s520 = sshll.u32 [#allocation20], 4
          %s521 = int_to_ptr.vmem [resolvable:$true] %s520
          %523 = dma.hbm_to_vmem [thread:$0]  %s12, 32, %s521, [#allocation21]
        $region60: #{swin_upsample_forward.1} parent=11 // pred_fallthru
          _
        // Predicated region
        $region61: #{swin_upsample_forward.1} parent=11 // pred_check
          %p524 = pneg %p329
        $region62: #{swin_upsample_forward.1} parent=11 // pred_check_branch
          %526 = sbr.rel (%p524) target = $region64
        $region63: #{swin_upsample_forward.1} parent=11 // pred_region
          _
        $region64: #{swin_upsample_forward.1} parent=11 // pred_fallthru
          _
      $region12: #{swin_upsample_forward.1} parent=5 // pred_fallthru
        _
      %p527 = scmp.lt.s32.totalorder %s30, 2
      // Predicated region
      $region65: #{swin_upsample_forward.1} parent=5 // pred_check
        %p528 = pneg %p527
      $region66: #{swin_upsample_forward.1} parent=5 // pred_check_branch
        %530 = sbr.rel (%p528) target = $region68
      $region67: #{swin_upsample_forward.1} parent=5 // pred_region
        // Predicated region
        $region69: #{swin_upsample_forward.1} parent=67 // pred_check
          %p531 = pneg %p50
        $region70: #{swin_upsample_forward.1} parent=67 // pred_check_branch
          %533 = sbr.rel (%p531) target = $region72
        $region71: #{swin_upsample_forward.1} parent=67 // pred_region
          %p534 = scmp.lt.s32.totalorder %s30, 1
          %s535 = scalar_select %p534, %s30, 1
          %s536 = smul.addr %s535, 6
          %s537 = smul.addr %s536, 8
          %s538 = scalar_lea.vmem %s0, %s537
        $region72: #{swin_upsample_forward.1} parent=67 // pred_fallthru
          _
      $region68: #{swin_upsample_forward.1} parent=5 // pred_fallthru
        _
      %p539 = scmp.le.s32.totalorder 1, %s30
      %p540 = scmp.lt.s32.totalorder %s30, 3
      %p541 = pnand %p539, %p540
      %p542 = pneg %p541
      // Predicated region
      $region73: #{swin_upsample_forward.1} parent=5 // pred_check
        _
      $region74: #{swin_upsample_forward.1} parent=5 // pred_check_branch
        %544 = sbr.rel (%p541) target = $region76
      $region75: #{swin_upsample_forward.1} parent=5 // pred_region
        %s545 = ssub.s32 %s30, 1
        // Predicated region
        $region77: #{swin_upsample_forward.1} parent=75 // pred_check
          %p546 = pneg %p77
        $region78: #{swin_upsample_forward.1} parent=75 // pred_check_branch
          %548 = sbr.rel (%p546) target = $region80
        $region79: #{swin_upsample_forward.1} parent=75 // pred_region
          %549 = dma.done [#allocation3], 73728
        $region80: #{swin_upsample_forward.1} parent=75 // pred_fallthru
          _
        // Predicated region
        $region81: #{swin_upsample_forward.1} parent=75 // pred_check
          %p550 = pneg %p98
        $region82: #{swin_upsample_forward.1} parent=75 // pred_check_branch
          %552 = sbr.rel (%p550) target = $region84
        $region83: #{swin_upsample_forward.1} parent=75 // pred_region
          %553 = dma.done [#allocation6], 256
        $region84: #{swin_upsample_forward.1} parent=75 // pred_fallthru
          _
        // Predicated region
        $region85: #{swin_upsample_forward.1} parent=75 // pred_check
          %p554 = pneg %p119
        $region86: #{swin_upsample_forward.1} parent=75 // pred_check_branch
          %556 = sbr.rel (%p554) target = $region88
        $region87: #{swin_upsample_forward.1} parent=75 // pred_region
          %557 = dma.done [#allocation6], 512
        $region88: #{swin_upsample_forward.1} parent=75 // pred_fallthru
          _
        // Predicated region
        $region89: #{swin_upsample_forward.1} parent=75 // pred_check
          %p558 = pneg %p140
        $region90: #{swin_upsample_forward.1} parent=75 // pred_check_branch
          %560 = sbr.rel (%p558) target = $region92
        $region91: #{swin_upsample_forward.1} parent=75 // pred_region
          %561 = dma.done [#allocation9], 24576
        $region92: #{swin_upsample_forward.1} parent=75 // pred_fallthru
          _
        // Predicated region
        $region93: #{swin_upsample_forward.1} parent=75 // pred_check
          %p562 = pneg %p161
        $region94: #{swin_upsample_forward.1} parent=75 // pred_check_branch
          %564 = sbr.rel (%p562) target = $region96
        $region95: #{swin_upsample_forward.1} parent=75 // pred_region
          %565 = dma.done [#allocation9], 512
        $region96: #{swin_upsample_forward.1} parent=75 // pred_fallthru
          _
        // Predicated region
        $region97: #{swin_upsample_forward.1} parent=75 // pred_check
          %p566 = pneg %p182
        $region98: #{swin_upsample_forward.1} parent=75 // pred_check_branch
          %568 = sbr.rel (%p566) target = $region100
        $region99: #{swin_upsample_forward.1} parent=75 // pred_region
          %569 = dma.done [#allocation12], 1024
        $region100: #{swin_upsample_forward.1} parent=75 // pred_fallthru
          _
        // Predicated region
        $region101: #{swin_upsample_forward.1} parent=75 // pred_check
          %p570 = pneg %p203
        $region102: #{swin_upsample_forward.1} parent=75 // pred_check_branch
          %572 = sbr.rel (%p570) target = $region104
        $region103: #{swin_upsample_forward.1} parent=75 // pred_region
          %573 = dma.done [#allocation12], 24576
        $region104: #{swin_upsample_forward.1} parent=75 // pred_fallthru
          _
        // Predicated region
        $region105: #{swin_upsample_forward.1} parent=75 // pred_check
          %p574 = pneg %p224
        $region106: #{swin_upsample_forward.1} parent=75 // pred_check_branch
          %576 = sbr.rel (%p574) target = $region108
        $region107: #{swin_upsample_forward.1} parent=75 // pred_region
          %577 = dma.done [#allocation15], 2048
        $region108: #{swin_upsample_forward.1} parent=75 // pred_fallthru
          _
        // Predicated region
        $region109: #{swin_upsample_forward.1} parent=75 // pred_check
          %p578 = pneg %p245
        $region110: #{swin_upsample_forward.1} parent=75 // pred_check_branch
          %580 = sbr.rel (%p578) target = $region112
        $region111: #{swin_upsample_forward.1} parent=75 // pred_region
          %581 = dma.done [#allocation15], 2048
        $region112: #{swin_upsample_forward.1} parent=75 // pred_fallthru
          _
        // Predicated region
        $region113: #{swin_upsample_forward.1} parent=75 // pred_check
          %p582 = pneg %p266
        $region114: #{swin_upsample_forward.1} parent=75 // pred_check_branch
          %584 = sbr.rel (%p582) target = $region116
        $region115: #{swin_upsample_forward.1} parent=75 // pred_region
          %585 = dma.done [#allocation18], 12288
        $region116: #{swin_upsample_forward.1} parent=75 // pred_fallthru
          _
        // Predicated region
        $region117: #{swin_upsample_forward.1} parent=75 // pred_check
          %p586 = pneg %p287
        $region118: #{swin_upsample_forward.1} parent=75 // pred_check_branch
          %588 = sbr.rel (%p586) target = $region120
        $region119: #{swin_upsample_forward.1} parent=75 // pred_region
          %589 = dma.done [#allocation18], 2048
        $region120: #{swin_upsample_forward.1} parent=75 // pred_fallthru
          _
        // Predicated region
        $region121: #{swin_upsample_forward.1} parent=75 // pred_check
          %p590 = pneg %p308
        $region122: #{swin_upsample_forward.1} parent=75 // pred_check_branch
          %592 = sbr.rel (%p590) target = $region124
        $region123: #{swin_upsample_forward.1} parent=75 // pred_region
          %593 = dma.done [#allocation21], 32
        $region124: #{swin_upsample_forward.1} parent=75 // pred_fallthru
          _
        %p594 = scmp.lt.s32.totalorder %s35, 1
        %s595 = scalar_select %p594, %s35, 1
        %s596 = smul.addr %s595, 6
        %s597 = smul.addr %s596, 8
        %s598 = scalar_lea.vmem %s0, %s597
        %p599 = pneg %p56
        %p600 = pneg %p53
        %p601 = pneg %p77
        %p602 = pneg %p74
        %p603 = pneg %p98
        %p604 = pneg %p95
        %p605 = pneg %p119
        %p606 = pneg %p116
        %p607 = pneg %p140
        %p608 = pneg %p137
        %p609 = pneg %p161
        %p610 = pneg %p158
        %p611 = pneg %p182
        %p612 = pneg %p179
        %p613 = pneg %p203
        %p614 = pneg %p200
        %p615 = pneg %p224
        %p616 = pneg %p221
        %p617 = pneg %p245
        %p618 = pneg %p242
        %p619 = pneg %p266
        %p620 = pneg %p263
        %p621 = pneg %p287
        %p622 = pneg %p284
        %p623 = pneg %p308
        %p624 = pneg %p305
        %p625 = pneg %p329
        %p626 = pneg %p326
        %p627 = pneg %p355
        %p628 = pneg %p352
        %s629 = sand.u32 %s342, 1
        %s630 = scalar_lea.sflag [#allocation4], %s629
        %s631 = sand.u32 %s342, 1
        %s632 = smul.addr %s631, 512
        %s633 = scalar_lea.vmem [#allocation22], %s632
        %p634 = scmp.lt.s32.totalorder %s35, 1
        %s635 = scalar_select %p634, %s35, 1
        %s636 = smul.addr %s635, 6
        %s637 = smul.addr %s636, 8
        %s638 = scalar_lea.vmem %s0, %s637
        %v640 = vld [vmem:[%s638] sm:$0xff]
        %v641 = vld [vmem:[%s638 + $0x8] sm:$0xff]
        %v642 = vld [vmem:[%s638 + $0x10] sm:$0xff]
        %v643 = vld [vmem:[%s638 + $0x18] sm:$0xff]
        %v644 = vld [vmem:[%s638 + $0x20] sm:$0xff]
        %v645 = vld [vmem:[%s638 + $0x28] sm:$0xff]
        %v646 = vpack.c.bf16 %v640, %v640
        %v647 = vpack.c.bf16 %v641, %v641
        %v648 = vpack.c.bf16 %v642, %v642
        %v649 = vpack.c.bf16 %v643, %v643
        %v650 = vpack.c.bf16 %v644, %v644
        %v651 = vpack.c.bf16 %v645, %v645
        %v652 = vld [vmem:[#allocation2] sm:$0xff]
        %v653 = vld [vmem:[#allocation2 + $0x8] sm:$0xff]
        %v654 = vld [vmem:[#allocation2 + $0x10] sm:$0xff]
        %v655 = vld [vmem:[#allocation2 + $0x18] sm:$0xff]
        %v656 = vld [vmem:[#allocation2 + $0x20] sm:$0xff]
        %v657 = vld [vmem:[#allocation2 + $0x28] sm:$0xff]
        %v658 = vld [vmem:[#allocation2 + $0x30] sm:$0xff]
        %v659 = vld [vmem:[#allocation2 + $0x38] sm:$0xff]
        %v660 = vld [vmem:[#allocation2 + $0x40] sm:$0xff]
        %v661 = vld [vmem:[#allocation2 + $0x48] sm:$0xff]
        %v662 = vld [vmem:[#allocation2 + $0x50] sm:$0xff]
        %v663 = vld [vmem:[#allocation2 + $0x58] sm:$0xff]
        %v664 = vld [vmem:[#allocation2 + $0x60] sm:$0xff]
        %v665 = vld [vmem:[#allocation2 + $0x68] sm:$0xff]
        %v666 = vld [vmem:[#allocation2 + $0x70] sm:$0xff]
        %v667 = vld [vmem:[#allocation2 + $0x78] sm:$0xff]
        %v668 = vld [vmem:[#allocation2 + $0x80] sm:$0xff]
        %v669 = vld [vmem:[#allocation2 + $0x88] sm:$0xff]
        %v670 = vld [vmem:[#allocation2 + $0x90] sm:$0xff]
        %v671 = vld [vmem:[#allocation2 + $0x98] sm:$0xff]
        %v672 = vld [vmem:[#allocation2 + $0xa0] sm:$0xff]
        %v673 = vld [vmem:[#allocation2 + $0xa8] sm:$0xff]
        %v674 = vld [vmem:[#allocation2 + $0xb0] sm:$0xff]
        %v675 = vld [vmem:[#allocation2 + $0xb8] sm:$0xff]
        %v676 = vld [vmem:[#allocation2 + $0xc0] sm:$0xff]
        %v677 = vld [vmem:[#allocation2 + $0xc8] sm:$0xff]
        %v678 = vld [vmem:[#allocation2 + $0xd0] sm:$0xff]
        %v679 = vld [vmem:[#allocation2 + $0xd8] sm:$0xff]
        %v680 = vld [vmem:[#allocation2 + $0xe0] sm:$0xff]
        %v681 = vld [vmem:[#allocation2 + $0xe8] sm:$0xff]
        %v682 = vld [vmem:[#allocation2 + $0xf0] sm:$0xff]
        %v683 = vld [vmem:[#allocation2 + $0xf8] sm:$0xff]
        %v684 = vld [vmem:[#allocation2 + $0x100] sm:$0xff]
        %v685 = vld [vmem:[#allocation2 + $0x108] sm:$0xff]
        %v686 = vld [vmem:[#allocation2 + $0x110] sm:$0xff]
        %v687 = vld [vmem:[#allocation2 + $0x118] sm:$0xff]
        %v688 = vld [vmem:[#allocation2 + $0x120] sm:$0xff]
        %v689 = vld [vmem:[#allocation2 + $0x128] sm:$0xff]
        %v690 = vld [vmem:[#allocation2 + $0x130] sm:$0xff]
        %v691 = vld [vmem:[#allocation2 + $0x138] sm:$0xff]
        %v692 = vld [vmem:[#allocation2 + $0x140] sm:$0xff]
        %v693 = vld [vmem:[#allocation2 + $0x148] sm:$0xff]
        %v694 = vld [vmem:[#allocation2 + $0x150] sm:$0xff]
        %v695 = vld [vmem:[#allocation2 + $0x158] sm:$0xff]
        %v696 = vld [vmem:[#allocation2 + $0x160] sm:$0xff]
        %v697 = vld [vmem:[#allocation2 + $0x168] sm:$0xff]
        %v698 = vld [vmem:[#allocation2 + $0x170] sm:$0xff]
        %v699 = vld [vmem:[#allocation2 + $0x178] sm:$0xff]
        %v700 = vld [vmem:[#allocation2 + $0x180] sm:$0xff]
        %v701 = vld [vmem:[#allocation2 + $0x188] sm:$0xff]
        %v702 = vld [vmem:[#allocation2 + $0x190] sm:$0xff]
        %v703 = vld [vmem:[#allocation2 + $0x198] sm:$0xff]
        %v704 = vld [vmem:[#allocation2 + $0x1a0] sm:$0xff]
        %v705 = vld [vmem:[#allocation2 + $0x1a8] sm:$0xff]
        %v706 = vld [vmem:[#allocation2 + $0x1b0] sm:$0xff]
        %v707 = vld [vmem:[#allocation2 + $0x1b8] sm:$0xff]
        %v708 = vld [vmem:[#allocation2 + $0x1c0] sm:$0xff]
        %v709 = vld [vmem:[#allocation2 + $0x1c8] sm:$0xff]
        %v710 = vld [vmem:[#allocation2 + $0x1d0] sm:$0xff]
        %v711 = vld [vmem:[#allocation2 + $0x1d8] sm:$0xff]
        %v712 = vld [vmem:[#allocation2 + $0x1e0] sm:$0xff]
        %v713 = vld [vmem:[#allocation2 + $0x1e8] sm:$0xff]
        %v714 = vld [vmem:[#allocation2 + $0x1f0] sm:$0xff]
        %v715 = vld [vmem:[#allocation2 + $0x1f8] sm:$0xff]
        %v716 = vld [vmem:[#allocation2 + $0x200] sm:$0xff]
        %v717 = vld [vmem:[#allocation2 + $0x208] sm:$0xff]
        %v718 = vld [vmem:[#allocation2 + $0x210] sm:$0xff]
        %v719 = vld [vmem:[#allocation2 + $0x218] sm:$0xff]
        %v720 = vld [vmem:[#allocation2 + $0x220] sm:$0xff]
        %v721 = vld [vmem:[#allocation2 + $0x228] sm:$0xff]
        %v722 = vld [vmem:[#allocation2 + $0x230] sm:$0xff]
        %v723 = vld [vmem:[#allocation2 + $0x238] sm:$0xff]
        %v724 = vld [vmem:[#allocation2 + $0x240] sm:$0xff]
        %v725 = vld [vmem:[#allocation2 + $0x248] sm:$0xff]
        %v726 = vld [vmem:[#allocation2 + $0x250] sm:$0xff]
        %v727 = vld [vmem:[#allocation2 + $0x258] sm:$0xff]
        %v728 = vld [vmem:[#allocation2 + $0x260] sm:$0xff]
        %v729 = vld [vmem:[#allocation2 + $0x268] sm:$0xff]
        %v730 = vld [vmem:[#allocation2 + $0x270] sm:$0xff]
        %v731 = vld [vmem:[#allocation2 + $0x278] sm:$0xff]
        %v732 = vld [vmem:[#allocation2 + $0x280] sm:$0xff]
        %v733 = vld [vmem:[#allocation2 + $0x288] sm:$0xff]
        %v734 = vld [vmem:[#allocation2 + $0x290] sm:$0xff]
        %v735 = vld [vmem:[#allocation2 + $0x298] sm:$0xff]
        %v736 = vld [vmem:[#allocation2 + $0x2a0] sm:$0xff]
        %v737 = vld [vmem:[#allocation2 + $0x2a8] sm:$0xff]
        %v738 = vld [vmem:[#allocation2 + $0x2b0] sm:$0xff]
        %v739 = vld [vmem:[#allocation2 + $0x2b8] sm:$0xff]
        %v740 = vld [vmem:[#allocation2 + $0x2c0] sm:$0xff]
        %v741 = vld [vmem:[#allocation2 + $0x2c8] sm:$0xff]
        %v742 = vld [vmem:[#allocation2 + $0x2d0] sm:$0xff]
        %v743 = vld [vmem:[#allocation2 + $0x2d8] sm:$0xff]
        %v744 = vld [vmem:[#allocation2 + $0x2e0] sm:$0xff]
        %v745 = vld [vmem:[#allocation2 + $0x2e8] sm:$0xff]
        %v746 = vld [vmem:[#allocation2 + $0x2f0] sm:$0xff]
        %v747 = vld [vmem:[#allocation2 + $0x2f8] sm:$0xff]
        %v748 = vld [vmem:[#allocation2 + $0x300] sm:$0xff]
        %v749 = vld [vmem:[#allocation2 + $0x308] sm:$0xff]
        %v750 = vld [vmem:[#allocation2 + $0x310] sm:$0xff]
        %v751 = vld [vmem:[#allocation2 + $0x318] sm:$0xff]
        %v752 = vld [vmem:[#allocation2 + $0x320] sm:$0xff]
        %v753 = vld [vmem:[#allocation2 + $0x328] sm:$0xff]
        %v754 = vld [vmem:[#allocation2 + $0x330] sm:$0xff]
        %v755 = vld [vmem:[#allocation2 + $0x338] sm:$0xff]
        %v756 = vld [vmem:[#allocation2 + $0x340] sm:$0xff]
        %v757 = vld [vmem:[#allocation2 + $0x348] sm:$0xff]
        %v758 = vld [vmem:[#allocation2 + $0x350] sm:$0xff]
        %v759 = vld [vmem:[#allocation2 + $0x358] sm:$0xff]
        %v760 = vld [vmem:[#allocation2 + $0x360] sm:$0xff]
        %v761 = vld [vmem:[#allocation2 + $0x368] sm:$0xff]
        %v762 = vld [vmem:[#allocation2 + $0x370] sm:$0xff]
        %v763 = vld [vmem:[#allocation2 + $0x378] sm:$0xff]
        %v764 = vld [vmem:[#allocation2 + $0x380] sm:$0xff]
        %v765 = vld [vmem:[#allocation2 + $0x388] sm:$0xff]
        %v766 = vld [vmem:[#allocation2 + $0x390] sm:$0xff]
        %v767 = vld [vmem:[#allocation2 + $0x398] sm:$0xff]
        %v768 = vld [vmem:[#allocation2 + $0x3a0] sm:$0xff]
        %v769 = vld [vmem:[#allocation2 + $0x3a8] sm:$0xff]
        %v770 = vld [vmem:[#allocation2 + $0x3b0] sm:$0xff]
        %v771 = vld [vmem:[#allocation2 + $0x3b8] sm:$0xff]
        %v772 = vld [vmem:[#allocation2 + $0x3c0] sm:$0xff]
        %v773 = vld [vmem:[#allocation2 + $0x3c8] sm:$0xff]
        %v774 = vld [vmem:[#allocation2 + $0x3d0] sm:$0xff]
        %v775 = vld [vmem:[#allocation2 + $0x3d8] sm:$0xff]
        %v776 = vld [vmem:[#allocation2 + $0x3e0] sm:$0xff]
        %v777 = vld [vmem:[#allocation2 + $0x3e8] sm:$0xff]
        %v778 = vld [vmem:[#allocation2 + $0x3f0] sm:$0xff]
        %v779 = vld [vmem:[#allocation2 + $0x3f8] sm:$0xff]
        %v780 = vld [vmem:[#allocation2 + $0x400] sm:$0xff]
        %v781 = vld [vmem:[#allocation2 + $0x408] sm:$0xff]
        %v782 = vld [vmem:[#allocation2 + $0x410] sm:$0xff]
        %v783 = vld [vmem:[#allocation2 + $0x418] sm:$0xff]
        %v784 = vld [vmem:[#allocation2 + $0x420] sm:$0xff]
        %v785 = vld [vmem:[#allocation2 + $0x428] sm:$0xff]
        %v786 = vld [vmem:[#allocation2 + $0x430] sm:$0xff]
        %v787 = vld [vmem:[#allocation2 + $0x438] sm:$0xff]
        %v788 = vld [vmem:[#allocation2 + $0x440] sm:$0xff]
        %v789 = vld [vmem:[#allocation2 + $0x448] sm:$0xff]
        %v790 = vld [vmem:[#allocation2 + $0x450] sm:$0xff]
        %v791 = vld [vmem:[#allocation2 + $0x458] sm:$0xff]
        %v792 = vld [vmem:[#allocation2 + $0x460] sm:$0xff]
        %v793 = vld [vmem:[#allocation2 + $0x468] sm:$0xff]
        %v794 = vld [vmem:[#allocation2 + $0x470] sm:$0xff]
        %v795 = vld [vmem:[#allocation2 + $0x478] sm:$0xff]
        %v796 = vld [vmem:[#allocation2 + $0x480] sm:$0xff]
        %v797 = vld [vmem:[#allocation2 + $0x488] sm:$0xff]
        %v798 = vld [vmem:[#allocation2 + $0x490] sm:$0xff]
        %v799 = vld [vmem:[#allocation2 + $0x498] sm:$0xff]
        %v800 = vld [vmem:[#allocation2 + $0x4a0] sm:$0xff]
        %v801 = vld [vmem:[#allocation2 + $0x4a8] sm:$0xff]
        %v802 = vld [vmem:[#allocation2 + $0x4b0] sm:$0xff]
        %v803 = vld [vmem:[#allocation2 + $0x4b8] sm:$0xff]
        %v804 = vld [vmem:[#allocation2 + $0x4c0] sm:$0xff]
        %v805 = vld [vmem:[#allocation2 + $0x4c8] sm:$0xff]
        %v806 = vld [vmem:[#allocation2 + $0x4d0] sm:$0xff]
        %v807 = vld [vmem:[#allocation2 + $0x4d8] sm:$0xff]
        %v808 = vld [vmem:[#allocation2 + $0x4e0] sm:$0xff]
        %v809 = vld [vmem:[#allocation2 + $0x4e8] sm:$0xff]
        %v810 = vld [vmem:[#allocation2 + $0x4f0] sm:$0xff]
        %v811 = vld [vmem:[#allocation2 + $0x4f8] sm:$0xff]
        %v812 = vld [vmem:[#allocation2 + $0x500] sm:$0xff]
        %v813 = vld [vmem:[#allocation2 + $0x508] sm:$0xff]
        %v814 = vld [vmem:[#allocation2 + $0x510] sm:$0xff]
        %v815 = vld [vmem:[#allocation2 + $0x518] sm:$0xff]
        %v816 = vld [vmem:[#allocation2 + $0x520] sm:$0xff]
        %v817 = vld [vmem:[#allocation2 + $0x528] sm:$0xff]
        %v818 = vld [vmem:[#allocation2 + $0x530] sm:$0xff]
        %v819 = vld [vmem:[#allocation2 + $0x538] sm:$0xff]
        %v820 = vld [vmem:[#allocation2 + $0x540] sm:$0xff]
        %v821 = vld [vmem:[#allocation2 + $0x548] sm:$0xff]
        %v822 = vld [vmem:[#allocation2 + $0x550] sm:$0xff]
        %v823 = vld [vmem:[#allocation2 + $0x558] sm:$0xff]
        %v824 = vld [vmem:[#allocation2 + $0x560] sm:$0xff]
        %v825 = vld [vmem:[#allocation2 + $0x568] sm:$0xff]
        %v826 = vld [vmem:[#allocation2 + $0x570] sm:$0xff]
        %v827 = vld [vmem:[#allocation2 + $0x578] sm:$0xff]
        %v828 = vld [vmem:[#allocation2 + $0x580] sm:$0xff]
        %v829 = vld [vmem:[#allocation2 + $0x588] sm:$0xff]
        %v830 = vld [vmem:[#allocation2 + $0x590] sm:$0xff]
        %v831 = vld [vmem:[#allocation2 + $0x598] sm:$0xff]
        %v832 = vld [vmem:[#allocation2 + $0x5a0] sm:$0xff]
        %v833 = vld [vmem:[#allocation2 + $0x5a8] sm:$0xff]
        %v834 = vld [vmem:[#allocation2 + $0x5b0] sm:$0xff]
        %v835 = vld [vmem:[#allocation2 + $0x5b8] sm:$0xff]
        %v836 = vld [vmem:[#allocation2 + $0x5c0] sm:$0xff]
        %v837 = vld [vmem:[#allocation2 + $0x5c8] sm:$0xff]
        %v838 = vld [vmem:[#allocation2 + $0x5d0] sm:$0xff]
        %v839 = vld [vmem:[#allocation2 + $0x5d8] sm:$0xff]
        %v840 = vld [vmem:[#allocation2 + $0x5e0] sm:$0xff]
        %v841 = vld [vmem:[#allocation2 + $0x5e8] sm:$0xff]
        %v842 = vld [vmem:[#allocation2 + $0x5f0] sm:$0xff]
        %v843 = vld [vmem:[#allocation2 + $0x5f8] sm:$0xff]
        %v844 = vld [vmem:[#allocation2 + $0x600] sm:$0xff]
        %v845 = vld [vmem:[#allocation2 + $0x608] sm:$0xff]
        %v846 = vld [vmem:[#allocation2 + $0x610] sm:$0xff]
        %v847 = vld [vmem:[#allocation2 + $0x618] sm:$0xff]
        %v848 = vld [vmem:[#allocation2 + $0x620] sm:$0xff]
        %v849 = vld [vmem:[#allocation2 + $0x628] sm:$0xff]
        %v850 = vld [vmem:[#allocation2 + $0x630] sm:$0xff]
        %v851 = vld [vmem:[#allocation2 + $0x638] sm:$0xff]
        %v852 = vld [vmem:[#allocation2 + $0x640] sm:$0xff]
        %v853 = vld [vmem:[#allocation2 + $0x648] sm:$0xff]
        %v854 = vld [vmem:[#allocation2 + $0x650] sm:$0xff]
        %v855 = vld [vmem:[#allocation2 + $0x658] sm:$0xff]
        %v856 = vld [vmem:[#allocation2 + $0x660] sm:$0xff]
        %v857 = vld [vmem:[#allocation2 + $0x668] sm:$0xff]
        %v858 = vld [vmem:[#allocation2 + $0x670] sm:$0xff]
        %v859 = vld [vmem:[#allocation2 + $0x678] sm:$0xff]
        %v860 = vld [vmem:[#allocation2 + $0x680] sm:$0xff]
        %v861 = vld [vmem:[#allocation2 + $0x688] sm:$0xff]
        %v862 = vld [vmem:[#allocation2 + $0x690] sm:$0xff]
        %v863 = vld [vmem:[#allocation2 + $0x698] sm:$0xff]
        %v864 = vld [vmem:[#allocation2 + $0x6a0] sm:$0xff]
        %v865 = vld [vmem:[#allocation2 + $0x6a8] sm:$0xff]
        %v866 = vld [vmem:[#allocation2 + $0x6b0] sm:$0xff]
        %v867 = vld [vmem:[#allocation2 + $0x6b8] sm:$0xff]
        %v868 = vld [vmem:[#allocation2 + $0x6c0] sm:$0xff]
        %v869 = vld [vmem:[#allocation2 + $0x6c8] sm:$0xff]
        %v870 = vld [vmem:[#allocation2 + $0x6d0] sm:$0xff]
        %v871 = vld [vmem:[#allocation2 + $0x6d8] sm:$0xff]
        %v872 = vld [vmem:[#allocation2 + $0x6e0] sm:$0xff]
        %v873 = vld [vmem:[#allocation2 + $0x6e8] sm:$0xff]
        %v874 = vld [vmem:[#allocation2 + $0x6f0] sm:$0xff]
        %v875 = vld [vmem:[#allocation2 + $0x6f8] sm:$0xff]
        %v876 = vld [vmem:[#allocation2 + $0x700] sm:$0xff]
        %v877 = vld [vmem:[#allocation2 + $0x708] sm:$0xff]
        %v878 = vld [vmem:[#allocation2 + $0x710] sm:$0xff]
        %v879 = vld [vmem:[#allocation2 + $0x718] sm:$0xff]
        %v880 = vld [vmem:[#allocation2 + $0x720] sm:$0xff]
        %v881 = vld [vmem:[#allocation2 + $0x728] sm:$0xff]
        %v882 = vld [vmem:[#allocation2 + $0x730] sm:$0xff]
        %v883 = vld [vmem:[#allocation2 + $0x738] sm:$0xff]
        %v884 = vld [vmem:[#allocation2 + $0x740] sm:$0xff]
        %v885 = vld [vmem:[#allocation2 + $0x748] sm:$0xff]
        %v886 = vld [vmem:[#allocation2 + $0x750] sm:$0xff]
        %v887 = vld [vmem:[#allocation2 + $0x758] sm:$0xff]
        %v888 = vld [vmem:[#allocation2 + $0x760] sm:$0xff]
        %v889 = vld [vmem:[#allocation2 + $0x768] sm:$0xff]
        %v890 = vld [vmem:[#allocation2 + $0x770] sm:$0xff]
        %v891 = vld [vmem:[#allocation2 + $0x778] sm:$0xff]
        %v892 = vld [vmem:[#allocation2 + $0x780] sm:$0xff]
        %v893 = vld [vmem:[#allocation2 + $0x788] sm:$0xff]
        %v894 = vld [vmem:[#allocation2 + $0x790] sm:$0xff]
        %v895 = vld [vmem:[#allocation2 + $0x798] sm:$0xff]
        %v896 = vld [vmem:[#allocation2 + $0x7a0] sm:$0xff]
        %v897 = vld [vmem:[#allocation2 + $0x7a8] sm:$0xff]
        %v898 = vld [vmem:[#allocation2 + $0x7b0] sm:$0xff]
        %v899 = vld [vmem:[#allocation2 + $0x7b8] sm:$0xff]
        %v900 = vld [vmem:[#allocation2 + $0x7c0] sm:$0xff]
        %v901 = vld [vmem:[#allocation2 + $0x7c8] sm:$0xff]
        %v902 = vld [vmem:[#allocation2 + $0x7d0] sm:$0xff]
        %v903 = vld [vmem:[#allocation2 + $0x7d8] sm:$0xff]
        %v904 = vld [vmem:[#allocation2 + $0x7e0] sm:$0xff]
        %v905 = vld [vmem:[#allocation2 + $0x7e8] sm:$0xff]
        %v906 = vld [vmem:[#allocation2 + $0x7f0] sm:$0xff]
        %v907 = vld [vmem:[#allocation2 + $0x7f8] sm:$0xff]
        %v908 = vld [vmem:[#allocation2 + $0x800] sm:$0xff]
        %v909 = vld [vmem:[#allocation2 + $0x808] sm:$0xff]
        %v910 = vld [vmem:[#allocation2 + $0x810] sm:$0xff]
        %v911 = vld [vmem:[#allocation2 + $0x818] sm:$0xff]
        %v912 = vld [vmem:[#allocation2 + $0x820] sm:$0xff]
        %v913 = vld [vmem:[#allocation2 + $0x828] sm:$0xff]
        %v914 = vld [vmem:[#allocation2 + $0x830] sm:$0xff]
        %v915 = vld [vmem:[#allocation2 + $0x838] sm:$0xff]
        %v916 = vld [vmem:[#allocation2 + $0x840] sm:$0xff]
        %v917 = vld [vmem:[#allocation2 + $0x848] sm:$0xff]
        %v918 = vld [vmem:[#allocation2 + $0x850] sm:$0xff]
        %v919 = vld [vmem:[#allocation2 + $0x858] sm:$0xff]
        %v920 = vld [vmem:[#allocation2 + $0x860] sm:$0xff]
        %v921 = vld [vmem:[#allocation2 + $0x868] sm:$0xff]
        %v922 = vld [vmem:[#allocation2 + $0x870] sm:$0xff]
        %v923 = vld [vmem:[#allocation2 + $0x878] sm:$0xff]
        %v924 = vld [vmem:[#allocation2 + $0x880] sm:$0xff]
        %v925 = vld [vmem:[#allocation2 + $0x888] sm:$0xff]
        %v926 = vld [vmem:[#allocation2 + $0x890] sm:$0xff]
        %v927 = vld [vmem:[#allocation2 + $0x898] sm:$0xff]
        %v928 = vld [vmem:[#allocation2 + $0x8a0] sm:$0xff]
        %v929 = vld [vmem:[#allocation2 + $0x8a8] sm:$0xff]
        %v930 = vld [vmem:[#allocation2 + $0x8b0] sm:$0xff]
        %v931 = vld [vmem:[#allocation2 + $0x8b8] sm:$0xff]
        %v932 = vld [vmem:[#allocation2 + $0x8c0] sm:$0xff]
        %v933 = vld [vmem:[#allocation2 + $0x8c8] sm:$0xff]
        %v934 = vld [vmem:[#allocation2 + $0x8d0] sm:$0xff]
        %v935 = vld [vmem:[#allocation2 + $0x8d8] sm:$0xff]
        %v936 = vld [vmem:[#allocation2 + $0x8e0] sm:$0xff]
        %v937 = vld [vmem:[#allocation2 + $0x8e8] sm:$0xff]
        %v938 = vld [vmem:[#allocation2 + $0x8f0] sm:$0xff]
        %v939 = vld [vmem:[#allocation2 + $0x8f8] sm:$0xff]
        %v940 = vld [vmem:[#allocation2 + $0x900] sm:$0xff]
        %v941 = vld [vmem:[#allocation2 + $0x908] sm:$0xff]
        %v942 = vld [vmem:[#allocation2 + $0x910] sm:$0xff]
        %v943 = vld [vmem:[#allocation2 + $0x918] sm:$0xff]
        %v944 = vld [vmem:[#allocation2 + $0x920] sm:$0xff]
        %v945 = vld [vmem:[#allocation2 + $0x928] sm:$0xff]
        %v946 = vld [vmem:[#allocation2 + $0x930] sm:$0xff]
        %v947 = vld [vmem:[#allocation2 + $0x938] sm:$0xff]
        %v948 = vld [vmem:[#allocation2 + $0x940] sm:$0xff]
        %v949 = vld [vmem:[#allocation2 + $0x948] sm:$0xff]
        %v950 = vld [vmem:[#allocation2 + $0x950] sm:$0xff]
        %v951 = vld [vmem:[#allocation2 + $0x958] sm:$0xff]
        %v952 = vld [vmem:[#allocation2 + $0x960] sm:$0xff]
        %v953 = vld [vmem:[#allocation2 + $0x968] sm:$0xff]
        %v954 = vld [vmem:[#allocation2 + $0x970] sm:$0xff]
        %v955 = vld [vmem:[#allocation2 + $0x978] sm:$0xff]
        %v956 = vld [vmem:[#allocation2 + $0x980] sm:$0xff]
        %v957 = vld [vmem:[#allocation2 + $0x988] sm:$0xff]
        %v958 = vld [vmem:[#allocation2 + $0x990] sm:$0xff]
        %v959 = vld [vmem:[#allocation2 + $0x998] sm:$0xff]
        %v960 = vld [vmem:[#allocation2 + $0x9a0] sm:$0xff]
        %v961 = vld [vmem:[#allocation2 + $0x9a8] sm:$0xff]
        %v962 = vld [vmem:[#allocation2 + $0x9b0] sm:$0xff]
        %v963 = vld [vmem:[#allocation2 + $0x9b8] sm:$0xff]
        %v964 = vld [vmem:[#allocation2 + $0x9c0] sm:$0xff]
        %v965 = vld [vmem:[#allocation2 + $0x9c8] sm:$0xff]
        %v966 = vld [vmem:[#allocation2 + $0x9d0] sm:$0xff]
        %v967 = vld [vmem:[#allocation2 + $0x9d8] sm:$0xff]
        %v968 = vld [vmem:[#allocation2 + $0x9e0] sm:$0xff]
        %v969 = vld [vmem:[#allocation2 + $0x9e8] sm:$0xff]
        %v970 = vld [vmem:[#allocation2 + $0x9f0] sm:$0xff]
        %v971 = vld [vmem:[#allocation2 + $0x9f8] sm:$0xff]
        %v972 = vld [vmem:[#allocation2 + $0xa00] sm:$0xff]
        %v973 = vld [vmem:[#allocation2 + $0xa08] sm:$0xff]
        %v974 = vld [vmem:[#allocation2 + $0xa10] sm:$0xff]
        %v975 = vld [vmem:[#allocation2 + $0xa18] sm:$0xff]
        %v976 = vld [vmem:[#allocation2 + $0xa20] sm:$0xff]
        %v977 = vld [vmem:[#allocation2 + $0xa28] sm:$0xff]
        %v978 = vld [vmem:[#allocation2 + $0xa30] sm:$0xff]
        %v979 = vld [vmem:[#allocation2 + $0xa38] sm:$0xff]
        %v980 = vld [vmem:[#allocation2 + $0xa40] sm:$0xff]
        %v981 = vld [vmem:[#allocation2 + $0xa48] sm:$0xff]
        %v982 = vld [vmem:[#allocation2 + $0xa50] sm:$0xff]
        %v983 = vld [vmem:[#allocation2 + $0xa58] sm:$0xff]
        %v984 = vld [vmem:[#allocation2 + $0xa60] sm:$0xff]
        %v985 = vld [vmem:[#allocation2 + $0xa68] sm:$0xff]
        %v986 = vld [vmem:[#allocation2 + $0xa70] sm:$0xff]
        %v987 = vld [vmem:[#allocation2 + $0xa78] sm:$0xff]
        %v988 = vld [vmem:[#allocation2 + $0xa80] sm:$0xff]
        %v989 = vld [vmem:[#allocation2 + $0xa88] sm:$0xff]
        %v990 = vld [vmem:[#allocation2 + $0xa90] sm:$0xff]
        %v991 = vld [vmem:[#allocation2 + $0xa98] sm:$0xff]
        %v992 = vld [vmem:[#allocation2 + $0xaa0] sm:$0xff]
        %v993 = vld [vmem:[#allocation2 + $0xaa8] sm:$0xff]
        %v994 = vld [vmem:[#allocation2 + $0xab0] sm:$0xff]
        %v995 = vld [vmem:[#allocation2 + $0xab8] sm:$0xff]
        %v996 = vld [vmem:[#allocation2 + $0xac0] sm:$0xff]
        %v997 = vld [vmem:[#allocation2 + $0xac8] sm:$0xff]
        %v998 = vld [vmem:[#allocation2 + $0xad0] sm:$0xff]
        %v999 = vld [vmem:[#allocation2 + $0xad8] sm:$0xff]
        %v1000 = vld [vmem:[#allocation2 + $0xae0] sm:$0xff]
        %v1001 = vld [vmem:[#allocation2 + $0xae8] sm:$0xff]
        %v1002 = vld [vmem:[#allocation2 + $0xaf0] sm:$0xff]
        %v1003 = vld [vmem:[#allocation2 + $0xaf8] sm:$0xff]
        %v1004 = vld [vmem:[#allocation2 + $0xb00] sm:$0xff]
        %v1005 = vld [vmem:[#allocation2 + $0xb08] sm:$0xff]
        %v1006 = vld [vmem:[#allocation2 + $0xb10] sm:$0xff]
        %v1007 = vld [vmem:[#allocation2 + $0xb18] sm:$0xff]
        %v1008 = vld [vmem:[#allocation2 + $0xb20] sm:$0xff]
        %v1009 = vld [vmem:[#allocation2 + $0xb28] sm:$0xff]
        %v1010 = vld [vmem:[#allocation2 + $0xb30] sm:$0xff]
        %v1011 = vld [vmem:[#allocation2 + $0xb38] sm:$0xff]
        %v1012 = vld [vmem:[#allocation2 + $0xb40] sm:$0xff]
        %v1013 = vld [vmem:[#allocation2 + $0xb48] sm:$0xff]
        %v1014 = vld [vmem:[#allocation2 + $0xb50] sm:$0xff]
        %v1015 = vld [vmem:[#allocation2 + $0xb58] sm:$0xff]
        %v1016 = vld [vmem:[#allocation2 + $0xb60] sm:$0xff]
        %v1017 = vld [vmem:[#allocation2 + $0xb68] sm:$0xff]
        %v1018 = vld [vmem:[#allocation2 + $0xb70] sm:$0xff]
        %v1019 = vld [vmem:[#allocation2 + $0xb78] sm:$0xff]
        %v1020 = vld [vmem:[#allocation2 + $0xb80] sm:$0xff]
        %v1021 = vld [vmem:[#allocation2 + $0xb88] sm:$0xff]
        %v1022 = vld [vmem:[#allocation2 + $0xb90] sm:$0xff]
        %v1023 = vld [vmem:[#allocation2 + $0xb98] sm:$0xff]
        %v1024 = vld [vmem:[#allocation2 + $0xba0] sm:$0xff]
        %v1025 = vld [vmem:[#allocation2 + $0xba8] sm:$0xff]
        %v1026 = vld [vmem:[#allocation2 + $0xbb0] sm:$0xff]
        %v1027 = vld [vmem:[#allocation2 + $0xbb8] sm:$0xff]
        %v1028 = vld [vmem:[#allocation2 + $0xbc0] sm:$0xff]
        %v1029 = vld [vmem:[#allocation2 + $0xbc8] sm:$0xff]
        %v1030 = vld [vmem:[#allocation2 + $0xbd0] sm:$0xff]
        %v1031 = vld [vmem:[#allocation2 + $0xbd8] sm:$0xff]
        %v1032 = vld [vmem:[#allocation2 + $0xbe0] sm:$0xff]
        %v1033 = vld [vmem:[#allocation2 + $0xbe8] sm:$0xff]
        %v1034 = vld [vmem:[#allocation2 + $0xbf0] sm:$0xff]
        %v1035 = vld [vmem:[#allocation2 + $0xbf8] sm:$0xff]
        %v1036 = vld [vmem:[#allocation2 + $0xc00] sm:$0xff]
        %v1037 = vld [vmem:[#allocation2 + $0xc08] sm:$0xff]
        %v1038 = vld [vmem:[#allocation2 + $0xc10] sm:$0xff]
        %v1039 = vld [vmem:[#allocation2 + $0xc18] sm:$0xff]
        %v1040 = vld [vmem:[#allocation2 + $0xc20] sm:$0xff]
        %v1041 = vld [vmem:[#allocation2 + $0xc28] sm:$0xff]
        %v1042 = vld [vmem:[#allocation2 + $0xc30] sm:$0xff]
        %v1043 = vld [vmem:[#allocation2 + $0xc38] sm:$0xff]
        %v1044 = vld [vmem:[#allocation2 + $0xc40] sm:$0xff]
        %v1045 = vld [vmem:[#allocation2 + $0xc48] sm:$0xff]
        %v1046 = vld [vmem:[#allocation2 + $0xc50] sm:$0xff]
        %v1047 = vld [vmem:[#allocation2 + $0xc58] sm:$0xff]
        %v1048 = vld [vmem:[#allocation2 + $0xc60] sm:$0xff]
        %v1049 = vld [vmem:[#allocation2 + $0xc68] sm:$0xff]
        %v1050 = vld [vmem:[#allocation2 + $0xc70] sm:$0xff]
        %v1051 = vld [vmem:[#allocation2 + $0xc78] sm:$0xff]
        %v1052 = vld [vmem:[#allocation2 + $0xc80] sm:$0xff]
        %v1053 = vld [vmem:[#allocation2 + $0xc88] sm:$0xff]
        %v1054 = vld [vmem:[#allocation2 + $0xc90] sm:$0xff]
        %v1055 = vld [vmem:[#allocation2 + $0xc98] sm:$0xff]
        %v1056 = vld [vmem:[#allocation2 + $0xca0] sm:$0xff]
        %v1057 = vld [vmem:[#allocation2 + $0xca8] sm:$0xff]
        %v1058 = vld [vmem:[#allocation2 + $0xcb0] sm:$0xff]
        %v1059 = vld [vmem:[#allocation2 + $0xcb8] sm:$0xff]
        %v1060 = vld [vmem:[#allocation2 + $0xcc0] sm:$0xff]
        %v1061 = vld [vmem:[#allocation2 + $0xcc8] sm:$0xff]
        %v1062 = vld [vmem:[#allocation2 + $0xcd0] sm:$0xff]
        %v1063 = vld [vmem:[#allocation2 + $0xcd8] sm:$0xff]
        %v1064 = vld [vmem:[#allocation2 + $0xce0] sm:$0xff]
        %v1065 = vld [vmem:[#allocation2 + $0xce8] sm:$0xff]
        %v1066 = vld [vmem:[#allocation2 + $0xcf0] sm:$0xff]
        %v1067 = vld [vmem:[#allocation2 + $0xcf8] sm:$0xff]
        %v1068 = vld [vmem:[#allocation2 + $0xd00] sm:$0xff]
        %v1069 = vld [vmem:[#allocation2 + $0xd08] sm:$0xff]
        %v1070 = vld [vmem:[#allocation2 + $0xd10] sm:$0xff]
        %v1071 = vld [vmem:[#allocation2 + $0xd18] sm:$0xff]
        %v1072 = vld [vmem:[#allocation2 + $0xd20] sm:$0xff]
        %v1073 = vld [vmem:[#allocation2 + $0xd28] sm:$0xff]
        %v1074 = vld [vmem:[#allocation2 + $0xd30] sm:$0xff]
        %v1075 = vld [vmem:[#allocation2 + $0xd38] sm:$0xff]
        %v1076 = vld [vmem:[#allocation2 + $0xd40] sm:$0xff]
        %v1077 = vld [vmem:[#allocation2 + $0xd48] sm:$0xff]
        %v1078 = vld [vmem:[#allocation2 + $0xd50] sm:$0xff]
        %v1079 = vld [vmem:[#allocation2 + $0xd58] sm:$0xff]
        %v1080 = vld [vmem:[#allocation2 + $0xd60] sm:$0xff]
        %v1081 = vld [vmem:[#allocation2 + $0xd68] sm:$0xff]
        %v1082 = vld [vmem:[#allocation2 + $0xd70] sm:$0xff]
        %v1083 = vld [vmem:[#allocation2 + $0xd78] sm:$0xff]
        %v1084 = vld [vmem:[#allocation2 + $0xd80] sm:$0xff]
        %v1085 = vld [vmem:[#allocation2 + $0xd88] sm:$0xff]
        %v1086 = vld [vmem:[#allocation2 + $0xd90] sm:$0xff]
        %v1087 = vld [vmem:[#allocation2 + $0xd98] sm:$0xff]
        %v1088 = vld [vmem:[#allocation2 + $0xda0] sm:$0xff]
        %v1089 = vld [vmem:[#allocation2 + $0xda8] sm:$0xff]
        %v1090 = vld [vmem:[#allocation2 + $0xdb0] sm:$0xff]
        %v1091 = vld [vmem:[#allocation2 + $0xdb8] sm:$0xff]
        %v1092 = vld [vmem:[#allocation2 + $0xdc0] sm:$0xff]
        %v1093 = vld [vmem:[#allocation2 + $0xdc8] sm:$0xff]
        %v1094 = vld [vmem:[#allocation2 + $0xdd0] sm:$0xff]
        %v1095 = vld [vmem:[#allocation2 + $0xdd8] sm:$0xff]
        %v1096 = vld [vmem:[#allocation2 + $0xde0] sm:$0xff]
        %v1097 = vld [vmem:[#allocation2 + $0xde8] sm:$0xff]
        %v1098 = vld [vmem:[#allocation2 + $0xdf0] sm:$0xff]
        %v1099 = vld [vmem:[#allocation2 + $0xdf8] sm:$0xff]
        %v1100 = vld [vmem:[#allocation2 + $0xe00] sm:$0xff]
        %v1101 = vld [vmem:[#allocation2 + $0xe08] sm:$0xff]
        %v1102 = vld [vmem:[#allocation2 + $0xe10] sm:$0xff]
        %v1103 = vld [vmem:[#allocation2 + $0xe18] sm:$0xff]
        %v1104 = vld [vmem:[#allocation2 + $0xe20] sm:$0xff]
        %v1105 = vld [vmem:[#allocation2 + $0xe28] sm:$0xff]
        %v1106 = vld [vmem:[#allocation2 + $0xe30] sm:$0xff]
        %v1107 = vld [vmem:[#allocation2 + $0xe38] sm:$0xff]
        %v1108 = vld [vmem:[#allocation2 + $0xe40] sm:$0xff]
        %v1109 = vld [vmem:[#allocation2 + $0xe48] sm:$0xff]
        %v1110 = vld [vmem:[#allocation2 + $0xe50] sm:$0xff]
        %v1111 = vld [vmem:[#allocation2 + $0xe58] sm:$0xff]
        %v1112 = vld [vmem:[#allocation2 + $0xe60] sm:$0xff]
        %v1113 = vld [vmem:[#allocation2 + $0xe68] sm:$0xff]
        %v1114 = vld [vmem:[#allocation2 + $0xe70] sm:$0xff]
        %v1115 = vld [vmem:[#allocation2 + $0xe78] sm:$0xff]
        %v1116 = vld [vmem:[#allocation2 + $0xe80] sm:$0xff]
        %v1117 = vld [vmem:[#allocation2 + $0xe88] sm:$0xff]
        %v1118 = vld [vmem:[#allocation2 + $0xe90] sm:$0xff]
        %v1119 = vld [vmem:[#allocation2 + $0xe98] sm:$0xff]
        %v1120 = vld [vmem:[#allocation2 + $0xea0] sm:$0xff]
        %v1121 = vld [vmem:[#allocation2 + $0xea8] sm:$0xff]
        %v1122 = vld [vmem:[#allocation2 + $0xeb0] sm:$0xff]
        %v1123 = vld [vmem:[#allocation2 + $0xeb8] sm:$0xff]
        %v1124 = vld [vmem:[#allocation2 + $0xec0] sm:$0xff]
        %v1125 = vld [vmem:[#allocation2 + $0xec8] sm:$0xff]
        %v1126 = vld [vmem:[#allocation2 + $0xed0] sm:$0xff]
        %v1127 = vld [vmem:[#allocation2 + $0xed8] sm:$0xff]
        %v1128 = vld [vmem:[#allocation2 + $0xee0] sm:$0xff]
        %v1129 = vld [vmem:[#allocation2 + $0xee8] sm:$0xff]
        %v1130 = vld [vmem:[#allocation2 + $0xef0] sm:$0xff]
        %v1131 = vld [vmem:[#allocation2 + $0xef8] sm:$0xff]
        %v1132 = vld [vmem:[#allocation2 + $0xf00] sm:$0xff]
        %v1133 = vld [vmem:[#allocation2 + $0xf08] sm:$0xff]
        %v1134 = vld [vmem:[#allocation2 + $0xf10] sm:$0xff]
        %v1135 = vld [vmem:[#allocation2 + $0xf18] sm:$0xff]
        %v1136 = vld [vmem:[#allocation2 + $0xf20] sm:$0xff]
        %v1137 = vld [vmem:[#allocation2 + $0xf28] sm:$0xff]
        %v1138 = vld [vmem:[#allocation2 + $0xf30] sm:$0xff]
        %v1139 = vld [vmem:[#allocation2 + $0xf38] sm:$0xff]
        %v1140 = vld [vmem:[#allocation2 + $0xf40] sm:$0xff]
        %v1141 = vld [vmem:[#allocation2 + $0xf48] sm:$0xff]
        %v1142 = vld [vmem:[#allocation2 + $0xf50] sm:$0xff]
        %v1143 = vld [vmem:[#allocation2 + $0xf58] sm:$0xff]
        %v1144 = vld [vmem:[#allocation2 + $0xf60] sm:$0xff]
        %v1145 = vld [vmem:[#allocation2 + $0xf68] sm:$0xff]
        %v1146 = vld [vmem:[#allocation2 + $0xf70] sm:$0xff]
        %v1147 = vld [vmem:[#allocation2 + $0xf78] sm:$0xff]
        %v1148 = vld [vmem:[#allocation2 + $0xf80] sm:$0xff]
        %v1149 = vld [vmem:[#allocation2 + $0xf88] sm:$0xff]
        %v1150 = vld [vmem:[#allocation2 + $0xf90] sm:$0xff]
        %v1151 = vld [vmem:[#allocation2 + $0xf98] sm:$0xff]
        %v1152 = vld [vmem:[#allocation2 + $0xfa0] sm:$0xff]
        %v1153 = vld [vmem:[#allocation2 + $0xfa8] sm:$0xff]
        %v1154 = vld [vmem:[#allocation2 + $0xfb0] sm:$0xff]
        %v1155 = vld [vmem:[#allocation2 + $0xfb8] sm:$0xff]
        %v1156 = vld [vmem:[#allocation2 + $0xfc0] sm:$0xff]
        %v1157 = vld [vmem:[#allocation2 + $0xfc8] sm:$0xff]
        %v1158 = vld [vmem:[#allocation2 + $0xfd0] sm:$0xff]
        %v1159 = vld [vmem:[#allocation2 + $0xfd8] sm:$0xff]
        %v1160 = vld [vmem:[#allocation2 + $0xfe0] sm:$0xff]
        %v1161 = vld [vmem:[#allocation2 + $0xfe8] sm:$0xff]
        %v1162 = vld [vmem:[#allocation2 + $0xff0] sm:$0xff]
        %v1163 = vld [vmem:[#allocation2 + $0xff8] sm:$0xff]
        %v1164 = vld [vmem:[#allocation2 + $0x1000] sm:$0xff]
        %v1165 = vld [vmem:[#allocation2 + $0x1008] sm:$0xff]
        %v1166 = vld [vmem:[#allocation2 + $0x1010] sm:$0xff]
        %v1167 = vld [vmem:[#allocation2 + $0x1018] sm:$0xff]
        %v1168 = vld [vmem:[#allocation2 + $0x1020] sm:$0xff]
        %v1169 = vld [vmem:[#allocation2 + $0x1028] sm:$0xff]
        %v1170 = vld [vmem:[#allocation2 + $0x1030] sm:$0xff]
        %v1171 = vld [vmem:[#allocation2 + $0x1038] sm:$0xff]
        %v1172 = vld [vmem:[#allocation2 + $0x1040] sm:$0xff]
        %v1173 = vld [vmem:[#allocation2 + $0x1048] sm:$0xff]
        %v1174 = vld [vmem:[#allocation2 + $0x1050] sm:$0xff]
        %v1175 = vld [vmem:[#allocation2 + $0x1058] sm:$0xff]
        %v1176 = vld [vmem:[#allocation2 + $0x1060] sm:$0xff]
        %v1177 = vld [vmem:[#allocation2 + $0x1068] sm:$0xff]
        %v1178 = vld [vmem:[#allocation2 + $0x1070] sm:$0xff]
        %v1179 = vld [vmem:[#allocation2 + $0x1078] sm:$0xff]
        %v1180 = vld [vmem:[#allocation2 + $0x1080] sm:$0xff]
        %v1181 = vld [vmem:[#allocation2 + $0x1088] sm:$0xff]
        %v1182 = vld [vmem:[#allocation2 + $0x1090] sm:$0xff]
        %v1183 = vld [vmem:[#allocation2 + $0x1098] sm:$0xff]
        %v1184 = vld [vmem:[#allocation2 + $0x10a0] sm:$0xff]
        %v1185 = vld [vmem:[#allocation2 + $0x10a8] sm:$0xff]
        %v1186 = vld [vmem:[#allocation2 + $0x10b0] sm:$0xff]
        %v1187 = vld [vmem:[#allocation2 + $0x10b8] sm:$0xff]
        %v1188 = vld [vmem:[#allocation2 + $0x10c0] sm:$0xff]
        %v1189 = vld [vmem:[#allocation2 + $0x10c8] sm:$0xff]
        %v1190 = vld [vmem:[#allocation2 + $0x10d0] sm:$0xff]
        %v1191 = vld [vmem:[#allocation2 + $0x10d8] sm:$0xff]
        %v1192 = vld [vmem:[#allocation2 + $0x10e0] sm:$0xff]
        %v1193 = vld [vmem:[#allocation2 + $0x10e8] sm:$0xff]
        %v1194 = vld [vmem:[#allocation2 + $0x10f0] sm:$0xff]
        %v1195 = vld [vmem:[#allocation2 + $0x10f8] sm:$0xff]
        %v1196 = vld [vmem:[#allocation2 + $0x1100] sm:$0xff]
        %v1197 = vld [vmem:[#allocation2 + $0x1108] sm:$0xff]
        %v1198 = vld [vmem:[#allocation2 + $0x1110] sm:$0xff]
        %v1199 = vld [vmem:[#allocation2 + $0x1118] sm:$0xff]
        %v1200 = vld [vmem:[#allocation2 + $0x1120] sm:$0xff]
        %v1201 = vld [vmem:[#allocation2 + $0x1128] sm:$0xff]
        %v1202 = vld [vmem:[#allocation2 + $0x1130] sm:$0xff]
        %v1203 = vld [vmem:[#allocation2 + $0x1138] sm:$0xff]
        %v1204 = vld [vmem:[#allocation2 + $0x1140] sm:$0xff]
        %v1205 = vld [vmem:[#allocation2 + $0x1148] sm:$0xff]
        %v1206 = vld [vmem:[#allocation2 + $0x1150] sm:$0xff]
        %v1207 = vld [vmem:[#allocation2 + $0x1158] sm:$0xff]
        %v1208 = vld [vmem:[#allocation2 + $0x1160] sm:$0xff]
        %v1209 = vld [vmem:[#allocation2 + $0x1168] sm:$0xff]
        %v1210 = vld [vmem:[#allocation2 + $0x1170] sm:$0xff]
        %v1211 = vld [vmem:[#allocation2 + $0x1178] sm:$0xff]
        %v1212 = vld [vmem:[#allocation2 + $0x1180] sm:$0xff]
        %v1213 = vld [vmem:[#allocation2 + $0x1188] sm:$0xff]
        %v1214 = vld [vmem:[#allocation2 + $0x1190] sm:$0xff]
        %v1215 = vld [vmem:[#allocation2 + $0x1198] sm:$0xff]
        %v1216 = vld [vmem:[#allocation2 + $0x11a0] sm:$0xff]
        %v1217 = vld [vmem:[#allocation2 + $0x11a8] sm:$0xff]
        %v1218 = vld [vmem:[#allocation2 + $0x11b0] sm:$0xff]
        %v1219 = vld [vmem:[#allocation2 + $0x11b8] sm:$0xff]
        %v1220 = vld [vmem:[#allocation2 + $0x11c0] sm:$0xff]
        %v1221 = vld [vmem:[#allocation2 + $0x11c8] sm:$0xff]
        %v1222 = vld [vmem:[#allocation2 + $0x11d0] sm:$0xff]
        %v1223 = vld [vmem:[#allocation2 + $0x11d8] sm:$0xff]
        %v1224 = vld [vmem:[#allocation2 + $0x11e0] sm:$0xff]
        %v1225 = vld [vmem:[#allocation2 + $0x11e8] sm:$0xff]
        %v1226 = vld [vmem:[#allocation2 + $0x11f0] sm:$0xff]
        %v1227 = vld [vmem:[#allocation2 + $0x11f8] sm:$0xff]
        %v1804 = vunpack.c.l.b16 %v652
        %v1805 = vunpack.c.h.b16 %v652
        %v1806 = vunpack.c.l.b16 %v653
        %v1807 = vunpack.c.h.b16 %v653
        %v1808 = vunpack.c.l.b16 %v654
        %v1809 = vunpack.c.h.b16 %v654
        %v1810 = vunpack.c.l.b16 %v655
        %v1811 = vunpack.c.h.b16 %v655
        %v1812 = vunpack.c.l.b16 %v656
        %v1813 = vunpack.c.h.b16 %v656
        %v1814 = vunpack.c.l.b16 %v657
        %v1815 = vunpack.c.h.b16 %v657
        %v1816 = vunpack.c.l.b16 %v658
        %v1817 = vunpack.c.h.b16 %v658
        %v1818 = vunpack.c.l.b16 %v659
        %v1819 = vunpack.c.h.b16 %v659
        %v1820 = vunpack.c.l.b16 %v660
        %v1821 = vunpack.c.h.b16 %v660
        %v1822 = vunpack.c.l.b16 %v661
        %v1823 = vunpack.c.h.b16 %v661
        %v1824 = vunpack.c.l.b16 %v662
        %v1825 = vunpack.c.h.b16 %v662
        %v1826 = vunpack.c.l.b16 %v663
        %v1827 = vunpack.c.h.b16 %v663
        %v1828 = vunpack.c.l.b16 %v664
        %v1829 = vunpack.c.h.b16 %v664
        %v1830 = vunpack.c.l.b16 %v665
        %v1831 = vunpack.c.h.b16 %v665
        %v1832 = vunpack.c.l.b16 %v666
        %v1833 = vunpack.c.h.b16 %v666
        %v1834 = vunpack.c.l.b16 %v667
        %v1835 = vunpack.c.h.b16 %v667
        %v1836 = vunpack.c.l.b16 %v668
        %v1837 = vunpack.c.h.b16 %v668
        %v1838 = vunpack.c.l.b16 %v669
        %v1839 = vunpack.c.h.b16 %v669
        %v1840 = vunpack.c.l.b16 %v670
        %v1841 = vunpack.c.h.b16 %v670
        %v1842 = vunpack.c.l.b16 %v671
        %v1843 = vunpack.c.h.b16 %v671
        %v1844 = vunpack.c.l.b16 %v672
        %v1845 = vunpack.c.h.b16 %v672
        %v1846 = vunpack.c.l.b16 %v673
        %v1847 = vunpack.c.h.b16 %v673
        %v1848 = vunpack.c.l.b16 %v674
        %v1849 = vunpack.c.h.b16 %v674
        %v1850 = vunpack.c.l.b16 %v675
        %v1851 = vunpack.c.h.b16 %v675
        %v1852 = vunpack.c.l.b16 %v676
        %v1853 = vunpack.c.h.b16 %v676
        %v1854 = vunpack.c.l.b16 %v677
        %v1855 = vunpack.c.h.b16 %v677
        %v1856 = vunpack.c.l.b16 %v678
        %v1857 = vunpack.c.h.b16 %v678
        %v1858 = vunpack.c.l.b16 %v679
        %v1859 = vunpack.c.h.b16 %v679
        %v1860 = vunpack.c.l.b16 %v680
        %v1861 = vunpack.c.h.b16 %v680
        %v1862 = vunpack.c.l.b16 %v681
        %v1863 = vunpack.c.h.b16 %v681
        %v1864 = vunpack.c.l.b16 %v682
        %v1865 = vunpack.c.h.b16 %v682
        %v1866 = vunpack.c.l.b16 %v683
        %v1867 = vunpack.c.h.b16 %v683
        %v1868 = vunpack.c.l.b16 %v684
        %v1869 = vunpack.c.h.b16 %v684
        %v1870 = vunpack.c.l.b16 %v685
        %v1871 = vunpack.c.h.b16 %v685
        %v1872 = vunpack.c.l.b16 %v686
        %v1873 = vunpack.c.h.b16 %v686
        %v1874 = vunpack.c.l.b16 %v687
        %v1875 = vunpack.c.h.b16 %v687
        %v1876 = vunpack.c.l.b16 %v688
        %v1877 = vunpack.c.h.b16 %v688
        %v1878 = vunpack.c.l.b16 %v689
        %v1879 = vunpack.c.h.b16 %v689
        %v1880 = vunpack.c.l.b16 %v690
        %v1881 = vunpack.c.h.b16 %v690
        %v1882 = vunpack.c.l.b16 %v691
        %v1883 = vunpack.c.h.b16 %v691
        %v1884 = vunpack.c.l.b16 %v692
        %v1885 = vunpack.c.h.b16 %v692
        %v1886 = vunpack.c.l.b16 %v693
        %v1887 = vunpack.c.h.b16 %v693
        %v1888 = vunpack.c.l.b16 %v694
        %v1889 = vunpack.c.h.b16 %v694
        %v1890 = vunpack.c.l.b16 %v695
        %v1891 = vunpack.c.h.b16 %v695
        %v1892 = vunpack.c.l.b16 %v696
        %v1893 = vunpack.c.h.b16 %v696
        %v1894 = vunpack.c.l.b16 %v697
        %v1895 = vunpack.c.h.b16 %v697
        %v1896 = vunpack.c.l.b16 %v698
        %v1897 = vunpack.c.h.b16 %v698
        %v1898 = vunpack.c.l.b16 %v699
        %v1899 = vunpack.c.h.b16 %v699
        %v1900 = vunpack.c.l.b16 %v700
        %v1901 = vunpack.c.h.b16 %v700
        %v1902 = vunpack.c.l.b16 %v701
        %v1903 = vunpack.c.h.b16 %v701
        %v1904 = vunpack.c.l.b16 %v702
        %v1905 = vunpack.c.h.b16 %v702
        %v1906 = vunpack.c.l.b16 %v703
        %v1907 = vunpack.c.h.b16 %v703
        %v1908 = vunpack.c.l.b16 %v704
        %v1909 = vunpack.c.h.b16 %v704
        %v1910 = vunpack.c.l.b16 %v705
        %v1911 = vunpack.c.h.b16 %v705
        %v1912 = vunpack.c.l.b16 %v706
        %v1913 = vunpack.c.h.b16 %v706
        %v1914 = vunpack.c.l.b16 %v707
        %v1915 = vunpack.c.h.b16 %v707
        %v1916 = vunpack.c.l.b16 %v708
        %v1917 = vunpack.c.h.b16 %v708
        %v1918 = vunpack.c.l.b16 %v709
        %v1919 = vunpack.c.h.b16 %v709
        %v1920 = vunpack.c.l.b16 %v710
        %v1921 = vunpack.c.h.b16 %v710
        %v1922 = vunpack.c.l.b16 %v711
        %v1923 = vunpack.c.h.b16 %v711
        %v1924 = vunpack.c.l.b16 %v712
        %v1925 = vunpack.c.h.b16 %v712
        %v1926 = vunpack.c.l.b16 %v713
        %v1927 = vunpack.c.h.b16 %v713
        %v1928 = vunpack.c.l.b16 %v714
        %v1929 = vunpack.c.h.b16 %v714
        %v1930 = vunpack.c.l.b16 %v715
        %v1931 = vunpack.c.h.b16 %v715
        %v1932 = vunpack.c.l.b16 %v716
        %v1933 = vunpack.c.h.b16 %v716
        %v1934 = vunpack.c.l.b16 %v717
        %v1935 = vunpack.c.h.b16 %v717
        %v1936 = vunpack.c.l.b16 %v718
        %v1937 = vunpack.c.h.b16 %v718
        %v1938 = vunpack.c.l.b16 %v719
        %v1939 = vunpack.c.h.b16 %v719
        %v1940 = vunpack.c.l.b16 %v720
        %v1941 = vunpack.c.h.b16 %v720
        %v1942 = vunpack.c.l.b16 %v721
        %v1943 = vunpack.c.h.b16 %v721
        %v1944 = vunpack.c.l.b16 %v722
        %v1945 = vunpack.c.h.b16 %v722
        %v1946 = vunpack.c.l.b16 %v723
        %v1947 = vunpack.c.h.b16 %v723
        %v1948 = vunpack.c.l.b16 %v724
        %v1949 = vunpack.c.h.b16 %v724
        %v1950 = vunpack.c.l.b16 %v725
        %v1951 = vunpack.c.h.b16 %v725
        %v1952 = vunpack.c.l.b16 %v726
        %v1953 = vunpack.c.h.b16 %v726
        %v1954 = vunpack.c.l.b16 %v727
        %v1955 = vunpack.c.h.b16 %v727
        %v1956 = vunpack.c.l.b16 %v728
        %v1957 = vunpack.c.h.b16 %v728
        %v1958 = vunpack.c.l.b16 %v729
        %v1959 = vunpack.c.h.b16 %v729
        %v1960 = vunpack.c.l.b16 %v730
        %v1961 = vunpack.c.h.b16 %v730
        %v1962 = vunpack.c.l.b16 %v731
        %v1963 = vunpack.c.h.b16 %v731
        %v1964 = vunpack.c.l.b16 %v732
        %v1965 = vunpack.c.h.b16 %v732
        %v1966 = vunpack.c.l.b16 %v733
        %v1967 = vunpack.c.h.b16 %v733
        %v1968 = vunpack.c.l.b16 %v734
        %v1969 = vunpack.c.h.b16 %v734
        %v1970 = vunpack.c.l.b16 %v735
        %v1971 = vunpack.c.h.b16 %v735
        %v1972 = vunpack.c.l.b16 %v736
        %v1973 = vunpack.c.h.b16 %v736
        %v1974 = vunpack.c.l.b16 %v737
        %v1975 = vunpack.c.h.b16 %v737
        %v1976 = vunpack.c.l.b16 %v738
        %v1977 = vunpack.c.h.b16 %v738
        %v1978 = vunpack.c.l.b16 %v739
        %v1979 = vunpack.c.h.b16 %v739
        %v1980 = vunpack.c.l.b16 %v740
        %v1981 = vunpack.c.h.b16 %v740
        %v1982 = vunpack.c.l.b16 %v741
        %v1983 = vunpack.c.h.b16 %v741
        %v1984 = vunpack.c.l.b16 %v742
        %v1985 = vunpack.c.h.b16 %v742
        %v1986 = vunpack.c.l.b16 %v743
        %v1987 = vunpack.c.h.b16 %v743
        %v1988 = vunpack.c.l.b16 %v744
        %v1989 = vunpack.c.h.b16 %v744
        %v1990 = vunpack.c.l.b16 %v745
        %v1991 = vunpack.c.h.b16 %v745
        %v1992 = vunpack.c.l.b16 %v746
        %v1993 = vunpack.c.h.b16 %v746
        %v1994 = vunpack.c.l.b16 %v747
        %v1995 = vunpack.c.h.b16 %v747
        %v1996 = vunpack.c.l.b16 %v748
        %v1997 = vunpack.c.h.b16 %v748
        %v1998 = vunpack.c.l.b16 %v749
        %v1999 = vunpack.c.h.b16 %v749
        %v2000 = vunpack.c.l.b16 %v750
        %v2001 = vunpack.c.h.b16 %v750
        %v2002 = vunpack.c.l.b16 %v751
        %v2003 = vunpack.c.h.b16 %v751
        %v2004 = vunpack.c.l.b16 %v752
        %v2005 = vunpack.c.h.b16 %v752
        %v2006 = vunpack.c.l.b16 %v753
        %v2007 = vunpack.c.h.b16 %v753
        %v2008 = vunpack.c.l.b16 %v754
        %v2009 = vunpack.c.h.b16 %v754
        %v2010 = vunpack.c.l.b16 %v755
        %v2011 = vunpack.c.h.b16 %v755
        %v2012 = vunpack.c.l.b16 %v756
        %v2013 = vunpack.c.h.b16 %v756
        %v2014 = vunpack.c.l.b16 %v757
        %v2015 = vunpack.c.h.b16 %v757
        %v2016 = vunpack.c.l.b16 %v758
        %v2017 = vunpack.c.h.b16 %v758
        %v2018 = vunpack.c.l.b16 %v759
        %v2019 = vunpack.c.h.b16 %v759
        %v2020 = vunpack.c.l.b16 %v760
        %v2021 = vunpack.c.h.b16 %v760
        %v2022 = vunpack.c.l.b16 %v761
        %v2023 = vunpack.c.h.b16 %v761
        %v2024 = vunpack.c.l.b16 %v762
        %v2025 = vunpack.c.h.b16 %v762
        %v2026 = vunpack.c.l.b16 %v763
        %v2027 = vunpack.c.h.b16 %v763
        %v2028 = vunpack.c.l.b16 %v764
        %v2029 = vunpack.c.h.b16 %v764
        %v2030 = vunpack.c.l.b16 %v765
        %v2031 = vunpack.c.h.b16 %v765
        %v2032 = vunpack.c.l.b16 %v766
        %v2033 = vunpack.c.h.b16 %v766
        %v2034 = vunpack.c.l.b16 %v767
        %v2035 = vunpack.c.h.b16 %v767
        %v2036 = vunpack.c.l.b16 %v768
        %v2037 = vunpack.c.h.b16 %v768
        %v2038 = vunpack.c.l.b16 %v769
        %v2039 = vunpack.c.h.b16 %v769
        %v2040 = vunpack.c.l.b16 %v770
        %v2041 = vunpack.c.h.b16 %v770
        %v2042 = vunpack.c.l.b16 %v771
        %v2043 = vunpack.c.h.b16 %v771
        %v2044 = vunpack.c.l.b16 %v772
        %v2045 = vunpack.c.h.b16 %v772
        %v2046 = vunpack.c.l.b16 %v773
        %v2047 = vunpack.c.h.b16 %v773
        %v2048 = vunpack.c.l.b16 %v774
        %v2049 = vunpack.c.h.b16 %v774
        %v2050 = vunpack.c.l.b16 %v775
        %v2051 = vunpack.c.h.b16 %v775
        %v2052 = vunpack.c.l.b16 %v776
        %v2053 = vunpack.c.h.b16 %v776
        %v2054 = vunpack.c.l.b16 %v777
        %v2055 = vunpack.c.h.b16 %v777
        %v2056 = vunpack.c.l.b16 %v778
        %v2057 = vunpack.c.h.b16 %v778
        %v2058 = vunpack.c.l.b16 %v779
        %v2059 = vunpack.c.h.b16 %v779
        %v2060 = vunpack.c.l.b16 %v780
        %v2061 = vunpack.c.h.b16 %v780
        %v2062 = vunpack.c.l.b16 %v781
        %v2063 = vunpack.c.h.b16 %v781
        %v2064 = vunpack.c.l.b16 %v782
        %v2065 = vunpack.c.h.b16 %v782
        %v2066 = vunpack.c.l.b16 %v783
        %v2067 = vunpack.c.h.b16 %v783
        %v2068 = vunpack.c.l.b16 %v784
        %v2069 = vunpack.c.h.b16 %v784
        %v2070 = vunpack.c.l.b16 %v785
        %v2071 = vunpack.c.h.b16 %v785
        %v2072 = vunpack.c.l.b16 %v786
        %v2073 = vunpack.c.h.b16 %v786
        %v2074 = vunpack.c.l.b16 %v787
        %v2075 = vunpack.c.h.b16 %v787
        %v2076 = vunpack.c.l.b16 %v788
        %v2077 = vunpack.c.h.b16 %v788
        %v2078 = vunpack.c.l.b16 %v789
        %v2079 = vunpack.c.h.b16 %v789
        %v2080 = vunpack.c.l.b16 %v790
        %v2081 = vunpack.c.h.b16 %v790
        %v2082 = vunpack.c.l.b16 %v791
        %v2083 = vunpack.c.h.b16 %v791
        %v2084 = vunpack.c.l.b16 %v792
        %v2085 = vunpack.c.h.b16 %v792
        %v2086 = vunpack.c.l.b16 %v793
        %v2087 = vunpack.c.h.b16 %v793
        %v2088 = vunpack.c.l.b16 %v794
        %v2089 = vunpack.c.h.b16 %v794
        %v2090 = vunpack.c.l.b16 %v795
        %v2091 = vunpack.c.h.b16 %v795
        %v2092 = vunpack.c.l.b16 %v796
        %v2093 = vunpack.c.h.b16 %v796
        %v2094 = vunpack.c.l.b16 %v797
        %v2095 = vunpack.c.h.b16 %v797
        %v2096 = vunpack.c.l.b16 %v798
        %v2097 = vunpack.c.h.b16 %v798
        %v2098 = vunpack.c.l.b16 %v799
        %v2099 = vunpack.c.h.b16 %v799
        %v2100 = vunpack.c.l.b16 %v800
        %v2101 = vunpack.c.h.b16 %v800
        %v2102 = vunpack.c.l.b16 %v801
        %v2103 = vunpack.c.h.b16 %v801
        %v2104 = vunpack.c.l.b16 %v802
        %v2105 = vunpack.c.h.b16 %v802
        %v2106 = vunpack.c.l.b16 %v803
        %v2107 = vunpack.c.h.b16 %v803
        %v2108 = vunpack.c.l.b16 %v804
        %v2109 = vunpack.c.h.b16 %v804
        %v2110 = vunpack.c.l.b16 %v805
        %v2111 = vunpack.c.h.b16 %v805
        %v2112 = vunpack.c.l.b16 %v806
        %v2113 = vunpack.c.h.b16 %v806
        %v2114 = vunpack.c.l.b16 %v807
        %v2115 = vunpack.c.h.b16 %v807
        %v2116 = vunpack.c.l.b16 %v808
        %v2117 = vunpack.c.h.b16 %v808
        %v2118 = vunpack.c.l.b16 %v809
        %v2119 = vunpack.c.h.b16 %v809
        %v2120 = vunpack.c.l.b16 %v810
        %v2121 = vunpack.c.h.b16 %v810
        %v2122 = vunpack.c.l.b16 %v811
        %v2123 = vunpack.c.h.b16 %v811
        %v2124 = vunpack.c.l.b16 %v812
        %v2125 = vunpack.c.h.b16 %v812
        %v2126 = vunpack.c.l.b16 %v813
        %v2127 = vunpack.c.h.b16 %v813
        %v2128 = vunpack.c.l.b16 %v814
        %v2129 = vunpack.c.h.b16 %v814
        %v2130 = vunpack.c.l.b16 %v815
        %v2131 = vunpack.c.h.b16 %v815
        %v2132 = vunpack.c.l.b16 %v816
        %v2133 = vunpack.c.h.b16 %v816
        %v2134 = vunpack.c.l.b16 %v817
        %v2135 = vunpack.c.h.b16 %v817
        %v2136 = vunpack.c.l.b16 %v818
        %v2137 = vunpack.c.h.b16 %v818
        %v2138 = vunpack.c.l.b16 %v819
        %v2139 = vunpack.c.h.b16 %v819
        %v2140 = vunpack.c.l.b16 %v820
        %v2141 = vunpack.c.h.b16 %v820
        %v2142 = vunpack.c.l.b16 %v821
        %v2143 = vunpack.c.h.b16 %v821
        %v2144 = vunpack.c.l.b16 %v822
        %v2145 = vunpack.c.h.b16 %v822
        %v2146 = vunpack.c.l.b16 %v823
        %v2147 = vunpack.c.h.b16 %v823
        %v2148 = vunpack.c.l.b16 %v824
        %v2149 = vunpack.c.h.b16 %v824
        %v2150 = vunpack.c.l.b16 %v825
        %v2151 = vunpack.c.h.b16 %v825
        %v2152 = vunpack.c.l.b16 %v826
        %v2153 = vunpack.c.h.b16 %v826
        %v2154 = vunpack.c.l.b16 %v827
        %v2155 = vunpack.c.h.b16 %v827
        %v2156 = vunpack.c.l.b16 %v828
        %v2157 = vunpack.c.h.b16 %v828
        %v2158 = vunpack.c.l.b16 %v829
        %v2159 = vunpack.c.h.b16 %v829
        %v2160 = vunpack.c.l.b16 %v830
        %v2161 = vunpack.c.h.b16 %v830
        %v2162 = vunpack.c.l.b16 %v831
        %v2163 = vunpack.c.h.b16 %v831
        %v2164 = vunpack.c.l.b16 %v832
        %v2165 = vunpack.c.h.b16 %v832
        %v2166 = vunpack.c.l.b16 %v833
        %v2167 = vunpack.c.h.b16 %v833
        %v2168 = vunpack.c.l.b16 %v834
        %v2169 = vunpack.c.h.b16 %v834
        %v2170 = vunpack.c.l.b16 %v835
        %v2171 = vunpack.c.h.b16 %v835
        %v2172 = vunpack.c.l.b16 %v836
        %v2173 = vunpack.c.h.b16 %v836
        %v2174 = vunpack.c.l.b16 %v837
        %v2175 = vunpack.c.h.b16 %v837
        %v2176 = vunpack.c.l.b16 %v838
        %v2177 = vunpack.c.h.b16 %v838
        %v2178 = vunpack.c.l.b16 %v839
        %v2179 = vunpack.c.h.b16 %v839
        %v2180 = vunpack.c.l.b16 %v840
        %v2181 = vunpack.c.h.b16 %v840
        %v2182 = vunpack.c.l.b16 %v841
        %v2183 = vunpack.c.h.b16 %v841
        %v2184 = vunpack.c.l.b16 %v842
        %v2185 = vunpack.c.h.b16 %v842
        %v2186 = vunpack.c.l.b16 %v843
        %v2187 = vunpack.c.h.b16 %v843
        %v2188 = vunpack.c.l.b16 %v844
        %v2189 = vunpack.c.h.b16 %v844
        %v2190 = vunpack.c.l.b16 %v845
        %v2191 = vunpack.c.h.b16 %v845
        %v2192 = vunpack.c.l.b16 %v846
        %v2193 = vunpack.c.h.b16 %v846
        %v2194 = vunpack.c.l.b16 %v847
        %v2195 = vunpack.c.h.b16 %v847
        %v2196 = vunpack.c.l.b16 %v848
        %v2197 = vunpack.c.h.b16 %v848
        %v2198 = vunpack.c.l.b16 %v849
        %v2199 = vunpack.c.h.b16 %v849
        %v2200 = vunpack.c.l.b16 %v850
        %v2201 = vunpack.c.h.b16 %v850
        %v2202 = vunpack.c.l.b16 %v851
        %v2203 = vunpack.c.h.b16 %v851
        %v2204 = vunpack.c.l.b16 %v852
        %v2205 = vunpack.c.h.b16 %v852
        %v2206 = vunpack.c.l.b16 %v853
        %v2207 = vunpack.c.h.b16 %v853
        %v2208 = vunpack.c.l.b16 %v854
        %v2209 = vunpack.c.h.b16 %v854
        %v2210 = vunpack.c.l.b16 %v855
        %v2211 = vunpack.c.h.b16 %v855
        %v2212 = vunpack.c.l.b16 %v856
        %v2213 = vunpack.c.h.b16 %v856
        %v2214 = vunpack.c.l.b16 %v857
        %v2215 = vunpack.c.h.b16 %v857
        %v2216 = vunpack.c.l.b16 %v858
        %v2217 = vunpack.c.h.b16 %v858
        %v2218 = vunpack.c.l.b16 %v859
        %v2219 = vunpack.c.h.b16 %v859
        %v2220 = vunpack.c.l.b16 %v860
        %v2221 = vunpack.c.h.b16 %v860
        %v2222 = vunpack.c.l.b16 %v861
        %v2223 = vunpack.c.h.b16 %v861
        %v2224 = vunpack.c.l.b16 %v862
        %v2225 = vunpack.c.h.b16 %v862
        %v2226 = vunpack.c.l.b16 %v863
        %v2227 = vunpack.c.h.b16 %v863
        %v2228 = vunpack.c.l.b16 %v864
        %v2229 = vunpack.c.h.b16 %v864
        %v2230 = vunpack.c.l.b16 %v865
        %v2231 = vunpack.c.h.b16 %v865
        %v2232 = vunpack.c.l.b16 %v866
        %v2233 = vunpack.c.h.b16 %v866
        %v2234 = vunpack.c.l.b16 %v867
        %v2235 = vunpack.c.h.b16 %v867
        %v2236 = vunpack.c.l.b16 %v868
        %v2237 = vunpack.c.h.b16 %v868
        %v2238 = vunpack.c.l.b16 %v869
        %v2239 = vunpack.c.h.b16 %v869
        %v2240 = vunpack.c.l.b16 %v870
        %v2241 = vunpack.c.h.b16 %v870
        %v2242 = vunpack.c.l.b16 %v871
        %v2243 = vunpack.c.h.b16 %v871
        %v2244 = vunpack.c.l.b16 %v872
        %v2245 = vunpack.c.h.b16 %v872
        %v2246 = vunpack.c.l.b16 %v873
        %v2247 = vunpack.c.h.b16 %v873
        %v2248 = vunpack.c.l.b16 %v874
        %v2249 = vunpack.c.h.b16 %v874
        %v2250 = vunpack.c.l.b16 %v875
        %v2251 = vunpack.c.h.b16 %v875
        %v2252 = vunpack.c.l.b16 %v876
        %v2253 = vunpack.c.h.b16 %v876
        %v2254 = vunpack.c.l.b16 %v877
        %v2255 = vunpack.c.h.b16 %v877
        %v2256 = vunpack.c.l.b16 %v878
        %v2257 = vunpack.c.h.b16 %v878
        %v2258 = vunpack.c.l.b16 %v879
        %v2259 = vunpack.c.h.b16 %v879
        %v2260 = vunpack.c.l.b16 %v880
        %v2261 = vunpack.c.h.b16 %v880
        %v2262 = vunpack.c.l.b16 %v881
        %v2263 = vunpack.c.h.b16 %v881
        %v2264 = vunpack.c.l.b16 %v882
        %v2265 = vunpack.c.h.b16 %v882
        %v2266 = vunpack.c.l.b16 %v883
        %v2267 = vunpack.c.h.b16 %v883
        %v2268 = vunpack.c.l.b16 %v884
        %v2269 = vunpack.c.h.b16 %v884
        %v2270 = vunpack.c.l.b16 %v885
        %v2271 = vunpack.c.h.b16 %v885
        %v2272 = vunpack.c.l.b16 %v886
        %v2273 = vunpack.c.h.b16 %v886
        %v2274 = vunpack.c.l.b16 %v887
        %v2275 = vunpack.c.h.b16 %v887
        %v2276 = vunpack.c.l.b16 %v888
        %v2277 = vunpack.c.h.b16 %v888
        %v2278 = vunpack.c.l.b16 %v889
        %v2279 = vunpack.c.h.b16 %v889
        %v2280 = vunpack.c.l.b16 %v890
        %v2281 = vunpack.c.h.b16 %v890
        %v2282 = vunpack.c.l.b16 %v891
        %v2283 = vunpack.c.h.b16 %v891
        %v2284 = vunpack.c.l.b16 %v892
        %v2285 = vunpack.c.h.b16 %v892
        %v2286 = vunpack.c.l.b16 %v893
        %v2287 = vunpack.c.h.b16 %v893
        %v2288 = vunpack.c.l.b16 %v894
        %v2289 = vunpack.c.h.b16 %v894
        %v2290 = vunpack.c.l.b16 %v895
        %v2291 = vunpack.c.h.b16 %v895
        %v2292 = vunpack.c.l.b16 %v896
        %v2293 = vunpack.c.h.b16 %v896
        %v2294 = vunpack.c.l.b16 %v897
        %v2295 = vunpack.c.h.b16 %v897
        %v2296 = vunpack.c.l.b16 %v898
        %v2297 = vunpack.c.h.b16 %v898
        %v2298 = vunpack.c.l.b16 %v899
        %v2299 = vunpack.c.h.b16 %v899
        %v2300 = vunpack.c.l.b16 %v900
        %v2301 = vunpack.c.h.b16 %v900
        %v2302 = vunpack.c.l.b16 %v901
        %v2303 = vunpack.c.h.b16 %v901
        %v2304 = vunpack.c.l.b16 %v902
        %v2305 = vunpack.c.h.b16 %v902
        %v2306 = vunpack.c.l.b16 %v903
        %v2307 = vunpack.c.h.b16 %v903
        %v2308 = vunpack.c.l.b16 %v904
        %v2309 = vunpack.c.h.b16 %v904
        %v2310 = vunpack.c.l.b16 %v905
        %v2311 = vunpack.c.h.b16 %v905
        %v2312 = vunpack.c.l.b16 %v906
        %v2313 = vunpack.c.h.b16 %v906
        %v2314 = vunpack.c.l.b16 %v907
        %v2315 = vunpack.c.h.b16 %v907
        %v2316 = vunpack.c.l.b16 %v908
        %v2317 = vunpack.c.h.b16 %v908
        %v2318 = vunpack.c.l.b16 %v909
        %v2319 = vunpack.c.h.b16 %v909
        %v2320 = vunpack.c.l.b16 %v910
        %v2321 = vunpack.c.h.b16 %v910
        %v2322 = vunpack.c.l.b16 %v911
        %v2323 = vunpack.c.h.b16 %v911
        %v2324 = vunpack.c.l.b16 %v912
        %v2325 = vunpack.c.h.b16 %v912
        %v2326 = vunpack.c.l.b16 %v913
        %v2327 = vunpack.c.h.b16 %v913
        %v2328 = vunpack.c.l.b16 %v914
        %v2329 = vunpack.c.h.b16 %v914
        %v2330 = vunpack.c.l.b16 %v915
        %v2331 = vunpack.c.h.b16 %v915
        %v2332 = vunpack.c.l.b16 %v916
        %v2333 = vunpack.c.h.b16 %v916
        %v2334 = vunpack.c.l.b16 %v917
        %v2335 = vunpack.c.h.b16 %v917
        %v2336 = vunpack.c.l.b16 %v918
        %v2337 = vunpack.c.h.b16 %v918
        %v2338 = vunpack.c.l.b16 %v919
        %v2339 = vunpack.c.h.b16 %v919
        %v2340 = vunpack.c.l.b16 %v920
        %v2341 = vunpack.c.h.b16 %v920
        %v2342 = vunpack.c.l.b16 %v921
        %v2343 = vunpack.c.h.b16 %v921
        %v2344 = vunpack.c.l.b16 %v922
        %v2345 = vunpack.c.h.b16 %v922
        %v2346 = vunpack.c.l.b16 %v923
        %v2347 = vunpack.c.h.b16 %v923
        %v2348 = vunpack.c.l.b16 %v924
        %v2349 = vunpack.c.h.b16 %v924
        %v2350 = vunpack.c.l.b16 %v925
        %v2351 = vunpack.c.h.b16 %v925
        %v2352 = vunpack.c.l.b16 %v926
        %v2353 = vunpack.c.h.b16 %v926
        %v2354 = vunpack.c.l.b16 %v927
        %v2355 = vunpack.c.h.b16 %v927
        %v2356 = vunpack.c.l.b16 %v928
        %v2357 = vunpack.c.h.b16 %v928
        %v2358 = vunpack.c.l.b16 %v929
        %v2359 = vunpack.c.h.b16 %v929
        %v2360 = vunpack.c.l.b16 %v930
        %v2361 = vunpack.c.h.b16 %v930
        %v2362 = vunpack.c.l.b16 %v931
        %v2363 = vunpack.c.h.b16 %v931
        %v2364 = vunpack.c.l.b16 %v932
        %v2365 = vunpack.c.h.b16 %v932
        %v2366 = vunpack.c.l.b16 %v933
        %v2367 = vunpack.c.h.b16 %v933
        %v2368 = vunpack.c.l.b16 %v934
        %v2369 = vunpack.c.h.b16 %v934
        %v2370 = vunpack.c.l.b16 %v935
        %v2371 = vunpack.c.h.b16 %v935
        %v2372 = vunpack.c.l.b16 %v936
        %v2373 = vunpack.c.h.b16 %v936
        %v2374 = vunpack.c.l.b16 %v937
        %v2375 = vunpack.c.h.b16 %v937
        %v2376 = vunpack.c.l.b16 %v938
        %v2377 = vunpack.c.h.b16 %v938
        %v2378 = vunpack.c.l.b16 %v939
        %v2379 = vunpack.c.h.b16 %v939
        %v2380 = vunpack.c.l.b16 %v940
        %v2381 = vunpack.c.h.b16 %v940
        %v2382 = vunpack.c.l.b16 %v941
        %v2383 = vunpack.c.h.b16 %v941
        %v2384 = vunpack.c.l.b16 %v942
        %v2385 = vunpack.c.h.b16 %v942
        %v2386 = vunpack.c.l.b16 %v943
        %v2387 = vunpack.c.h.b16 %v943
        %v2388 = vunpack.c.l.b16 %v944
        %v2389 = vunpack.c.h.b16 %v944
        %v2390 = vunpack.c.l.b16 %v945
        %v2391 = vunpack.c.h.b16 %v945
        %v2392 = vunpack.c.l.b16 %v946
        %v2393 = vunpack.c.h.b16 %v946
        %v2394 = vunpack.c.l.b16 %v947
        %v2395 = vunpack.c.h.b16 %v947
        %v2396 = vunpack.c.l.b16 %v948
        %v2397 = vunpack.c.h.b16 %v948
        %v2398 = vunpack.c.l.b16 %v949
        %v2399 = vunpack.c.h.b16 %v949
        %v2400 = vunpack.c.l.b16 %v950
        %v2401 = vunpack.c.h.b16 %v950
        %v2402 = vunpack.c.l.b16 %v951
        %v2403 = vunpack.c.h.b16 %v951
        %v2404 = vunpack.c.l.b16 %v952
        %v2405 = vunpack.c.h.b16 %v952
        %v2406 = vunpack.c.l.b16 %v953
        %v2407 = vunpack.c.h.b16 %v953
        %v2408 = vunpack.c.l.b16 %v954
        %v2409 = vunpack.c.h.b16 %v954
        %v2410 = vunpack.c.l.b16 %v955
        %v2411 = vunpack.c.h.b16 %v955
        %v2412 = vunpack.c.l.b16 %v956
        %v2413 = vunpack.c.h.b16 %v956
        %v2414 = vunpack.c.l.b16 %v957
        %v2415 = vunpack.c.h.b16 %v957
        %v2416 = vunpack.c.l.b16 %v958
        %v2417 = vunpack.c.h.b16 %v958
        %v2418 = vunpack.c.l.b16 %v959
        %v2419 = vunpack.c.h.b16 %v959
        %v2420 = vunpack.c.l.b16 %v960
        %v2421 = vunpack.c.h.b16 %v960
        %v2422 = vunpack.c.l.b16 %v961
        %v2423 = vunpack.c.h.b16 %v961
        %v2424 = vunpack.c.l.b16 %v962
        %v2425 = vunpack.c.h.b16 %v962
        %v2426 = vunpack.c.l.b16 %v963
        %v2427 = vunpack.c.h.b16 %v963
        %v2428 = vunpack.c.l.b16 %v964
        %v2429 = vunpack.c.h.b16 %v964
        %v2430 = vunpack.c.l.b16 %v965
        %v2431 = vunpack.c.h.b16 %v965
        %v2432 = vunpack.c.l.b16 %v966
        %v2433 = vunpack.c.h.b16 %v966
        %v2434 = vunpack.c.l.b16 %v967
        %v2435 = vunpack.c.h.b16 %v967
        %v2436 = vunpack.c.l.b16 %v968
        %v2437 = vunpack.c.h.b16 %v968
        %v2438 = vunpack.c.l.b16 %v969
        %v2439 = vunpack.c.h.b16 %v969
        %v2440 = vunpack.c.l.b16 %v970
        %v2441 = vunpack.c.h.b16 %v970
        %v2442 = vunpack.c.l.b16 %v971
        %v2443 = vunpack.c.h.b16 %v971
        %v2444 = vunpack.c.l.b16 %v972
        %v2445 = vunpack.c.h.b16 %v972
        %v2446 = vunpack.c.l.b16 %v973
        %v2447 = vunpack.c.h.b16 %v973
        %v2448 = vunpack.c.l.b16 %v974
        %v2449 = vunpack.c.h.b16 %v974
        %v2450 = vunpack.c.l.b16 %v975
        %v2451 = vunpack.c.h.b16 %v975
        %v2452 = vunpack.c.l.b16 %v976
        %v2453 = vunpack.c.h.b16 %v976
        %v2454 = vunpack.c.l.b16 %v977
        %v2455 = vunpack.c.h.b16 %v977
        %v2456 = vunpack.c.l.b16 %v978
        %v2457 = vunpack.c.h.b16 %v978
        %v2458 = vunpack.c.l.b16 %v979
        %v2459 = vunpack.c.h.b16 %v979
        %v2460 = vunpack.c.l.b16 %v980
        %v2461 = vunpack.c.h.b16 %v980
        %v2462 = vunpack.c.l.b16 %v981
        %v2463 = vunpack.c.h.b16 %v981
        %v2464 = vunpack.c.l.b16 %v982
        %v2465 = vunpack.c.h.b16 %v982
        %v2466 = vunpack.c.l.b16 %v983
        %v2467 = vunpack.c.h.b16 %v983
        %v2468 = vunpack.c.l.b16 %v984
        %v2469 = vunpack.c.h.b16 %v984
        %v2470 = vunpack.c.l.b16 %v985
        %v2471 = vunpack.c.h.b16 %v985
        %v2472 = vunpack.c.l.b16 %v986
        %v2473 = vunpack.c.h.b16 %v986
        %v2474 = vunpack.c.l.b16 %v987
        %v2475 = vunpack.c.h.b16 %v987
        %v2476 = vunpack.c.l.b16 %v988
        %v2477 = vunpack.c.h.b16 %v988
        %v2478 = vunpack.c.l.b16 %v989
        %v2479 = vunpack.c.h.b16 %v989
        %v2480 = vunpack.c.l.b16 %v990
        %v2481 = vunpack.c.h.b16 %v990
        %v2482 = vunpack.c.l.b16 %v991
        %v2483 = vunpack.c.h.b16 %v991
        %v2484 = vunpack.c.l.b16 %v992
        %v2485 = vunpack.c.h.b16 %v992
        %v2486 = vunpack.c.l.b16 %v993
        %v2487 = vunpack.c.h.b16 %v993
        %v2488 = vunpack.c.l.b16 %v994
        %v2489 = vunpack.c.h.b16 %v994
        %v2490 = vunpack.c.l.b16 %v995
        %v2491 = vunpack.c.h.b16 %v995
        %v2492 = vunpack.c.l.b16 %v996
        %v2493 = vunpack.c.h.b16 %v996
        %v2494 = vunpack.c.l.b16 %v997
        %v2495 = vunpack.c.h.b16 %v997
        %v2496 = vunpack.c.l.b16 %v998
        %v2497 = vunpack.c.h.b16 %v998
        %v2498 = vunpack.c.l.b16 %v999
        %v2499 = vunpack.c.h.b16 %v999
        %v2500 = vunpack.c.l.b16 %v1000
        %v2501 = vunpack.c.h.b16 %v1000
        %v2502 = vunpack.c.l.b16 %v1001
        %v2503 = vunpack.c.h.b16 %v1001
        %v2504 = vunpack.c.l.b16 %v1002
        %v2505 = vunpack.c.h.b16 %v1002
        %v2506 = vunpack.c.l.b16 %v1003
        %v2507 = vunpack.c.h.b16 %v1003
        %v2508 = vunpack.c.l.b16 %v1004
        %v2509 = vunpack.c.h.b16 %v1004
        %v2510 = vunpack.c.l.b16 %v1005
        %v2511 = vunpack.c.h.b16 %v1005
        %v2512 = vunpack.c.l.b16 %v1006
        %v2513 = vunpack.c.h.b16 %v1006
        %v2514 = vunpack.c.l.b16 %v1007
        %v2515 = vunpack.c.h.b16 %v1007
        %v2516 = vunpack.c.l.b16 %v1008
        %v2517 = vunpack.c.h.b16 %v1008
        %v2518 = vunpack.c.l.b16 %v1009
        %v2519 = vunpack.c.h.b16 %v1009
        %v2520 = vunpack.c.l.b16 %v1010
        %v2521 = vunpack.c.h.b16 %v1010
        %v2522 = vunpack.c.l.b16 %v1011
        %v2523 = vunpack.c.h.b16 %v1011
        %v2524 = vunpack.c.l.b16 %v1012
        %v2525 = vunpack.c.h.b16 %v1012
        %v2526 = vunpack.c.l.b16 %v1013
        %v2527 = vunpack.c.h.b16 %v1013
        %v2528 = vunpack.c.l.b16 %v1014
        %v2529 = vunpack.c.h.b16 %v1014
        %v2530 = vunpack.c.l.b16 %v1015
        %v2531 = vunpack.c.h.b16 %v1015
        %v2532 = vunpack.c.l.b16 %v1016
        %v2533 = vunpack.c.h.b16 %v1016
        %v2534 = vunpack.c.l.b16 %v1017
        %v2535 = vunpack.c.h.b16 %v1017
        %v2536 = vunpack.c.l.b16 %v1018
        %v2537 = vunpack.c.h.b16 %v1018
        %v2538 = vunpack.c.l.b16 %v1019
        %v2539 = vunpack.c.h.b16 %v1019
        %v2540 = vunpack.c.l.b16 %v1020
        %v2541 = vunpack.c.h.b16 %v1020
        %v2542 = vunpack.c.l.b16 %v1021
        %v2543 = vunpack.c.h.b16 %v1021
        %v2544 = vunpack.c.l.b16 %v1022
        %v2545 = vunpack.c.h.b16 %v1022
        %v2546 = vunpack.c.l.b16 %v1023
        %v2547 = vunpack.c.h.b16 %v1023
        %v2548 = vunpack.c.l.b16 %v1024
        %v2549 = vunpack.c.h.b16 %v1024
        %v2550 = vunpack.c.l.b16 %v1025
        %v2551 = vunpack.c.h.b16 %v1025
        %v2552 = vunpack.c.l.b16 %v1026
        %v2553 = vunpack.c.h.b16 %v1026
        %v2554 = vunpack.c.l.b16 %v1027
        %v2555 = vunpack.c.h.b16 %v1027
        %v2556 = vunpack.c.l.b16 %v1028
        %v2557 = vunpack.c.h.b16 %v1028
        %v2558 = vunpack.c.l.b16 %v1029
        %v2559 = vunpack.c.h.b16 %v1029
        %v2560 = vunpack.c.l.b16 %v1030
        %v2561 = vunpack.c.h.b16 %v1030
        %v2562 = vunpack.c.l.b16 %v1031
        %v2563 = vunpack.c.h.b16 %v1031
        %v2564 = vunpack.c.l.b16 %v1032
        %v2565 = vunpack.c.h.b16 %v1032
        %v2566 = vunpack.c.l.b16 %v1033
        %v2567 = vunpack.c.h.b16 %v1033
        %v2568 = vunpack.c.l.b16 %v1034
        %v2569 = vunpack.c.h.b16 %v1034
        %v2570 = vunpack.c.l.b16 %v1035
        %v2571 = vunpack.c.h.b16 %v1035
        %v2572 = vunpack.c.l.b16 %v1036
        %v2573 = vunpack.c.h.b16 %v1036
        %v2574 = vunpack.c.l.b16 %v1037
        %v2575 = vunpack.c.h.b16 %v1037
        %v2576 = vunpack.c.l.b16 %v1038
        %v2577 = vunpack.c.h.b16 %v1038
        %v2578 = vunpack.c.l.b16 %v1039
        %v2579 = vunpack.c.h.b16 %v1039
        %v2580 = vunpack.c.l.b16 %v1040
        %v2581 = vunpack.c.h.b16 %v1040
        %v2582 = vunpack.c.l.b16 %v1041
        %v2583 = vunpack.c.h.b16 %v1041
        %v2584 = vunpack.c.l.b16 %v1042
        %v2585 = vunpack.c.h.b16 %v1042
        %v2586 = vunpack.c.l.b16 %v1043
        %v2587 = vunpack.c.h.b16 %v1043
        %v2588 = vunpack.c.l.b16 %v1044
        %v2589 = vunpack.c.h.b16 %v1044
        %v2590 = vunpack.c.l.b16 %v1045
        %v2591 = vunpack.c.h.b16 %v1045
        %v2592 = vunpack.c.l.b16 %v1046
        %v2593 = vunpack.c.h.b16 %v1046
        %v2594 = vunpack.c.l.b16 %v1047
        %v2595 = vunpack.c.h.b16 %v1047
        %v2596 = vunpack.c.l.b16 %v1048
        %v2597 = vunpack.c.h.b16 %v1048
        %v2598 = vunpack.c.l.b16 %v1049
        %v2599 = vunpack.c.h.b16 %v1049
        %v2600 = vunpack.c.l.b16 %v1050
        %v2601 = vunpack.c.h.b16 %v1050
        %v2602 = vunpack.c.l.b16 %v1051
        %v2603 = vunpack.c.h.b16 %v1051
        %v2604 = vunpack.c.l.b16 %v1052
        %v2605 = vunpack.c.h.b16 %v1052
        %v2606 = vunpack.c.l.b16 %v1053
        %v2607 = vunpack.c.h.b16 %v1053
        %v2608 = vunpack.c.l.b16 %v1054
        %v2609 = vunpack.c.h.b16 %v1054
        %v2610 = vunpack.c.l.b16 %v1055
        %v2611 = vunpack.c.h.b16 %v1055
        %v2612 = vunpack.c.l.b16 %v1056
        %v2613 = vunpack.c.h.b16 %v1056
        %v2614 = vunpack.c.l.b16 %v1057
        %v2615 = vunpack.c.h.b16 %v1057
        %v2616 = vunpack.c.l.b16 %v1058
        %v2617 = vunpack.c.h.b16 %v1058
        %v2618 = vunpack.c.l.b16 %v1059
        %v2619 = vunpack.c.h.b16 %v1059
        %v2620 = vunpack.c.l.b16 %v1060
        %v2621 = vunpack.c.h.b16 %v1060
        %v2622 = vunpack.c.l.b16 %v1061
        %v2623 = vunpack.c.h.b16 %v1061
        %v2624 = vunpack.c.l.b16 %v1062
        %v2625 = vunpack.c.h.b16 %v1062
        %v2626 = vunpack.c.l.b16 %v1063
        %v2627 = vunpack.c.h.b16 %v1063
        %v2628 = vunpack.c.l.b16 %v1064
        %v2629 = vunpack.c.h.b16 %v1064
        %v2630 = vunpack.c.l.b16 %v1065
        %v2631 = vunpack.c.h.b16 %v1065
        %v2632 = vunpack.c.l.b16 %v1066
        %v2633 = vunpack.c.h.b16 %v1066
        %v2634 = vunpack.c.l.b16 %v1067
        %v2635 = vunpack.c.h.b16 %v1067
        %v2636 = vunpack.c.l.b16 %v1068
        %v2637 = vunpack.c.h.b16 %v1068
        %v2638 = vunpack.c.l.b16 %v1069
        %v2639 = vunpack.c.h.b16 %v1069
        %v2640 = vunpack.c.l.b16 %v1070
        %v2641 = vunpack.c.h.b16 %v1070
        %v2642 = vunpack.c.l.b16 %v1071
        %v2643 = vunpack.c.h.b16 %v1071
        %v2644 = vunpack.c.l.b16 %v1072
        %v2645 = vunpack.c.h.b16 %v1072
        %v2646 = vunpack.c.l.b16 %v1073
        %v2647 = vunpack.c.h.b16 %v1073
        %v2648 = vunpack.c.l.b16 %v1074
        %v2649 = vunpack.c.h.b16 %v1074
        %v2650 = vunpack.c.l.b16 %v1075
        %v2651 = vunpack.c.h.b16 %v1075
        %v2652 = vunpack.c.l.b16 %v1076
        %v2653 = vunpack.c.h.b16 %v1076
        %v2654 = vunpack.c.l.b16 %v1077
        %v2655 = vunpack.c.h.b16 %v1077
        %v2656 = vunpack.c.l.b16 %v1078
        %v2657 = vunpack.c.h.b16 %v1078
        %v2658 = vunpack.c.l.b16 %v1079
        %v2659 = vunpack.c.h.b16 %v1079
        %v2660 = vunpack.c.l.b16 %v1080
        %v2661 = vunpack.c.h.b16 %v1080
        %v2662 = vunpack.c.l.b16 %v1081
        %v2663 = vunpack.c.h.b16 %v1081
        %v2664 = vunpack.c.l.b16 %v1082
        %v2665 = vunpack.c.h.b16 %v1082
        %v2666 = vunpack.c.l.b16 %v1083
        %v2667 = vunpack.c.h.b16 %v1083
        %v2668 = vunpack.c.l.b16 %v1084
        %v2669 = vunpack.c.h.b16 %v1084
        %v2670 = vunpack.c.l.b16 %v1085
        %v2671 = vunpack.c.h.b16 %v1085
        %v2672 = vunpack.c.l.b16 %v1086
        %v2673 = vunpack.c.h.b16 %v1086
        %v2674 = vunpack.c.l.b16 %v1087
        %v2675 = vunpack.c.h.b16 %v1087
        %v2676 = vunpack.c.l.b16 %v1088
        %v2677 = vunpack.c.h.b16 %v1088
        %v2678 = vunpack.c.l.b16 %v1089
        %v2679 = vunpack.c.h.b16 %v1089
        %v2680 = vunpack.c.l.b16 %v1090
        %v2681 = vunpack.c.h.b16 %v1090
        %v2682 = vunpack.c.l.b16 %v1091
        %v2683 = vunpack.c.h.b16 %v1091
        %v2684 = vunpack.c.l.b16 %v1092
        %v2685 = vunpack.c.h.b16 %v1092
        %v2686 = vunpack.c.l.b16 %v1093
        %v2687 = vunpack.c.h.b16 %v1093
        %v2688 = vunpack.c.l.b16 %v1094
        %v2689 = vunpack.c.h.b16 %v1094
        %v2690 = vunpack.c.l.b16 %v1095
        %v2691 = vunpack.c.h.b16 %v1095
        %v2692 = vunpack.c.l.b16 %v1096
        %v2693 = vunpack.c.h.b16 %v1096
        %v2694 = vunpack.c.l.b16 %v1097
        %v2695 = vunpack.c.h.b16 %v1097
        %v2696 = vunpack.c.l.b16 %v1098
        %v2697 = vunpack.c.h.b16 %v1098
        %v2698 = vunpack.c.l.b16 %v1099
        %v2699 = vunpack.c.h.b16 %v1099
        %v2700 = vunpack.c.l.b16 %v1100
        %v2701 = vunpack.c.h.b16 %v1100
        %v2702 = vunpack.c.l.b16 %v1101
        %v2703 = vunpack.c.h.b16 %v1101
        %v2704 = vunpack.c.l.b16 %v1102
        %v2705 = vunpack.c.h.b16 %v1102
        %v2706 = vunpack.c.l.b16 %v1103
        %v2707 = vunpack.c.h.b16 %v1103
        %v2708 = vunpack.c.l.b16 %v1104
        %v2709 = vunpack.c.h.b16 %v1104
        %v2710 = vunpack.c.l.b16 %v1105
        %v2711 = vunpack.c.h.b16 %v1105
        %v2712 = vunpack.c.l.b16 %v1106
        %v2713 = vunpack.c.h.b16 %v1106
        %v2714 = vunpack.c.l.b16 %v1107
        %v2715 = vunpack.c.h.b16 %v1107
        %v2716 = vunpack.c.l.b16 %v1108
        %v2717 = vunpack.c.h.b16 %v1108
        %v2718 = vunpack.c.l.b16 %v1109
        %v2719 = vunpack.c.h.b16 %v1109
        %v2720 = vunpack.c.l.b16 %v1110
        %v2721 = vunpack.c.h.b16 %v1110
        %v2722 = vunpack.c.l.b16 %v1111
        %v2723 = vunpack.c.h.b16 %v1111
        %v2724 = vunpack.c.l.b16 %v1112
        %v2725 = vunpack.c.h.b16 %v1112
        %v2726 = vunpack.c.l.b16 %v1113
        %v2727 = vunpack.c.h.b16 %v1113
        %v2728 = vunpack.c.l.b16 %v1114
        %v2729 = vunpack.c.h.b16 %v1114
        %v2730 = vunpack.c.l.b16 %v1115
        %v2731 = vunpack.c.h.b16 %v1115
        %v2732 = vunpack.c.l.b16 %v1116
        %v2733 = vunpack.c.h.b16 %v1116
        %v2734 = vunpack.c.l.b16 %v1117
        %v2735 = vunpack.c.h.b16 %v1117
        %v2736 = vunpack.c.l.b16 %v1118
        %v2737 = vunpack.c.h.b16 %v1118
        %v2738 = vunpack.c.l.b16 %v1119
        %v2739 = vunpack.c.h.b16 %v1119
        %v2740 = vunpack.c.l.b16 %v1120
        %v2741 = vunpack.c.h.b16 %v1120
        %v2742 = vunpack.c.l.b16 %v1121
        %v2743 = vunpack.c.h.b16 %v1121
        %v2744 = vunpack.c.l.b16 %v1122
        %v2745 = vunpack.c.h.b16 %v1122
        %v2746 = vunpack.c.l.b16 %v1123
        %v2747 = vunpack.c.h.b16 %v1123
        %v2748 = vunpack.c.l.b16 %v1124
        %v2749 = vunpack.c.h.b16 %v1124
        %v2750 = vunpack.c.l.b16 %v1125
        %v2751 = vunpack.c.h.b16 %v1125
        %v2752 = vunpack.c.l.b16 %v1126
        %v2753 = vunpack.c.h.b16 %v1126
        %v2754 = vunpack.c.l.b16 %v1127
        %v2755 = vunpack.c.h.b16 %v1127
        %v2756 = vunpack.c.l.b16 %v1128
        %v2757 = vunpack.c.h.b16 %v1128
        %v2758 = vunpack.c.l.b16 %v1129
        %v2759 = vunpack.c.h.b16 %v1129
        %v2760 = vunpack.c.l.b16 %v1130
        %v2761 = vunpack.c.h.b16 %v1130
        %v2762 = vunpack.c.l.b16 %v1131
        %v2763 = vunpack.c.h.b16 %v1131
        %v2764 = vunpack.c.l.b16 %v1132
        %v2765 = vunpack.c.h.b16 %v1132
        %v2766 = vunpack.c.l.b16 %v1133
        %v2767 = vunpack.c.h.b16 %v1133
        %v2768 = vunpack.c.l.b16 %v1134
        %v2769 = vunpack.c.h.b16 %v1134
        %v2770 = vunpack.c.l.b16 %v1135
        %v2771 = vunpack.c.h.b16 %v1135
        %v2772 = vunpack.c.l.b16 %v1136
        %v2773 = vunpack.c.h.b16 %v1136
        %v2774 = vunpack.c.l.b16 %v1137
        %v2775 = vunpack.c.h.b16 %v1137
        %v2776 = vunpack.c.l.b16 %v1138
        %v2777 = vunpack.c.h.b16 %v1138
        %v2778 = vunpack.c.l.b16 %v1139
        %v2779 = vunpack.c.h.b16 %v1139
        %v2780 = vunpack.c.l.b16 %v1140
        %v2781 = vunpack.c.h.b16 %v1140
        %v2782 = vunpack.c.l.b16 %v1141
        %v2783 = vunpack.c.h.b16 %v1141
        %v2784 = vunpack.c.l.b16 %v1142
        %v2785 = vunpack.c.h.b16 %v1142
        %v2786 = vunpack.c.l.b16 %v1143
        %v2787 = vunpack.c.h.b16 %v1143
        %v2788 = vunpack.c.l.b16 %v1144
        %v2789 = vunpack.c.h.b16 %v1144
        %v2790 = vunpack.c.l.b16 %v1145
        %v2791 = vunpack.c.h.b16 %v1145
        %v2792 = vunpack.c.l.b16 %v1146
        %v2793 = vunpack.c.h.b16 %v1146
        %v2794 = vunpack.c.l.b16 %v1147
        %v2795 = vunpack.c.h.b16 %v1147
        %v2796 = vunpack.c.l.b16 %v1148
        %v2797 = vunpack.c.h.b16 %v1148
        %v2798 = vunpack.c.l.b16 %v1149
        %v2799 = vunpack.c.h.b16 %v1149
        %v2800 = vunpack.c.l.b16 %v1150
        %v2801 = vunpack.c.h.b16 %v1150
        %v2802 = vunpack.c.l.b16 %v1151
        %v2803 = vunpack.c.h.b16 %v1151
        %v2804 = vunpack.c.l.b16 %v1152
        %v2805 = vunpack.c.h.b16 %v1152
        %v2806 = vunpack.c.l.b16 %v1153
        %v2807 = vunpack.c.h.b16 %v1153
        %v2808 = vunpack.c.l.b16 %v1154
        %v2809 = vunpack.c.h.b16 %v1154
        %v2810 = vunpack.c.l.b16 %v1155
        %v2811 = vunpack.c.h.b16 %v1155
        %v2812 = vunpack.c.l.b16 %v1156
        %v2813 = vunpack.c.h.b16 %v1156
        %v2814 = vunpack.c.l.b16 %v1157
        %v2815 = vunpack.c.h.b16 %v1157
        %v2816 = vunpack.c.l.b16 %v1158
        %v2817 = vunpack.c.h.b16 %v1158
        %v2818 = vunpack.c.l.b16 %v1159
        %v2819 = vunpack.c.h.b16 %v1159
        %v2820 = vunpack.c.l.b16 %v1160
        %v2821 = vunpack.c.h.b16 %v1160
        %v2822 = vunpack.c.l.b16 %v1161
        %v2823 = vunpack.c.h.b16 %v1161
        %v2824 = vunpack.c.l.b16 %v1162
        %v2825 = vunpack.c.h.b16 %v1162
        %v2826 = vunpack.c.l.b16 %v1163
        %v2827 = vunpack.c.h.b16 %v1163
        %v2828 = vunpack.c.l.b16 %v1164
        %v2829 = vunpack.c.h.b16 %v1164
        %v2830 = vunpack.c.l.b16 %v1165
        %v2831 = vunpack.c.h.b16 %v1165
        %v2832 = vunpack.c.l.b16 %v1166
        %v2833 = vunpack.c.h.b16 %v1166
        %v2834 = vunpack.c.l.b16 %v1167
        %v2835 = vunpack.c.h.b16 %v1167
        %v2836 = vunpack.c.l.b16 %v1168
        %v2837 = vunpack.c.h.b16 %v1168
        %v2838 = vunpack.c.l.b16 %v1169
        %v2839 = vunpack.c.h.b16 %v1169
        %v2840 = vunpack.c.l.b16 %v1170
        %v2841 = vunpack.c.h.b16 %v1170
        %v2842 = vunpack.c.l.b16 %v1171
        %v2843 = vunpack.c.h.b16 %v1171
        %v2844 = vunpack.c.l.b16 %v1172
        %v2845 = vunpack.c.h.b16 %v1172
        %v2846 = vunpack.c.l.b16 %v1173
        %v2847 = vunpack.c.h.b16 %v1173
        %v2848 = vunpack.c.l.b16 %v1174
        %v2849 = vunpack.c.h.b16 %v1174
        %v2850 = vunpack.c.l.b16 %v1175
        %v2851 = vunpack.c.h.b16 %v1175
        %v2852 = vunpack.c.l.b16 %v1176
        %v2853 = vunpack.c.h.b16 %v1176
        %v2854 = vunpack.c.l.b16 %v1177
        %v2855 = vunpack.c.h.b16 %v1177
        %v2856 = vunpack.c.l.b16 %v1178
        %v2857 = vunpack.c.h.b16 %v1178
        %v2858 = vunpack.c.l.b16 %v1179
        %v2859 = vunpack.c.h.b16 %v1179
        %v2860 = vunpack.c.l.b16 %v1180
        %v2861 = vunpack.c.h.b16 %v1180
        %v2862 = vunpack.c.l.b16 %v1181
        %v2863 = vunpack.c.h.b16 %v1181
        %v2864 = vunpack.c.l.b16 %v1182
        %v2865 = vunpack.c.h.b16 %v1182
        %v2866 = vunpack.c.l.b16 %v1183
        %v2867 = vunpack.c.h.b16 %v1183
        %v2868 = vunpack.c.l.b16 %v1184
        %v2869 = vunpack.c.h.b16 %v1184
        %v2870 = vunpack.c.l.b16 %v1185
        %v2871 = vunpack.c.h.b16 %v1185
        %v2872 = vunpack.c.l.b16 %v1186
        %v2873 = vunpack.c.h.b16 %v1186
        %v2874 = vunpack.c.l.b16 %v1187
        %v2875 = vunpack.c.h.b16 %v1187
        %v2876 = vunpack.c.l.b16 %v1188
        %v2877 = vunpack.c.h.b16 %v1188
        %v2878 = vunpack.c.l.b16 %v1189
        %v2879 = vunpack.c.h.b16 %v1189
        %v2880 = vunpack.c.l.b16 %v1190
        %v2881 = vunpack.c.h.b16 %v1190
        %v2882 = vunpack.c.l.b16 %v1191
        %v2883 = vunpack.c.h.b16 %v1191
        %v2884 = vunpack.c.l.b16 %v1192
        %v2885 = vunpack.c.h.b16 %v1192
        %v2886 = vunpack.c.l.b16 %v1193
        %v2887 = vunpack.c.h.b16 %v1193
        %v2888 = vunpack.c.l.b16 %v1194
        %v2889 = vunpack.c.h.b16 %v1194
        %v2890 = vunpack.c.l.b16 %v1195
        %v2891 = vunpack.c.h.b16 %v1195
        %v2892 = vunpack.c.l.b16 %v1196
        %v2893 = vunpack.c.h.b16 %v1196
        %v2894 = vunpack.c.l.b16 %v1197
        %v2895 = vunpack.c.h.b16 %v1197
        %v2896 = vunpack.c.l.b16 %v1198
        %v2897 = vunpack.c.h.b16 %v1198
        %v2898 = vunpack.c.l.b16 %v1199
        %v2899 = vunpack.c.h.b16 %v1199
        %v2900 = vunpack.c.l.b16 %v1200
        %v2901 = vunpack.c.h.b16 %v1200
        %v2902 = vunpack.c.l.b16 %v1201
        %v2903 = vunpack.c.h.b16 %v1201
        %v2904 = vunpack.c.l.b16 %v1202
        %v2905 = vunpack.c.h.b16 %v1202
        %v2906 = vunpack.c.l.b16 %v1203
        %v2907 = vunpack.c.h.b16 %v1203
        %v2908 = vunpack.c.l.b16 %v1204
        %v2909 = vunpack.c.h.b16 %v1204
        %v2910 = vunpack.c.l.b16 %v1205
        %v2911 = vunpack.c.h.b16 %v1205
        %v2912 = vunpack.c.l.b16 %v1206
        %v2913 = vunpack.c.h.b16 %v1206
        %v2914 = vunpack.c.l.b16 %v1207
        %v2915 = vunpack.c.h.b16 %v1207
        %v2916 = vunpack.c.l.b16 %v1208
        %v2917 = vunpack.c.h.b16 %v1208
        %v2918 = vunpack.c.l.b16 %v1209
        %v2919 = vunpack.c.h.b16 %v1209
        %v2920 = vunpack.c.l.b16 %v1210
        %v2921 = vunpack.c.h.b16 %v1210
        %v2922 = vunpack.c.l.b16 %v1211
        %v2923 = vunpack.c.h.b16 %v1211
        %v2924 = vunpack.c.l.b16 %v1212
        %v2925 = vunpack.c.h.b16 %v1212
        %v2926 = vunpack.c.l.b16 %v1213
        %v2927 = vunpack.c.h.b16 %v1213
        %v2928 = vunpack.c.l.b16 %v1214
        %v2929 = vunpack.c.h.b16 %v1214
        %v2930 = vunpack.c.l.b16 %v1215
        %v2931 = vunpack.c.h.b16 %v1215
        %v2932 = vunpack.c.l.b16 %v1216
        %v2933 = vunpack.c.h.b16 %v1216
        %v2934 = vunpack.c.l.b16 %v1217
        %v2935 = vunpack.c.h.b16 %v1217
        %v2936 = vunpack.c.l.b16 %v1218
        %v2937 = vunpack.c.h.b16 %v1218
        %v2938 = vunpack.c.l.b16 %v1219
        %v2939 = vunpack.c.h.b16 %v1219
        %v2940 = vunpack.c.l.b16 %v1220
        %v2941 = vunpack.c.h.b16 %v1220
        %v2942 = vunpack.c.l.b16 %v1221
        %v2943 = vunpack.c.h.b16 %v1221
        %v2944 = vunpack.c.l.b16 %v1222
        %v2945 = vunpack.c.h.b16 %v1222
        %v2946 = vunpack.c.l.b16 %v1223
        %v2947 = vunpack.c.h.b16 %v1223
        %v2948 = vunpack.c.l.b16 %v1224
        %v2949 = vunpack.c.h.b16 %v1224
        %v2950 = vunpack.c.l.b16 %v1225
        %v2951 = vunpack.c.h.b16 %v1225
        %v2952 = vunpack.c.l.b16 %v1226
        %v2953 = vunpack.c.h.b16 %v1226
        %v2954 = vunpack.c.l.b16 %v1227
        %v2955 = vunpack.c.h.b16 %v1227
        %v2956 = vpack.c.b16 %v1816, %v1804
        %v2957 = vpack.c.b16 %v1817, %v1805
        %v2958 = vpack.c.b16 %v1818, %v1806
        %v2959 = vpack.c.b16 %v1819, %v1807
        %v2960 = vpack.c.b16 %v1820, %v1808
        %v2961 = vpack.c.b16 %v1821, %v1809
        %v2962 = vpack.c.b16 %v1822, %v1810
        %v2963 = vpack.c.b16 %v1823, %v1811
        %v2964 = vpack.c.b16 %v1824, %v1812
        %v2965 = vpack.c.b16 %v1825, %v1813
        %v2966 = vpack.c.b16 %v1826, %v1814
        %v2967 = vpack.c.b16 %v1827, %v1815
        %v2968 = vpack.c.b16 %v1840, %v1828
        %v2969 = vpack.c.b16 %v1841, %v1829
        %v2970 = vpack.c.b16 %v1842, %v1830
        %v2971 = vpack.c.b16 %v1843, %v1831
        %v2972 = vpack.c.b16 %v1844, %v1832
        %v2973 = vpack.c.b16 %v1845, %v1833
        %v2974 = vpack.c.b16 %v1846, %v1834
        %v2975 = vpack.c.b16 %v1847, %v1835
        %v2976 = vpack.c.b16 %v1848, %v1836
        %v2977 = vpack.c.b16 %v1849, %v1837
        %v2978 = vpack.c.b16 %v1850, %v1838
        %v2979 = vpack.c.b16 %v1851, %v1839
        %v2980 = vpack.c.b16 %v1864, %v1852
        %v2981 = vpack.c.b16 %v1865, %v1853
        %v2982 = vpack.c.b16 %v1866, %v1854
        %v2983 = vpack.c.b16 %v1867, %v1855
        %v2984 = vpack.c.b16 %v1868, %v1856
        %v2985 = vpack.c.b16 %v1869, %v1857
        %v2986 = vpack.c.b16 %v1870, %v1858
        %v2987 = vpack.c.b16 %v1871, %v1859
        %v2988 = vpack.c.b16 %v1872, %v1860
        %v2989 = vpack.c.b16 %v1873, %v1861
        %v2990 = vpack.c.b16 %v1874, %v1862
        %v2991 = vpack.c.b16 %v1875, %v1863
        %v2992 = vpack.c.b16 %v1888, %v1876
        %v2993 = vpack.c.b16 %v1889, %v1877
        %v2994 = vpack.c.b16 %v1890, %v1878
        %v2995 = vpack.c.b16 %v1891, %v1879
        %v2996 = vpack.c.b16 %v1892, %v1880
        %v2997 = vpack.c.b16 %v1893, %v1881
        %v2998 = vpack.c.b16 %v1894, %v1882
        %v2999 = vpack.c.b16 %v1895, %v1883
        %v3000 = vpack.c.b16 %v1896, %v1884
        %v3001 = vpack.c.b16 %v1897, %v1885
        %v3002 = vpack.c.b16 %v1898, %v1886
        %v3003 = vpack.c.b16 %v1899, %v1887
        %v3004 = vpack.c.b16 %v1912, %v1900
        %v3005 = vpack.c.b16 %v1913, %v1901
        %v3006 = vpack.c.b16 %v1914, %v1902
        %v3007 = vpack.c.b16 %v1915, %v1903
        %v3008 = vpack.c.b16 %v1916, %v1904
        %v3009 = vpack.c.b16 %v1917, %v1905
        %v3010 = vpack.c.b16 %v1918, %v1906
        %v3011 = vpack.c.b16 %v1919, %v1907
        %v3012 = vpack.c.b16 %v1920, %v1908
        %v3013 = vpack.c.b16 %v1921, %v1909
        %v3014 = vpack.c.b16 %v1922, %v1910
        %v3015 = vpack.c.b16 %v1923, %v1911
        %v3016 = vpack.c.b16 %v1936, %v1924
        %v3017 = vpack.c.b16 %v1937, %v1925
        %v3018 = vpack.c.b16 %v1938, %v1926
        %v3019 = vpack.c.b16 %v1939, %v1927
        %v3020 = vpack.c.b16 %v1940, %v1928
        %v3021 = vpack.c.b16 %v1941, %v1929
        %v3022 = vpack.c.b16 %v1942, %v1930
        %v3023 = vpack.c.b16 %v1943, %v1931
        %v3024 = vpack.c.b16 %v1944, %v1932
        %v3025 = vpack.c.b16 %v1945, %v1933
        %v3026 = vpack.c.b16 %v1946, %v1934
        %v3027 = vpack.c.b16 %v1947, %v1935
        %v3028 = vpack.c.b16 %v1960, %v1948
        %v3029 = vpack.c.b16 %v1961, %v1949
        %v3030 = vpack.c.b16 %v1962, %v1950
        %v3031 = vpack.c.b16 %v1963, %v1951
        %v3032 = vpack.c.b16 %v1964, %v1952
        %v3033 = vpack.c.b16 %v1965, %v1953
        %v3034 = vpack.c.b16 %v1966, %v1954
        %v3035 = vpack.c.b16 %v1967, %v1955
        %v3036 = vpack.c.b16 %v1968, %v1956
        %v3037 = vpack.c.b16 %v1969, %v1957
        %v3038 = vpack.c.b16 %v1970, %v1958
        %v3039 = vpack.c.b16 %v1971, %v1959
        %v3040 = vpack.c.b16 %v1984, %v1972
        %v3041 = vpack.c.b16 %v1985, %v1973
        %v3042 = vpack.c.b16 %v1986, %v1974
        %v3043 = vpack.c.b16 %v1987, %v1975
        %v3044 = vpack.c.b16 %v1988, %v1976
        %v3045 = vpack.c.b16 %v1989, %v1977
        %v3046 = vpack.c.b16 %v1990, %v1978
        %v3047 = vpack.c.b16 %v1991, %v1979
        %v3048 = vpack.c.b16 %v1992, %v1980
        %v3049 = vpack.c.b16 %v1993, %v1981
        %v3050 = vpack.c.b16 %v1994, %v1982
        %v3051 = vpack.c.b16 %v1995, %v1983
        %v3052 = vpack.c.b16 %v2008, %v1996
        %v3053 = vpack.c.b16 %v2009, %v1997
        %v3054 = vpack.c.b16 %v2010, %v1998
        %v3055 = vpack.c.b16 %v2011, %v1999
        %v3056 = vpack.c.b16 %v2012, %v2000
        %v3057 = vpack.c.b16 %v2013, %v2001
        %v3058 = vpack.c.b16 %v2014, %v2002
        %v3059 = vpack.c.b16 %v2015, %v2003
        %v3060 = vpack.c.b16 %v2016, %v2004
        %v3061 = vpack.c.b16 %v2017, %v2005
        %v3062 = vpack.c.b16 %v2018, %v2006
        %v3063 = vpack.c.b16 %v2019, %v2007
        %v3064 = vpack.c.b16 %v2032, %v2020
        %v3065 = vpack.c.b16 %v2033, %v2021
        %v3066 = vpack.c.b16 %v2034, %v2022
        %v3067 = vpack.c.b16 %v2035, %v2023
        %v3068 = vpack.c.b16 %v2036, %v2024
        %v3069 = vpack.c.b16 %v2037, %v2025
        %v3070 = vpack.c.b16 %v2038, %v2026
        %v3071 = vpack.c.b16 %v2039, %v2027
        %v3072 = vpack.c.b16 %v2040, %v2028
        %v3073 = vpack.c.b16 %v2041, %v2029
        %v3074 = vpack.c.b16 %v2042, %v2030
        %v3075 = vpack.c.b16 %v2043, %v2031
        %v3076 = vpack.c.b16 %v2056, %v2044
        %v3077 = vpack.c.b16 %v2057, %v2045
        %v3078 = vpack.c.b16 %v2058, %v2046
        %v3079 = vpack.c.b16 %v2059, %v2047
        %v3080 = vpack.c.b16 %v2060, %v2048
        %v3081 = vpack.c.b16 %v2061, %v2049
        %v3082 = vpack.c.b16 %v2062, %v2050
        %v3083 = vpack.c.b16 %v2063, %v2051
        %v3084 = vpack.c.b16 %v2064, %v2052
        %v3085 = vpack.c.b16 %v2065, %v2053
        %v3086 = vpack.c.b16 %v2066, %v2054
        %v3087 = vpack.c.b16 %v2067, %v2055
        %v3088 = vpack.c.b16 %v2080, %v2068
        %v3089 = vpack.c.b16 %v2081, %v2069
        %v3090 = vpack.c.b16 %v2082, %v2070
        %v3091 = vpack.c.b16 %v2083, %v2071
        %v3092 = vpack.c.b16 %v2084, %v2072
        %v3093 = vpack.c.b16 %v2085, %v2073
        %v3094 = vpack.c.b16 %v2086, %v2074
        %v3095 = vpack.c.b16 %v2087, %v2075
        %v3096 = vpack.c.b16 %v2088, %v2076
        %v3097 = vpack.c.b16 %v2089, %v2077
        %v3098 = vpack.c.b16 %v2090, %v2078
        %v3099 = vpack.c.b16 %v2091, %v2079
        %v3100 = vpack.c.b16 %v2104, %v2092
        %v3101 = vpack.c.b16 %v2105, %v2093
        %v3102 = vpack.c.b16 %v2106, %v2094
        %v3103 = vpack.c.b16 %v2107, %v2095
        %v3104 = vpack.c.b16 %v2108, %v2096
        %v3105 = vpack.c.b16 %v2109, %v2097
        %v3106 = vpack.c.b16 %v2110, %v2098
        %v3107 = vpack.c.b16 %v2111, %v2099
        %v3108 = vpack.c.b16 %v2112, %v2100
        %v3109 = vpack.c.b16 %v2113, %v2101
        %v3110 = vpack.c.b16 %v2114, %v2102
        %v3111 = vpack.c.b16 %v2115, %v2103
        %v3112 = vpack.c.b16 %v2128, %v2116
        %v3113 = vpack.c.b16 %v2129, %v2117
        %v3114 = vpack.c.b16 %v2130, %v2118
        %v3115 = vpack.c.b16 %v2131, %v2119
        %v3116 = vpack.c.b16 %v2132, %v2120
        %v3117 = vpack.c.b16 %v2133, %v2121
        %v3118 = vpack.c.b16 %v2134, %v2122
        %v3119 = vpack.c.b16 %v2135, %v2123
        %v3120 = vpack.c.b16 %v2136, %v2124
        %v3121 = vpack.c.b16 %v2137, %v2125
        %v3122 = vpack.c.b16 %v2138, %v2126
        %v3123 = vpack.c.b16 %v2139, %v2127
        %v3124 = vpack.c.b16 %v2152, %v2140
        %v3125 = vpack.c.b16 %v2153, %v2141
        %v3126 = vpack.c.b16 %v2154, %v2142
        %v3127 = vpack.c.b16 %v2155, %v2143
        %v3128 = vpack.c.b16 %v2156, %v2144
        %v3129 = vpack.c.b16 %v2157, %v2145
        %v3130 = vpack.c.b16 %v2158, %v2146
        %v3131 = vpack.c.b16 %v2159, %v2147
        %v3132 = vpack.c.b16 %v2160, %v2148
        %v3133 = vpack.c.b16 %v2161, %v2149
        %v3134 = vpack.c.b16 %v2162, %v2150
        %v3135 = vpack.c.b16 %v2163, %v2151
        %v3136 = vpack.c.b16 %v2176, %v2164
        %v3137 = vpack.c.b16 %v2177, %v2165
        %v3138 = vpack.c.b16 %v2178, %v2166
        %v3139 = vpack.c.b16 %v2179, %v2167
        %v3140 = vpack.c.b16 %v2180, %v2168
        %v3141 = vpack.c.b16 %v2181, %v2169
        %v3142 = vpack.c.b16 %v2182, %v2170
        %v3143 = vpack.c.b16 %v2183, %v2171
        %v3144 = vpack.c.b16 %v2184, %v2172
        %v3145 = vpack.c.b16 %v2185, %v2173
        %v3146 = vpack.c.b16 %v2186, %v2174
        %v3147 = vpack.c.b16 %v2187, %v2175
        %v3148 = vpack.c.b16 %v2200, %v2188
        %v3149 = vpack.c.b16 %v2201, %v2189
        %v3150 = vpack.c.b16 %v2202, %v2190
        %v3151 = vpack.c.b16 %v2203, %v2191
        %v3152 = vpack.c.b16 %v2204, %v2192
        %v3153 = vpack.c.b16 %v2205, %v2193
        %v3154 = vpack.c.b16 %v2206, %v2194
        %v3155 = vpack.c.b16 %v2207, %v2195
        %v3156 = vpack.c.b16 %v2208, %v2196
        %v3157 = vpack.c.b16 %v2209, %v2197
        %v3158 = vpack.c.b16 %v2210, %v2198
        %v3159 = vpack.c.b16 %v2211, %v2199
        %v3160 = vpack.c.b16 %v2224, %v2212
        %v3161 = vpack.c.b16 %v2225, %v2213
        %v3162 = vpack.c.b16 %v2226, %v2214
        %v3163 = vpack.c.b16 %v2227, %v2215
        %v3164 = vpack.c.b16 %v2228, %v2216
        %v3165 = vpack.c.b16 %v2229, %v2217
        %v3166 = vpack.c.b16 %v2230, %v2218
        %v3167 = vpack.c.b16 %v2231, %v2219
        %v3168 = vpack.c.b16 %v2232, %v2220
        %v3169 = vpack.c.b16 %v2233, %v2221
        %v3170 = vpack.c.b16 %v2234, %v2222
        %v3171 = vpack.c.b16 %v2235, %v2223
        %v3172 = vpack.c.b16 %v2248, %v2236
        %v3173 = vpack.c.b16 %v2249, %v2237
        %v3174 = vpack.c.b16 %v2250, %v2238
        %v3175 = vpack.c.b16 %v2251, %v2239
        %v3176 = vpack.c.b16 %v2252, %v2240
        %v3177 = vpack.c.b16 %v2253, %v2241
        %v3178 = vpack.c.b16 %v2254, %v2242
        %v3179 = vpack.c.b16 %v2255, %v2243
        %v3180 = vpack.c.b16 %v2256, %v2244
        %v3181 = vpack.c.b16 %v2257, %v2245
        %v3182 = vpack.c.b16 %v2258, %v2246
        %v3183 = vpack.c.b16 %v2259, %v2247
        %v3184 = vpack.c.b16 %v2272, %v2260
        %v3185 = vpack.c.b16 %v2273, %v2261
        %v3186 = vpack.c.b16 %v2274, %v2262
        %v3187 = vpack.c.b16 %v2275, %v2263
        %v3188 = vpack.c.b16 %v2276, %v2264
        %v3189 = vpack.c.b16 %v2277, %v2265
        %v3190 = vpack.c.b16 %v2278, %v2266
        %v3191 = vpack.c.b16 %v2279, %v2267
        %v3192 = vpack.c.b16 %v2280, %v2268
        %v3193 = vpack.c.b16 %v2281, %v2269
        %v3194 = vpack.c.b16 %v2282, %v2270
        %v3195 = vpack.c.b16 %v2283, %v2271
        %v3196 = vpack.c.b16 %v2296, %v2284
        %v3197 = vpack.c.b16 %v2297, %v2285
        %v3198 = vpack.c.b16 %v2298, %v2286
        %v3199 = vpack.c.b16 %v2299, %v2287
        %v3200 = vpack.c.b16 %v2300, %v2288
        %v3201 = vpack.c.b16 %v2301, %v2289
        %v3202 = vpack.c.b16 %v2302, %v2290
        %v3203 = vpack.c.b16 %v2303, %v2291
        %v3204 = vpack.c.b16 %v2304, %v2292
        %v3205 = vpack.c.b16 %v2305, %v2293
        %v3206 = vpack.c.b16 %v2306, %v2294
        %v3207 = vpack.c.b16 %v2307, %v2295
        %v3208 = vpack.c.b16 %v2320, %v2308
        %v3209 = vpack.c.b16 %v2321, %v2309
        %v3210 = vpack.c.b16 %v2322, %v2310
        %v3211 = vpack.c.b16 %v2323, %v2311
        %v3212 = vpack.c.b16 %v2324, %v2312
        %v3213 = vpack.c.b16 %v2325, %v2313
        %v3214 = vpack.c.b16 %v2326, %v2314
        %v3215 = vpack.c.b16 %v2327, %v2315
        %v3216 = vpack.c.b16 %v2328, %v2316
        %v3217 = vpack.c.b16 %v2329, %v2317
        %v3218 = vpack.c.b16 %v2330, %v2318
        %v3219 = vpack.c.b16 %v2331, %v2319
        %v3220 = vpack.c.b16 %v2344, %v2332
        %v3221 = vpack.c.b16 %v2345, %v2333
        %v3222 = vpack.c.b16 %v2346, %v2334
        %v3223 = vpack.c.b16 %v2347, %v2335
        %v3224 = vpack.c.b16 %v2348, %v2336
        %v3225 = vpack.c.b16 %v2349, %v2337
        %v3226 = vpack.c.b16 %v2350, %v2338
        %v3227 = vpack.c.b16 %v2351, %v2339
        %v3228 = vpack.c.b16 %v2352, %v2340
        %v3229 = vpack.c.b16 %v2353, %v2341
        %v3230 = vpack.c.b16 %v2354, %v2342
        %v3231 = vpack.c.b16 %v2355, %v2343
        %v3232 = vpack.c.b16 %v2368, %v2356
        %v3233 = vpack.c.b16 %v2369, %v2357
        %v3234 = vpack.c.b16 %v2370, %v2358
        %v3235 = vpack.c.b16 %v2371, %v2359
        %v3236 = vpack.c.b16 %v2372, %v2360
        %v3237 = vpack.c.b16 %v2373, %v2361
        %v3238 = vpack.c.b16 %v2374, %v2362
        %v3239 = vpack.c.b16 %v2375, %v2363
        %v3240 = vpack.c.b16 %v2376, %v2364
        %v3241 = vpack.c.b16 %v2377, %v2365
        %v3242 = vpack.c.b16 %v2378, %v2366
        %v3243 = vpack.c.b16 %v2379, %v2367
        %v3244 = vpack.c.b16 %v2392, %v2380
        %v3245 = vpack.c.b16 %v2393, %v2381
        %v3246 = vpack.c.b16 %v2394, %v2382
        %v3247 = vpack.c.b16 %v2395, %v2383
        %v3248 = vpack.c.b16 %v2396, %v2384
        %v3249 = vpack.c.b16 %v2397, %v2385
        %v3250 = vpack.c.b16 %v2398, %v2386
        %v3251 = vpack.c.b16 %v2399, %v2387
        %v3252 = vpack.c.b16 %v2400, %v2388
        %v3253 = vpack.c.b16 %v2401, %v2389
        %v3254 = vpack.c.b16 %v2402, %v2390
        %v3255 = vpack.c.b16 %v2403, %v2391
        %v3256 = vpack.c.b16 %v2416, %v2404
        %v3257 = vpack.c.b16 %v2417, %v2405
        %v3258 = vpack.c.b16 %v2418, %v2406
        %v3259 = vpack.c.b16 %v2419, %v2407
        %v3260 = vpack.c.b16 %v2420, %v2408
        %v3261 = vpack.c.b16 %v2421, %v2409
        %v3262 = vpack.c.b16 %v2422, %v2410
        %v3263 = vpack.c.b16 %v2423, %v2411
        %v3264 = vpack.c.b16 %v2424, %v2412
        %v3265 = vpack.c.b16 %v2425, %v2413
        %v3266 = vpack.c.b16 %v2426, %v2414
        %v3267 = vpack.c.b16 %v2427, %v2415
        %v3268 = vpack.c.b16 %v2440, %v2428
        %v3269 = vpack.c.b16 %v2441, %v2429
        %v3270 = vpack.c.b16 %v2442, %v2430
        %v3271 = vpack.c.b16 %v2443, %v2431
        %v3272 = vpack.c.b16 %v2444, %v2432
        %v3273 = vpack.c.b16 %v2445, %v2433
        %v3274 = vpack.c.b16 %v2446, %v2434
        %v3275 = vpack.c.b16 %v2447, %v2435
        %v3276 = vpack.c.b16 %v2448, %v2436
        %v3277 = vpack.c.b16 %v2449, %v2437
        %v3278 = vpack.c.b16 %v2450, %v2438
        %v3279 = vpack.c.b16 %v2451, %v2439
        %v3280 = vpack.c.b16 %v2464, %v2452
        %v3281 = vpack.c.b16 %v2465, %v2453
        %v3282 = vpack.c.b16 %v2466, %v2454
        %v3283 = vpack.c.b16 %v2467, %v2455
        %v3284 = vpack.c.b16 %v2468, %v2456
        %v3285 = vpack.c.b16 %v2469, %v2457
        %v3286 = vpack.c.b16 %v2470, %v2458
        %v3287 = vpack.c.b16 %v2471, %v2459
        %v3288 = vpack.c.b16 %v2472, %v2460
        %v3289 = vpack.c.b16 %v2473, %v2461
        %v3290 = vpack.c.b16 %v2474, %v2462
        %v3291 = vpack.c.b16 %v2475, %v2463
        %v3292 = vpack.c.b16 %v2488, %v2476
        %v3293 = vpack.c.b16 %v2489, %v2477
        %v3294 = vpack.c.b16 %v2490, %v2478
        %v3295 = vpack.c.b16 %v2491, %v2479
        %v3296 = vpack.c.b16 %v2492, %v2480
        %v3297 = vpack.c.b16 %v2493, %v2481
        %v3298 = vpack.c.b16 %v2494, %v2482
        %v3299 = vpack.c.b16 %v2495, %v2483
        %v3300 = vpack.c.b16 %v2496, %v2484
        %v3301 = vpack.c.b16 %v2497, %v2485
        %v3302 = vpack.c.b16 %v2498, %v2486
        %v3303 = vpack.c.b16 %v2499, %v2487
        %v3304 = vpack.c.b16 %v2512, %v2500
        %v3305 = vpack.c.b16 %v2513, %v2501
        %v3306 = vpack.c.b16 %v2514, %v2502
        %v3307 = vpack.c.b16 %v2515, %v2503
        %v3308 = vpack.c.b16 %v2516, %v2504
        %v3309 = vpack.c.b16 %v2517, %v2505
        %v3310 = vpack.c.b16 %v2518, %v2506
        %v3311 = vpack.c.b16 %v2519, %v2507
        %v3312 = vpack.c.b16 %v2520, %v2508
        %v3313 = vpack.c.b16 %v2521, %v2509
        %v3314 = vpack.c.b16 %v2522, %v2510
        %v3315 = vpack.c.b16 %v2523, %v2511
        %v3316 = vpack.c.b16 %v2536, %v2524
        %v3317 = vpack.c.b16 %v2537, %v2525
        %v3318 = vpack.c.b16 %v2538, %v2526
        %v3319 = vpack.c.b16 %v2539, %v2527
        %v3320 = vpack.c.b16 %v2540, %v2528
        %v3321 = vpack.c.b16 %v2541, %v2529
        %v3322 = vpack.c.b16 %v2542, %v2530
        %v3323 = vpack.c.b16 %v2543, %v2531
        %v3324 = vpack.c.b16 %v2544, %v2532
        %v3325 = vpack.c.b16 %v2545, %v2533
        %v3326 = vpack.c.b16 %v2546, %v2534
        %v3327 = vpack.c.b16 %v2547, %v2535
        %v3328 = vpack.c.b16 %v2560, %v2548
        %v3329 = vpack.c.b16 %v2561, %v2549
        %v3330 = vpack.c.b16 %v2562, %v2550
        %v3331 = vpack.c.b16 %v2563, %v2551
        %v3332 = vpack.c.b16 %v2564, %v2552
        %v3333 = vpack.c.b16 %v2565, %v2553
        %v3334 = vpack.c.b16 %v2566, %v2554
        %v3335 = vpack.c.b16 %v2567, %v2555
        %v3336 = vpack.c.b16 %v2568, %v2556
        %v3337 = vpack.c.b16 %v2569, %v2557
        %v3338 = vpack.c.b16 %v2570, %v2558
        %v3339 = vpack.c.b16 %v2571, %v2559
        %v3340 = vpack.c.b16 %v2584, %v2572
        %v3341 = vpack.c.b16 %v2585, %v2573
        %v3342 = vpack.c.b16 %v2586, %v2574
        %v3343 = vpack.c.b16 %v2587, %v2575
        %v3344 = vpack.c.b16 %v2588, %v2576
        %v3345 = vpack.c.b16 %v2589, %v2577
        %v3346 = vpack.c.b16 %v2590, %v2578
        %v3347 = vpack.c.b16 %v2591, %v2579
        %v3348 = vpack.c.b16 %v2592, %v2580
        %v3349 = vpack.c.b16 %v2593, %v2581
        %v3350 = vpack.c.b16 %v2594, %v2582
        %v3351 = vpack.c.b16 %v2595, %v2583
        %v3352 = vpack.c.b16 %v2608, %v2596
        %v3353 = vpack.c.b16 %v2609, %v2597
        %v3354 = vpack.c.b16 %v2610, %v2598
        %v3355 = vpack.c.b16 %v2611, %v2599
        %v3356 = vpack.c.b16 %v2612, %v2600
        %v3357 = vpack.c.b16 %v2613, %v2601
        %v3358 = vpack.c.b16 %v2614, %v2602
        %v3359 = vpack.c.b16 %v2615, %v2603
        %v3360 = vpack.c.b16 %v2616, %v2604
        %v3361 = vpack.c.b16 %v2617, %v2605
        %v3362 = vpack.c.b16 %v2618, %v2606
        %v3363 = vpack.c.b16 %v2619, %v2607
        %v3364 = vpack.c.b16 %v2632, %v2620
        %v3365 = vpack.c.b16 %v2633, %v2621
        %v3366 = vpack.c.b16 %v2634, %v2622
        %v3367 = vpack.c.b16 %v2635, %v2623
        %v3368 = vpack.c.b16 %v2636, %v2624
        %v3369 = vpack.c.b16 %v2637, %v2625
        %v3370 = vpack.c.b16 %v2638, %v2626
        %v3371 = vpack.c.b16 %v2639, %v2627
        %v3372 = vpack.c.b16 %v2640, %v2628
        %v3373 = vpack.c.b16 %v2641, %v2629
        %v3374 = vpack.c.b16 %v2642, %v2630
        %v3375 = vpack.c.b16 %v2643, %v2631
        %v3376 = vpack.c.b16 %v2656, %v2644
        %v3377 = vpack.c.b16 %v2657, %v2645
        %v3378 = vpack.c.b16 %v2658, %v2646
        %v3379 = vpack.c.b16 %v2659, %v2647
        %v3380 = vpack.c.b16 %v2660, %v2648
        %v3381 = vpack.c.b16 %v2661, %v2649
        %v3382 = vpack.c.b16 %v2662, %v2650
        %v3383 = vpack.c.b16 %v2663, %v2651
        %v3384 = vpack.c.b16 %v2664, %v2652
        %v3385 = vpack.c.b16 %v2665, %v2653
        %v3386 = vpack.c.b16 %v2666, %v2654
        %v3387 = vpack.c.b16 %v2667, %v2655
        %v3388 = vpack.c.b16 %v2680, %v2668
        %v3389 = vpack.c.b16 %v2681, %v2669
        %v3390 = vpack.c.b16 %v2682, %v2670
        %v3391 = vpack.c.b16 %v2683, %v2671
        %v3392 = vpack.c.b16 %v2684, %v2672
        %v3393 = vpack.c.b16 %v2685, %v2673
        %v3394 = vpack.c.b16 %v2686, %v2674
        %v3395 = vpack.c.b16 %v2687, %v2675
        %v3396 = vpack.c.b16 %v2688, %v2676
        %v3397 = vpack.c.b16 %v2689, %v2677
        %v3398 = vpack.c.b16 %v2690, %v2678
        %v3399 = vpack.c.b16 %v2691, %v2679
        %v3400 = vpack.c.b16 %v2704, %v2692
        %v3401 = vpack.c.b16 %v2705, %v2693
        %v3402 = vpack.c.b16 %v2706, %v2694
        %v3403 = vpack.c.b16 %v2707, %v2695
        %v3404 = vpack.c.b16 %v2708, %v2696
        %v3405 = vpack.c.b16 %v2709, %v2697
        %v3406 = vpack.c.b16 %v2710, %v2698
        %v3407 = vpack.c.b16 %v2711, %v2699
        %v3408 = vpack.c.b16 %v2712, %v2700
        %v3409 = vpack.c.b16 %v2713, %v2701
        %v3410 = vpack.c.b16 %v2714, %v2702
        %v3411 = vpack.c.b16 %v2715, %v2703
        %v3412 = vpack.c.b16 %v2728, %v2716
        %v3413 = vpack.c.b16 %v2729, %v2717
        %v3414 = vpack.c.b16 %v2730, %v2718
        %v3415 = vpack.c.b16 %v2731, %v2719
        %v3416 = vpack.c.b16 %v2732, %v2720
        %v3417 = vpack.c.b16 %v2733, %v2721
        %v3418 = vpack.c.b16 %v2734, %v2722
        %v3419 = vpack.c.b16 %v2735, %v2723
        %v3420 = vpack.c.b16 %v2736, %v2724
        %v3421 = vpack.c.b16 %v2737, %v2725
        %v3422 = vpack.c.b16 %v2738, %v2726
        %v3423 = vpack.c.b16 %v2739, %v2727
        %v3424 = vpack.c.b16 %v2752, %v2740
        %v3425 = vpack.c.b16 %v2753, %v2741
        %v3426 = vpack.c.b16 %v2754, %v2742
        %v3427 = vpack.c.b16 %v2755, %v2743
        %v3428 = vpack.c.b16 %v2756, %v2744
        %v3429 = vpack.c.b16 %v2757, %v2745
        %v3430 = vpack.c.b16 %v2758, %v2746
        %v3431 = vpack.c.b16 %v2759, %v2747
        %v3432 = vpack.c.b16 %v2760, %v2748
        %v3433 = vpack.c.b16 %v2761, %v2749
        %v3434 = vpack.c.b16 %v2762, %v2750
        %v3435 = vpack.c.b16 %v2763, %v2751
        %v3436 = vpack.c.b16 %v2776, %v2764
        %v3437 = vpack.c.b16 %v2777, %v2765
        %v3438 = vpack.c.b16 %v2778, %v2766
        %v3439 = vpack.c.b16 %v2779, %v2767
        %v3440 = vpack.c.b16 %v2780, %v2768
        %v3441 = vpack.c.b16 %v2781, %v2769
        %v3442 = vpack.c.b16 %v2782, %v2770
        %v3443 = vpack.c.b16 %v2783, %v2771
        %v3444 = vpack.c.b16 %v2784, %v2772
        %v3445 = vpack.c.b16 %v2785, %v2773
        %v3446 = vpack.c.b16 %v2786, %v2774
        %v3447 = vpack.c.b16 %v2787, %v2775
        %v3448 = vpack.c.b16 %v2800, %v2788
        %v3449 = vpack.c.b16 %v2801, %v2789
        %v3450 = vpack.c.b16 %v2802, %v2790
        %v3451 = vpack.c.b16 %v2803, %v2791
        %v3452 = vpack.c.b16 %v2804, %v2792
        %v3453 = vpack.c.b16 %v2805, %v2793
        %v3454 = vpack.c.b16 %v2806, %v2794
        %v3455 = vpack.c.b16 %v2807, %v2795
        %v3456 = vpack.c.b16 %v2808, %v2796
        %v3457 = vpack.c.b16 %v2809, %v2797
        %v3458 = vpack.c.b16 %v2810, %v2798
        %v3459 = vpack.c.b16 %v2811, %v2799
        %v3460 = vpack.c.b16 %v2824, %v2812
        %v3461 = vpack.c.b16 %v2825, %v2813
        %v3462 = vpack.c.b16 %v2826, %v2814
        %v3463 = vpack.c.b16 %v2827, %v2815
        %v3464 = vpack.c.b16 %v2828, %v2816
        %v3465 = vpack.c.b16 %v2829, %v2817
        %v3466 = vpack.c.b16 %v2830, %v2818
        %v3467 = vpack.c.b16 %v2831, %v2819
        %v3468 = vpack.c.b16 %v2832, %v2820
        %v3469 = vpack.c.b16 %v2833, %v2821
        %v3470 = vpack.c.b16 %v2834, %v2822
        %v3471 = vpack.c.b16 %v2835, %v2823
        %v3472 = vpack.c.b16 %v2848, %v2836
        %v3473 = vpack.c.b16 %v2849, %v2837
        %v3474 = vpack.c.b16 %v2850, %v2838
        %v3475 = vpack.c.b16 %v2851, %v2839
        %v3476 = vpack.c.b16 %v2852, %v2840
        %v3477 = vpack.c.b16 %v2853, %v2841
        %v3478 = vpack.c.b16 %v2854, %v2842
        %v3479 = vpack.c.b16 %v2855, %v2843
        %v3480 = vpack.c.b16 %v2856, %v2844
        %v3481 = vpack.c.b16 %v2857, %v2845
        %v3482 = vpack.c.b16 %v2858, %v2846
        %v3483 = vpack.c.b16 %v2859, %v2847
        %v3484 = vpack.c.b16 %v2872, %v2860
        %v3485 = vpack.c.b16 %v2873, %v2861
        %v3486 = vpack.c.b16 %v2874, %v2862
        %v3487 = vpack.c.b16 %v2875, %v2863
        %v3488 = vpack.c.b16 %v2876, %v2864
        %v3489 = vpack.c.b16 %v2877, %v2865
        %v3490 = vpack.c.b16 %v2878, %v2866
        %v3491 = vpack.c.b16 %v2879, %v2867
        %v3492 = vpack.c.b16 %v2880, %v2868
        %v3493 = vpack.c.b16 %v2881, %v2869
        %v3494 = vpack.c.b16 %v2882, %v2870
        %v3495 = vpack.c.b16 %v2883, %v2871
        %v3496 = vpack.c.b16 %v2896, %v2884
        %v3497 = vpack.c.b16 %v2897, %v2885
        %v3498 = vpack.c.b16 %v2898, %v2886
        %v3499 = vpack.c.b16 %v2899, %v2887
        %v3500 = vpack.c.b16 %v2900, %v2888
        %v3501 = vpack.c.b16 %v2901, %v2889
        %v3502 = vpack.c.b16 %v2902, %v2890
        %v3503 = vpack.c.b16 %v2903, %v2891
        %v3504 = vpack.c.b16 %v2904, %v2892
        %v3505 = vpack.c.b16 %v2905, %v2893
        %v3506 = vpack.c.b16 %v2906, %v2894
        %v3507 = vpack.c.b16 %v2907, %v2895
        %v3508 = vpack.c.b16 %v2920, %v2908
        %v3509 = vpack.c.b16 %v2921, %v2909
        %v3510 = vpack.c.b16 %v2922, %v2910
        %v3511 = vpack.c.b16 %v2923, %v2911
        %v3512 = vpack.c.b16 %v2924, %v2912
        %v3513 = vpack.c.b16 %v2925, %v2913
        %v3514 = vpack.c.b16 %v2926, %v2914
        %v3515 = vpack.c.b16 %v2927, %v2915
        %v3516 = vpack.c.b16 %v2928, %v2916
        %v3517 = vpack.c.b16 %v2929, %v2917
        %v3518 = vpack.c.b16 %v2930, %v2918
        %v3519 = vpack.c.b16 %v2931, %v2919
        %v3520 = vpack.c.b16 %v2944, %v2932
        %v3521 = vpack.c.b16 %v2945, %v2933
        %v3522 = vpack.c.b16 %v2946, %v2934
        %v3523 = vpack.c.b16 %v2947, %v2935
        %v3524 = vpack.c.b16 %v2948, %v2936
        %v3525 = vpack.c.b16 %v2949, %v2937
        %v3526 = vpack.c.b16 %v2950, %v2938
        %v3527 = vpack.c.b16 %v2951, %v2939
        %v3528 = vpack.c.b16 %v2952, %v2940
        %v3529 = vpack.c.b16 %v2953, %v2941
        %v3530 = vpack.c.b16 %v2954, %v2942
        %v3531 = vpack.c.b16 %v2955, %v2943
        %4108 = vmatprep.subr.bf16.mxu0 %v3041
        %4109 = vmatpush1.bf16.msra.mxu0 %v3040
        %4110 = vmatprep.subr.bf16.mxu0 %v3029
        %4111 = vmatpush1.bf16.msra.mxu0 %v3028
        %4112 = vmatprep.subr.bf16.mxu0 %v3017
        %4113 = vmatpush1.bf16.msra.mxu0 %v3016
        %4114 = vmatprep.subr.bf16.mxu0 %v3005
        %4115 = vmatpush1.bf16.msra.mxu0 %v3004
        %4116 = vmatprep.subr.bf16.mxu0 %v2993
        %4117 = vmatpush1.bf16.msra.mxu0 %v2992
        %4118 = vmatprep.subr.bf16.mxu0 %v2981
        %4119 = vmatpush1.bf16.msra.mxu0 %v2980
        %4120 = vmatprep.subr.bf16.mxu0 %v2969
        %4121 = vmatpush1.bf16.msra.mxu0 %v2968
        %4122 = vmatprep.subr.bf16.mxu0 %v2957
        %4123 = vmatpush1.bf16.msra.mxu0 %v2956
        %4124 = vmatprep.subr.bf16.mxu0 %v3137
        %4125 = vmatpush2.bf16.msra.mxu0 %v3136
        %4126 = vmatprep.subr.bf16.mxu0 %v3125
        %4127 = vmatpush2.bf16.msra.mxu0 %v3124
        %4128 = vmatprep.subr.bf16.mxu0 %v3113
        %4129 = vmatpush2.bf16.msra.mxu0 %v3112
        %4130 = vmatprep.subr.bf16.mxu0 %v3101
        %4131 = vmatpush2.bf16.msra.mxu0 %v3100
        %4132 = vmatprep.subr.bf16.mxu0 %v3089
        %4133 = vmatpush2.bf16.msra.mxu0 %v3088
        %4134 = vmatprep.subr.bf16.mxu0 %v3077
        %4135 = vmatpush2.bf16.msra.mxu0 %v3076
        %4136 = vmatprep.subr.bf16.mxu0 %v3065
        %4137 = vmatpush2.bf16.msra.mxu0 %v3064
        %4138 = vmatprep.subr.bf16.mxu0 %v3053
        %4139 = vmatpush2.bf16.msra.mxu0 %v3052
        %4140 = vmatprep.mubr.bf16.mxu0 %v647
        %4141 = vmatmul.mubr.bf16.gmra.mxu0 %v646
        %v4142 = vpop.f32.mrf.mxu0
        %v4143 = vadd.f32 0.0, %v4142
        %v4144 = vpop.f32.mrf.mxu0
        %v4145 = vadd.f32 0.0, %v4144
        %v4146 = vpop.f32.mrf.mxu0
        %v4147 = vpop.f32.mrf.mxu0
        %4148 = vdwg.mxu0
        %4149 = vmatprep.subr.bf16.mxu0 %v3233
        %4150 = vmatpush1.bf16.msra.mxu0 %v3232
        %4151 = vmatprep.subr.bf16.mxu0 %v3221
        %4152 = vmatpush1.bf16.msra.mxu0 %v3220
        %4153 = vmatprep.subr.bf16.mxu0 %v3209
        %4154 = vmatpush1.bf16.msra.mxu0 %v3208
        %4155 = vmatprep.subr.bf16.mxu0 %v3197
        %4156 = vmatpush1.bf16.msra.mxu0 %v3196
        %4157 = vmatprep.subr.bf16.mxu0 %v3185
        %4158 = vmatpush1.bf16.msra.mxu0 %v3184
        %4159 = vmatprep.subr.bf16.mxu0 %v3173
        %4160 = vmatpush1.bf16.msra.mxu0 %v3172
        %4161 = vmatprep.subr.bf16.mxu0 %v3161
        %4162 = vmatpush1.bf16.msra.mxu0 %v3160
        %4163 = vmatprep.subr.bf16.mxu0 %v3149
        %4164 = vmatpush1.bf16.msra.mxu0 %v3148
        %4165 = vmatprep.subr.bf16.mxu0 %v3329
        %4166 = vmatpush2.bf16.msra.mxu0 %v3328
        %4167 = vmatprep.subr.bf16.mxu0 %v3317
        %4168 = vmatpush2.bf16.msra.mxu0 %v3316
        %4169 = vmatprep.subr.bf16.mxu0 %v3305
        %4170 = vmatpush2.bf16.msra.mxu0 %v3304
        %4171 = vmatprep.subr.bf16.mxu0 %v3293
        %4172 = vmatpush2.bf16.msra.mxu0 %v3292
        %4173 = vmatprep.subr.bf16.mxu0 %v3281
        %4174 = vmatpush2.bf16.msra.mxu0 %v3280
        %4175 = vmatprep.subr.bf16.mxu0 %v3269
        %4176 = vmatpush2.bf16.msra.mxu0 %v3268
        %4177 = vmatprep.subr.bf16.mxu0 %v3257
        %4178 = vmatpush2.bf16.msra.mxu0 %v3256
        %4179 = vmatprep.subr.bf16.mxu0 %v3245
        %4180 = vmatpush2.bf16.msra.mxu0 %v3244
        %4181 = vmatprep.mubr.bf16.mxu0 %v649
        %4182 = vmatmul.mubr.bf16.gmra.mxu0 %v648
        %v4183 = vpop.f32.mrf.mxu0
        %v4184 = vadd.f32 %v4143, %v4183
        %v4185 = vpop.f32.mrf.mxu0
        %v4186 = vadd.f32 %v4145, %v4185
        %v4187 = vpop.f32.mrf.mxu0
        %v4188 = vpop.f32.mrf.mxu0
        %4189 = vdwg.mxu0
        %4190 = vmatprep.subr.bf16.mxu0 %v3425
        %4191 = vmatpush1.bf16.msra.mxu0 %v3424
        %4192 = vmatprep.subr.bf16.mxu0 %v3413
        %4193 = vmatpush1.bf16.msra.mxu0 %v3412
        %4194 = vmatprep.subr.bf16.mxu0 %v3401
        %4195 = vmatpush1.bf16.msra.mxu0 %v3400
        %4196 = vmatprep.subr.bf16.mxu0 %v3389
        %4197 = vmatpush1.bf16.msra.mxu0 %v3388
        %4198 = vmatprep.subr.bf16.mxu0 %v3377
        %4199 = vmatpush1.bf16.msra.mxu0 %v3376
        %4200 = vmatprep.subr.bf16.mxu0 %v3365
        %4201 = vmatpush1.bf16.msra.mxu0 %v3364
        %4202 = vmatprep.subr.bf16.mxu0 %v3353
        %4203 = vmatpush1.bf16.msra.mxu0 %v3352
        %4204 = vmatprep.subr.bf16.mxu0 %v3341
        %4205 = vmatpush1.bf16.msra.mxu0 %v3340
        %4206 = vmatprep.subr.bf16.mxu0 %v3521
        %4207 = vmatpush2.bf16.msra.mxu0 %v3520
        %4208 = vmatprep.subr.bf16.mxu0 %v3509
        %4209 = vmatpush2.bf16.msra.mxu0 %v3508
        %4210 = vmatprep.subr.bf16.mxu0 %v3497
        %4211 = vmatpush2.bf16.msra.mxu0 %v3496
        %4212 = vmatprep.subr.bf16.mxu0 %v3485
        %4213 = vmatpush2.bf16.msra.mxu0 %v3484
        %4214 = vmatprep.subr.bf16.mxu0 %v3473
        %4215 = vmatpush2.bf16.msra.mxu0 %v3472
        %4216 = vmatprep.subr.bf16.mxu0 %v3461
        %4217 = vmatpush2.bf16.msra.mxu0 %v3460
        %4218 = vmatprep.subr.bf16.mxu0 %v3449
        %4219 = vmatpush2.bf16.msra.mxu0 %v3448
        %4220 = vmatprep.subr.bf16.mxu0 %v3437
        %4221 = vmatpush2.bf16.msra.mxu0 %v3436
        %4222 = vmatprep.mubr.bf16.mxu0 %v651
        %4223 = vmatmul.mubr.bf16.gmra.mxu0 %v650
        %v4224 = vpop.f32.mrf.mxu0
        %v4225 = vadd.f32 %v4184, %v4224
        %v4226 = vpop.f32.mrf.mxu0
        %v4227 = vadd.f32 %v4186, %v4226
        %v4228 = vpop.f32.mrf.mxu0
        %v4229 = vpop.f32.mrf.mxu0
        %4230 = vdwg.mxu0
        %4231 = vmatprep.subr.bf16.mxu0 %v3043
        %4232 = vmatpush1.bf16.msra.mxu0 %v3042
        %4233 = vmatprep.subr.bf16.mxu0 %v3031
        %4234 = vmatpush1.bf16.msra.mxu0 %v3030
        %4235 = vmatprep.subr.bf16.mxu0 %v3019
        %4236 = vmatpush1.bf16.msra.mxu0 %v3018
        %4237 = vmatprep.subr.bf16.mxu0 %v3007
        %4238 = vmatpush1.bf16.msra.mxu0 %v3006
        %4239 = vmatprep.subr.bf16.mxu0 %v2995
        %4240 = vmatpush1.bf16.msra.mxu0 %v2994
        %4241 = vmatprep.subr.bf16.mxu0 %v2983
        %4242 = vmatpush1.bf16.msra.mxu0 %v2982
        %4243 = vmatprep.subr.bf16.mxu0 %v2971
        %4244 = vmatpush1.bf16.msra.mxu0 %v2970
        %4245 = vmatprep.subr.bf16.mxu0 %v2959
        %4246 = vmatpush1.bf16.msra.mxu0 %v2958
        %4247 = vmatprep.subr.bf16.mxu0 %v3139
        %4248 = vmatpush2.bf16.msra.mxu0 %v3138
        %4249 = vmatprep.subr.bf16.mxu0 %v3127
        %4250 = vmatpush2.bf16.msra.mxu0 %v3126
        %4251 = vmatprep.subr.bf16.mxu0 %v3115
        %4252 = vmatpush2.bf16.msra.mxu0 %v3114
        %4253 = vmatprep.subr.bf16.mxu0 %v3103
        %4254 = vmatpush2.bf16.msra.mxu0 %v3102
        %4255 = vmatprep.subr.bf16.mxu0 %v3091
        %4256 = vmatpush2.bf16.msra.mxu0 %v3090
        %4257 = vmatprep.subr.bf16.mxu0 %v3079
        %4258 = vmatpush2.bf16.msra.mxu0 %v3078
        %4259 = vmatprep.subr.bf16.mxu0 %v3067
        %4260 = vmatpush2.bf16.msra.mxu0 %v3066
        %4261 = vmatprep.subr.bf16.mxu0 %v3055
        %4262 = vmatpush2.bf16.msra.mxu0 %v3054
        %4263 = vmatprep.mubr.bf16.mxu0 %v647
        %4264 = vmatmul.mubr.bf16.gmra.mxu0 %v646
        %v4265 = vpop.f32.mrf.mxu0
        %v4266 = vadd.f32 0.0, %v4265
        %v4267 = vpop.f32.mrf.mxu0
        %v4268 = vadd.f32 0.0, %v4267
        %v4269 = vpop.f32.mrf.mxu0
        %v4270 = vpop.f32.mrf.mxu0
        %4271 = vdwg.mxu0
        %4272 = vmatprep.subr.bf16.mxu0 %v3235
        %4273 = vmatpush1.bf16.msra.mxu0 %v3234
        %4274 = vmatprep.subr.bf16.mxu0 %v3223
        %4275 = vmatpush1.bf16.msra.mxu0 %v3222
        %4276 = vmatprep.subr.bf16.mxu0 %v3211
        %4277 = vmatpush1.bf16.msra.mxu0 %v3210
        %4278 = vmatprep.subr.bf16.mxu0 %v3199
        %4279 = vmatpush1.bf16.msra.mxu0 %v3198
        %4280 = vmatprep.subr.bf16.mxu0 %v3187
        %4281 = vmatpush1.bf16.msra.mxu0 %v3186
        %4282 = vmatprep.subr.bf16.mxu0 %v3175
        %4283 = vmatpush1.bf16.msra.mxu0 %v3174
        %4284 = vmatprep.subr.bf16.mxu0 %v3163
        %4285 = vmatpush1.bf16.msra.mxu0 %v3162
        %4286 = vmatprep.subr.bf16.mxu0 %v3151
        %4287 = vmatpush1.bf16.msra.mxu0 %v3150
        %4288 = vmatprep.subr.bf16.mxu0 %v3331
        %4289 = vmatpush2.bf16.msra.mxu0 %v3330
        %4290 = vmatprep.subr.bf16.mxu0 %v3319
        %4291 = vmatpush2.bf16.msra.mxu0 %v3318
        %4292 = vmatprep.subr.bf16.mxu0 %v3307
        %4293 = vmatpush2.bf16.msra.mxu0 %v3306
        %4294 = vmatprep.subr.bf16.mxu0 %v3295
        %4295 = vmatpush2.bf16.msra.mxu0 %v3294
        %4296 = vmatprep.subr.bf16.mxu0 %v3283
        %4297 = vmatpush2.bf16.msra.mxu0 %v3282
        %4298 = vmatprep.subr.bf16.mxu0 %v3271
        %4299 = vmatpush2.bf16.msra.mxu0 %v3270
        %4300 = vmatprep.subr.bf16.mxu0 %v3259
        %4301 = vmatpush2.bf16.msra.mxu0 %v3258
        %4302 = vmatprep.subr.bf16.mxu0 %v3247
        %4303 = vmatpush2.bf16.msra.mxu0 %v3246
        %4304 = vmatprep.mubr.bf16.mxu0 %v649
        %4305 = vmatmul.mubr.bf16.gmra.mxu0 %v648
        %v4306 = vpop.f32.mrf.mxu0
        %v4307 = vadd.f32 %v4266, %v4306
        %v4308 = vpop.f32.mrf.mxu0
        %v4309 = vadd.f32 %v4268, %v4308
        %v4310 = vpop.f32.mrf.mxu0
        %v4311 = vpop.f32.mrf.mxu0
        %4312 = vdwg.mxu0
        %4313 = vmatprep.subr.bf16.mxu0 %v3427
        %4314 = vmatpush1.bf16.msra.mxu0 %v3426
        %4315 = vmatprep.subr.bf16.mxu0 %v3415
        %4316 = vmatpush1.bf16.msra.mxu0 %v3414
        %4317 = vmatprep.subr.bf16.mxu0 %v3403
        %4318 = vmatpush1.bf16.msra.mxu0 %v3402
        %4319 = vmatprep.subr.bf16.mxu0 %v3391
        %4320 = vmatpush1.bf16.msra.mxu0 %v3390
        %4321 = vmatprep.subr.bf16.mxu0 %v3379
        %4322 = vmatpush1.bf16.msra.mxu0 %v3378
        %4323 = vmatprep.subr.bf16.mxu0 %v3367
        %4324 = vmatpush1.bf16.msra.mxu0 %v3366
        %4325 = vmatprep.subr.bf16.mxu0 %v3355
        %4326 = vmatpush1.bf16.msra.mxu0 %v3354
        %4327 = vmatprep.subr.bf16.mxu0 %v3343
        %4328 = vmatpush1.bf16.msra.mxu0 %v3342
        %4329 = vmatprep.subr.bf16.mxu0 %v3523
        %4330 = vmatpush2.bf16.msra.mxu0 %v3522
        %4331 = vmatprep.subr.bf16.mxu0 %v3511
        %4332 = vmatpush2.bf16.msra.mxu0 %v3510
        %4333 = vmatprep.subr.bf16.mxu0 %v3499
        %4334 = vmatpush2.bf16.msra.mxu0 %v3498
        %4335 = vmatprep.subr.bf16.mxu0 %v3487
        %4336 = vmatpush2.bf16.msra.mxu0 %v3486
        %4337 = vmatprep.subr.bf16.mxu0 %v3475
        %4338 = vmatpush2.bf16.msra.mxu0 %v3474
        %4339 = vmatprep.subr.bf16.mxu0 %v3463
        %4340 = vmatpush2.bf16.msra.mxu0 %v3462
        %4341 = vmatprep.subr.bf16.mxu0 %v3451
        %4342 = vmatpush2.bf16.msra.mxu0 %v3450
        %4343 = vmatprep.subr.bf16.mxu0 %v3439
        %4344 = vmatpush2.bf16.msra.mxu0 %v3438
        %4345 = vmatprep.mubr.bf16.mxu0 %v651
        %4346 = vmatmul.mubr.bf16.gmra.mxu0 %v650
        %v4347 = vpop.f32.mrf.mxu0
        %v4348 = vadd.f32 %v4307, %v4347
        %v4349 = vpop.f32.mrf.mxu0
        %v4350 = vadd.f32 %v4309, %v4349
        %v4351 = vpop.f32.mrf.mxu0
        %v4352 = vpop.f32.mrf.mxu0
        %4353 = vdwg.mxu0
        %4354 = vmatprep.subr.bf16.mxu0 %v3045
        %4355 = vmatpush1.bf16.msra.mxu0 %v3044
        %4356 = vmatprep.subr.bf16.mxu0 %v3033
        %4357 = vmatpush1.bf16.msra.mxu0 %v3032
        %4358 = vmatprep.subr.bf16.mxu0 %v3021
        %4359 = vmatpush1.bf16.msra.mxu0 %v3020
        %4360 = vmatprep.subr.bf16.mxu0 %v3009
        %4361 = vmatpush1.bf16.msra.mxu0 %v3008
        %4362 = vmatprep.subr.bf16.mxu0 %v2997
        %4363 = vmatpush1.bf16.msra.mxu0 %v2996
        %4364 = vmatprep.subr.bf16.mxu0 %v2985
        %4365 = vmatpush1.bf16.msra.mxu0 %v2984
        %4366 = vmatprep.subr.bf16.mxu0 %v2973
        %4367 = vmatpush1.bf16.msra.mxu0 %v2972
        %4368 = vmatprep.subr.bf16.mxu0 %v2961
        %4369 = vmatpush1.bf16.msra.mxu0 %v2960
        %4370 = vmatprep.subr.bf16.mxu0 %v3141
        %4371 = vmatpush2.bf16.msra.mxu0 %v3140
        %4372 = vmatprep.subr.bf16.mxu0 %v3129
        %4373 = vmatpush2.bf16.msra.mxu0 %v3128
        %4374 = vmatprep.subr.bf16.mxu0 %v3117
        %4375 = vmatpush2.bf16.msra.mxu0 %v3116
        %4376 = vmatprep.subr.bf16.mxu0 %v3105
        %4377 = vmatpush2.bf16.msra.mxu0 %v3104
        %4378 = vmatprep.subr.bf16.mxu0 %v3093
        %4379 = vmatpush2.bf16.msra.mxu0 %v3092
        %4380 = vmatprep.subr.bf16.mxu0 %v3081
        %4381 = vmatpush2.bf16.msra.mxu0 %v3080
        %4382 = vmatprep.subr.bf16.mxu0 %v3069
        %4383 = vmatpush2.bf16.msra.mxu0 %v3068
        %4384 = vmatprep.subr.bf16.mxu0 %v3057
        %4385 = vmatpush2.bf16.msra.mxu0 %v3056
        %4386 = vmatprep.mubr.bf16.mxu0 %v647
        %4387 = vmatmul.mubr.bf16.gmra.mxu0 %v646
        %v4388 = vpop.f32.mrf.mxu0
        %v4389 = vadd.f32 0.0, %v4388
        %v4390 = vpop.f32.mrf.mxu0
        %v4391 = vadd.f32 0.0, %v4390
        %v4392 = vpop.f32.mrf.mxu0
        %v4393 = vpop.f32.mrf.mxu0
        %4394 = vdwg.mxu0
        %4395 = vmatprep.subr.bf16.mxu0 %v3237
        %4396 = vmatpush1.bf16.msra.mxu0 %v3236
        %4397 = vmatprep.subr.bf16.mxu0 %v3225
        %4398 = vmatpush1.bf16.msra.mxu0 %v3224
        %4399 = vmatprep.subr.bf16.mxu0 %v3213
        %4400 = vmatpush1.bf16.msra.mxu0 %v3212
        %4401 = vmatprep.subr.bf16.mxu0 %v3201
        %4402 = vmatpush1.bf16.msra.mxu0 %v3200
        %4403 = vmatprep.subr.bf16.mxu0 %v3189
        %4404 = vmatpush1.bf16.msra.mxu0 %v3188
        %4405 = vmatprep.subr.bf16.mxu0 %v3177
        %4406 = vmatpush1.bf16.msra.mxu0 %v3176
        %4407 = vmatprep.subr.bf16.mxu0 %v3165
        %4408 = vmatpush1.bf16.msra.mxu0 %v3164
        %4409 = vmatprep.subr.bf16.mxu0 %v3153
        %4410 = vmatpush1.bf16.msra.mxu0 %v3152
        %4411 = vmatprep.subr.bf16.mxu0 %v3333
        %4412 = vmatpush2.bf16.msra.mxu0 %v3332
        %4413 = vmatprep.subr.bf16.mxu0 %v3321
        %4414 = vmatpush2.bf16.msra.mxu0 %v3320
        %4415 = vmatprep.subr.bf16.mxu0 %v3309
        %4416 = vmatpush2.bf16.msra.mxu0 %v3308
        %4417 = vmatprep.subr.bf16.mxu0 %v3297
        %4418 = vmatpush2.bf16.msra.mxu0 %v3296
        %4419 = vmatprep.subr.bf16.mxu0 %v3285
        %4420 = vmatpush2.bf16.msra.mxu0 %v3284
        %4421 = vmatprep.subr.bf16.mxu0 %v3273
        %4422 = vmatpush2.bf16.msra.mxu0 %v3272
        %4423 = vmatprep.subr.bf16.mxu0 %v3261
        %4424 = vmatpush2.bf16.msra.mxu0 %v3260
        %4425 = vmatprep.subr.bf16.mxu0 %v3249
        %4426 = vmatpush2.bf16.msra.mxu0 %v3248
        %4427 = vmatprep.mubr.bf16.mxu0 %v649
        %4428 = vmatmul.mubr.bf16.gmra.mxu0 %v648
        %v4429 = vpop.f32.mrf.mxu0
        %v4430 = vadd.f32 %v4389, %v4429
        %v4431 = vpop.f32.mrf.mxu0
        %v4432 = vadd.f32 %v4391, %v4431
        %v4433 = vpop.f32.mrf.mxu0
        %v4434 = vpop.f32.mrf.mxu0
        %4435 = vdwg.mxu0
        %4436 = vmatprep.subr.bf16.mxu0 %v3429
        %4437 = vmatpush1.bf16.msra.mxu0 %v3428
        %4438 = vmatprep.subr.bf16.mxu0 %v3417
        %4439 = vmatpush1.bf16.msra.mxu0 %v3416
        %4440 = vmatprep.subr.bf16.mxu0 %v3405
        %4441 = vmatpush1.bf16.msra.mxu0 %v3404
        %4442 = vmatprep.subr.bf16.mxu0 %v3393
        %4443 = vmatpush1.bf16.msra.mxu0 %v3392
        %4444 = vmatprep.subr.bf16.mxu0 %v3381
        %4445 = vmatpush1.bf16.msra.mxu0 %v3380
        %4446 = vmatprep.subr.bf16.mxu0 %v3369
        %4447 = vmatpush1.bf16.msra.mxu0 %v3368
        %4448 = vmatprep.subr.bf16.mxu0 %v3357
        %4449 = vmatpush1.bf16.msra.mxu0 %v3356
        %4450 = vmatprep.subr.bf16.mxu0 %v3345
        %4451 = vmatpush1.bf16.msra.mxu0 %v3344
        %4452 = vmatprep.subr.bf16.mxu0 %v3525
        %4453 = vmatpush2.bf16.msra.mxu0 %v3524
        %4454 = vmatprep.subr.bf16.mxu0 %v3513
        %4455 = vmatpush2.bf16.msra.mxu0 %v3512
        %4456 = vmatprep.subr.bf16.mxu0 %v3501
        %4457 = vmatpush2.bf16.msra.mxu0 %v3500
        %4458 = vmatprep.subr.bf16.mxu0 %v3489
        %4459 = vmatpush2.bf16.msra.mxu0 %v3488
        %4460 = vmatprep.subr.bf16.mxu0 %v3477
        %4461 = vmatpush2.bf16.msra.mxu0 %v3476
        %4462 = vmatprep.subr.bf16.mxu0 %v3465
        %4463 = vmatpush2.bf16.msra.mxu0 %v3464
        %4464 = vmatprep.subr.bf16.mxu0 %v3453
        %4465 = vmatpush2.bf16.msra.mxu0 %v3452
        %4466 = vmatprep.subr.bf16.mxu0 %v3441
        %4467 = vmatpush2.bf16.msra.mxu0 %v3440
        %4468 = vmatprep.mubr.bf16.mxu0 %v651
        %4469 = vmatmul.mubr.bf16.gmra.mxu0 %v650
        %v4470 = vpop.f32.mrf.mxu0
        %v4471 = vadd.f32 %v4430, %v4470
        %v4472 = vpop.f32.mrf.mxu0
        %v4473 = vadd.f32 %v4432, %v4472
        %v4474 = vpop.f32.mrf.mxu0
        %v4475 = vpop.f32.mrf.mxu0
        %4476 = vdwg.mxu0
        %4477 = vmatprep.subr.bf16.mxu0 %v3047
        %4478 = vmatpush1.bf16.msra.mxu0 %v3046
        %4479 = vmatprep.subr.bf16.mxu0 %v3035
        %4480 = vmatpush1.bf16.msra.mxu0 %v3034
        %4481 = vmatprep.subr.bf16.mxu0 %v3023
        %4482 = vmatpush1.bf16.msra.mxu0 %v3022
        %4483 = vmatprep.subr.bf16.mxu0 %v3011
        %4484 = vmatpush1.bf16.msra.mxu0 %v3010
        %4485 = vmatprep.subr.bf16.mxu0 %v2999
        %4486 = vmatpush1.bf16.msra.mxu0 %v2998
        %4487 = vmatprep.subr.bf16.mxu0 %v2987
        %4488 = vmatpush1.bf16.msra.mxu0 %v2986
        %4489 = vmatprep.subr.bf16.mxu0 %v2975
        %4490 = vmatpush1.bf16.msra.mxu0 %v2974
        %4491 = vmatprep.subr.bf16.mxu0 %v2963
        %4492 = vmatpush1.bf16.msra.mxu0 %v2962
        %4493 = vmatprep.subr.bf16.mxu0 %v3143
        %4494 = vmatpush2.bf16.msra.mxu0 %v3142
        %4495 = vmatprep.subr.bf16.mxu0 %v3131
        %4496 = vmatpush2.bf16.msra.mxu0 %v3130
        %4497 = vmatprep.subr.bf16.mxu0 %v3119
        %4498 = vmatpush2.bf16.msra.mxu0 %v3118
        %4499 = vmatprep.subr.bf16.mxu0 %v3107
        %4500 = vmatpush2.bf16.msra.mxu0 %v3106
        %4501 = vmatprep.subr.bf16.mxu0 %v3095
        %4502 = vmatpush2.bf16.msra.mxu0 %v3094
        %4503 = vmatprep.subr.bf16.mxu0 %v3083
        %4504 = vmatpush2.bf16.msra.mxu0 %v3082
        %4505 = vmatprep.subr.bf16.mxu0 %v3071
        %4506 = vmatpush2.bf16.msra.mxu0 %v3070
        %4507 = vmatprep.subr.bf16.mxu0 %v3059
        %4508 = vmatpush2.bf16.msra.mxu0 %v3058
        %4509 = vmatprep.mubr.bf16.mxu0 %v647
        %4510 = vmatmul.mubr.bf16.gmra.mxu0 %v646
        %v4511 = vpop.f32.mrf.mxu0
        %v4512 = vadd.f32 0.0, %v4511
        %v4513 = vpop.f32.mrf.mxu0
        %v4514 = vadd.f32 0.0, %v4513
        %v4515 = vpop.f32.mrf.mxu0
        %v4516 = vpop.f32.mrf.mxu0
        %4517 = vdwg.mxu0
        %4518 = vmatprep.subr.bf16.mxu0 %v3239
        %4519 = vmatpush1.bf16.msra.mxu0 %v3238
        %4520 = vmatprep.subr.bf16.mxu0 %v3227
        %4521 = vmatpush1.bf16.msra.mxu0 %v3226
        %4522 = vmatprep.subr.bf16.mxu0 %v3215
        %4523 = vmatpush1.bf16.msra.mxu0 %v3214
        %4524 = vmatprep.subr.bf16.mxu0 %v3203
        %4525 = vmatpush1.bf16.msra.mxu0 %v3202
        %4526 = vmatprep.subr.bf16.mxu0 %v3191
        %4527 = vmatpush1.bf16.msra.mxu0 %v3190
        %4528 = vmatprep.subr.bf16.mxu0 %v3179
        %4529 = vmatpush1.bf16.msra.mxu0 %v3178
        %4530 = vmatprep.subr.bf16.mxu0 %v3167
        %4531 = vmatpush1.bf16.msra.mxu0 %v3166
        %4532 = vmatprep.subr.bf16.mxu0 %v3155
        %4533 = vmatpush1.bf16.msra.mxu0 %v3154
        %4534 = vmatprep.subr.bf16.mxu0 %v3335
        %4535 = vmatpush2.bf16.msra.mxu0 %v3334
        %4536 = vmatprep.subr.bf16.mxu0 %v3323
        %4537 = vmatpush2.bf16.msra.mxu0 %v3322
        %4538 = vmatprep.subr.bf16.mxu0 %v3311
        %4539 = vmatpush2.bf16.msra.mxu0 %v3310
        %4540 = vmatprep.subr.bf16.mxu0 %v3299
        %4541 = vmatpush2.bf16.msra.mxu0 %v3298
        %4542 = vmatprep.subr.bf16.mxu0 %v3287
        %4543 = vmatpush2.bf16.msra.mxu0 %v3286
        %4544 = vmatprep.subr.bf16.mxu0 %v3275
        %4545 = vmatpush2.bf16.msra.mxu0 %v3274
        %4546 = vmatprep.subr.bf16.mxu0 %v3263
        %4547 = vmatpush2.bf16.msra.mxu0 %v3262
        %4548 = vmatprep.subr.bf16.mxu0 %v3251
        %4549 = vmatpush2.bf16.msra.mxu0 %v3250
        %4550 = vmatprep.mubr.bf16.mxu0 %v649
        %4551 = vmatmul.mubr.bf16.gmra.mxu0 %v648
        %v4552 = vpop.f32.mrf.mxu0
        %v4553 = vadd.f32 %v4512, %v4552
        %v4554 = vpop.f32.mrf.mxu0
        %v4555 = vadd.f32 %v4514, %v4554
        %v4556 = vpop.f32.mrf.mxu0
        %v4557 = vpop.f32.mrf.mxu0
        %4558 = vdwg.mxu0
        %4559 = vmatprep.subr.bf16.mxu0 %v3431
        %4560 = vmatpush1.bf16.msra.mxu0 %v3430
        %4561 = vmatprep.subr.bf16.mxu0 %v3419
        %4562 = vmatpush1.bf16.msra.mxu0 %v3418
        %4563 = vmatprep.subr.bf16.mxu0 %v3407
        %4564 = vmatpush1.bf16.msra.mxu0 %v3406
        %4565 = vmatprep.subr.bf16.mxu0 %v3395
        %4566 = vmatpush1.bf16.msra.mxu0 %v3394
        %4567 = vmatprep.subr.bf16.mxu0 %v3383
        %4568 = vmatpush1.bf16.msra.mxu0 %v3382
        %4569 = vmatprep.subr.bf16.mxu0 %v3371
        %4570 = vmatpush1.bf16.msra.mxu0 %v3370
        %4571 = vmatprep.subr.bf16.mxu0 %v3359
        %4572 = vmatpush1.bf16.msra.mxu0 %v3358
        %4573 = vmatprep.subr.bf16.mxu0 %v3347
        %4574 = vmatpush1.bf16.msra.mxu0 %v3346
        %4575 = vmatprep.subr.bf16.mxu0 %v3527
        %4576 = vmatpush2.bf16.msra.mxu0 %v3526
        %4577 = vmatprep.subr.bf16.mxu0 %v3515
        %4578 = vmatpush2.bf16.msra.mxu0 %v3514
        %4579 = vmatprep.subr.bf16.mxu0 %v3503
        %4580 = vmatpush2.bf16.msra.mxu0 %v3502
        %4581 = vmatprep.subr.bf16.mxu0 %v3491
        %4582 = vmatpush2.bf16.msra.mxu0 %v3490
        %4583 = vmatprep.subr.bf16.mxu0 %v3479
        %4584 = vmatpush2.bf16.msra.mxu0 %v3478
        %4585 = vmatprep.subr.bf16.mxu0 %v3467
        %4586 = vmatpush2.bf16.msra.mxu0 %v3466
        %4587 = vmatprep.subr.bf16.mxu0 %v3455
        %4588 = vmatpush2.bf16.msra.mxu0 %v3454
        %4589 = vmatprep.subr.bf16.mxu0 %v3443
        %4590 = vmatpush2.bf16.msra.mxu0 %v3442
        %4591 = vmatprep.mubr.bf16.mxu0 %v651
        %4592 = vmatmul.mubr.bf16.gmra.mxu0 %v650
        %v4593 = vpop.f32.mrf.mxu0
        %v4594 = vadd.f32 %v4553, %v4593
        %v4595 = vpop.f32.mrf.mxu0
        %v4596 = vadd.f32 %v4555, %v4595
        %v4597 = vpop.f32.mrf.mxu0
        %v4598 = vpop.f32.mrf.mxu0
        %4599 = vdwg.mxu0
        %4600 = vmatprep.subr.bf16.mxu0 %v3049
        %4601 = vmatpush1.bf16.msra.mxu0 %v3048
        %4602 = vmatprep.subr.bf16.mxu0 %v3037
        %4603 = vmatpush1.bf16.msra.mxu0 %v3036
        %4604 = vmatprep.subr.bf16.mxu0 %v3025
        %4605 = vmatpush1.bf16.msra.mxu0 %v3024
        %4606 = vmatprep.subr.bf16.mxu0 %v3013
        %4607 = vmatpush1.bf16.msra.mxu0 %v3012
        %4608 = vmatprep.subr.bf16.mxu0 %v3001
        %4609 = vmatpush1.bf16.msra.mxu0 %v3000
        %4610 = vmatprep.subr.bf16.mxu0 %v2989
        %4611 = vmatpush1.bf16.msra.mxu0 %v2988
        %4612 = vmatprep.subr.bf16.mxu0 %v2977
        %4613 = vmatpush1.bf16.msra.mxu0 %v2976
        %4614 = vmatprep.subr.bf16.mxu0 %v2965
        %4615 = vmatpush1.bf16.msra.mxu0 %v2964
        %4616 = vmatprep.subr.bf16.mxu0 %v3145
        %4617 = vmatpush2.bf16.msra.mxu0 %v3144
        %4618 = vmatprep.subr.bf16.mxu0 %v3133
        %4619 = vmatpush2.bf16.msra.mxu0 %v3132
        %4620 = vmatprep.subr.bf16.mxu0 %v3121
        %4621 = vmatpush2.bf16.msra.mxu0 %v3120
        %4622 = vmatprep.subr.bf16.mxu0 %v3109
        %4623 = vmatpush2.bf16.msra.mxu0 %v3108
        %4624 = vmatprep.subr.bf16.mxu0 %v3097
        %4625 = vmatpush2.bf16.msra.mxu0 %v3096
        %4626 = vmatprep.subr.bf16.mxu0 %v3085
        %4627 = vmatpush2.bf16.msra.mxu0 %v3084
        %4628 = vmatprep.subr.bf16.mxu0 %v3073
        %4629 = vmatpush2.bf16.msra.mxu0 %v3072
        %4630 = vmatprep.subr.bf16.mxu0 %v3061
        %4631 = vmatpush2.bf16.msra.mxu0 %v3060
        %4632 = vmatprep.mubr.bf16.mxu0 %v647
        %4633 = vmatmul.mubr.bf16.gmra.mxu0 %v646
        %v4634 = vpop.f32.mrf.mxu0
        %v4635 = vadd.f32 0.0, %v4634
        %v4636 = vpop.f32.mrf.mxu0
        %v4637 = vadd.f32 0.0, %v4636
        %v4638 = vpop.f32.mrf.mxu0
        %v4639 = vpop.f32.mrf.mxu0
        %4640 = vdwg.mxu0
        %4641 = vmatprep.subr.bf16.mxu0 %v3241
        %4642 = vmatpush1.bf16.msra.mxu0 %v3240
        %4643 = vmatprep.subr.bf16.mxu0 %v3229
        %4644 = vmatpush1.bf16.msra.mxu0 %v3228
        %4645 = vmatprep.subr.bf16.mxu0 %v3217
        %4646 = vmatpush1.bf16.msra.mxu0 %v3216
        %4647 = vmatprep.subr.bf16.mxu0 %v3205
        %4648 = vmatpush1.bf16.msra.mxu0 %v3204
        %4649 = vmatprep.subr.bf16.mxu0 %v3193
        %4650 = vmatpush1.bf16.msra.mxu0 %v3192
        %4651 = vmatprep.subr.bf16.mxu0 %v3181
        %4652 = vmatpush1.bf16.msra.mxu0 %v3180
        %4653 = vmatprep.subr.bf16.mxu0 %v3169
        %4654 = vmatpush1.bf16.msra.mxu0 %v3168
        %4655 = vmatprep.subr.bf16.mxu0 %v3157
        %4656 = vmatpush1.bf16.msra.mxu0 %v3156
        %4657 = vmatprep.subr.bf16.mxu0 %v3337
        %4658 = vmatpush2.bf16.msra.mxu0 %v3336
        %4659 = vmatprep.subr.bf16.mxu0 %v3325
        %4660 = vmatpush2.bf16.msra.mxu0 %v3324
        %4661 = vmatprep.subr.bf16.mxu0 %v3313
        %4662 = vmatpush2.bf16.msra.mxu0 %v3312
        %4663 = vmatprep.subr.bf16.mxu0 %v3301
        %4664 = vmatpush2.bf16.msra.mxu0 %v3300
        %4665 = vmatprep.subr.bf16.mxu0 %v3289
        %4666 = vmatpush2.bf16.msra.mxu0 %v3288
        %4667 = vmatprep.subr.bf16.mxu0 %v3277
        %4668 = vmatpush2.bf16.msra.mxu0 %v3276
        %4669 = vmatprep.subr.bf16.mxu0 %v3265
        %4670 = vmatpush2.bf16.msra.mxu0 %v3264
        %4671 = vmatprep.subr.bf16.mxu0 %v3253
        %4672 = vmatpush2.bf16.msra.mxu0 %v3252
        %4673 = vmatprep.mubr.bf16.mxu0 %v649
        %4674 = vmatmul.mubr.bf16.gmra.mxu0 %v648
        %v4675 = vpop.f32.mrf.mxu0
        %v4676 = vadd.f32 %v4635, %v4675
        %v4677 = vpop.f32.mrf.mxu0
        %v4678 = vadd.f32 %v4637, %v4677
        %v4679 = vpop.f32.mrf.mxu0
        %v4680 = vpop.f32.mrf.mxu0
        %4681 = vdwg.mxu0
        %4682 = vmatprep.subr.bf16.mxu0 %v3433
        %4683 = vmatpush1.bf16.msra.mxu0 %v3432
        %4684 = vmatprep.subr.bf16.mxu0 %v3421
        %4685 = vmatpush1.bf16.msra.mxu0 %v3420
        %4686 = vmatprep.subr.bf16.mxu0 %v3409
        %4687 = vmatpush1.bf16.msra.mxu0 %v3408
        %4688 = vmatprep.subr.bf16.mxu0 %v3397
        %4689 = vmatpush1.bf16.msra.mxu0 %v3396
        %4690 = vmatprep.subr.bf16.mxu0 %v3385
        %4691 = vmatpush1.bf16.msra.mxu0 %v3384
        %4692 = vmatprep.subr.bf16.mxu0 %v3373
        %4693 = vmatpush1.bf16.msra.mxu0 %v3372
        %4694 = vmatprep.subr.bf16.mxu0 %v3361
        %4695 = vmatpush1.bf16.msra.mxu0 %v3360
        %4696 = vmatprep.subr.bf16.mxu0 %v3349
        %4697 = vmatpush1.bf16.msra.mxu0 %v3348
        %4698 = vmatprep.subr.bf16.mxu0 %v3529
        %4699 = vmatpush2.bf16.msra.mxu0 %v3528
        %4700 = vmatprep.subr.bf16.mxu0 %v3517
        %4701 = vmatpush2.bf16.msra.mxu0 %v3516
        %4702 = vmatprep.subr.bf16.mxu0 %v3505
        %4703 = vmatpush2.bf16.msra.mxu0 %v3504
        %4704 = vmatprep.subr.bf16.mxu0 %v3493
        %4705 = vmatpush2.bf16.msra.mxu0 %v3492
        %4706 = vmatprep.subr.bf16.mxu0 %v3481
        %4707 = vmatpush2.bf16.msra.mxu0 %v3480
        %4708 = vmatprep.subr.bf16.mxu0 %v3469
        %4709 = vmatpush2.bf16.msra.mxu0 %v3468
        %4710 = vmatprep.subr.bf16.mxu0 %v3457
        %4711 = vmatpush2.bf16.msra.mxu0 %v3456
        %4712 = vmatprep.subr.bf16.mxu0 %v3445
        %4713 = vmatpush2.bf16.msra.mxu0 %v3444
        %4714 = vmatprep.mubr.bf16.mxu0 %v651
        %4715 = vmatmul.mubr.bf16.gmra.mxu0 %v650
        %v4716 = vpop.f32.mrf.mxu0
        %v4717 = vadd.f32 %v4676, %v4716
        %v4718 = vpop.f32.mrf.mxu0
        %v4719 = vadd.f32 %v4678, %v4718
        %v4720 = vpop.f32.mrf.mxu0
        %v4721 = vpop.f32.mrf.mxu0
        %4722 = vdwg.mxu0
        %4723 = vmatprep.subr.bf16.mxu0 %v3051
        %4724 = vmatpush1.bf16.msra.mxu0 %v3050
        %4725 = vmatprep.subr.bf16.mxu0 %v3039
        %4726 = vmatpush1.bf16.msra.mxu0 %v3038
        %4727 = vmatprep.subr.bf16.mxu0 %v3027
        %4728 = vmatpush1.bf16.msra.mxu0 %v3026
        %4729 = vmatprep.subr.bf16.mxu0 %v3015
        %4730 = vmatpush1.bf16.msra.mxu0 %v3014
        %4731 = vmatprep.subr.bf16.mxu0 %v3003
        %4732 = vmatpush1.bf16.msra.mxu0 %v3002
        %4733 = vmatprep.subr.bf16.mxu0 %v2991
        %4734 = vmatpush1.bf16.msra.mxu0 %v2990
        %4735 = vmatprep.subr.bf16.mxu0 %v2979
        %4736 = vmatpush1.bf16.msra.mxu0 %v2978
        %4737 = vmatprep.subr.bf16.mxu0 %v2967
        %4738 = vmatpush1.bf16.msra.mxu0 %v2966
        %4739 = vmatprep.subr.bf16.mxu0 %v3147
        %4740 = vmatpush2.bf16.msra.mxu0 %v3146
        %4741 = vmatprep.subr.bf16.mxu0 %v3135
        %4742 = vmatpush2.bf16.msra.mxu0 %v3134
        %4743 = vmatprep.subr.bf16.mxu0 %v3123
        %4744 = vmatpush2.bf16.msra.mxu0 %v3122
        %4745 = vmatprep.subr.bf16.mxu0 %v3111
        %4746 = vmatpush2.bf16.msra.mxu0 %v3110
        %4747 = vmatprep.subr.bf16.mxu0 %v3099
        %4748 = vmatpush2.bf16.msra.mxu0 %v3098
        %4749 = vmatprep.subr.bf16.mxu0 %v3087
        %4750 = vmatpush2.bf16.msra.mxu0 %v3086
        %4751 = vmatprep.subr.bf16.mxu0 %v3075
        %4752 = vmatpush2.bf16.msra.mxu0 %v3074
        %4753 = vmatprep.subr.bf16.mxu0 %v3063
        %4754 = vmatpush2.bf16.msra.mxu0 %v3062
        %4755 = vmatprep.mubr.bf16.mxu0 %v647
        %4756 = vmatmul.mubr.bf16.gmra.mxu0 %v646
        %v4757 = vpop.f32.mrf.mxu0
        %v4758 = vadd.f32 0.0, %v4757
        %v4759 = vpop.f32.mrf.mxu0
        %v4760 = vadd.f32 0.0, %v4759
        %v4761 = vpop.f32.mrf.mxu0
        %v4762 = vpop.f32.mrf.mxu0
        %4763 = vdwg.mxu0
        %4764 = vmatprep.subr.bf16.mxu0 %v3243
        %4765 = vmatpush1.bf16.msra.mxu0 %v3242
        %4766 = vmatprep.subr.bf16.mxu0 %v3231
        %4767 = vmatpush1.bf16.msra.mxu0 %v3230
        %4768 = vmatprep.subr.bf16.mxu0 %v3219
        %4769 = vmatpush1.bf16.msra.mxu0 %v3218
        %4770 = vmatprep.subr.bf16.mxu0 %v3207
        %4771 = vmatpush1.bf16.msra.mxu0 %v3206
        %4772 = vmatprep.subr.bf16.mxu0 %v3195
        %4773 = vmatpush1.bf16.msra.mxu0 %v3194
        %4774 = vmatprep.subr.bf16.mxu0 %v3183
        %4775 = vmatpush1.bf16.msra.mxu0 %v3182
        %4776 = vmatprep.subr.bf16.mxu0 %v3171
        %4777 = vmatpush1.bf16.msra.mxu0 %v3170
        %4778 = vmatprep.subr.bf16.mxu0 %v3159
        %4779 = vmatpush1.bf16.msra.mxu0 %v3158
        %4780 = vmatprep.subr.bf16.mxu0 %v3339
        %4781 = vmatpush2.bf16.msra.mxu0 %v3338
        %4782 = vmatprep.subr.bf16.mxu0 %v3327
        %4783 = vmatpush2.bf16.msra.mxu0 %v3326
        %4784 = vmatprep.subr.bf16.mxu0 %v3315
        %4785 = vmatpush2.bf16.msra.mxu0 %v3314
        %4786 = vmatprep.subr.bf16.mxu0 %v3303
        %4787 = vmatpush2.bf16.msra.mxu0 %v3302
        %4788 = vmatprep.subr.bf16.mxu0 %v3291
        %4789 = vmatpush2.bf16.msra.mxu0 %v3290
        %4790 = vmatprep.subr.bf16.mxu0 %v3279
        %4791 = vmatpush2.bf16.msra.mxu0 %v3278
        %4792 = vmatprep.subr.bf16.mxu0 %v3267
        %4793 = vmatpush2.bf16.msra.mxu0 %v3266
        %4794 = vmatprep.subr.bf16.mxu0 %v3255
        %4795 = vmatpush2.bf16.msra.mxu0 %v3254
        %4796 = vmatprep.mubr.bf16.mxu0 %v649
        %4797 = vmatmul.mubr.bf16.gmra.mxu0 %v648
        %v4798 = vpop.f32.mrf.mxu0
        %v4799 = vadd.f32 %v4758, %v4798
        %v4800 = vpop.f32.mrf.mxu0
        %v4801 = vadd.f32 %v4760, %v4800
        %v4802 = vpop.f32.mrf.mxu0
        %v4803 = vpop.f32.mrf.mxu0
        %4804 = vdwg.mxu0
        %4805 = vmatprep.subr.bf16.mxu0 %v3435
        %4806 = vmatpush1.bf16.msra.mxu0 %v3434
        %4807 = vmatprep.subr.bf16.mxu0 %v3423
        %4808 = vmatpush1.bf16.msra.mxu0 %v3422
        %4809 = vmatprep.subr.bf16.mxu0 %v3411
        %4810 = vmatpush1.bf16.msra.mxu0 %v3410
        %4811 = vmatprep.subr.bf16.mxu0 %v3399
        %4812 = vmatpush1.bf16.msra.mxu0 %v3398
        %4813 = vmatprep.subr.bf16.mxu0 %v3387
        %4814 = vmatpush1.bf16.msra.mxu0 %v3386
        %4815 = vmatprep.subr.bf16.mxu0 %v3375
        %4816 = vmatpush1.bf16.msra.mxu0 %v3374
        %4817 = vmatprep.subr.bf16.mxu0 %v3363
        %4818 = vmatpush1.bf16.msra.mxu0 %v3362
        %4819 = vmatprep.subr.bf16.mxu0 %v3351
        %4820 = vmatpush1.bf16.msra.mxu0 %v3350
        %4821 = vmatprep.subr.bf16.mxu0 %v3531
        %4822 = vmatpush2.bf16.msra.mxu0 %v3530
        %4823 = vmatprep.subr.bf16.mxu0 %v3519
        %4824 = vmatpush2.bf16.msra.mxu0 %v3518
        %4825 = vmatprep.subr.bf16.mxu0 %v3507
        %4826 = vmatpush2.bf16.msra.mxu0 %v3506
        %4827 = vmatprep.subr.bf16.mxu0 %v3495
        %4828 = vmatpush2.bf16.msra.mxu0 %v3494
        %4829 = vmatprep.subr.bf16.mxu0 %v3483
        %4830 = vmatpush2.bf16.msra.mxu0 %v3482
        %4831 = vmatprep.subr.bf16.mxu0 %v3471
        %4832 = vmatpush2.bf16.msra.mxu0 %v3470
        %4833 = vmatprep.subr.bf16.mxu0 %v3459
        %4834 = vmatpush2.bf16.msra.mxu0 %v3458
        %4835 = vmatprep.subr.bf16.mxu0 %v3447
        %4836 = vmatpush2.bf16.msra.mxu0 %v3446
        %4837 = vmatprep.mubr.bf16.mxu0 %v651
        %4838 = vmatmul.mubr.bf16.gmra.mxu0 %v650
        %v4839 = vpop.f32.mrf.mxu0
        %v4840 = vadd.f32 %v4799, %v4839
        %v4841 = vpop.f32.mrf.mxu0
        %v4842 = vadd.f32 %v4801, %v4841
        %v4843 = vpop.f32.mrf.mxu0
        %v4844 = vpop.f32.mrf.mxu0
        %4845 = vdwg.mxu0
        %v4846 = vld [vmem:[#allocation5] sm:$0xff]
        %v4847 = vld [vmem:[#allocation5 + $0x8] sm:$0xff]
        %v4848 = vld [vmem:[#allocation7] sm:$0xff]
        %v4849 = vld [vmem:[#allocation7 + $0x8] sm:$0xff]
        %v4850 = vld [vmem:[#allocation7 + $0x10] sm:$0xff]
        %v4851 = vld [vmem:[#allocation7 + $0x18] sm:$0xff]
        %vm4852 = vcmask 392192
        %v4854 = vsel %vm4852, %v4846, 0
        %v4857 = vsel %vm4852, %v4847, 0
        %4859 = vmatprep.subr.mxu0 0.0
        %4860 = vmatpush1.msra.mxu0 0.0
        %4861 = vmatprep.subr.mxu0 0.0
        %4862 = vmatpush1.msra.mxu0 0.0
        %4863 = vmatprep.subr.mxu0 0.0
        %4864 = vmatpush1.msra.mxu0 0.0
        %4865 = vmatprep.subr.mxu0 0.0
        %4866 = vmatpush1.msra.mxu0 0.0
        %4867 = vmatprep.subr.mxu0 0.0
        %4868 = vmatpush1.msra.mxu0 0.0
        %4869 = vmatprep.subr.mxu0 0.0
        %4870 = vmatpush1.msra.mxu0 0.0
        %4871 = vmatprep.subr.mxu0 0.0
        %4872 = vmatpush1.msra.mxu0 0.0
        %4873 = vmatprep.subr.mxu0 0.0
        %4874 = vmatpush1.msra.mxu0 0.0
        %4875 = vmatprep.subr.mxu0 0.0
        %4876 = vmatpush1.msra.mxu0 0.0
        %4877 = vmatprep.subr.mxu0 0.0
        %4878 = vmatpush1.msra.mxu0 0.0
        %4879 = vmatprep.subr.mxu0 %v4842
        %4880 = vmatpush1.msra.mxu0 %v4840
        %4881 = vmatprep.subr.mxu0 %v4719
        %4882 = vmatpush1.msra.mxu0 %v4717
        %4883 = vmatprep.subr.mxu0 %v4596
        %4884 = vmatpush1.msra.mxu0 %v4594
        %4885 = vmatprep.subr.mxu0 %v4473
        %4886 = vmatpush1.msra.mxu0 %v4471
        %4887 = vmatprep.subr.mxu0 %v4350
        %4888 = vmatpush1.msra.mxu0 %v4348
        %4889 = vmatprep.subr.mxu0 %v4227
        %4890 = vmatpush1.msra.mxu0 %v4225
        %4891 = vmatprep.subr.mxu0 0.0
        %4892 = vmatpush2.msra.mxu0 0.0
        %4893 = vmatprep.subr.mxu0 0.0
        %4894 = vmatpush2.msra.mxu0 0.0
        %4895 = vmatprep.subr.mxu0 0.0
        %4896 = vmatpush2.msra.mxu0 0.0
        %4897 = vmatprep.subr.mxu0 0.0
        %4898 = vmatpush2.msra.mxu0 0.0
        %4899 = vmatprep.subr.mxu0 0.0
        %4900 = vmatpush2.msra.mxu0 0.0
        %4901 = vmatprep.subr.mxu0 0.0
        %4902 = vmatpush2.msra.mxu0 0.0
        %4903 = vmatprep.subr.mxu0 0.0
        %4904 = vmatpush2.msra.mxu0 0.0
        %4905 = vmatprep.subr.mxu0 0.0
        %4906 = vmatpush2.msra.mxu0 0.0
        %4907 = vmatprep.subr.mxu0 0.0
        %4908 = vmatpush2.msra.mxu0 0.0
        %4909 = vmatprep.subr.mxu0 0.0
        %4910 = vmatpush2.msra.mxu0 0.0
        %4911 = vmatprep.subr.mxu0 0.0
        %4912 = vmatpush2.msra.mxu0 0.0
        %4913 = vmatprep.subr.mxu0 0.0
        %4914 = vmatpush2.msra.mxu0 0.0
        %4915 = vmatprep.subr.mxu0 0.0
        %4916 = vmatpush2.msra.mxu0 0.0
        %4917 = vmatprep.subr.mxu0 0.0
        %4918 = vmatpush2.msra.mxu0 0.0
        %4919 = vmatprep.subr.mxu0 0.0
        %4920 = vmatpush2.msra.mxu0 0.0
        %4921 = vmatprep.subr.mxu0 0.0
        %4922 = vmatpush2.msra.mxu0 0.0
        %4923 = vmatprep.mubr.f32.mxu0 0.0
        %4924 = vmatmul.mubr.f32.gmra.mxu0 %v4854
        %v4925 = vpop.f32.mrf.mxu0
        %v4926 = vadd.f32 %v4848, %v4925
        %v4927 = vpop.f32.mrf.mxu0
        %v4928 = vadd.f32 %v4849, %v4927
        %4929 = vmatprep.mubr.f32.mxu0 0.0
        %4930 = vmatmul.mubr.f32.gmra.mxu0 %v4857
        %v4931 = vpop.f32.mrf.mxu0
        %v4932 = vadd.f32 %v4850, %v4931
        %v4933 = vpop.f32.mrf.mxu0
        %v4934 = vadd.f32 %v4851, %v4933
        %4935 = vdwg.mxu0
        %v4936 = vpack.c.bf16 %v4932, %v4926
        %v4937 = vpack.c.bf16 %v4934, %v4928
        %v4938 = vld [vmem:[#allocation8] sm:$0xff]
        %v4939 = vld [vmem:[#allocation8 + $0x8] sm:$0xff]
        %v4940 = vld [vmem:[#allocation8 + $0x10] sm:$0xff]
        %v4941 = vld [vmem:[#allocation8 + $0x18] sm:$0xff]
        %v4942 = vld [vmem:[#allocation8 + $0x20] sm:$0xff]
        %v4943 = vld [vmem:[#allocation8 + $0x28] sm:$0xff]
        %v4944 = vld [vmem:[#allocation8 + $0x30] sm:$0xff]
        %v4945 = vld [vmem:[#allocation8 + $0x38] sm:$0xff]
        %v4946 = vld [vmem:[#allocation8 + $0x40] sm:$0xff]
        %v4947 = vld [vmem:[#allocation8 + $0x48] sm:$0xff]
        %v4948 = vld [vmem:[#allocation8 + $0x50] sm:$0xff]
        %v4949 = vld [vmem:[#allocation8 + $0x58] sm:$0xff]
        %v4950 = vld [vmem:[#allocation8 + $0x60] sm:$0xff]
        %v4951 = vld [vmem:[#allocation8 + $0x68] sm:$0xff]
        %v4952 = vld [vmem:[#allocation8 + $0x70] sm:$0xff]
        %v4953 = vld [vmem:[#allocation8 + $0x78] sm:$0xff]
        %v4954 = vld [vmem:[#allocation8 + $0x80] sm:$0xff]
        %v4955 = vld [vmem:[#allocation8 + $0x88] sm:$0xff]
        %v4956 = vld [vmem:[#allocation8 + $0x90] sm:$0xff]
        %v4957 = vld [vmem:[#allocation8 + $0x98] sm:$0xff]
        %v4958 = vld [vmem:[#allocation8 + $0xa0] sm:$0xff]
        %v4959 = vld [vmem:[#allocation8 + $0xa8] sm:$0xff]
        %v4960 = vld [vmem:[#allocation8 + $0xb0] sm:$0xff]
        %v4961 = vld [vmem:[#allocation8 + $0xb8] sm:$0xff]
        %v4962 = vld [vmem:[#allocation8 + $0xc0] sm:$0xff]
        %v4963 = vld [vmem:[#allocation8 + $0xc8] sm:$0xff]
        %v4964 = vld [vmem:[#allocation8 + $0xd0] sm:$0xff]
        %v4965 = vld [vmem:[#allocation8 + $0xd8] sm:$0xff]
        %v4966 = vld [vmem:[#allocation8 + $0xe0] sm:$0xff]
        %v4967 = vld [vmem:[#allocation8 + $0xe8] sm:$0xff]
        %v4968 = vld [vmem:[#allocation8 + $0xf0] sm:$0xff]
        %v4969 = vld [vmem:[#allocation8 + $0xf8] sm:$0xff]
        %v4970 = vld [vmem:[#allocation8 + $0x100] sm:$0xff]
        %v4971 = vld [vmem:[#allocation8 + $0x108] sm:$0xff]
        %v4972 = vld [vmem:[#allocation8 + $0x110] sm:$0xff]
        %v4973 = vld [vmem:[#allocation8 + $0x118] sm:$0xff]
        %v4974 = vld [vmem:[#allocation8 + $0x120] sm:$0xff]
        %v4975 = vld [vmem:[#allocation8 + $0x128] sm:$0xff]
        %v4976 = vld [vmem:[#allocation8 + $0x130] sm:$0xff]
        %v4977 = vld [vmem:[#allocation8 + $0x138] sm:$0xff]
        %v4978 = vld [vmem:[#allocation8 + $0x140] sm:$0xff]
        %v4979 = vld [vmem:[#allocation8 + $0x148] sm:$0xff]
        %v4980 = vld [vmem:[#allocation8 + $0x150] sm:$0xff]
        %v4981 = vld [vmem:[#allocation8 + $0x158] sm:$0xff]
        %v4982 = vld [vmem:[#allocation8 + $0x160] sm:$0xff]
        %v4983 = vld [vmem:[#allocation8 + $0x168] sm:$0xff]
        %v4984 = vld [vmem:[#allocation8 + $0x170] sm:$0xff]
        %v4985 = vld [vmem:[#allocation8 + $0x178] sm:$0xff]
        %v4986 = vld [vmem:[#allocation8 + $0x180] sm:$0xff]
        %v4987 = vld [vmem:[#allocation8 + $0x188] sm:$0xff]
        %v4988 = vld [vmem:[#allocation8 + $0x190] sm:$0xff]
        %v4989 = vld [vmem:[#allocation8 + $0x198] sm:$0xff]
        %v4990 = vld [vmem:[#allocation8 + $0x1a0] sm:$0xff]
        %v4991 = vld [vmem:[#allocation8 + $0x1a8] sm:$0xff]
        %v4992 = vld [vmem:[#allocation8 + $0x1b0] sm:$0xff]
        %v4993 = vld [vmem:[#allocation8 + $0x1b8] sm:$0xff]
        %v4994 = vld [vmem:[#allocation8 + $0x1c0] sm:$0xff]
        %v4995 = vld [vmem:[#allocation8 + $0x1c8] sm:$0xff]
        %v4996 = vld [vmem:[#allocation8 + $0x1d0] sm:$0xff]
        %v4997 = vld [vmem:[#allocation8 + $0x1d8] sm:$0xff]
        %v4998 = vld [vmem:[#allocation8 + $0x1e0] sm:$0xff]
        %v4999 = vld [vmem:[#allocation8 + $0x1e8] sm:$0xff]
        %v5000 = vld [vmem:[#allocation8 + $0x1f0] sm:$0xff]
        %v5001 = vld [vmem:[#allocation8 + $0x1f8] sm:$0xff]
        %v5002 = vld [vmem:[#allocation8 + $0x200] sm:$0xff]
        %v5003 = vld [vmem:[#allocation8 + $0x208] sm:$0xff]
        %v5004 = vld [vmem:[#allocation8 + $0x210] sm:$0xff]
        %v5005 = vld [vmem:[#allocation8 + $0x218] sm:$0xff]
        %v5006 = vld [vmem:[#allocation8 + $0x220] sm:$0xff]
        %v5007 = vld [vmem:[#allocation8 + $0x228] sm:$0xff]
        %v5008 = vld [vmem:[#allocation8 + $0x230] sm:$0xff]
        %v5009 = vld [vmem:[#allocation8 + $0x238] sm:$0xff]
        %v5010 = vld [vmem:[#allocation8 + $0x240] sm:$0xff]
        %v5011 = vld [vmem:[#allocation8 + $0x248] sm:$0xff]
        %v5012 = vld [vmem:[#allocation8 + $0x250] sm:$0xff]
        %v5013 = vld [vmem:[#allocation8 + $0x258] sm:$0xff]
        %v5014 = vld [vmem:[#allocation8 + $0x260] sm:$0xff]
        %v5015 = vld [vmem:[#allocation8 + $0x268] sm:$0xff]
        %v5016 = vld [vmem:[#allocation8 + $0x270] sm:$0xff]
        %v5017 = vld [vmem:[#allocation8 + $0x278] sm:$0xff]
        %v5018 = vld [vmem:[#allocation8 + $0x280] sm:$0xff]
        %v5019 = vld [vmem:[#allocation8 + $0x288] sm:$0xff]
        %v5020 = vld [vmem:[#allocation8 + $0x290] sm:$0xff]
        %v5021 = vld [vmem:[#allocation8 + $0x298] sm:$0xff]
        %v5022 = vld [vmem:[#allocation8 + $0x2a0] sm:$0xff]
        %v5023 = vld [vmem:[#allocation8 + $0x2a8] sm:$0xff]
        %v5024 = vld [vmem:[#allocation8 + $0x2b0] sm:$0xff]
        %v5025 = vld [vmem:[#allocation8 + $0x2b8] sm:$0xff]
        %v5026 = vld [vmem:[#allocation8 + $0x2c0] sm:$0xff]
        %v5027 = vld [vmem:[#allocation8 + $0x2c8] sm:$0xff]
        %v5028 = vld [vmem:[#allocation8 + $0x2d0] sm:$0xff]
        %v5029 = vld [vmem:[#allocation8 + $0x2d8] sm:$0xff]
        %v5030 = vld [vmem:[#allocation8 + $0x2e0] sm:$0xff]
        %v5031 = vld [vmem:[#allocation8 + $0x2e8] sm:$0xff]
        %v5032 = vld [vmem:[#allocation8 + $0x2f0] sm:$0xff]
        %v5033 = vld [vmem:[#allocation8 + $0x2f8] sm:$0xff]
        %v5034 = vld [vmem:[#allocation8 + $0x300] sm:$0xff]
        %v5035 = vld [vmem:[#allocation8 + $0x308] sm:$0xff]
        %v5036 = vld [vmem:[#allocation8 + $0x310] sm:$0xff]
        %v5037 = vld [vmem:[#allocation8 + $0x318] sm:$0xff]
        %v5038 = vld [vmem:[#allocation8 + $0x320] sm:$0xff]
        %v5039 = vld [vmem:[#allocation8 + $0x328] sm:$0xff]
        %v5040 = vld [vmem:[#allocation8 + $0x330] sm:$0xff]
        %v5041 = vld [vmem:[#allocation8 + $0x338] sm:$0xff]
        %v5042 = vld [vmem:[#allocation8 + $0x340] sm:$0xff]
        %v5043 = vld [vmem:[#allocation8 + $0x348] sm:$0xff]
        %v5044 = vld [vmem:[#allocation8 + $0x350] sm:$0xff]
        %v5045 = vld [vmem:[#allocation8 + $0x358] sm:$0xff]
        %v5046 = vld [vmem:[#allocation8 + $0x360] sm:$0xff]
        %v5047 = vld [vmem:[#allocation8 + $0x368] sm:$0xff]
        %v5048 = vld [vmem:[#allocation8 + $0x370] sm:$0xff]
        %v5049 = vld [vmem:[#allocation8 + $0x378] sm:$0xff]
        %v5050 = vld [vmem:[#allocation8 + $0x380] sm:$0xff]
        %v5051 = vld [vmem:[#allocation8 + $0x388] sm:$0xff]
        %v5052 = vld [vmem:[#allocation8 + $0x390] sm:$0xff]
        %v5053 = vld [vmem:[#allocation8 + $0x398] sm:$0xff]
        %v5054 = vld [vmem:[#allocation8 + $0x3a0] sm:$0xff]
        %v5055 = vld [vmem:[#allocation8 + $0x3a8] sm:$0xff]
        %v5056 = vld [vmem:[#allocation8 + $0x3b0] sm:$0xff]
        %v5057 = vld [vmem:[#allocation8 + $0x3b8] sm:$0xff]
        %v5058 = vld [vmem:[#allocation8 + $0x3c0] sm:$0xff]
        %v5059 = vld [vmem:[#allocation8 + $0x3c8] sm:$0xff]
        %v5060 = vld [vmem:[#allocation8 + $0x3d0] sm:$0xff]
        %v5061 = vld [vmem:[#allocation8 + $0x3d8] sm:$0xff]
        %v5062 = vld [vmem:[#allocation8 + $0x3e0] sm:$0xff]
        %v5063 = vld [vmem:[#allocation8 + $0x3e8] sm:$0xff]
        %v5064 = vld [vmem:[#allocation8 + $0x3f0] sm:$0xff]
        %v5065 = vld [vmem:[#allocation8 + $0x3f8] sm:$0xff]
        %v5066 = vld [vmem:[#allocation8 + $0x400] sm:$0xff]
        %v5067 = vld [vmem:[#allocation8 + $0x408] sm:$0xff]
        %v5068 = vld [vmem:[#allocation8 + $0x410] sm:$0xff]
        %v5069 = vld [vmem:[#allocation8 + $0x418] sm:$0xff]
        %v5070 = vld [vmem:[#allocation8 + $0x420] sm:$0xff]
        %v5071 = vld [vmem:[#allocation8 + $0x428] sm:$0xff]
        %v5072 = vld [vmem:[#allocation8 + $0x430] sm:$0xff]
        %v5073 = vld [vmem:[#allocation8 + $0x438] sm:$0xff]
        %v5074 = vld [vmem:[#allocation8 + $0x440] sm:$0xff]
        %v5075 = vld [vmem:[#allocation8 + $0x448] sm:$0xff]
        %v5076 = vld [vmem:[#allocation8 + $0x450] sm:$0xff]
        %v5077 = vld [vmem:[#allocation8 + $0x458] sm:$0xff]
        %v5078 = vld [vmem:[#allocation8 + $0x460] sm:$0xff]
        %v5079 = vld [vmem:[#allocation8 + $0x468] sm:$0xff]
        %v5080 = vld [vmem:[#allocation8 + $0x470] sm:$0xff]
        %v5081 = vld [vmem:[#allocation8 + $0x478] sm:$0xff]
        %v5082 = vld [vmem:[#allocation8 + $0x480] sm:$0xff]
        %v5083 = vld [vmem:[#allocation8 + $0x488] sm:$0xff]
        %v5084 = vld [vmem:[#allocation8 + $0x490] sm:$0xff]
        %v5085 = vld [vmem:[#allocation8 + $0x498] sm:$0xff]
        %v5086 = vld [vmem:[#allocation8 + $0x4a0] sm:$0xff]
        %v5087 = vld [vmem:[#allocation8 + $0x4a8] sm:$0xff]
        %v5088 = vld [vmem:[#allocation8 + $0x4b0] sm:$0xff]
        %v5089 = vld [vmem:[#allocation8 + $0x4b8] sm:$0xff]
        %v5090 = vld [vmem:[#allocation8 + $0x4c0] sm:$0xff]
        %v5091 = vld [vmem:[#allocation8 + $0x4c8] sm:$0xff]
        %v5092 = vld [vmem:[#allocation8 + $0x4d0] sm:$0xff]
        %v5093 = vld [vmem:[#allocation8 + $0x4d8] sm:$0xff]
        %v5094 = vld [vmem:[#allocation8 + $0x4e0] sm:$0xff]
        %v5095 = vld [vmem:[#allocation8 + $0x4e8] sm:$0xff]
        %v5096 = vld [vmem:[#allocation8 + $0x4f0] sm:$0xff]
        %v5097 = vld [vmem:[#allocation8 + $0x4f8] sm:$0xff]
        %v5098 = vld [vmem:[#allocation8 + $0x500] sm:$0xff]
        %v5099 = vld [vmem:[#allocation8 + $0x508] sm:$0xff]
        %v5100 = vld [vmem:[#allocation8 + $0x510] sm:$0xff]
        %v5101 = vld [vmem:[#allocation8 + $0x518] sm:$0xff]
        %v5102 = vld [vmem:[#allocation8 + $0x520] sm:$0xff]
        %v5103 = vld [vmem:[#allocation8 + $0x528] sm:$0xff]
        %v5104 = vld [vmem:[#allocation8 + $0x530] sm:$0xff]
        %v5105 = vld [vmem:[#allocation8 + $0x538] sm:$0xff]
        %v5106 = vld [vmem:[#allocation8 + $0x540] sm:$0xff]
        %v5107 = vld [vmem:[#allocation8 + $0x548] sm:$0xff]
        %v5108 = vld [vmem:[#allocation8 + $0x550] sm:$0xff]
        %v5109 = vld [vmem:[#allocation8 + $0x558] sm:$0xff]
        %v5110 = vld [vmem:[#allocation8 + $0x560] sm:$0xff]
        %v5111 = vld [vmem:[#allocation8 + $0x568] sm:$0xff]
        %v5112 = vld [vmem:[#allocation8 + $0x570] sm:$0xff]
        %v5113 = vld [vmem:[#allocation8 + $0x578] sm:$0xff]
        %v5114 = vld [vmem:[#allocation8 + $0x580] sm:$0xff]
        %v5115 = vld [vmem:[#allocation8 + $0x588] sm:$0xff]
        %v5116 = vld [vmem:[#allocation8 + $0x590] sm:$0xff]
        %v5117 = vld [vmem:[#allocation8 + $0x598] sm:$0xff]
        %v5118 = vld [vmem:[#allocation8 + $0x5a0] sm:$0xff]
        %v5119 = vld [vmem:[#allocation8 + $0x5a8] sm:$0xff]
        %v5120 = vld [vmem:[#allocation8 + $0x5b0] sm:$0xff]
        %v5121 = vld [vmem:[#allocation8 + $0x5b8] sm:$0xff]
        %v5122 = vld [vmem:[#allocation8 + $0x5c0] sm:$0xff]
        %v5123 = vld [vmem:[#allocation8 + $0x5c8] sm:$0xff]
        %v5124 = vld [vmem:[#allocation8 + $0x5d0] sm:$0xff]
        %v5125 = vld [vmem:[#allocation8 + $0x5d8] sm:$0xff]
        %v5126 = vld [vmem:[#allocation8 + $0x5e0] sm:$0xff]
        %v5127 = vld [vmem:[#allocation8 + $0x5e8] sm:$0xff]
        %v5128 = vld [vmem:[#allocation8 + $0x5f0] sm:$0xff]
        %v5129 = vld [vmem:[#allocation8 + $0x5f8] sm:$0xff]
        %v5322 = vunpack.c.l.b16 %v4938
        %v5323 = vunpack.c.h.b16 %v4938
        %v5324 = vunpack.c.l.b16 %v4939
        %v5325 = vunpack.c.h.b16 %v4939
        %v5326 = vunpack.c.l.b16 %v4940
        %v5327 = vunpack.c.h.b16 %v4940
        %v5328 = vunpack.c.l.b16 %v4941
        %v5329 = vunpack.c.h.b16 %v4941
        %v5330 = vunpack.c.l.b16 %v4942
        %v5331 = vunpack.c.h.b16 %v4942
        %v5332 = vunpack.c.l.b16 %v4943
        %v5333 = vunpack.c.h.b16 %v4943
        %v5334 = vunpack.c.l.b16 %v4944
        %v5335 = vunpack.c.h.b16 %v4944
        %v5336 = vunpack.c.l.b16 %v4945
        %v5337 = vunpack.c.h.b16 %v4945
        %v5338 = vunpack.c.l.b16 %v4946
        %v5339 = vunpack.c.h.b16 %v4946
        %v5340 = vunpack.c.l.b16 %v4947
        %v5341 = vunpack.c.h.b16 %v4947
        %v5342 = vunpack.c.l.b16 %v4948
        %v5343 = vunpack.c.h.b16 %v4948
        %v5344 = vunpack.c.l.b16 %v4949
        %v5345 = vunpack.c.h.b16 %v4949
        %v5346 = vunpack.c.l.b16 %v4950
        %v5347 = vunpack.c.h.b16 %v4950
        %v5348 = vunpack.c.l.b16 %v4951
        %v5349 = vunpack.c.h.b16 %v4951
        %v5350 = vunpack.c.l.b16 %v4952
        %v5351 = vunpack.c.h.b16 %v4952
        %v5352 = vunpack.c.l.b16 %v4953
        %v5353 = vunpack.c.h.b16 %v4953
        %v5354 = vunpack.c.l.b16 %v4954
        %v5355 = vunpack.c.h.b16 %v4954
        %v5356 = vunpack.c.l.b16 %v4955
        %v5357 = vunpack.c.h.b16 %v4955
        %v5358 = vunpack.c.l.b16 %v4956
        %v5359 = vunpack.c.h.b16 %v4956
        %v5360 = vunpack.c.l.b16 %v4957
        %v5361 = vunpack.c.h.b16 %v4957
        %v5362 = vunpack.c.l.b16 %v4958
        %v5363 = vunpack.c.h.b16 %v4958
        %v5364 = vunpack.c.l.b16 %v4959
        %v5365 = vunpack.c.h.b16 %v4959
        %v5366 = vunpack.c.l.b16 %v4960
        %v5367 = vunpack.c.h.b16 %v4960
        %v5368 = vunpack.c.l.b16 %v4961
        %v5369 = vunpack.c.h.b16 %v4961
        %v5370 = vunpack.c.l.b16 %v4962
        %v5371 = vunpack.c.h.b16 %v4962
        %v5372 = vunpack.c.l.b16 %v4963
        %v5373 = vunpack.c.h.b16 %v4963
        %v5374 = vunpack.c.l.b16 %v4964
        %v5375 = vunpack.c.h.b16 %v4964
        %v5376 = vunpack.c.l.b16 %v4965
        %v5377 = vunpack.c.h.b16 %v4965
        %v5378 = vunpack.c.l.b16 %v4966
        %v5379 = vunpack.c.h.b16 %v4966
        %v5380 = vunpack.c.l.b16 %v4967
        %v5381 = vunpack.c.h.b16 %v4967
        %v5382 = vunpack.c.l.b16 %v4968
        %v5383 = vunpack.c.h.b16 %v4968
        %v5384 = vunpack.c.l.b16 %v4969
        %v5385 = vunpack.c.h.b16 %v4969
        %v5386 = vunpack.c.l.b16 %v4970
        %v5387 = vunpack.c.h.b16 %v4970
        %v5388 = vunpack.c.l.b16 %v4971
        %v5389 = vunpack.c.h.b16 %v4971
        %v5390 = vunpack.c.l.b16 %v4972
        %v5391 = vunpack.c.h.b16 %v4972
        %v5392 = vunpack.c.l.b16 %v4973
        %v5393 = vunpack.c.h.b16 %v4973
        %v5394 = vunpack.c.l.b16 %v4974
        %v5395 = vunpack.c.h.b16 %v4974
        %v5396 = vunpack.c.l.b16 %v4975
        %v5397 = vunpack.c.h.b16 %v4975
        %v5398 = vunpack.c.l.b16 %v4976
        %v5399 = vunpack.c.h.b16 %v4976
        %v5400 = vunpack.c.l.b16 %v4977
        %v5401 = vunpack.c.h.b16 %v4977
        %v5402 = vunpack.c.l.b16 %v4978
        %v5403 = vunpack.c.h.b16 %v4978
        %v5404 = vunpack.c.l.b16 %v4979
        %v5405 = vunpack.c.h.b16 %v4979
        %v5406 = vunpack.c.l.b16 %v4980
        %v5407 = vunpack.c.h.b16 %v4980
        %v5408 = vunpack.c.l.b16 %v4981
        %v5409 = vunpack.c.h.b16 %v4981
        %v5410 = vunpack.c.l.b16 %v4982
        %v5411 = vunpack.c.h.b16 %v4982
        %v5412 = vunpack.c.l.b16 %v4983
        %v5413 = vunpack.c.h.b16 %v4983
        %v5414 = vunpack.c.l.b16 %v4984
        %v5415 = vunpack.c.h.b16 %v4984
        %v5416 = vunpack.c.l.b16 %v4985
        %v5417 = vunpack.c.h.b16 %v4985
        %v5418 = vunpack.c.l.b16 %v4986
        %v5419 = vunpack.c.h.b16 %v4986
        %v5420 = vunpack.c.l.b16 %v4987
        %v5421 = vunpack.c.h.b16 %v4987
        %v5422 = vunpack.c.l.b16 %v4988
        %v5423 = vunpack.c.h.b16 %v4988
        %v5424 = vunpack.c.l.b16 %v4989
        %v5425 = vunpack.c.h.b16 %v4989
        %v5426 = vunpack.c.l.b16 %v4990
        %v5427 = vunpack.c.h.b16 %v4990
        %v5428 = vunpack.c.l.b16 %v4991
        %v5429 = vunpack.c.h.b16 %v4991
        %v5430 = vunpack.c.l.b16 %v4992
        %v5431 = vunpack.c.h.b16 %v4992
        %v5432 = vunpack.c.l.b16 %v4993
        %v5433 = vunpack.c.h.b16 %v4993
        %v5434 = vunpack.c.l.b16 %v4994
        %v5435 = vunpack.c.h.b16 %v4994
        %v5436 = vunpack.c.l.b16 %v4995
        %v5437 = vunpack.c.h.b16 %v4995
        %v5438 = vunpack.c.l.b16 %v4996
        %v5439 = vunpack.c.h.b16 %v4996
        %v5440 = vunpack.c.l.b16 %v4997
        %v5441 = vunpack.c.h.b16 %v4997
        %v5442 = vunpack.c.l.b16 %v4998
        %v5443 = vunpack.c.h.b16 %v4998
        %v5444 = vunpack.c.l.b16 %v4999
        %v5445 = vunpack.c.h.b16 %v4999
        %v5446 = vunpack.c.l.b16 %v5000
        %v5447 = vunpack.c.h.b16 %v5000
        %v5448 = vunpack.c.l.b16 %v5001
        %v5449 = vunpack.c.h.b16 %v5001
        %v5450 = vunpack.c.l.b16 %v5002
        %v5451 = vunpack.c.h.b16 %v5002
        %v5452 = vunpack.c.l.b16 %v5003
        %v5453 = vunpack.c.h.b16 %v5003
        %v5454 = vunpack.c.l.b16 %v5004
        %v5455 = vunpack.c.h.b16 %v5004
        %v5456 = vunpack.c.l.b16 %v5005
        %v5457 = vunpack.c.h.b16 %v5005
        %v5458 = vunpack.c.l.b16 %v5006
        %v5459 = vunpack.c.h.b16 %v5006
        %v5460 = vunpack.c.l.b16 %v5007
        %v5461 = vunpack.c.h.b16 %v5007
        %v5462 = vunpack.c.l.b16 %v5008
        %v5463 = vunpack.c.h.b16 %v5008
        %v5464 = vunpack.c.l.b16 %v5009
        %v5465 = vunpack.c.h.b16 %v5009
        %v5466 = vunpack.c.l.b16 %v5010
        %v5467 = vunpack.c.h.b16 %v5010
        %v5468 = vunpack.c.l.b16 %v5011
        %v5469 = vunpack.c.h.b16 %v5011
        %v5470 = vunpack.c.l.b16 %v5012
        %v5471 = vunpack.c.h.b16 %v5012
        %v5472 = vunpack.c.l.b16 %v5013
        %v5473 = vunpack.c.h.b16 %v5013
        %v5474 = vunpack.c.l.b16 %v5014
        %v5475 = vunpack.c.h.b16 %v5014
        %v5476 = vunpack.c.l.b16 %v5015
        %v5477 = vunpack.c.h.b16 %v5015
        %v5478 = vunpack.c.l.b16 %v5016
        %v5479 = vunpack.c.h.b16 %v5016
        %v5480 = vunpack.c.l.b16 %v5017
        %v5481 = vunpack.c.h.b16 %v5017
        %v5482 = vunpack.c.l.b16 %v5018
        %v5483 = vunpack.c.h.b16 %v5018
        %v5484 = vunpack.c.l.b16 %v5019
        %v5485 = vunpack.c.h.b16 %v5019
        %v5486 = vunpack.c.l.b16 %v5020
        %v5487 = vunpack.c.h.b16 %v5020
        %v5488 = vunpack.c.l.b16 %v5021
        %v5489 = vunpack.c.h.b16 %v5021
        %v5490 = vunpack.c.l.b16 %v5022
        %v5491 = vunpack.c.h.b16 %v5022
        %v5492 = vunpack.c.l.b16 %v5023
        %v5493 = vunpack.c.h.b16 %v5023
        %v5494 = vunpack.c.l.b16 %v5024
        %v5495 = vunpack.c.h.b16 %v5024
        %v5496 = vunpack.c.l.b16 %v5025
        %v5497 = vunpack.c.h.b16 %v5025
        %v5498 = vunpack.c.l.b16 %v5026
        %v5499 = vunpack.c.h.b16 %v5026
        %v5500 = vunpack.c.l.b16 %v5027
        %v5501 = vunpack.c.h.b16 %v5027
        %v5502 = vunpack.c.l.b16 %v5028
        %v5503 = vunpack.c.h.b16 %v5028
        %v5504 = vunpack.c.l.b16 %v5029
        %v5505 = vunpack.c.h.b16 %v5029
        %v5506 = vunpack.c.l.b16 %v5030
        %v5507 = vunpack.c.h.b16 %v5030
        %v5508 = vunpack.c.l.b16 %v5031
        %v5509 = vunpack.c.h.b16 %v5031
        %v5510 = vunpack.c.l.b16 %v5032
        %v5511 = vunpack.c.h.b16 %v5032
        %v5512 = vunpack.c.l.b16 %v5033
        %v5513 = vunpack.c.h.b16 %v5033
        %v5514 = vunpack.c.l.b16 %v5034
        %v5515 = vunpack.c.h.b16 %v5034
        %v5516 = vunpack.c.l.b16 %v5035
        %v5517 = vunpack.c.h.b16 %v5035
        %v5518 = vunpack.c.l.b16 %v5036
        %v5519 = vunpack.c.h.b16 %v5036
        %v5520 = vunpack.c.l.b16 %v5037
        %v5521 = vunpack.c.h.b16 %v5037
        %v5522 = vunpack.c.l.b16 %v5038
        %v5523 = vunpack.c.h.b16 %v5038
        %v5524 = vunpack.c.l.b16 %v5039
        %v5525 = vunpack.c.h.b16 %v5039
        %v5526 = vunpack.c.l.b16 %v5040
        %v5527 = vunpack.c.h.b16 %v5040
        %v5528 = vunpack.c.l.b16 %v5041
        %v5529 = vunpack.c.h.b16 %v5041
        %v5530 = vunpack.c.l.b16 %v5042
        %v5531 = vunpack.c.h.b16 %v5042
        %v5532 = vunpack.c.l.b16 %v5043
        %v5533 = vunpack.c.h.b16 %v5043
        %v5534 = vunpack.c.l.b16 %v5044
        %v5535 = vunpack.c.h.b16 %v5044
        %v5536 = vunpack.c.l.b16 %v5045
        %v5537 = vunpack.c.h.b16 %v5045
        %v5538 = vunpack.c.l.b16 %v5046
        %v5539 = vunpack.c.h.b16 %v5046
        %v5540 = vunpack.c.l.b16 %v5047
        %v5541 = vunpack.c.h.b16 %v5047
        %v5542 = vunpack.c.l.b16 %v5048
        %v5543 = vunpack.c.h.b16 %v5048
        %v5544 = vunpack.c.l.b16 %v5049
        %v5545 = vunpack.c.h.b16 %v5049
        %v5546 = vunpack.c.l.b16 %v5050
        %v5547 = vunpack.c.h.b16 %v5050
        %v5548 = vunpack.c.l.b16 %v5051
        %v5549 = vunpack.c.h.b16 %v5051
        %v5550 = vunpack.c.l.b16 %v5052
        %v5551 = vunpack.c.h.b16 %v5052
        %v5552 = vunpack.c.l.b16 %v5053
        %v5553 = vunpack.c.h.b16 %v5053
        %v5554 = vunpack.c.l.b16 %v5054
        %v5555 = vunpack.c.h.b16 %v5054
        %v5556 = vunpack.c.l.b16 %v5055
        %v5557 = vunpack.c.h.b16 %v5055
        %v5558 = vunpack.c.l.b16 %v5056
        %v5559 = vunpack.c.h.b16 %v5056
        %v5560 = vunpack.c.l.b16 %v5057
        %v5561 = vunpack.c.h.b16 %v5057
        %v5562 = vunpack.c.l.b16 %v5058
        %v5563 = vunpack.c.h.b16 %v5058
        %v5564 = vunpack.c.l.b16 %v5059
        %v5565 = vunpack.c.h.b16 %v5059
        %v5566 = vunpack.c.l.b16 %v5060
        %v5567 = vunpack.c.h.b16 %v5060
        %v5568 = vunpack.c.l.b16 %v5061
        %v5569 = vunpack.c.h.b16 %v5061
        %v5570 = vunpack.c.l.b16 %v5062
        %v5571 = vunpack.c.h.b16 %v5062
        %v5572 = vunpack.c.l.b16 %v5063
        %v5573 = vunpack.c.h.b16 %v5063
        %v5574 = vunpack.c.l.b16 %v5064
        %v5575 = vunpack.c.h.b16 %v5064
        %v5576 = vunpack.c.l.b16 %v5065
        %v5577 = vunpack.c.h.b16 %v5065
        %v5578 = vunpack.c.l.b16 %v5066
        %v5579 = vunpack.c.h.b16 %v5066
        %v5580 = vunpack.c.l.b16 %v5067
        %v5581 = vunpack.c.h.b16 %v5067
        %v5582 = vunpack.c.l.b16 %v5068
        %v5583 = vunpack.c.h.b16 %v5068
        %v5584 = vunpack.c.l.b16 %v5069
        %v5585 = vunpack.c.h.b16 %v5069
        %v5586 = vunpack.c.l.b16 %v5070
        %v5587 = vunpack.c.h.b16 %v5070
        %v5588 = vunpack.c.l.b16 %v5071
        %v5589 = vunpack.c.h.b16 %v5071
        %v5590 = vunpack.c.l.b16 %v5072
        %v5591 = vunpack.c.h.b16 %v5072
        %v5592 = vunpack.c.l.b16 %v5073
        %v5593 = vunpack.c.h.b16 %v5073
        %v5594 = vunpack.c.l.b16 %v5074
        %v5595 = vunpack.c.h.b16 %v5074
        %v5596 = vunpack.c.l.b16 %v5075
        %v5597 = vunpack.c.h.b16 %v5075
        %v5598 = vunpack.c.l.b16 %v5076
        %v5599 = vunpack.c.h.b16 %v5076
        %v5600 = vunpack.c.l.b16 %v5077
        %v5601 = vunpack.c.h.b16 %v5077
        %v5602 = vunpack.c.l.b16 %v5078
        %v5603 = vunpack.c.h.b16 %v5078
        %v5604 = vunpack.c.l.b16 %v5079
        %v5605 = vunpack.c.h.b16 %v5079
        %v5606 = vunpack.c.l.b16 %v5080
        %v5607 = vunpack.c.h.b16 %v5080
        %v5608 = vunpack.c.l.b16 %v5081
        %v5609 = vunpack.c.h.b16 %v5081
        %v5610 = vunpack.c.l.b16 %v5082
        %v5611 = vunpack.c.h.b16 %v5082
        %v5612 = vunpack.c.l.b16 %v5083
        %v5613 = vunpack.c.h.b16 %v5083
        %v5614 = vunpack.c.l.b16 %v5084
        %v5615 = vunpack.c.h.b16 %v5084
        %v5616 = vunpack.c.l.b16 %v5085
        %v5617 = vunpack.c.h.b16 %v5085
        %v5618 = vunpack.c.l.b16 %v5086
        %v5619 = vunpack.c.h.b16 %v5086
        %v5620 = vunpack.c.l.b16 %v5087
        %v5621 = vunpack.c.h.b16 %v5087
        %v5622 = vunpack.c.l.b16 %v5088
        %v5623 = vunpack.c.h.b16 %v5088
        %v5624 = vunpack.c.l.b16 %v5089
        %v5625 = vunpack.c.h.b16 %v5089
        %v5626 = vunpack.c.l.b16 %v5090
        %v5627 = vunpack.c.h.b16 %v5090
        %v5628 = vunpack.c.l.b16 %v5091
        %v5629 = vunpack.c.h.b16 %v5091
        %v5630 = vunpack.c.l.b16 %v5092
        %v5631 = vunpack.c.h.b16 %v5092
        %v5632 = vunpack.c.l.b16 %v5093
        %v5633 = vunpack.c.h.b16 %v5093
        %v5634 = vunpack.c.l.b16 %v5094
        %v5635 = vunpack.c.h.b16 %v5094
        %v5636 = vunpack.c.l.b16 %v5095
        %v5637 = vunpack.c.h.b16 %v5095
        %v5638 = vunpack.c.l.b16 %v5096
        %v5639 = vunpack.c.h.b16 %v5096
        %v5640 = vunpack.c.l.b16 %v5097
        %v5641 = vunpack.c.h.b16 %v5097
        %v5642 = vunpack.c.l.b16 %v5098
        %v5643 = vunpack.c.h.b16 %v5098
        %v5644 = vunpack.c.l.b16 %v5099
        %v5645 = vunpack.c.h.b16 %v5099
        %v5646 = vunpack.c.l.b16 %v5100
        %v5647 = vunpack.c.h.b16 %v5100
        %v5648 = vunpack.c.l.b16 %v5101
        %v5649 = vunpack.c.h.b16 %v5101
        %v5650 = vunpack.c.l.b16 %v5102
        %v5651 = vunpack.c.h.b16 %v5102
        %v5652 = vunpack.c.l.b16 %v5103
        %v5653 = vunpack.c.h.b16 %v5103
        %v5654 = vunpack.c.l.b16 %v5104
        %v5655 = vunpack.c.h.b16 %v5104
        %v5656 = vunpack.c.l.b16 %v5105
        %v5657 = vunpack.c.h.b16 %v5105
        %v5658 = vunpack.c.l.b16 %v5106
        %v5659 = vunpack.c.h.b16 %v5106
        %v5660 = vunpack.c.l.b16 %v5107
        %v5661 = vunpack.c.h.b16 %v5107
        %v5662 = vunpack.c.l.b16 %v5108
        %v5663 = vunpack.c.h.b16 %v5108
        %v5664 = vunpack.c.l.b16 %v5109
        %v5665 = vunpack.c.h.b16 %v5109
        %v5666 = vunpack.c.l.b16 %v5110
        %v5667 = vunpack.c.h.b16 %v5110
        %v5668 = vunpack.c.l.b16 %v5111
        %v5669 = vunpack.c.h.b16 %v5111
        %v5670 = vunpack.c.l.b16 %v5112
        %v5671 = vunpack.c.h.b16 %v5112
        %v5672 = vunpack.c.l.b16 %v5113
        %v5673 = vunpack.c.h.b16 %v5113
        %v5674 = vunpack.c.l.b16 %v5114
        %v5675 = vunpack.c.h.b16 %v5114
        %v5676 = vunpack.c.l.b16 %v5115
        %v5677 = vunpack.c.h.b16 %v5115
        %v5678 = vunpack.c.l.b16 %v5116
        %v5679 = vunpack.c.h.b16 %v5116
        %v5680 = vunpack.c.l.b16 %v5117
        %v5681 = vunpack.c.h.b16 %v5117
        %v5682 = vunpack.c.l.b16 %v5118
        %v5683 = vunpack.c.h.b16 %v5118
        %v5684 = vunpack.c.l.b16 %v5119
        %v5685 = vunpack.c.h.b16 %v5119
        %v5686 = vunpack.c.l.b16 %v5120
        %v5687 = vunpack.c.h.b16 %v5120
        %v5688 = vunpack.c.l.b16 %v5121
        %v5689 = vunpack.c.h.b16 %v5121
        %v5690 = vunpack.c.l.b16 %v5122
        %v5691 = vunpack.c.h.b16 %v5122
        %v5692 = vunpack.c.l.b16 %v5123
        %v5693 = vunpack.c.h.b16 %v5123
        %v5694 = vunpack.c.l.b16 %v5124
        %v5695 = vunpack.c.h.b16 %v5124
        %v5696 = vunpack.c.l.b16 %v5125
        %v5697 = vunpack.c.h.b16 %v5125
        %v5698 = vunpack.c.l.b16 %v5126
        %v5699 = vunpack.c.h.b16 %v5126
        %v5700 = vunpack.c.l.b16 %v5127
        %v5701 = vunpack.c.h.b16 %v5127
        %v5702 = vunpack.c.l.b16 %v5128
        %v5703 = vunpack.c.h.b16 %v5128
        %v5704 = vunpack.c.l.b16 %v5129
        %v5705 = vunpack.c.h.b16 %v5129
        %v5706 = vpack.c.b16 %v5334, %v5322
        %v5707 = vpack.c.b16 %v5335, %v5323
        %v5708 = vpack.c.b16 %v5336, %v5324
        %v5709 = vpack.c.b16 %v5337, %v5325
        %v5710 = vpack.c.b16 %v5338, %v5326
        %v5711 = vpack.c.b16 %v5339, %v5327
        %v5712 = vpack.c.b16 %v5340, %v5328
        %v5713 = vpack.c.b16 %v5341, %v5329
        %v5714 = vpack.c.b16 %v5342, %v5330
        %v5715 = vpack.c.b16 %v5343, %v5331
        %v5716 = vpack.c.b16 %v5344, %v5332
        %v5717 = vpack.c.b16 %v5345, %v5333
        %v5718 = vpack.c.b16 %v5358, %v5346
        %v5719 = vpack.c.b16 %v5359, %v5347
        %v5720 = vpack.c.b16 %v5360, %v5348
        %v5721 = vpack.c.b16 %v5361, %v5349
        %v5722 = vpack.c.b16 %v5362, %v5350
        %v5723 = vpack.c.b16 %v5363, %v5351
        %v5724 = vpack.c.b16 %v5364, %v5352
        %v5725 = vpack.c.b16 %v5365, %v5353
        %v5726 = vpack.c.b16 %v5366, %v5354
        %v5727 = vpack.c.b16 %v5367, %v5355
        %v5728 = vpack.c.b16 %v5368, %v5356
        %v5729 = vpack.c.b16 %v5369, %v5357
        %v5730 = vpack.c.b16 %v5382, %v5370
        %v5731 = vpack.c.b16 %v5383, %v5371
        %v5732 = vpack.c.b16 %v5384, %v5372
        %v5733 = vpack.c.b16 %v5385, %v5373
        %v5734 = vpack.c.b16 %v5386, %v5374
        %v5735 = vpack.c.b16 %v5387, %v5375
        %v5736 = vpack.c.b16 %v5388, %v5376
        %v5737 = vpack.c.b16 %v5389, %v5377
        %v5738 = vpack.c.b16 %v5390, %v5378
        %v5739 = vpack.c.b16 %v5391, %v5379
        %v5740 = vpack.c.b16 %v5392, %v5380
        %v5741 = vpack.c.b16 %v5393, %v5381
        %v5742 = vpack.c.b16 %v5406, %v5394
        %v5743 = vpack.c.b16 %v5407, %v5395
        %v5744 = vpack.c.b16 %v5408, %v5396
        %v5745 = vpack.c.b16 %v5409, %v5397
        %v5746 = vpack.c.b16 %v5410, %v5398
        %v5747 = vpack.c.b16 %v5411, %v5399
        %v5748 = vpack.c.b16 %v5412, %v5400
        %v5749 = vpack.c.b16 %v5413, %v5401
        %v5750 = vpack.c.b16 %v5414, %v5402
        %v5751 = vpack.c.b16 %v5415, %v5403
        %v5752 = vpack.c.b16 %v5416, %v5404
        %v5753 = vpack.c.b16 %v5417, %v5405
        %v5754 = vpack.c.b16 %v5430, %v5418
        %v5755 = vpack.c.b16 %v5431, %v5419
        %v5756 = vpack.c.b16 %v5432, %v5420
        %v5757 = vpack.c.b16 %v5433, %v5421
        %v5758 = vpack.c.b16 %v5434, %v5422
        %v5759 = vpack.c.b16 %v5435, %v5423
        %v5760 = vpack.c.b16 %v5436, %v5424
        %v5761 = vpack.c.b16 %v5437, %v5425
        %v5762 = vpack.c.b16 %v5438, %v5426
        %v5763 = vpack.c.b16 %v5439, %v5427
        %v5764 = vpack.c.b16 %v5440, %v5428
        %v5765 = vpack.c.b16 %v5441, %v5429
        %v5766 = vpack.c.b16 %v5454, %v5442
        %v5767 = vpack.c.b16 %v5455, %v5443
        %v5768 = vpack.c.b16 %v5456, %v5444
        %v5769 = vpack.c.b16 %v5457, %v5445
        %v5770 = vpack.c.b16 %v5458, %v5446
        %v5771 = vpack.c.b16 %v5459, %v5447
        %v5772 = vpack.c.b16 %v5460, %v5448
        %v5773 = vpack.c.b16 %v5461, %v5449
        %v5774 = vpack.c.b16 %v5462, %v5450
        %v5775 = vpack.c.b16 %v5463, %v5451
        %v5776 = vpack.c.b16 %v5464, %v5452
        %v5777 = vpack.c.b16 %v5465, %v5453
        %v5778 = vpack.c.b16 %v5478, %v5466
        %v5779 = vpack.c.b16 %v5479, %v5467
        %v5780 = vpack.c.b16 %v5480, %v5468
        %v5781 = vpack.c.b16 %v5481, %v5469
        %v5782 = vpack.c.b16 %v5482, %v5470
        %v5783 = vpack.c.b16 %v5483, %v5471
        %v5784 = vpack.c.b16 %v5484, %v5472
        %v5785 = vpack.c.b16 %v5485, %v5473
        %v5786 = vpack.c.b16 %v5486, %v5474
        %v5787 = vpack.c.b16 %v5487, %v5475
        %v5788 = vpack.c.b16 %v5488, %v5476
        %v5789 = vpack.c.b16 %v5489, %v5477
        %v5790 = vpack.c.b16 %v5502, %v5490
        %v5791 = vpack.c.b16 %v5503, %v5491
        %v5792 = vpack.c.b16 %v5504, %v5492
        %v5793 = vpack.c.b16 %v5505, %v5493
        %v5794 = vpack.c.b16 %v5506, %v5494
        %v5795 = vpack.c.b16 %v5507, %v5495
        %v5796 = vpack.c.b16 %v5508, %v5496
        %v5797 = vpack.c.b16 %v5509, %v5497
        %v5798 = vpack.c.b16 %v5510, %v5498
        %v5799 = vpack.c.b16 %v5511, %v5499
        %v5800 = vpack.c.b16 %v5512, %v5500
        %v5801 = vpack.c.b16 %v5513, %v5501
        %v5802 = vpack.c.b16 %v5526, %v5514
        %v5803 = vpack.c.b16 %v5527, %v5515
        %v5804 = vpack.c.b16 %v5528, %v5516
        %v5805 = vpack.c.b16 %v5529, %v5517
        %v5806 = vpack.c.b16 %v5530, %v5518
        %v5807 = vpack.c.b16 %v5531, %v5519
        %v5808 = vpack.c.b16 %v5532, %v5520
        %v5809 = vpack.c.b16 %v5533, %v5521
        %v5810 = vpack.c.b16 %v5534, %v5522
        %v5811 = vpack.c.b16 %v5535, %v5523
        %v5812 = vpack.c.b16 %v5536, %v5524
        %v5813 = vpack.c.b16 %v5537, %v5525
        %v5814 = vpack.c.b16 %v5550, %v5538
        %v5815 = vpack.c.b16 %v5551, %v5539
        %v5816 = vpack.c.b16 %v5552, %v5540
        %v5817 = vpack.c.b16 %v5553, %v5541
        %v5818 = vpack.c.b16 %v5554, %v5542
        %v5819 = vpack.c.b16 %v5555, %v5543
        %v5820 = vpack.c.b16 %v5556, %v5544
        %v5821 = vpack.c.b16 %v5557, %v5545
        %v5822 = vpack.c.b16 %v5558, %v5546
        %v5823 = vpack.c.b16 %v5559, %v5547
        %v5824 = vpack.c.b16 %v5560, %v5548
        %v5825 = vpack.c.b16 %v5561, %v5549
        %v5826 = vpack.c.b16 %v5574, %v5562
        %v5827 = vpack.c.b16 %v5575, %v5563
        %v5828 = vpack.c.b16 %v5576, %v5564
        %v5829 = vpack.c.b16 %v5577, %v5565
        %v5830 = vpack.c.b16 %v5578, %v5566
        %v5831 = vpack.c.b16 %v5579, %v5567
        %v5832 = vpack.c.b16 %v5580, %v5568
        %v5833 = vpack.c.b16 %v5581, %v5569
        %v5834 = vpack.c.b16 %v5582, %v5570
        %v5835 = vpack.c.b16 %v5583, %v5571
        %v5836 = vpack.c.b16 %v5584, %v5572
        %v5837 = vpack.c.b16 %v5585, %v5573
        %v5838 = vpack.c.b16 %v5598, %v5586
        %v5839 = vpack.c.b16 %v5599, %v5587
        %v5840 = vpack.c.b16 %v5600, %v5588
        %v5841 = vpack.c.b16 %v5601, %v5589
        %v5842 = vpack.c.b16 %v5602, %v5590
        %v5843 = vpack.c.b16 %v5603, %v5591
        %v5844 = vpack.c.b16 %v5604, %v5592
        %v5845 = vpack.c.b16 %v5605, %v5593
        %v5846 = vpack.c.b16 %v5606, %v5594
        %v5847 = vpack.c.b16 %v5607, %v5595
        %v5848 = vpack.c.b16 %v5608, %v5596
        %v5849 = vpack.c.b16 %v5609, %v5597
        %v5850 = vpack.c.b16 %v5622, %v5610
        %v5851 = vpack.c.b16 %v5623, %v5611
        %v5852 = vpack.c.b16 %v5624, %v5612
        %v5853 = vpack.c.b16 %v5625, %v5613
        %v5854 = vpack.c.b16 %v5626, %v5614
        %v5855 = vpack.c.b16 %v5627, %v5615
        %v5856 = vpack.c.b16 %v5628, %v5616
        %v5857 = vpack.c.b16 %v5629, %v5617
        %v5858 = vpack.c.b16 %v5630, %v5618
        %v5859 = vpack.c.b16 %v5631, %v5619
        %v5860 = vpack.c.b16 %v5632, %v5620
        %v5861 = vpack.c.b16 %v5633, %v5621
        %v5862 = vpack.c.b16 %v5646, %v5634
        %v5863 = vpack.c.b16 %v5647, %v5635
        %v5864 = vpack.c.b16 %v5648, %v5636
        %v5865 = vpack.c.b16 %v5649, %v5637
        %v5866 = vpack.c.b16 %v5650, %v5638
        %v5867 = vpack.c.b16 %v5651, %v5639
        %v5868 = vpack.c.b16 %v5652, %v5640
        %v5869 = vpack.c.b16 %v5653, %v5641
        %v5870 = vpack.c.b16 %v5654, %v5642
        %v5871 = vpack.c.b16 %v5655, %v5643
        %v5872 = vpack.c.b16 %v5656, %v5644
        %v5873 = vpack.c.b16 %v5657, %v5645
        %v5874 = vpack.c.b16 %v5670, %v5658
        %v5875 = vpack.c.b16 %v5671, %v5659
        %v5876 = vpack.c.b16 %v5672, %v5660
        %v5877 = vpack.c.b16 %v5673, %v5661
        %v5878 = vpack.c.b16 %v5674, %v5662
        %v5879 = vpack.c.b16 %v5675, %v5663
        %v5880 = vpack.c.b16 %v5676, %v5664
        %v5881 = vpack.c.b16 %v5677, %v5665
        %v5882 = vpack.c.b16 %v5678, %v5666
        %v5883 = vpack.c.b16 %v5679, %v5667
        %v5884 = vpack.c.b16 %v5680, %v5668
        %v5885 = vpack.c.b16 %v5681, %v5669
        %v5886 = vpack.c.b16 %v5694, %v5682
        %v5887 = vpack.c.b16 %v5695, %v5683
        %v5888 = vpack.c.b16 %v5696, %v5684
        %v5889 = vpack.c.b16 %v5697, %v5685
        %v5890 = vpack.c.b16 %v5698, %v5686
        %v5891 = vpack.c.b16 %v5699, %v5687
        %v5892 = vpack.c.b16 %v5700, %v5688
        %v5893 = vpack.c.b16 %v5701, %v5689
        %v5894 = vpack.c.b16 %v5702, %v5690
        %v5895 = vpack.c.b16 %v5703, %v5691
        %v5896 = vpack.c.b16 %v5704, %v5692
        %v5897 = vpack.c.b16 %v5705, %v5693
        %6090 = vmatprep.subr.bf16.mxu0 %v5791
        %6091 = vmatpush1.bf16.msra.mxu0 %v5790
        %6092 = vmatprep.subr.bf16.mxu0 %v5779
        %6093 = vmatpush1.bf16.msra.mxu0 %v5778
        %6094 = vmatprep.subr.bf16.mxu0 %v5767
        %6095 = vmatpush1.bf16.msra.mxu0 %v5766
        %6096 = vmatprep.subr.bf16.mxu0 %v5755
        %6097 = vmatpush1.bf16.msra.mxu0 %v5754
        %6098 = vmatprep.subr.bf16.mxu0 %v5743
        %6099 = vmatpush1.bf16.msra.mxu0 %v5742
        %6100 = vmatprep.subr.bf16.mxu0 %v5731
        %6101 = vmatpush1.bf16.msra.mxu0 %v5730
        %6102 = vmatprep.subr.bf16.mxu0 %v5719
        %6103 = vmatpush1.bf16.msra.mxu0 %v5718
        %6104 = vmatprep.subr.bf16.mxu0 %v5707
        %6105 = vmatpush1.bf16.msra.mxu0 %v5706
        %6106 = vmatprep.subr.bf16.mxu0 %v5887
        %6107 = vmatpush2.bf16.msra.mxu0 %v5886
        %6108 = vmatprep.subr.bf16.mxu0 %v5875
        %6109 = vmatpush2.bf16.msra.mxu0 %v5874
        %6110 = vmatprep.subr.bf16.mxu0 %v5863
        %6111 = vmatpush2.bf16.msra.mxu0 %v5862
        %6112 = vmatprep.subr.bf16.mxu0 %v5851
        %6113 = vmatpush2.bf16.msra.mxu0 %v5850
        %6114 = vmatprep.subr.bf16.mxu0 %v5839
        %6115 = vmatpush2.bf16.msra.mxu0 %v5838
        %6116 = vmatprep.subr.bf16.mxu0 %v5827
        %6117 = vmatpush2.bf16.msra.mxu0 %v5826
        %6118 = vmatprep.subr.bf16.mxu0 %v5815
        %6119 = vmatpush2.bf16.msra.mxu0 %v5814
        %6120 = vmatprep.subr.bf16.mxu0 %v5803
        %6121 = vmatpush2.bf16.msra.mxu0 %v5802
        %6122 = vmatprep.mubr.bf16.mxu0 %v4937
        %6123 = vmatmul.mubr.bf16.gmra.mxu0 %v4936
        %v6124 = vpop.f32.mrf.mxu0
        %v6125 = vadd.f32 0.0, %v6124
        %v6126 = vpop.f32.mrf.mxu0
        %v6127 = vadd.f32 0.0, %v6126
        %v6128 = vpop.f32.mrf.mxu0
        %v6129 = vadd.f32 0.0, %v6128
        %v6130 = vpop.f32.mrf.mxu0
        %v6131 = vadd.f32 0.0, %v6130
        %6132 = vdwg.mxu0
        %6133 = vmatprep.subr.bf16.mxu0 %v5793
        %6134 = vmatpush1.bf16.msra.mxu0 %v5792
        %6135 = vmatprep.subr.bf16.mxu0 %v5781
        %6136 = vmatpush1.bf16.msra.mxu0 %v5780
        %6137 = vmatprep.subr.bf16.mxu0 %v5769
        %6138 = vmatpush1.bf16.msra.mxu0 %v5768
        %6139 = vmatprep.subr.bf16.mxu0 %v5757
        %6140 = vmatpush1.bf16.msra.mxu0 %v5756
        %6141 = vmatprep.subr.bf16.mxu0 %v5745
        %6142 = vmatpush1.bf16.msra.mxu0 %v5744
        %6143 = vmatprep.subr.bf16.mxu0 %v5733
        %6144 = vmatpush1.bf16.msra.mxu0 %v5732
        %6145 = vmatprep.subr.bf16.mxu0 %v5721
        %6146 = vmatpush1.bf16.msra.mxu0 %v5720
        %6147 = vmatprep.subr.bf16.mxu0 %v5709
        %6148 = vmatpush1.bf16.msra.mxu0 %v5708
        %6149 = vmatprep.subr.bf16.mxu0 %v5889
        %6150 = vmatpush2.bf16.msra.mxu0 %v5888
        %6151 = vmatprep.subr.bf16.mxu0 %v5877
        %6152 = vmatpush2.bf16.msra.mxu0 %v5876
        %6153 = vmatprep.subr.bf16.mxu0 %v5865
        %6154 = vmatpush2.bf16.msra.mxu0 %v5864
        %6155 = vmatprep.subr.bf16.mxu0 %v5853
        %6156 = vmatpush2.bf16.msra.mxu0 %v5852
        %6157 = vmatprep.subr.bf16.mxu0 %v5841
        %6158 = vmatpush2.bf16.msra.mxu0 %v5840
        %6159 = vmatprep.subr.bf16.mxu0 %v5829
        %6160 = vmatpush2.bf16.msra.mxu0 %v5828
        %6161 = vmatprep.subr.bf16.mxu0 %v5817
        %6162 = vmatpush2.bf16.msra.mxu0 %v5816
        %6163 = vmatprep.subr.bf16.mxu0 %v5805
        %6164 = vmatpush2.bf16.msra.mxu0 %v5804
        %6165 = vmatprep.mubr.bf16.mxu0 %v4937
        %6166 = vmatmul.mubr.bf16.gmra.mxu0 %v4936
        %v6167 = vpop.f32.mrf.mxu0
        %v6168 = vadd.f32 0.0, %v6167
        %v6169 = vpop.f32.mrf.mxu0
        %v6170 = vadd.f32 0.0, %v6169
        %v6171 = vpop.f32.mrf.mxu0
        %v6172 = vadd.f32 0.0, %v6171
        %v6173 = vpop.f32.mrf.mxu0
        %v6174 = vadd.f32 0.0, %v6173
        %6175 = vdwg.mxu0
        %6176 = vmatprep.subr.bf16.mxu0 %v5795
        %6177 = vmatpush1.bf16.msra.mxu0 %v5794
        %6178 = vmatprep.subr.bf16.mxu0 %v5783
        %6179 = vmatpush1.bf16.msra.mxu0 %v5782
        %6180 = vmatprep.subr.bf16.mxu0 %v5771
        %6181 = vmatpush1.bf16.msra.mxu0 %v5770
        %6182 = vmatprep.subr.bf16.mxu0 %v5759
        %6183 = vmatpush1.bf16.msra.mxu0 %v5758
        %6184 = vmatprep.subr.bf16.mxu0 %v5747
        %6185 = vmatpush1.bf16.msra.mxu0 %v5746
        %6186 = vmatprep.subr.bf16.mxu0 %v5735
        %6187 = vmatpush1.bf16.msra.mxu0 %v5734
        %6188 = vmatprep.subr.bf16.mxu0 %v5723
        %6189 = vmatpush1.bf16.msra.mxu0 %v5722
        %6190 = vmatprep.subr.bf16.mxu0 %v5711
        %6191 = vmatpush1.bf16.msra.mxu0 %v5710
        %6192 = vmatprep.subr.bf16.mxu0 %v5891
        %6193 = vmatpush2.bf16.msra.mxu0 %v5890
        %6194 = vmatprep.subr.bf16.mxu0 %v5879
        %6195 = vmatpush2.bf16.msra.mxu0 %v5878
        %6196 = vmatprep.subr.bf16.mxu0 %v5867
        %6197 = vmatpush2.bf16.msra.mxu0 %v5866
        %6198 = vmatprep.subr.bf16.mxu0 %v5855
        %6199 = vmatpush2.bf16.msra.mxu0 %v5854
        %6200 = vmatprep.subr.bf16.mxu0 %v5843
        %6201 = vmatpush2.bf16.msra.mxu0 %v5842
        %6202 = vmatprep.subr.bf16.mxu0 %v5831
        %6203 = vmatpush2.bf16.msra.mxu0 %v5830
        %6204 = vmatprep.subr.bf16.mxu0 %v5819
        %6205 = vmatpush2.bf16.msra.mxu0 %v5818
        %6206 = vmatprep.subr.bf16.mxu0 %v5807
        %6207 = vmatpush2.bf16.msra.mxu0 %v5806
        %6208 = vmatprep.mubr.bf16.mxu0 %v4937
        %6209 = vmatmul.mubr.bf16.gmra.mxu0 %v4936
        %v6210 = vpop.f32.mrf.mxu0
        %v6211 = vadd.f32 0.0, %v6210
        %v6212 = vpop.f32.mrf.mxu0
        %v6213 = vadd.f32 0.0, %v6212
        %v6214 = vpop.f32.mrf.mxu0
        %v6215 = vadd.f32 0.0, %v6214
        %v6216 = vpop.f32.mrf.mxu0
        %v6217 = vadd.f32 0.0, %v6216
        %6218 = vdwg.mxu0
        %6219 = vmatprep.subr.bf16.mxu0 %v5797
        %6220 = vmatpush1.bf16.msra.mxu0 %v5796
        %6221 = vmatprep.subr.bf16.mxu0 %v5785
        %6222 = vmatpush1.bf16.msra.mxu0 %v5784
        %6223 = vmatprep.subr.bf16.mxu0 %v5773
        %6224 = vmatpush1.bf16.msra.mxu0 %v5772
        %6225 = vmatprep.subr.bf16.mxu0 %v5761
        %6226 = vmatpush1.bf16.msra.mxu0 %v5760
        %6227 = vmatprep.subr.bf16.mxu0 %v5749
        %6228 = vmatpush1.bf16.msra.mxu0 %v5748
        %6229 = vmatprep.subr.bf16.mxu0 %v5737
        %6230 = vmatpush1.bf16.msra.mxu0 %v5736
        %6231 = vmatprep.subr.bf16.mxu0 %v5725
        %6232 = vmatpush1.bf16.msra.mxu0 %v5724
        %6233 = vmatprep.subr.bf16.mxu0 %v5713
        %6234 = vmatpush1.bf16.msra.mxu0 %v5712
        %6235 = vmatprep.subr.bf16.mxu0 %v5893
        %6236 = vmatpush2.bf16.msra.mxu0 %v5892
        %6237 = vmatprep.subr.bf16.mxu0 %v5881
        %6238 = vmatpush2.bf16.msra.mxu0 %v5880
        %6239 = vmatprep.subr.bf16.mxu0 %v5869
        %6240 = vmatpush2.bf16.msra.mxu0 %v5868
        %6241 = vmatprep.subr.bf16.mxu0 %v5857
        %6242 = vmatpush2.bf16.msra.mxu0 %v5856
        %6243 = vmatprep.subr.bf16.mxu0 %v5845
        %6244 = vmatpush2.bf16.msra.mxu0 %v5844
        %6245 = vmatprep.subr.bf16.mxu0 %v5833
        %6246 = vmatpush2.bf16.msra.mxu0 %v5832
        %6247 = vmatprep.subr.bf16.mxu0 %v5821
        %6248 = vmatpush2.bf16.msra.mxu0 %v5820
        %6249 = vmatprep.subr.bf16.mxu0 %v5809
        %6250 = vmatpush2.bf16.msra.mxu0 %v5808
        %6251 = vmatprep.mubr.bf16.mxu0 %v4937
        %6252 = vmatmul.mubr.bf16.gmra.mxu0 %v4936
        %v6253 = vpop.f32.mrf.mxu0
        %v6254 = vadd.f32 0.0, %v6253
        %v6255 = vpop.f32.mrf.mxu0
        %v6256 = vadd.f32 0.0, %v6255
        %v6257 = vpop.f32.mrf.mxu0
        %v6258 = vadd.f32 0.0, %v6257
        %v6259 = vpop.f32.mrf.mxu0
        %v6260 = vadd.f32 0.0, %v6259
        %6261 = vdwg.mxu0
        %6262 = vmatprep.subr.bf16.mxu0 %v5799
        %6263 = vmatpush1.bf16.msra.mxu0 %v5798
        %6264 = vmatprep.subr.bf16.mxu0 %v5787
        %6265 = vmatpush1.bf16.msra.mxu0 %v5786
        %6266 = vmatprep.subr.bf16.mxu0 %v5775
        %6267 = vmatpush1.bf16.msra.mxu0 %v5774
        %6268 = vmatprep.subr.bf16.mxu0 %v5763
        %6269 = vmatpush1.bf16.msra.mxu0 %v5762
        %6270 = vmatprep.subr.bf16.mxu0 %v5751
        %6271 = vmatpush1.bf16.msra.mxu0 %v5750
        %6272 = vmatprep.subr.bf16.mxu0 %v5739
        %6273 = vmatpush1.bf16.msra.mxu0 %v5738
        %6274 = vmatprep.subr.bf16.mxu0 %v5727
        %6275 = vmatpush1.bf16.msra.mxu0 %v5726
        %6276 = vmatprep.subr.bf16.mxu0 %v5715
        %6277 = vmatpush1.bf16.msra.mxu0 %v5714
        %6278 = vmatprep.subr.bf16.mxu0 %v5895
        %6279 = vmatpush2.bf16.msra.mxu0 %v5894
        %6280 = vmatprep.subr.bf16.mxu0 %v5883
        %6281 = vmatpush2.bf16.msra.mxu0 %v5882
        %6282 = vmatprep.subr.bf16.mxu0 %v5871
        %6283 = vmatpush2.bf16.msra.mxu0 %v5870
        %6284 = vmatprep.subr.bf16.mxu0 %v5859
        %6285 = vmatpush2.bf16.msra.mxu0 %v5858
        %6286 = vmatprep.subr.bf16.mxu0 %v5847
        %6287 = vmatpush2.bf16.msra.mxu0 %v5846
        %6288 = vmatprep.subr.bf16.mxu0 %v5835
        %6289 = vmatpush2.bf16.msra.mxu0 %v5834
        %6290 = vmatprep.subr.bf16.mxu0 %v5823
        %6291 = vmatpush2.bf16.msra.mxu0 %v5822
        %6292 = vmatprep.subr.bf16.mxu0 %v5811
        %6293 = vmatpush2.bf16.msra.mxu0 %v5810
        %6294 = vmatprep.mubr.bf16.mxu0 %v4937
        %6295 = vmatmul.mubr.bf16.gmra.mxu0 %v4936
        %v6296 = vpop.f32.mrf.mxu0
        %v6297 = vadd.f32 0.0, %v6296
        %v6298 = vpop.f32.mrf.mxu0
        %v6299 = vadd.f32 0.0, %v6298
        %v6300 = vpop.f32.mrf.mxu0
        %v6301 = vadd.f32 0.0, %v6300
        %v6302 = vpop.f32.mrf.mxu0
        %v6303 = vadd.f32 0.0, %v6302
        %6304 = vdwg.mxu0
        %6305 = vmatprep.subr.bf16.mxu0 %v5801
        %6306 = vmatpush1.bf16.msra.mxu0 %v5800
        %6307 = vmatprep.subr.bf16.mxu0 %v5789
        %6308 = vmatpush1.bf16.msra.mxu0 %v5788
        %6309 = vmatprep.subr.bf16.mxu0 %v5777
        %6310 = vmatpush1.bf16.msra.mxu0 %v5776
        %6311 = vmatprep.subr.bf16.mxu0 %v5765
        %6312 = vmatpush1.bf16.msra.mxu0 %v5764
        %6313 = vmatprep.subr.bf16.mxu0 %v5753
        %6314 = vmatpush1.bf16.msra.mxu0 %v5752
        %6315 = vmatprep.subr.bf16.mxu0 %v5741
        %6316 = vmatpush1.bf16.msra.mxu0 %v5740
        %6317 = vmatprep.subr.bf16.mxu0 %v5729
        %6318 = vmatpush1.bf16.msra.mxu0 %v5728
        %6319 = vmatprep.subr.bf16.mxu0 %v5717
        %6320 = vmatpush1.bf16.msra.mxu0 %v5716
        %6321 = vmatprep.subr.bf16.mxu0 %v5897
        %6322 = vmatpush2.bf16.msra.mxu0 %v5896
        %6323 = vmatprep.subr.bf16.mxu0 %v5885
        %6324 = vmatpush2.bf16.msra.mxu0 %v5884
        %6325 = vmatprep.subr.bf16.mxu0 %v5873
        %6326 = vmatpush2.bf16.msra.mxu0 %v5872
        %6327 = vmatprep.subr.bf16.mxu0 %v5861
        %6328 = vmatpush2.bf16.msra.mxu0 %v5860
        %6329 = vmatprep.subr.bf16.mxu0 %v5849
        %6330 = vmatpush2.bf16.msra.mxu0 %v5848
        %6331 = vmatprep.subr.bf16.mxu0 %v5837
        %6332 = vmatpush2.bf16.msra.mxu0 %v5836
        %6333 = vmatprep.subr.bf16.mxu0 %v5825
        %6334 = vmatpush2.bf16.msra.mxu0 %v5824
        %6335 = vmatprep.subr.bf16.mxu0 %v5813
        %6336 = vmatpush2.bf16.msra.mxu0 %v5812
        %6337 = vmatprep.mubr.bf16.mxu0 %v4937
        %6338 = vmatmul.mubr.bf16.gmra.mxu0 %v4936
        %v6339 = vpop.f32.mrf.mxu0
        %v6340 = vadd.f32 0.0, %v6339
        %v6341 = vpop.f32.mrf.mxu0
        %v6342 = vadd.f32 0.0, %v6341
        %v6343 = vpop.f32.mrf.mxu0
        %v6344 = vadd.f32 0.0, %v6343
        %v6345 = vpop.f32.mrf.mxu0
        %v6346 = vadd.f32 0.0, %v6345
        %6347 = vdwg.mxu0
        %v6348 = vld [vmem:[#allocation10] sm:$0xff]
        %v6349 = vld [vmem:[#allocation10 + $0x8] sm:$0xff]
        %v6350 = vld [vmem:[#allocation10 + $0x10] sm:$0xff]
        %v6351 = vld [vmem:[#allocation10 + $0x18] sm:$0xff]
        %v6352 = vld [vmem:[#allocation11] sm:$0xff]
        %v6353 = vld [vmem:[#allocation11 + $0x8] sm:$0xff]
        %v6354 = vld [vmem:[#allocation11 + $0x10] sm:$0xff]
        %v6355 = vld [vmem:[#allocation11 + $0x18] sm:$0xff]
        %v6356 = vld [vmem:[#allocation11 + $0x20] sm:$0xff]
        %v6357 = vld [vmem:[#allocation11 + $0x28] sm:$0xff]
        %v6358 = vld [vmem:[#allocation11 + $0x30] sm:$0xff]
        %v6359 = vld [vmem:[#allocation11 + $0x38] sm:$0xff]
        %vm6360 = vcmask 785408
        %v6362 = vsel %vm6360, %v6348, 0
        %v6365 = vsel %vm6360, %v6349, 0
        %v6368 = vsel %vm6360, %v6350, 0
        %v6371 = vsel %vm6360, %v6351, 0
        %6373 = vmatprep.subr.mxu0 0.0
        %6374 = vmatpush1.msra.mxu0 0.0
        %6375 = vmatprep.subr.mxu0 0.0
        %6376 = vmatpush1.msra.mxu0 0.0
        %6377 = vmatprep.subr.mxu0 0.0
        %6378 = vmatpush1.msra.mxu0 0.0
        %6379 = vmatprep.subr.mxu0 0.0
        %6380 = vmatpush1.msra.mxu0 0.0
        %6381 = vmatprep.subr.mxu0 %v6346
        %6382 = vmatpush1.msra.mxu0 %v6344
        %6383 = vmatprep.subr.mxu0 %v6342
        %6384 = vmatpush1.msra.mxu0 %v6340
        %6385 = vmatprep.subr.mxu0 %v6303
        %6386 = vmatpush1.msra.mxu0 %v6301
        %6387 = vmatprep.subr.mxu0 %v6299
        %6388 = vmatpush1.msra.mxu0 %v6297
        %6389 = vmatprep.subr.mxu0 %v6260
        %6390 = vmatpush1.msra.mxu0 %v6258
        %6391 = vmatprep.subr.mxu0 %v6256
        %6392 = vmatpush1.msra.mxu0 %v6254
        %6393 = vmatprep.subr.mxu0 %v6217
        %6394 = vmatpush1.msra.mxu0 %v6215
        %6395 = vmatprep.subr.mxu0 %v6213
        %6396 = vmatpush1.msra.mxu0 %v6211
        %6397 = vmatprep.subr.mxu0 %v6174
        %6398 = vmatpush1.msra.mxu0 %v6172
        %6399 = vmatprep.subr.mxu0 %v6170
        %6400 = vmatpush1.msra.mxu0 %v6168
        %6401 = vmatprep.subr.mxu0 %v6131
        %6402 = vmatpush1.msra.mxu0 %v6129
        %6403 = vmatprep.subr.mxu0 %v6127
        %6404 = vmatpush1.msra.mxu0 %v6125
        %6405 = vmatprep.subr.mxu0 0.0
        %6406 = vmatpush2.msra.mxu0 0.0
        %6407 = vmatprep.subr.mxu0 0.0
        %6408 = vmatpush2.msra.mxu0 0.0
        %6409 = vmatprep.subr.mxu0 0.0
        %6410 = vmatpush2.msra.mxu0 0.0
        %6411 = vmatprep.subr.mxu0 0.0
        %6412 = vmatpush2.msra.mxu0 0.0
        %6413 = vmatprep.subr.mxu0 0.0
        %6414 = vmatpush2.msra.mxu0 0.0
        %6415 = vmatprep.subr.mxu0 0.0
        %6416 = vmatpush2.msra.mxu0 0.0
        %6417 = vmatprep.subr.mxu0 0.0
        %6418 = vmatpush2.msra.mxu0 0.0
        %6419 = vmatprep.subr.mxu0 0.0
        %6420 = vmatpush2.msra.mxu0 0.0
        %6421 = vmatprep.subr.mxu0 0.0
        %6422 = vmatpush2.msra.mxu0 0.0
        %6423 = vmatprep.subr.mxu0 0.0
        %6424 = vmatpush2.msra.mxu0 0.0
        %6425 = vmatprep.subr.mxu0 0.0
        %6426 = vmatpush2.msra.mxu0 0.0
        %6427 = vmatprep.subr.mxu0 0.0
        %6428 = vmatpush2.msra.mxu0 0.0
        %6429 = vmatprep.subr.mxu0 0.0
        %6430 = vmatpush2.msra.mxu0 0.0
        %6431 = vmatprep.subr.mxu0 0.0
        %6432 = vmatpush2.msra.mxu0 0.0
        %6433 = vmatprep.subr.mxu0 0.0
        %6434 = vmatpush2.msra.mxu0 0.0
        %6435 = vmatprep.subr.mxu0 0.0
        %6436 = vmatpush2.msra.mxu0 0.0
        %6437 = vmatprep.mubr.f32.mxu0 0.0
        %6438 = vmatmul.mubr.f32.gmra.mxu0 %v6362
        %v6439 = vpop.f32.mrf.mxu0
        %v6440 = vadd.f32 %v6352, %v6439
        %v6441 = vpop.f32.mrf.mxu0
        %v6442 = vadd.f32 %v6353, %v6441
        %6443 = vmatprep.mubr.f32.mxu0 0.0
        %6444 = vmatmul.mubr.f32.gmra.mxu0 %v6365
        %v6445 = vpop.f32.mrf.mxu0
        %v6446 = vadd.f32 %v6354, %v6445
        %v6447 = vpop.f32.mrf.mxu0
        %v6448 = vadd.f32 %v6355, %v6447
        %6449 = vmatprep.mubr.f32.mxu0 0.0
        %6450 = vmatmul.mubr.f32.gmra.mxu0 %v6368
        %v6451 = vpop.f32.mrf.mxu0
        %v6452 = vadd.f32 %v6356, %v6451
        %v6453 = vpop.f32.mrf.mxu0
        %v6454 = vadd.f32 %v6357, %v6453
        %6455 = vmatprep.mubr.f32.mxu0 0.0
        %6456 = vmatmul.mubr.f32.gmra.mxu0 %v6371
        %v6457 = vpop.f32.mrf.mxu0
        %v6458 = vadd.f32 %v6358, %v6457
        %v6459 = vpop.f32.mrf.mxu0
        %v6460 = vadd.f32 %v6359, %v6459
        %6461 = vdwg.mxu0
        %v6462 = vpack.c.bf16 %v6446, %v6440
        %v6463 = vpack.c.bf16 %v6448, %v6442
        %v6464 = vpack.c.bf16 %v6458, %v6452
        %v6465 = vpack.c.bf16 %v6460, %v6454
        %v6466 = vld [vmem:[#allocation13] sm:$0xff]
        %v6467 = vld [vmem:[#allocation13 + $0x8] sm:$0xff]
        %v6468 = vld [vmem:[#allocation13 + $0x10] sm:$0xff]
        %v6469 = vld [vmem:[#allocation13 + $0x18] sm:$0xff]
        %v6470 = vld [vmem:[#allocation13 + $0x20] sm:$0xff]
        %v6471 = vld [vmem:[#allocation13 + $0x28] sm:$0xff]
        %v6472 = vld [vmem:[#allocation13 + $0x30] sm:$0xff]
        %v6473 = vld [vmem:[#allocation13 + $0x38] sm:$0xff]
        %v6474 = vld [vmem:[#allocation13 + $0x40] sm:$0xff]
        %v6475 = vld [vmem:[#allocation13 + $0x48] sm:$0xff]
        %v6476 = vld [vmem:[#allocation13 + $0x50] sm:$0xff]
        %v6477 = vld [vmem:[#allocation13 + $0x58] sm:$0xff]
        %v6478 = vld [vmem:[#allocation13 + $0x60] sm:$0xff]
        %v6479 = vld [vmem:[#allocation13 + $0x68] sm:$0xff]
        %v6480 = vld [vmem:[#allocation13 + $0x70] sm:$0xff]
        %v6481 = vld [vmem:[#allocation13 + $0x78] sm:$0xff]
        %v6482 = vld [vmem:[#allocation13 + $0x80] sm:$0xff]
        %v6483 = vld [vmem:[#allocation13 + $0x88] sm:$0xff]
        %v6484 = vld [vmem:[#allocation13 + $0x90] sm:$0xff]
        %v6485 = vld [vmem:[#allocation13 + $0x98] sm:$0xff]
        %v6486 = vld [vmem:[#allocation13 + $0xa0] sm:$0xff]
        %v6487 = vld [vmem:[#allocation13 + $0xa8] sm:$0xff]
        %v6488 = vld [vmem:[#allocation13 + $0xb0] sm:$0xff]
        %v6489 = vld [vmem:[#allocation13 + $0xb8] sm:$0xff]
        %v6490 = vld [vmem:[#allocation13 + $0xc0] sm:$0xff]
        %v6491 = vld [vmem:[#allocation13 + $0xc8] sm:$0xff]
        %v6492 = vld [vmem:[#allocation13 + $0xd0] sm:$0xff]
        %v6493 = vld [vmem:[#allocation13 + $0xd8] sm:$0xff]
        %v6494 = vld [vmem:[#allocation13 + $0xe0] sm:$0xff]
        %v6495 = vld [vmem:[#allocation13 + $0xe8] sm:$0xff]
        %v6496 = vld [vmem:[#allocation13 + $0xf0] sm:$0xff]
        %v6497 = vld [vmem:[#allocation13 + $0xf8] sm:$0xff]
        %v6498 = vld [vmem:[#allocation13 + $0x100] sm:$0xff]
        %v6499 = vld [vmem:[#allocation13 + $0x108] sm:$0xff]
        %v6500 = vld [vmem:[#allocation13 + $0x110] sm:$0xff]
        %v6501 = vld [vmem:[#allocation13 + $0x118] sm:$0xff]
        %v6502 = vld [vmem:[#allocation13 + $0x120] sm:$0xff]
        %v6503 = vld [vmem:[#allocation13 + $0x128] sm:$0xff]
        %v6504 = vld [vmem:[#allocation13 + $0x130] sm:$0xff]
        %v6505 = vld [vmem:[#allocation13 + $0x138] sm:$0xff]
        %v6506 = vld [vmem:[#allocation13 + $0x140] sm:$0xff]
        %v6507 = vld [vmem:[#allocation13 + $0x148] sm:$0xff]
        %v6508 = vld [vmem:[#allocation13 + $0x150] sm:$0xff]
        %v6509 = vld [vmem:[#allocation13 + $0x158] sm:$0xff]
        %v6510 = vld [vmem:[#allocation13 + $0x160] sm:$0xff]
        %v6511 = vld [vmem:[#allocation13 + $0x168] sm:$0xff]
        %v6512 = vld [vmem:[#allocation13 + $0x170] sm:$0xff]
        %v6513 = vld [vmem:[#allocation13 + $0x178] sm:$0xff]
        %v6514 = vld [vmem:[#allocation13 + $0x180] sm:$0xff]
        %v6515 = vld [vmem:[#allocation13 + $0x188] sm:$0xff]
        %v6516 = vld [vmem:[#allocation13 + $0x190] sm:$0xff]
        %v6517 = vld [vmem:[#allocation13 + $0x198] sm:$0xff]
        %v6518 = vld [vmem:[#allocation13 + $0x1a0] sm:$0xff]
        %v6519 = vld [vmem:[#allocation13 + $0x1a8] sm:$0xff]
        %v6520 = vld [vmem:[#allocation13 + $0x1b0] sm:$0xff]
        %v6521 = vld [vmem:[#allocation13 + $0x1b8] sm:$0xff]
        %v6522 = vld [vmem:[#allocation13 + $0x1c0] sm:$0xff]
        %v6523 = vld [vmem:[#allocation13 + $0x1c8] sm:$0xff]
        %v6524 = vld [vmem:[#allocation13 + $0x1d0] sm:$0xff]
        %v6525 = vld [vmem:[#allocation13 + $0x1d8] sm:$0xff]
        %v6526 = vld [vmem:[#allocation13 + $0x1e0] sm:$0xff]
        %v6527 = vld [vmem:[#allocation13 + $0x1e8] sm:$0xff]
        %v6528 = vld [vmem:[#allocation13 + $0x1f0] sm:$0xff]
        %v6529 = vld [vmem:[#allocation13 + $0x1f8] sm:$0xff]
        %v6530 = vld [vmem:[#allocation13 + $0x200] sm:$0xff]
        %v6531 = vld [vmem:[#allocation13 + $0x208] sm:$0xff]
        %v6532 = vld [vmem:[#allocation13 + $0x210] sm:$0xff]
        %v6533 = vld [vmem:[#allocation13 + $0x218] sm:$0xff]
        %v6534 = vld [vmem:[#allocation13 + $0x220] sm:$0xff]
        %v6535 = vld [vmem:[#allocation13 + $0x228] sm:$0xff]
        %v6536 = vld [vmem:[#allocation13 + $0x230] sm:$0xff]
        %v6537 = vld [vmem:[#allocation13 + $0x238] sm:$0xff]
        %v6538 = vld [vmem:[#allocation13 + $0x240] sm:$0xff]
        %v6539 = vld [vmem:[#allocation13 + $0x248] sm:$0xff]
        %v6540 = vld [vmem:[#allocation13 + $0x250] sm:$0xff]
        %v6541 = vld [vmem:[#allocation13 + $0x258] sm:$0xff]
        %v6542 = vld [vmem:[#allocation13 + $0x260] sm:$0xff]
        %v6543 = vld [vmem:[#allocation13 + $0x268] sm:$0xff]
        %v6544 = vld [vmem:[#allocation13 + $0x270] sm:$0xff]
        %v6545 = vld [vmem:[#allocation13 + $0x278] sm:$0xff]
        %v6546 = vld [vmem:[#allocation13 + $0x280] sm:$0xff]
        %v6547 = vld [vmem:[#allocation13 + $0x288] sm:$0xff]
        %v6548 = vld [vmem:[#allocation13 + $0x290] sm:$0xff]
        %v6549 = vld [vmem:[#allocation13 + $0x298] sm:$0xff]
        %v6550 = vld [vmem:[#allocation13 + $0x2a0] sm:$0xff]
        %v6551 = vld [vmem:[#allocation13 + $0x2a8] sm:$0xff]
        %v6552 = vld [vmem:[#allocation13 + $0x2b0] sm:$0xff]
        %v6553 = vld [vmem:[#allocation13 + $0x2b8] sm:$0xff]
        %v6554 = vld [vmem:[#allocation13 + $0x2c0] sm:$0xff]
        %v6555 = vld [vmem:[#allocation13 + $0x2c8] sm:$0xff]
        %v6556 = vld [vmem:[#allocation13 + $0x2d0] sm:$0xff]
        %v6557 = vld [vmem:[#allocation13 + $0x2d8] sm:$0xff]
        %v6558 = vld [vmem:[#allocation13 + $0x2e0] sm:$0xff]
        %v6559 = vld [vmem:[#allocation13 + $0x2e8] sm:$0xff]
        %v6560 = vld [vmem:[#allocation13 + $0x2f0] sm:$0xff]
        %v6561 = vld [vmem:[#allocation13 + $0x2f8] sm:$0xff]
        %v6562 = vld [vmem:[#allocation13 + $0x300] sm:$0xff]
        %v6563 = vld [vmem:[#allocation13 + $0x308] sm:$0xff]
        %v6564 = vld [vmem:[#allocation13 + $0x310] sm:$0xff]
        %v6565 = vld [vmem:[#allocation13 + $0x318] sm:$0xff]
        %v6566 = vld [vmem:[#allocation13 + $0x320] sm:$0xff]
        %v6567 = vld [vmem:[#allocation13 + $0x328] sm:$0xff]
        %v6568 = vld [vmem:[#allocation13 + $0x330] sm:$0xff]
        %v6569 = vld [vmem:[#allocation13 + $0x338] sm:$0xff]
        %v6570 = vld [vmem:[#allocation13 + $0x340] sm:$0xff]
        %v6571 = vld [vmem:[#allocation13 + $0x348] sm:$0xff]
        %v6572 = vld [vmem:[#allocation13 + $0x350] sm:$0xff]
        %v6573 = vld [vmem:[#allocation13 + $0x358] sm:$0xff]
        %v6574 = vld [vmem:[#allocation13 + $0x360] sm:$0xff]
        %v6575 = vld [vmem:[#allocation13 + $0x368] sm:$0xff]
        %v6576 = vld [vmem:[#allocation13 + $0x370] sm:$0xff]
        %v6577 = vld [vmem:[#allocation13 + $0x378] sm:$0xff]
        %v6578 = vld [vmem:[#allocation13 + $0x380] sm:$0xff]
        %v6579 = vld [vmem:[#allocation13 + $0x388] sm:$0xff]
        %v6580 = vld [vmem:[#allocation13 + $0x390] sm:$0xff]
        %v6581 = vld [vmem:[#allocation13 + $0x398] sm:$0xff]
        %v6582 = vld [vmem:[#allocation13 + $0x3a0] sm:$0xff]
        %v6583 = vld [vmem:[#allocation13 + $0x3a8] sm:$0xff]
        %v6584 = vld [vmem:[#allocation13 + $0x3b0] sm:$0xff]
        %v6585 = vld [vmem:[#allocation13 + $0x3b8] sm:$0xff]
        %v6586 = vld [vmem:[#allocation13 + $0x3c0] sm:$0xff]
        %v6587 = vld [vmem:[#allocation13 + $0x3c8] sm:$0xff]
        %v6588 = vld [vmem:[#allocation13 + $0x3d0] sm:$0xff]
        %v6589 = vld [vmem:[#allocation13 + $0x3d8] sm:$0xff]
        %v6590 = vld [vmem:[#allocation13 + $0x3e0] sm:$0xff]
        %v6591 = vld [vmem:[#allocation13 + $0x3e8] sm:$0xff]
        %v6592 = vld [vmem:[#allocation13 + $0x3f0] sm:$0xff]
        %v6593 = vld [vmem:[#allocation13 + $0x3f8] sm:$0xff]
        %v6594 = vld [vmem:[#allocation13 + $0x400] sm:$0xff]
        %v6595 = vld [vmem:[#allocation13 + $0x408] sm:$0xff]
        %v6596 = vld [vmem:[#allocation13 + $0x410] sm:$0xff]
        %v6597 = vld [vmem:[#allocation13 + $0x418] sm:$0xff]
        %v6598 = vld [vmem:[#allocation13 + $0x420] sm:$0xff]
        %v6599 = vld [vmem:[#allocation13 + $0x428] sm:$0xff]
        %v6600 = vld [vmem:[#allocation13 + $0x430] sm:$0xff]
        %v6601 = vld [vmem:[#allocation13 + $0x438] sm:$0xff]
        %v6602 = vld [vmem:[#allocation13 + $0x440] sm:$0xff]
        %v6603 = vld [vmem:[#allocation13 + $0x448] sm:$0xff]
        %v6604 = vld [vmem:[#allocation13 + $0x450] sm:$0xff]
        %v6605 = vld [vmem:[#allocation13 + $0x458] sm:$0xff]
        %v6606 = vld [vmem:[#allocation13 + $0x460] sm:$0xff]
        %v6607 = vld [vmem:[#allocation13 + $0x468] sm:$0xff]
        %v6608 = vld [vmem:[#allocation13 + $0x470] sm:$0xff]
        %v6609 = vld [vmem:[#allocation13 + $0x478] sm:$0xff]
        %v6610 = vld [vmem:[#allocation13 + $0x480] sm:$0xff]
        %v6611 = vld [vmem:[#allocation13 + $0x488] sm:$0xff]
        %v6612 = vld [vmem:[#allocation13 + $0x490] sm:$0xff]
        %v6613 = vld [vmem:[#allocation13 + $0x498] sm:$0xff]
        %v6614 = vld [vmem:[#allocation13 + $0x4a0] sm:$0xff]
        %v6615 = vld [vmem:[#allocation13 + $0x4a8] sm:$0xff]
        %v6616 = vld [vmem:[#allocation13 + $0x4b0] sm:$0xff]
        %v6617 = vld [vmem:[#allocation13 + $0x4b8] sm:$0xff]
        %v6618 = vld [vmem:[#allocation13 + $0x4c0] sm:$0xff]
        %v6619 = vld [vmem:[#allocation13 + $0x4c8] sm:$0xff]
        %v6620 = vld [vmem:[#allocation13 + $0x4d0] sm:$0xff]
        %v6621 = vld [vmem:[#allocation13 + $0x4d8] sm:$0xff]
        %v6622 = vld [vmem:[#allocation13 + $0x4e0] sm:$0xff]
        %v6623 = vld [vmem:[#allocation13 + $0x4e8] sm:$0xff]
        %v6624 = vld [vmem:[#allocation13 + $0x4f0] sm:$0xff]
        %v6625 = vld [vmem:[#allocation13 + $0x4f8] sm:$0xff]
        %v6626 = vld [vmem:[#allocation13 + $0x500] sm:$0xff]
        %v6627 = vld [vmem:[#allocation13 + $0x508] sm:$0xff]
        %v6628 = vld [vmem:[#allocation13 + $0x510] sm:$0xff]
        %v6629 = vld [vmem:[#allocation13 + $0x518] sm:$0xff]
        %v6630 = vld [vmem:[#allocation13 + $0x520] sm:$0xff]
        %v6631 = vld [vmem:[#allocation13 + $0x528] sm:$0xff]
        %v6632 = vld [vmem:[#allocation13 + $0x530] sm:$0xff]
        %v6633 = vld [vmem:[#allocation13 + $0x538] sm:$0xff]
        %v6634 = vld [vmem:[#allocation13 + $0x540] sm:$0xff]
        %v6635 = vld [vmem:[#allocation13 + $0x548] sm:$0xff]
        %v6636 = vld [vmem:[#allocation13 + $0x550] sm:$0xff]
        %v6637 = vld [vmem:[#allocation13 + $0x558] sm:$0xff]
        %v6638 = vld [vmem:[#allocation13 + $0x560] sm:$0xff]
        %v6639 = vld [vmem:[#allocation13 + $0x568] sm:$0xff]
        %v6640 = vld [vmem:[#allocation13 + $0x570] sm:$0xff]
        %v6641 = vld [vmem:[#allocation13 + $0x578] sm:$0xff]
        %v6642 = vld [vmem:[#allocation13 + $0x580] sm:$0xff]
        %v6643 = vld [vmem:[#allocation13 + $0x588] sm:$0xff]
        %v6644 = vld [vmem:[#allocation13 + $0x590] sm:$0xff]
        %v6645 = vld [vmem:[#allocation13 + $0x598] sm:$0xff]
        %v6646 = vld [vmem:[#allocation13 + $0x5a0] sm:$0xff]
        %v6647 = vld [vmem:[#allocation13 + $0x5a8] sm:$0xff]
        %v6648 = vld [vmem:[#allocation13 + $0x5b0] sm:$0xff]
        %v6649 = vld [vmem:[#allocation13 + $0x5b8] sm:$0xff]
        %v6650 = vld [vmem:[#allocation13 + $0x5c0] sm:$0xff]
        %v6651 = vld [vmem:[#allocation13 + $0x5c8] sm:$0xff]
        %v6652 = vld [vmem:[#allocation13 + $0x5d0] sm:$0xff]
        %v6653 = vld [vmem:[#allocation13 + $0x5d8] sm:$0xff]
        %v6654 = vld [vmem:[#allocation13 + $0x5e0] sm:$0xff]
        %v6655 = vld [vmem:[#allocation13 + $0x5e8] sm:$0xff]
        %v6656 = vld [vmem:[#allocation13 + $0x5f0] sm:$0xff]
        %v6657 = vld [vmem:[#allocation13 + $0x5f8] sm:$0xff]
        %v6850 = vunpack.c.l.b16 %v6466
        %v6851 = vunpack.c.h.b16 %v6466
        %v6852 = vunpack.c.l.b16 %v6467
        %v6853 = vunpack.c.h.b16 %v6467
        %v6854 = vunpack.c.l.b16 %v6468
        %v6855 = vunpack.c.h.b16 %v6468
        %v6856 = vunpack.c.l.b16 %v6469
        %v6857 = vunpack.c.h.b16 %v6469
        %v6858 = vunpack.c.l.b16 %v6470
        %v6859 = vunpack.c.h.b16 %v6470
        %v6860 = vunpack.c.l.b16 %v6471
        %v6861 = vunpack.c.h.b16 %v6471
        %v6862 = vunpack.c.l.b16 %v6472
        %v6863 = vunpack.c.h.b16 %v6472
        %v6864 = vunpack.c.l.b16 %v6473
        %v6865 = vunpack.c.h.b16 %v6473
        %v6866 = vunpack.c.l.b16 %v6474
        %v6867 = vunpack.c.h.b16 %v6474
        %v6868 = vunpack.c.l.b16 %v6475
        %v6869 = vunpack.c.h.b16 %v6475
        %v6870 = vunpack.c.l.b16 %v6476
        %v6871 = vunpack.c.h.b16 %v6476
        %v6872 = vunpack.c.l.b16 %v6477
        %v6873 = vunpack.c.h.b16 %v6477
        %v6874 = vunpack.c.l.b16 %v6478
        %v6875 = vunpack.c.h.b16 %v6478
        %v6876 = vunpack.c.l.b16 %v6479
        %v6877 = vunpack.c.h.b16 %v6479
        %v6878 = vunpack.c.l.b16 %v6480
        %v6879 = vunpack.c.h.b16 %v6480
        %v6880 = vunpack.c.l.b16 %v6481
        %v6881 = vunpack.c.h.b16 %v6481
        %v6882 = vunpack.c.l.b16 %v6482
        %v6883 = vunpack.c.h.b16 %v6482
        %v6884 = vunpack.c.l.b16 %v6483
        %v6885 = vunpack.c.h.b16 %v6483
        %v6886 = vunpack.c.l.b16 %v6484
        %v6887 = vunpack.c.h.b16 %v6484
        %v6888 = vunpack.c.l.b16 %v6485
        %v6889 = vunpack.c.h.b16 %v6485
        %v6890 = vunpack.c.l.b16 %v6486
        %v6891 = vunpack.c.h.b16 %v6486
        %v6892 = vunpack.c.l.b16 %v6487
        %v6893 = vunpack.c.h.b16 %v6487
        %v6894 = vunpack.c.l.b16 %v6488
        %v6895 = vunpack.c.h.b16 %v6488
        %v6896 = vunpack.c.l.b16 %v6489
        %v6897 = vunpack.c.h.b16 %v6489
        %v6898 = vunpack.c.l.b16 %v6490
        %v6899 = vunpack.c.h.b16 %v6490
        %v6900 = vunpack.c.l.b16 %v6491
        %v6901 = vunpack.c.h.b16 %v6491
        %v6902 = vunpack.c.l.b16 %v6492
        %v6903 = vunpack.c.h.b16 %v6492
        %v6904 = vunpack.c.l.b16 %v6493
        %v6905 = vunpack.c.h.b16 %v6493
        %v6906 = vunpack.c.l.b16 %v6494
        %v6907 = vunpack.c.h.b16 %v6494
        %v6908 = vunpack.c.l.b16 %v6495
        %v6909 = vunpack.c.h.b16 %v6495
        %v6910 = vunpack.c.l.b16 %v6496
        %v6911 = vunpack.c.h.b16 %v6496
        %v6912 = vunpack.c.l.b16 %v6497
        %v6913 = vunpack.c.h.b16 %v6497
        %v6914 = vunpack.c.l.b16 %v6498
        %v6915 = vunpack.c.h.b16 %v6498
        %v6916 = vunpack.c.l.b16 %v6499
        %v6917 = vunpack.c.h.b16 %v6499
        %v6918 = vunpack.c.l.b16 %v6500
        %v6919 = vunpack.c.h.b16 %v6500
        %v6920 = vunpack.c.l.b16 %v6501
        %v6921 = vunpack.c.h.b16 %v6501
        %v6922 = vunpack.c.l.b16 %v6502
        %v6923 = vunpack.c.h.b16 %v6502
        %v6924 = vunpack.c.l.b16 %v6503
        %v6925 = vunpack.c.h.b16 %v6503
        %v6926 = vunpack.c.l.b16 %v6504
        %v6927 = vunpack.c.h.b16 %v6504
        %v6928 = vunpack.c.l.b16 %v6505
        %v6929 = vunpack.c.h.b16 %v6505
        %v6930 = vunpack.c.l.b16 %v6506
        %v6931 = vunpack.c.h.b16 %v6506
        %v6932 = vunpack.c.l.b16 %v6507
        %v6933 = vunpack.c.h.b16 %v6507
        %v6934 = vunpack.c.l.b16 %v6508
        %v6935 = vunpack.c.h.b16 %v6508
        %v6936 = vunpack.c.l.b16 %v6509
        %v6937 = vunpack.c.h.b16 %v6509
        %v6938 = vunpack.c.l.b16 %v6510
        %v6939 = vunpack.c.h.b16 %v6510
        %v6940 = vunpack.c.l.b16 %v6511
        %v6941 = vunpack.c.h.b16 %v6511
        %v6942 = vunpack.c.l.b16 %v6512
        %v6943 = vunpack.c.h.b16 %v6512
        %v6944 = vunpack.c.l.b16 %v6513
        %v6945 = vunpack.c.h.b16 %v6513
        %v6946 = vunpack.c.l.b16 %v6514
        %v6947 = vunpack.c.h.b16 %v6514
        %v6948 = vunpack.c.l.b16 %v6515
        %v6949 = vunpack.c.h.b16 %v6515
        %v6950 = vunpack.c.l.b16 %v6516
        %v6951 = vunpack.c.h.b16 %v6516
        %v6952 = vunpack.c.l.b16 %v6517
        %v6953 = vunpack.c.h.b16 %v6517
        %v6954 = vunpack.c.l.b16 %v6518
        %v6955 = vunpack.c.h.b16 %v6518
        %v6956 = vunpack.c.l.b16 %v6519
        %v6957 = vunpack.c.h.b16 %v6519
        %v6958 = vunpack.c.l.b16 %v6520
        %v6959 = vunpack.c.h.b16 %v6520
        %v6960 = vunpack.c.l.b16 %v6521
        %v6961 = vunpack.c.h.b16 %v6521
        %v6962 = vunpack.c.l.b16 %v6522
        %v6963 = vunpack.c.h.b16 %v6522
        %v6964 = vunpack.c.l.b16 %v6523
        %v6965 = vunpack.c.h.b16 %v6523
        %v6966 = vunpack.c.l.b16 %v6524
        %v6967 = vunpack.c.h.b16 %v6524
        %v6968 = vunpack.c.l.b16 %v6525
        %v6969 = vunpack.c.h.b16 %v6525
        %v6970 = vunpack.c.l.b16 %v6526
        %v6971 = vunpack.c.h.b16 %v6526
        %v6972 = vunpack.c.l.b16 %v6527
        %v6973 = vunpack.c.h.b16 %v6527
        %v6974 = vunpack.c.l.b16 %v6528
        %v6975 = vunpack.c.h.b16 %v6528
        %v6976 = vunpack.c.l.b16 %v6529
        %v6977 = vunpack.c.h.b16 %v6529
        %v6978 = vunpack.c.l.b16 %v6530
        %v6979 = vunpack.c.h.b16 %v6530
        %v6980 = vunpack.c.l.b16 %v6531
        %v6981 = vunpack.c.h.b16 %v6531
        %v6982 = vunpack.c.l.b16 %v6532
        %v6983 = vunpack.c.h.b16 %v6532
        %v6984 = vunpack.c.l.b16 %v6533
        %v6985 = vunpack.c.h.b16 %v6533
        %v6986 = vunpack.c.l.b16 %v6534
        %v6987 = vunpack.c.h.b16 %v6534
        %v6988 = vunpack.c.l.b16 %v6535
        %v6989 = vunpack.c.h.b16 %v6535
        %v6990 = vunpack.c.l.b16 %v6536
        %v6991 = vunpack.c.h.b16 %v6536
        %v6992 = vunpack.c.l.b16 %v6537
        %v6993 = vunpack.c.h.b16 %v6537
        %v6994 = vunpack.c.l.b16 %v6538
        %v6995 = vunpack.c.h.b16 %v6538
        %v6996 = vunpack.c.l.b16 %v6539
        %v6997 = vunpack.c.h.b16 %v6539
        %v6998 = vunpack.c.l.b16 %v6540
        %v6999 = vunpack.c.h.b16 %v6540
        %v7000 = vunpack.c.l.b16 %v6541
        %v7001 = vunpack.c.h.b16 %v6541
        %v7002 = vunpack.c.l.b16 %v6542
        %v7003 = vunpack.c.h.b16 %v6542
        %v7004 = vunpack.c.l.b16 %v6543
        %v7005 = vunpack.c.h.b16 %v6543
        %v7006 = vunpack.c.l.b16 %v6544
        %v7007 = vunpack.c.h.b16 %v6544
        %v7008 = vunpack.c.l.b16 %v6545
        %v7009 = vunpack.c.h.b16 %v6545
        %v7010 = vunpack.c.l.b16 %v6546
        %v7011 = vunpack.c.h.b16 %v6546
        %v7012 = vunpack.c.l.b16 %v6547
        %v7013 = vunpack.c.h.b16 %v6547
        %v7014 = vunpack.c.l.b16 %v6548
        %v7015 = vunpack.c.h.b16 %v6548
        %v7016 = vunpack.c.l.b16 %v6549
        %v7017 = vunpack.c.h.b16 %v6549
        %v7018 = vunpack.c.l.b16 %v6550
        %v7019 = vunpack.c.h.b16 %v6550
        %v7020 = vunpack.c.l.b16 %v6551
        %v7021 = vunpack.c.h.b16 %v6551
        %v7022 = vunpack.c.l.b16 %v6552
        %v7023 = vunpack.c.h.b16 %v6552
        %v7024 = vunpack.c.l.b16 %v6553
        %v7025 = vunpack.c.h.b16 %v6553
        %v7026 = vunpack.c.l.b16 %v6554
        %v7027 = vunpack.c.h.b16 %v6554
        %v7028 = vunpack.c.l.b16 %v6555
        %v7029 = vunpack.c.h.b16 %v6555
        %v7030 = vunpack.c.l.b16 %v6556
        %v7031 = vunpack.c.h.b16 %v6556
        %v7032 = vunpack.c.l.b16 %v6557
        %v7033 = vunpack.c.h.b16 %v6557
        %v7034 = vunpack.c.l.b16 %v6558
        %v7035 = vunpack.c.h.b16 %v6558
        %v7036 = vunpack.c.l.b16 %v6559
        %v7037 = vunpack.c.h.b16 %v6559
        %v7038 = vunpack.c.l.b16 %v6560
        %v7039 = vunpack.c.h.b16 %v6560
        %v7040 = vunpack.c.l.b16 %v6561
        %v7041 = vunpack.c.h.b16 %v6561
        %v7042 = vunpack.c.l.b16 %v6562
        %v7043 = vunpack.c.h.b16 %v6562
        %v7044 = vunpack.c.l.b16 %v6563
        %v7045 = vunpack.c.h.b16 %v6563
        %v7046 = vunpack.c.l.b16 %v6564
        %v7047 = vunpack.c.h.b16 %v6564
        %v7048 = vunpack.c.l.b16 %v6565
        %v7049 = vunpack.c.h.b16 %v6565
        %v7050 = vunpack.c.l.b16 %v6566
        %v7051 = vunpack.c.h.b16 %v6566
        %v7052 = vunpack.c.l.b16 %v6567
        %v7053 = vunpack.c.h.b16 %v6567
        %v7054 = vunpack.c.l.b16 %v6568
        %v7055 = vunpack.c.h.b16 %v6568
        %v7056 = vunpack.c.l.b16 %v6569
        %v7057 = vunpack.c.h.b16 %v6569
        %v7058 = vunpack.c.l.b16 %v6570
        %v7059 = vunpack.c.h.b16 %v6570
        %v7060 = vunpack.c.l.b16 %v6571
        %v7061 = vunpack.c.h.b16 %v6571
        %v7062 = vunpack.c.l.b16 %v6572
        %v7063 = vunpack.c.h.b16 %v6572
        %v7064 = vunpack.c.l.b16 %v6573
        %v7065 = vunpack.c.h.b16 %v6573
        %v7066 = vunpack.c.l.b16 %v6574
        %v7067 = vunpack.c.h.b16 %v6574
        %v7068 = vunpack.c.l.b16 %v6575
        %v7069 = vunpack.c.h.b16 %v6575
        %v7070 = vunpack.c.l.b16 %v6576
        %v7071 = vunpack.c.h.b16 %v6576
        %v7072 = vunpack.c.l.b16 %v6577
        %v7073 = vunpack.c.h.b16 %v6577
        %v7074 = vunpack.c.l.b16 %v6578
        %v7075 = vunpack.c.h.b16 %v6578
        %v7076 = vunpack.c.l.b16 %v6579
        %v7077 = vunpack.c.h.b16 %v6579
        %v7078 = vunpack.c.l.b16 %v6580
        %v7079 = vunpack.c.h.b16 %v6580
        %v7080 = vunpack.c.l.b16 %v6581
        %v7081 = vunpack.c.h.b16 %v6581
        %v7082 = vunpack.c.l.b16 %v6582
        %v7083 = vunpack.c.h.b16 %v6582
        %v7084 = vunpack.c.l.b16 %v6583
        %v7085 = vunpack.c.h.b16 %v6583
        %v7086 = vunpack.c.l.b16 %v6584
        %v7087 = vunpack.c.h.b16 %v6584
        %v7088 = vunpack.c.l.b16 %v6585
        %v7089 = vunpack.c.h.b16 %v6585
        %v7090 = vunpack.c.l.b16 %v6586
        %v7091 = vunpack.c.h.b16 %v6586
        %v7092 = vunpack.c.l.b16 %v6587
        %v7093 = vunpack.c.h.b16 %v6587
        %v7094 = vunpack.c.l.b16 %v6588
        %v7095 = vunpack.c.h.b16 %v6588
        %v7096 = vunpack.c.l.b16 %v6589
        %v7097 = vunpack.c.h.b16 %v6589
        %v7098 = vunpack.c.l.b16 %v6590
        %v7099 = vunpack.c.h.b16 %v6590
        %v7100 = vunpack.c.l.b16 %v6591
        %v7101 = vunpack.c.h.b16 %v6591
        %v7102 = vunpack.c.l.b16 %v6592
        %v7103 = vunpack.c.h.b16 %v6592
        %v7104 = vunpack.c.l.b16 %v6593
        %v7105 = vunpack.c.h.b16 %v6593
        %v7106 = vunpack.c.l.b16 %v6594
        %v7107 = vunpack.c.h.b16 %v6594
        %v7108 = vunpack.c.l.b16 %v6595
        %v7109 = vunpack.c.h.b16 %v6595
        %v7110 = vunpack.c.l.b16 %v6596
        %v7111 = vunpack.c.h.b16 %v6596
        %v7112 = vunpack.c.l.b16 %v6597
        %v7113 = vunpack.c.h.b16 %v6597
        %v7114 = vunpack.c.l.b16 %v6598
        %v7115 = vunpack.c.h.b16 %v6598
        %v7116 = vunpack.c.l.b16 %v6599
        %v7117 = vunpack.c.h.b16 %v6599
        %v7118 = vunpack.c.l.b16 %v6600
        %v7119 = vunpack.c.h.b16 %v6600
        %v7120 = vunpack.c.l.b16 %v6601
        %v7121 = vunpack.c.h.b16 %v6601
        %v7122 = vunpack.c.l.b16 %v6602
        %v7123 = vunpack.c.h.b16 %v6602
        %v7124 = vunpack.c.l.b16 %v6603
        %v7125 = vunpack.c.h.b16 %v6603
        %v7126 = vunpack.c.l.b16 %v6604
        %v7127 = vunpack.c.h.b16 %v6604
        %v7128 = vunpack.c.l.b16 %v6605
        %v7129 = vunpack.c.h.b16 %v6605
        %v7130 = vunpack.c.l.b16 %v6606
        %v7131 = vunpack.c.h.b16 %v6606
        %v7132 = vunpack.c.l.b16 %v6607
        %v7133 = vunpack.c.h.b16 %v6607
        %v7134 = vunpack.c.l.b16 %v6608
        %v7135 = vunpack.c.h.b16 %v6608
        %v7136 = vunpack.c.l.b16 %v6609
        %v7137 = vunpack.c.h.b16 %v6609
        %v7138 = vunpack.c.l.b16 %v6610
        %v7139 = vunpack.c.h.b16 %v6610
        %v7140 = vunpack.c.l.b16 %v6611
        %v7141 = vunpack.c.h.b16 %v6611
        %v7142 = vunpack.c.l.b16 %v6612
        %v7143 = vunpack.c.h.b16 %v6612
        %v7144 = vunpack.c.l.b16 %v6613
        %v7145 = vunpack.c.h.b16 %v6613
        %v7146 = vunpack.c.l.b16 %v6614
        %v7147 = vunpack.c.h.b16 %v6614
        %v7148 = vunpack.c.l.b16 %v6615
        %v7149 = vunpack.c.h.b16 %v6615
        %v7150 = vunpack.c.l.b16 %v6616
        %v7151 = vunpack.c.h.b16 %v6616
        %v7152 = vunpack.c.l.b16 %v6617
        %v7153 = vunpack.c.h.b16 %v6617
        %v7154 = vunpack.c.l.b16 %v6618
        %v7155 = vunpack.c.h.b16 %v6618
        %v7156 = vunpack.c.l.b16 %v6619
        %v7157 = vunpack.c.h.b16 %v6619
        %v7158 = vunpack.c.l.b16 %v6620
        %v7159 = vunpack.c.h.b16 %v6620
        %v7160 = vunpack.c.l.b16 %v6621
        %v7161 = vunpack.c.h.b16 %v6621
        %v7162 = vunpack.c.l.b16 %v6622
        %v7163 = vunpack.c.h.b16 %v6622
        %v7164 = vunpack.c.l.b16 %v6623
        %v7165 = vunpack.c.h.b16 %v6623
        %v7166 = vunpack.c.l.b16 %v6624
        %v7167 = vunpack.c.h.b16 %v6624
        %v7168 = vunpack.c.l.b16 %v6625
        %v7169 = vunpack.c.h.b16 %v6625
        %v7170 = vunpack.c.l.b16 %v6626
        %v7171 = vunpack.c.h.b16 %v6626
        %v7172 = vunpack.c.l.b16 %v6627
        %v7173 = vunpack.c.h.b16 %v6627
        %v7174 = vunpack.c.l.b16 %v6628
        %v7175 = vunpack.c.h.b16 %v6628
        %v7176 = vunpack.c.l.b16 %v6629
        %v7177 = vunpack.c.h.b16 %v6629
        %v7178 = vunpack.c.l.b16 %v6630
        %v7179 = vunpack.c.h.b16 %v6630
        %v7180 = vunpack.c.l.b16 %v6631
        %v7181 = vunpack.c.h.b16 %v6631
        %v7182 = vunpack.c.l.b16 %v6632
        %v7183 = vunpack.c.h.b16 %v6632
        %v7184 = vunpack.c.l.b16 %v6633
        %v7185 = vunpack.c.h.b16 %v6633
        %v7186 = vunpack.c.l.b16 %v6634
        %v7187 = vunpack.c.h.b16 %v6634
        %v7188 = vunpack.c.l.b16 %v6635
        %v7189 = vunpack.c.h.b16 %v6635
        %v7190 = vunpack.c.l.b16 %v6636
        %v7191 = vunpack.c.h.b16 %v6636
        %v7192 = vunpack.c.l.b16 %v6637
        %v7193 = vunpack.c.h.b16 %v6637
        %v7194 = vunpack.c.l.b16 %v6638
        %v7195 = vunpack.c.h.b16 %v6638
        %v7196 = vunpack.c.l.b16 %v6639
        %v7197 = vunpack.c.h.b16 %v6639
        %v7198 = vunpack.c.l.b16 %v6640
        %v7199 = vunpack.c.h.b16 %v6640
        %v7200 = vunpack.c.l.b16 %v6641
        %v7201 = vunpack.c.h.b16 %v6641
        %v7202 = vunpack.c.l.b16 %v6642
        %v7203 = vunpack.c.h.b16 %v6642
        %v7204 = vunpack.c.l.b16 %v6643
        %v7205 = vunpack.c.h.b16 %v6643
        %v7206 = vunpack.c.l.b16 %v6644
        %v7207 = vunpack.c.h.b16 %v6644
        %v7208 = vunpack.c.l.b16 %v6645
        %v7209 = vunpack.c.h.b16 %v6645
        %v7210 = vunpack.c.l.b16 %v6646
        %v7211 = vunpack.c.h.b16 %v6646
        %v7212 = vunpack.c.l.b16 %v6647
        %v7213 = vunpack.c.h.b16 %v6647
        %v7214 = vunpack.c.l.b16 %v6648
        %v7215 = vunpack.c.h.b16 %v6648
        %v7216 = vunpack.c.l.b16 %v6649
        %v7217 = vunpack.c.h.b16 %v6649
        %v7218 = vunpack.c.l.b16 %v6650
        %v7219 = vunpack.c.h.b16 %v6650
        %v7220 = vunpack.c.l.b16 %v6651
        %v7221 = vunpack.c.h.b16 %v6651
        %v7222 = vunpack.c.l.b16 %v6652
        %v7223 = vunpack.c.h.b16 %v6652
        %v7224 = vunpack.c.l.b16 %v6653
        %v7225 = vunpack.c.h.b16 %v6653
        %v7226 = vunpack.c.l.b16 %v6654
        %v7227 = vunpack.c.h.b16 %v6654
        %v7228 = vunpack.c.l.b16 %v6655
        %v7229 = vunpack.c.h.b16 %v6655
        %v7230 = vunpack.c.l.b16 %v6656
        %v7231 = vunpack.c.h.b16 %v6656
        %v7232 = vunpack.c.l.b16 %v6657
        %v7233 = vunpack.c.h.b16 %v6657
        %v7234 = vpack.c.b16 %v6862, %v6850
        %v7235 = vpack.c.b16 %v6863, %v6851
        %v7236 = vpack.c.b16 %v6864, %v6852
        %v7237 = vpack.c.b16 %v6865, %v6853
        %v7238 = vpack.c.b16 %v6866, %v6854
        %v7239 = vpack.c.b16 %v6867, %v6855
        %v7240 = vpack.c.b16 %v6868, %v6856
        %v7241 = vpack.c.b16 %v6869, %v6857
        %v7242 = vpack.c.b16 %v6870, %v6858
        %v7243 = vpack.c.b16 %v6871, %v6859
        %v7244 = vpack.c.b16 %v6872, %v6860
        %v7245 = vpack.c.b16 %v6873, %v6861
        %v7246 = vpack.c.b16 %v6886, %v6874
        %v7247 = vpack.c.b16 %v6887, %v6875
        %v7248 = vpack.c.b16 %v6888, %v6876
        %v7249 = vpack.c.b16 %v6889, %v6877
        %v7250 = vpack.c.b16 %v6890, %v6878
        %v7251 = vpack.c.b16 %v6891, %v6879
        %v7252 = vpack.c.b16 %v6892, %v6880
        %v7253 = vpack.c.b16 %v6893, %v6881
        %v7254 = vpack.c.b16 %v6894, %v6882
        %v7255 = vpack.c.b16 %v6895, %v6883
        %v7256 = vpack.c.b16 %v6896, %v6884
        %v7257 = vpack.c.b16 %v6897, %v6885
        %v7258 = vpack.c.b16 %v6910, %v6898
        %v7259 = vpack.c.b16 %v6911, %v6899
        %v7260 = vpack.c.b16 %v6912, %v6900
        %v7261 = vpack.c.b16 %v6913, %v6901
        %v7262 = vpack.c.b16 %v6914, %v6902
        %v7263 = vpack.c.b16 %v6915, %v6903
        %v7264 = vpack.c.b16 %v6916, %v6904
        %v7265 = vpack.c.b16 %v6917, %v6905
        %v7266 = vpack.c.b16 %v6918, %v6906
        %v7267 = vpack.c.b16 %v6919, %v6907
        %v7268 = vpack.c.b16 %v6920, %v6908
        %v7269 = vpack.c.b16 %v6921, %v6909
        %v7270 = vpack.c.b16 %v6934, %v6922
        %v7271 = vpack.c.b16 %v6935, %v6923
        %v7272 = vpack.c.b16 %v6936, %v6924
        %v7273 = vpack.c.b16 %v6937, %v6925
        %v7274 = vpack.c.b16 %v6938, %v6926
        %v7275 = vpack.c.b16 %v6939, %v6927
        %v7276 = vpack.c.b16 %v6940, %v6928
        %v7277 = vpack.c.b16 %v6941, %v6929
        %v7278 = vpack.c.b16 %v6942, %v6930
        %v7279 = vpack.c.b16 %v6943, %v6931
        %v7280 = vpack.c.b16 %v6944, %v6932
        %v7281 = vpack.c.b16 %v6945, %v6933
        %v7282 = vpack.c.b16 %v6958, %v6946
        %v7283 = vpack.c.b16 %v6959, %v6947
        %v7284 = vpack.c.b16 %v6960, %v6948
        %v7285 = vpack.c.b16 %v6961, %v6949
        %v7286 = vpack.c.b16 %v6962, %v6950
        %v7287 = vpack.c.b16 %v6963, %v6951
        %v7288 = vpack.c.b16 %v6964, %v6952
        %v7289 = vpack.c.b16 %v6965, %v6953
        %v7290 = vpack.c.b16 %v6966, %v6954
        %v7291 = vpack.c.b16 %v6967, %v6955
        %v7292 = vpack.c.b16 %v6968, %v6956
        %v7293 = vpack.c.b16 %v6969, %v6957
        %v7294 = vpack.c.b16 %v6982, %v6970
        %v7295 = vpack.c.b16 %v6983, %v6971
        %v7296 = vpack.c.b16 %v6984, %v6972
        %v7297 = vpack.c.b16 %v6985, %v6973
        %v7298 = vpack.c.b16 %v6986, %v6974
        %v7299 = vpack.c.b16 %v6987, %v6975
        %v7300 = vpack.c.b16 %v6988, %v6976
        %v7301 = vpack.c.b16 %v6989, %v6977
        %v7302 = vpack.c.b16 %v6990, %v6978
        %v7303 = vpack.c.b16 %v6991, %v6979
        %v7304 = vpack.c.b16 %v6992, %v6980
        %v7305 = vpack.c.b16 %v6993, %v6981
        %v7306 = vpack.c.b16 %v7006, %v6994
        %v7307 = vpack.c.b16 %v7007, %v6995
        %v7308 = vpack.c.b16 %v7008, %v6996
        %v7309 = vpack.c.b16 %v7009, %v6997
        %v7310 = vpack.c.b16 %v7010, %v6998
        %v7311 = vpack.c.b16 %v7011, %v6999
        %v7312 = vpack.c.b16 %v7012, %v7000
        %v7313 = vpack.c.b16 %v7013, %v7001
        %v7314 = vpack.c.b16 %v7014, %v7002
        %v7315 = vpack.c.b16 %v7015, %v7003
        %v7316 = vpack.c.b16 %v7016, %v7004
        %v7317 = vpack.c.b16 %v7017, %v7005
        %v7318 = vpack.c.b16 %v7030, %v7018
        %v7319 = vpack.c.b16 %v7031, %v7019
        %v7320 = vpack.c.b16 %v7032, %v7020
        %v7321 = vpack.c.b16 %v7033, %v7021
        %v7322 = vpack.c.b16 %v7034, %v7022
        %v7323 = vpack.c.b16 %v7035, %v7023
        %v7324 = vpack.c.b16 %v7036, %v7024
        %v7325 = vpack.c.b16 %v7037, %v7025
        %v7326 = vpack.c.b16 %v7038, %v7026
        %v7327 = vpack.c.b16 %v7039, %v7027
        %v7328 = vpack.c.b16 %v7040, %v7028
        %v7329 = vpack.c.b16 %v7041, %v7029
        %v7330 = vpack.c.b16 %v7054, %v7042
        %v7331 = vpack.c.b16 %v7055, %v7043
        %v7332 = vpack.c.b16 %v7056, %v7044
        %v7333 = vpack.c.b16 %v7057, %v7045
        %v7334 = vpack.c.b16 %v7058, %v7046
        %v7335 = vpack.c.b16 %v7059, %v7047
        %v7336 = vpack.c.b16 %v7060, %v7048
        %v7337 = vpack.c.b16 %v7061, %v7049
        %v7338 = vpack.c.b16 %v7062, %v7050
        %v7339 = vpack.c.b16 %v7063, %v7051
        %v7340 = vpack.c.b16 %v7064, %v7052
        %v7341 = vpack.c.b16 %v7065, %v7053
        %v7342 = vpack.c.b16 %v7078, %v7066
        %v7343 = vpack.c.b16 %v7079, %v7067
        %v7344 = vpack.c.b16 %v7080, %v7068
        %v7345 = vpack.c.b16 %v7081, %v7069
        %v7346 = vpack.c.b16 %v7082, %v7070
        %v7347 = vpack.c.b16 %v7083, %v7071
        %v7348 = vpack.c.b16 %v7084, %v7072
        %v7349 = vpack.c.b16 %v7085, %v7073
        %v7350 = vpack.c.b16 %v7086, %v7074
        %v7351 = vpack.c.b16 %v7087, %v7075
        %v7352 = vpack.c.b16 %v7088, %v7076
        %v7353 = vpack.c.b16 %v7089, %v7077
        %v7354 = vpack.c.b16 %v7102, %v7090
        %v7355 = vpack.c.b16 %v7103, %v7091
        %v7356 = vpack.c.b16 %v7104, %v7092
        %v7357 = vpack.c.b16 %v7105, %v7093
        %v7358 = vpack.c.b16 %v7106, %v7094
        %v7359 = vpack.c.b16 %v7107, %v7095
        %v7360 = vpack.c.b16 %v7108, %v7096
        %v7361 = vpack.c.b16 %v7109, %v7097
        %v7362 = vpack.c.b16 %v7110, %v7098
        %v7363 = vpack.c.b16 %v7111, %v7099
        %v7364 = vpack.c.b16 %v7112, %v7100
        %v7365 = vpack.c.b16 %v7113, %v7101
        %v7366 = vpack.c.b16 %v7126, %v7114
        %v7367 = vpack.c.b16 %v7127, %v7115
        %v7368 = vpack.c.b16 %v7128, %v7116
        %v7369 = vpack.c.b16 %v7129, %v7117
        %v7370 = vpack.c.b16 %v7130, %v7118
        %v7371 = vpack.c.b16 %v7131, %v7119
        %v7372 = vpack.c.b16 %v7132, %v7120
        %v7373 = vpack.c.b16 %v7133, %v7121
        %v7374 = vpack.c.b16 %v7134, %v7122
        %v7375 = vpack.c.b16 %v7135, %v7123
        %v7376 = vpack.c.b16 %v7136, %v7124
        %v7377 = vpack.c.b16 %v7137, %v7125
        %v7378 = vpack.c.b16 %v7150, %v7138
        %v7379 = vpack.c.b16 %v7151, %v7139
        %v7380 = vpack.c.b16 %v7152, %v7140
        %v7381 = vpack.c.b16 %v7153, %v7141
        %v7382 = vpack.c.b16 %v7154, %v7142
        %v7383 = vpack.c.b16 %v7155, %v7143
        %v7384 = vpack.c.b16 %v7156, %v7144
        %v7385 = vpack.c.b16 %v7157, %v7145
        %v7386 = vpack.c.b16 %v7158, %v7146
        %v7387 = vpack.c.b16 %v7159, %v7147
        %v7388 = vpack.c.b16 %v7160, %v7148
        %v7389 = vpack.c.b16 %v7161, %v7149
        %v7390 = vpack.c.b16 %v7174, %v7162
        %v7391 = vpack.c.b16 %v7175, %v7163
        %v7392 = vpack.c.b16 %v7176, %v7164
        %v7393 = vpack.c.b16 %v7177, %v7165
        %v7394 = vpack.c.b16 %v7178, %v7166
        %v7395 = vpack.c.b16 %v7179, %v7167
        %v7396 = vpack.c.b16 %v7180, %v7168
        %v7397 = vpack.c.b16 %v7181, %v7169
        %v7398 = vpack.c.b16 %v7182, %v7170
        %v7399 = vpack.c.b16 %v7183, %v7171
        %v7400 = vpack.c.b16 %v7184, %v7172
        %v7401 = vpack.c.b16 %v7185, %v7173
        %v7402 = vpack.c.b16 %v7198, %v7186
        %v7403 = vpack.c.b16 %v7199, %v7187
        %v7404 = vpack.c.b16 %v7200, %v7188
        %v7405 = vpack.c.b16 %v7201, %v7189
        %v7406 = vpack.c.b16 %v7202, %v7190
        %v7407 = vpack.c.b16 %v7203, %v7191
        %v7408 = vpack.c.b16 %v7204, %v7192
        %v7409 = vpack.c.b16 %v7205, %v7193
        %v7410 = vpack.c.b16 %v7206, %v7194
        %v7411 = vpack.c.b16 %v7207, %v7195
        %v7412 = vpack.c.b16 %v7208, %v7196
        %v7413 = vpack.c.b16 %v7209, %v7197
        %v7414 = vpack.c.b16 %v7222, %v7210
        %v7415 = vpack.c.b16 %v7223, %v7211
        %v7416 = vpack.c.b16 %v7224, %v7212
        %v7417 = vpack.c.b16 %v7225, %v7213
        %v7418 = vpack.c.b16 %v7226, %v7214
        %v7419 = vpack.c.b16 %v7227, %v7215
        %v7420 = vpack.c.b16 %v7228, %v7216
        %v7421 = vpack.c.b16 %v7229, %v7217
        %v7422 = vpack.c.b16 %v7230, %v7218
        %v7423 = vpack.c.b16 %v7231, %v7219
        %v7424 = vpack.c.b16 %v7232, %v7220
        %v7425 = vpack.c.b16 %v7233, %v7221
        %7618 = vmatprep.subr.bf16.mxu0 %v7319
        %7619 = vmatpush1.bf16.msra.mxu0 %v7318
        %7620 = vmatprep.subr.bf16.mxu0 %v7307
        %7621 = vmatpush1.bf16.msra.mxu0 %v7306
        %7622 = vmatprep.subr.bf16.mxu0 %v7295
        %7623 = vmatpush1.bf16.msra.mxu0 %v7294
        %7624 = vmatprep.subr.bf16.mxu0 %v7283
        %7625 = vmatpush1.bf16.msra.mxu0 %v7282
        %7626 = vmatprep.subr.bf16.mxu0 %v7271
        %7627 = vmatpush1.bf16.msra.mxu0 %v7270
        %7628 = vmatprep.subr.bf16.mxu0 %v7259
        %7629 = vmatpush1.bf16.msra.mxu0 %v7258
        %7630 = vmatprep.subr.bf16.mxu0 %v7247
        %7631 = vmatpush1.bf16.msra.mxu0 %v7246
        %7632 = vmatprep.subr.bf16.mxu0 %v7235
        %7633 = vmatpush1.bf16.msra.mxu0 %v7234
        %7634 = vmatprep.subr.bf16.mxu0 %v7415
        %7635 = vmatpush2.bf16.msra.mxu0 %v7414
        %7636 = vmatprep.subr.bf16.mxu0 %v7403
        %7637 = vmatpush2.bf16.msra.mxu0 %v7402
        %7638 = vmatprep.subr.bf16.mxu0 %v7391
        %7639 = vmatpush2.bf16.msra.mxu0 %v7390
        %7640 = vmatprep.subr.bf16.mxu0 %v7379
        %7641 = vmatpush2.bf16.msra.mxu0 %v7378
        %7642 = vmatprep.subr.bf16.mxu0 %v7367
        %7643 = vmatpush2.bf16.msra.mxu0 %v7366
        %7644 = vmatprep.subr.bf16.mxu0 %v7355
        %7645 = vmatpush2.bf16.msra.mxu0 %v7354
        %7646 = vmatprep.subr.bf16.mxu0 %v7343
        %7647 = vmatpush2.bf16.msra.mxu0 %v7342
        %7648 = vmatprep.subr.bf16.mxu0 %v7331
        %7649 = vmatpush2.bf16.msra.mxu0 %v7330
        %7650 = vmatprep.mubr.bf16.mxu0 %v6463
        %7651 = vmatmul.mubr.bf16.gmra.mxu0 %v6462
        %v7652 = vpop.f32.mrf.mxu0
        %v7653 = vadd.f32 0.0, %v7652
        %v7654 = vpop.f32.mrf.mxu0
        %v7655 = vadd.f32 0.0, %v7654
        %v7656 = vpop.f32.mrf.mxu0
        %v7657 = vadd.f32 0.0, %v7656
        %v7658 = vpop.f32.mrf.mxu0
        %v7659 = vadd.f32 0.0, %v7658
        %7660 = vmatprep.mubr.bf16.mxu0 %v6465
        %7661 = vmatmul.mubr.bf16.gmra.mxu0 %v6464
        %v7662 = vpop.f32.mrf.mxu0
        %v7663 = vadd.f32 0.0, %v7662
        %v7664 = vpop.f32.mrf.mxu0
        %v7665 = vadd.f32 0.0, %v7664
        %v7666 = vpop.f32.mrf.mxu0
        %v7667 = vadd.f32 0.0, %v7666
        %v7668 = vpop.f32.mrf.mxu0
        %v7669 = vadd.f32 0.0, %v7668
        %7670 = vdwg.mxu0
        %7671 = vmatprep.subr.bf16.mxu0 %v7321
        %7672 = vmatpush1.bf16.msra.mxu0 %v7320
        %7673 = vmatprep.subr.bf16.mxu0 %v7309
        %7674 = vmatpush1.bf16.msra.mxu0 %v7308
        %7675 = vmatprep.subr.bf16.mxu0 %v7297
        %7676 = vmatpush1.bf16.msra.mxu0 %v7296
        %7677 = vmatprep.subr.bf16.mxu0 %v7285
        %7678 = vmatpush1.bf16.msra.mxu0 %v7284
        %7679 = vmatprep.subr.bf16.mxu0 %v7273
        %7680 = vmatpush1.bf16.msra.mxu0 %v7272
        %7681 = vmatprep.subr.bf16.mxu0 %v7261
        %7682 = vmatpush1.bf16.msra.mxu0 %v7260
        %7683 = vmatprep.subr.bf16.mxu0 %v7249
        %7684 = vmatpush1.bf16.msra.mxu0 %v7248
        %7685 = vmatprep.subr.bf16.mxu0 %v7237
        %7686 = vmatpush1.bf16.msra.mxu0 %v7236
        %7687 = vmatprep.subr.bf16.mxu0 %v7417
        %7688 = vmatpush2.bf16.msra.mxu0 %v7416
        %7689 = vmatprep.subr.bf16.mxu0 %v7405
        %7690 = vmatpush2.bf16.msra.mxu0 %v7404
        %7691 = vmatprep.subr.bf16.mxu0 %v7393
        %7692 = vmatpush2.bf16.msra.mxu0 %v7392
        %7693 = vmatprep.subr.bf16.mxu0 %v7381
        %7694 = vmatpush2.bf16.msra.mxu0 %v7380
        %7695 = vmatprep.subr.bf16.mxu0 %v7369
        %7696 = vmatpush2.bf16.msra.mxu0 %v7368
        %7697 = vmatprep.subr.bf16.mxu0 %v7357
        %7698 = vmatpush2.bf16.msra.mxu0 %v7356
        %7699 = vmatprep.subr.bf16.mxu0 %v7345
        %7700 = vmatpush2.bf16.msra.mxu0 %v7344
        %7701 = vmatprep.subr.bf16.mxu0 %v7333
        %7702 = vmatpush2.bf16.msra.mxu0 %v7332
        %7703 = vmatprep.mubr.bf16.mxu0 %v6463
        %7704 = vmatmul.mubr.bf16.gmra.mxu0 %v6462
        %v7705 = vpop.f32.mrf.mxu0
        %v7706 = vadd.f32 0.0, %v7705
        %v7707 = vpop.f32.mrf.mxu0
        %v7708 = vadd.f32 0.0, %v7707
        %v7709 = vpop.f32.mrf.mxu0
        %v7710 = vadd.f32 0.0, %v7709
        %v7711 = vpop.f32.mrf.mxu0
        %v7712 = vadd.f32 0.0, %v7711
        %7713 = vmatprep.mubr.bf16.mxu0 %v6465
        %7714 = vmatmul.mubr.bf16.gmra.mxu0 %v6464
        %v7715 = vpop.f32.mrf.mxu0
        %v7716 = vadd.f32 0.0, %v7715
        %v7717 = vpop.f32.mrf.mxu0
        %v7718 = vadd.f32 0.0, %v7717
        %v7719 = vpop.f32.mrf.mxu0
        %v7720 = vadd.f32 0.0, %v7719
        %v7721 = vpop.f32.mrf.mxu0
        %v7722 = vadd.f32 0.0, %v7721
        %7723 = vdwg.mxu0
        %7724 = vmatprep.subr.bf16.mxu0 %v7323
        %7725 = vmatpush1.bf16.msra.mxu0 %v7322
        %7726 = vmatprep.subr.bf16.mxu0 %v7311
        %7727 = vmatpush1.bf16.msra.mxu0 %v7310
        %7728 = vmatprep.subr.bf16.mxu0 %v7299
        %7729 = vmatpush1.bf16.msra.mxu0 %v7298
        %7730 = vmatprep.subr.bf16.mxu0 %v7287
        %7731 = vmatpush1.bf16.msra.mxu0 %v7286
        %7732 = vmatprep.subr.bf16.mxu0 %v7275
        %7733 = vmatpush1.bf16.msra.mxu0 %v7274
        %7734 = vmatprep.subr.bf16.mxu0 %v7263
        %7735 = vmatpush1.bf16.msra.mxu0 %v7262
        %7736 = vmatprep.subr.bf16.mxu0 %v7251
        %7737 = vmatpush1.bf16.msra.mxu0 %v7250
        %7738 = vmatprep.subr.bf16.mxu0 %v7239
        %7739 = vmatpush1.bf16.msra.mxu0 %v7238
        %7740 = vmatprep.subr.bf16.mxu0 %v7419
        %7741 = vmatpush2.bf16.msra.mxu0 %v7418
        %7742 = vmatprep.subr.bf16.mxu0 %v7407
        %7743 = vmatpush2.bf16.msra.mxu0 %v7406
        %7744 = vmatprep.subr.bf16.mxu0 %v7395
        %7745 = vmatpush2.bf16.msra.mxu0 %v7394
        %7746 = vmatprep.subr.bf16.mxu0 %v7383
        %7747 = vmatpush2.bf16.msra.mxu0 %v7382
        %7748 = vmatprep.subr.bf16.mxu0 %v7371
        %7749 = vmatpush2.bf16.msra.mxu0 %v7370
        %7750 = vmatprep.subr.bf16.mxu0 %v7359
        %7751 = vmatpush2.bf16.msra.mxu0 %v7358
        %7752 = vmatprep.subr.bf16.mxu0 %v7347
        %7753 = vmatpush2.bf16.msra.mxu0 %v7346
        %7754 = vmatprep.subr.bf16.mxu0 %v7335
        %7755 = vmatpush2.bf16.msra.mxu0 %v7334
        %7756 = vmatprep.mubr.bf16.mxu0 %v6463
        %7757 = vmatmul.mubr.bf16.gmra.mxu0 %v6462
        %v7758 = vpop.f32.mrf.mxu0
        %v7759 = vadd.f32 0.0, %v7758
        %v7760 = vpop.f32.mrf.mxu0
        %v7761 = vadd.f32 0.0, %v7760
        %v7762 = vpop.f32.mrf.mxu0
        %v7763 = vadd.f32 0.0, %v7762
        %v7764 = vpop.f32.mrf.mxu0
        %v7765 = vadd.f32 0.0, %v7764
        %7766 = vmatprep.mubr.bf16.mxu0 %v6465
        %7767 = vmatmul.mubr.bf16.gmra.mxu0 %v6464
        %v7768 = vpop.f32.mrf.mxu0
        %v7769 = vadd.f32 0.0, %v7768
        %v7770 = vpop.f32.mrf.mxu0
        %v7771 = vadd.f32 0.0, %v7770
        %v7772 = vpop.f32.mrf.mxu0
        %v7773 = vadd.f32 0.0, %v7772
        %v7774 = vpop.f32.mrf.mxu0
        %v7775 = vadd.f32 0.0, %v7774
        %7776 = vdwg.mxu0
        %7777 = vmatprep.subr.bf16.mxu0 %v7325
        %7778 = vmatpush1.bf16.msra.mxu0 %v7324
        %7779 = vmatprep.subr.bf16.mxu0 %v7313
        %7780 = vmatpush1.bf16.msra.mxu0 %v7312
        %7781 = vmatprep.subr.bf16.mxu0 %v7301
        %7782 = vmatpush1.bf16.msra.mxu0 %v7300
        %7783 = vmatprep.subr.bf16.mxu0 %v7289
        %7784 = vmatpush1.bf16.msra.mxu0 %v7288
        %7785 = vmatprep.subr.bf16.mxu0 %v7277
        %7786 = vmatpush1.bf16.msra.mxu0 %v7276
        %7787 = vmatprep.subr.bf16.mxu0 %v7265
        %7788 = vmatpush1.bf16.msra.mxu0 %v7264
        %7789 = vmatprep.subr.bf16.mxu0 %v7253
        %7790 = vmatpush1.bf16.msra.mxu0 %v7252
        %7791 = vmatprep.subr.bf16.mxu0 %v7241
        %7792 = vmatpush1.bf16.msra.mxu0 %v7240
        %7793 = vmatprep.subr.bf16.mxu0 %v7421
        %7794 = vmatpush2.bf16.msra.mxu0 %v7420
        %7795 = vmatprep.subr.bf16.mxu0 %v7409
        %7796 = vmatpush2.bf16.msra.mxu0 %v7408
        %7797 = vmatprep.subr.bf16.mxu0 %v7397
        %7798 = vmatpush2.bf16.msra.mxu0 %v7396
        %7799 = vmatprep.subr.bf16.mxu0 %v7385
        %7800 = vmatpush2.bf16.msra.mxu0 %v7384
        %7801 = vmatprep.subr.bf16.mxu0 %v7373
        %7802 = vmatpush2.bf16.msra.mxu0 %v7372
        %7803 = vmatprep.subr.bf16.mxu0 %v7361
        %7804 = vmatpush2.bf16.msra.mxu0 %v7360
        %7805 = vmatprep.subr.bf16.mxu0 %v7349
        %7806 = vmatpush2.bf16.msra.mxu0 %v7348
        %7807 = vmatprep.subr.bf16.mxu0 %v7337
        %7808 = vmatpush2.bf16.msra.mxu0 %v7336
        %7809 = vmatprep.mubr.bf16.mxu0 %v6463
        %7810 = vmatmul.mubr.bf16.gmra.mxu0 %v6462
        %v7811 = vpop.f32.mrf.mxu0
        %v7812 = vadd.f32 0.0, %v7811
        %v7813 = vpop.f32.mrf.mxu0
        %v7814 = vadd.f32 0.0, %v7813
        %v7815 = vpop.f32.mrf.mxu0
        %v7816 = vadd.f32 0.0, %v7815
        %v7817 = vpop.f32.mrf.mxu0
        %v7818 = vadd.f32 0.0, %v7817
        %7819 = vmatprep.mubr.bf16.mxu0 %v6465
        %7820 = vmatmul.mubr.bf16.gmra.mxu0 %v6464
        %v7821 = vpop.f32.mrf.mxu0
        %v7822 = vadd.f32 0.0, %v7821
        %v7823 = vpop.f32.mrf.mxu0
        %v7824 = vadd.f32 0.0, %v7823
        %v7825 = vpop.f32.mrf.mxu0
        %v7826 = vadd.f32 0.0, %v7825
        %v7827 = vpop.f32.mrf.mxu0
        %v7828 = vadd.f32 0.0, %v7827
        %7829 = vdwg.mxu0
        %7830 = vmatprep.subr.bf16.mxu0 %v7327
        %7831 = vmatpush1.bf16.msra.mxu0 %v7326
        %7832 = vmatprep.subr.bf16.mxu0 %v7315
        %7833 = vmatpush1.bf16.msra.mxu0 %v7314
        %7834 = vmatprep.subr.bf16.mxu0 %v7303
        %7835 = vmatpush1.bf16.msra.mxu0 %v7302
        %7836 = vmatprep.subr.bf16.mxu0 %v7291
        %7837 = vmatpush1.bf16.msra.mxu0 %v7290
        %7838 = vmatprep.subr.bf16.mxu0 %v7279
        %7839 = vmatpush1.bf16.msra.mxu0 %v7278
        %7840 = vmatprep.subr.bf16.mxu0 %v7267
        %7841 = vmatpush1.bf16.msra.mxu0 %v7266
        %7842 = vmatprep.subr.bf16.mxu0 %v7255
        %7843 = vmatpush1.bf16.msra.mxu0 %v7254
        %7844 = vmatprep.subr.bf16.mxu0 %v7243
        %7845 = vmatpush1.bf16.msra.mxu0 %v7242
        %7846 = vmatprep.subr.bf16.mxu0 %v7423
        %7847 = vmatpush2.bf16.msra.mxu0 %v7422
        %7848 = vmatprep.subr.bf16.mxu0 %v7411
        %7849 = vmatpush2.bf16.msra.mxu0 %v7410
        %7850 = vmatprep.subr.bf16.mxu0 %v7399
        %7851 = vmatpush2.bf16.msra.mxu0 %v7398
        %7852 = vmatprep.subr.bf16.mxu0 %v7387
        %7853 = vmatpush2.bf16.msra.mxu0 %v7386
        %7854 = vmatprep.subr.bf16.mxu0 %v7375
        %7855 = vmatpush2.bf16.msra.mxu0 %v7374
        %7856 = vmatprep.subr.bf16.mxu0 %v7363
        %7857 = vmatpush2.bf16.msra.mxu0 %v7362
        %7858 = vmatprep.subr.bf16.mxu0 %v7351
        %7859 = vmatpush2.bf16.msra.mxu0 %v7350
        %7860 = vmatprep.subr.bf16.mxu0 %v7339
        %7861 = vmatpush2.bf16.msra.mxu0 %v7338
        %7862 = vmatprep.mubr.bf16.mxu0 %v6463
        %7863 = vmatmul.mubr.bf16.gmra.mxu0 %v6462
        %v7864 = vpop.f32.mrf.mxu0
        %v7865 = vadd.f32 0.0, %v7864
        %v7866 = vpop.f32.mrf.mxu0
        %v7867 = vadd.f32 0.0, %v7866
        %v7868 = vpop.f32.mrf.mxu0
        %v7869 = vadd.f32 0.0, %v7868
        %v7870 = vpop.f32.mrf.mxu0
        %v7871 = vadd.f32 0.0, %v7870
        %7872 = vmatprep.mubr.bf16.mxu0 %v6465
        %7873 = vmatmul.mubr.bf16.gmra.mxu0 %v6464
        %v7874 = vpop.f32.mrf.mxu0
        %v7875 = vadd.f32 0.0, %v7874
        %v7876 = vpop.f32.mrf.mxu0
        %v7877 = vadd.f32 0.0, %v7876
        %v7878 = vpop.f32.mrf.mxu0
        %v7879 = vadd.f32 0.0, %v7878
        %v7880 = vpop.f32.mrf.mxu0
        %v7881 = vadd.f32 0.0, %v7880
        %7882 = vdwg.mxu0
        %7883 = vmatprep.subr.bf16.mxu0 %v7329
        %7884 = vmatpush1.bf16.msra.mxu0 %v7328
        %7885 = vmatprep.subr.bf16.mxu0 %v7317
        %7886 = vmatpush1.bf16.msra.mxu0 %v7316
        %7887 = vmatprep.subr.bf16.mxu0 %v7305
        %7888 = vmatpush1.bf16.msra.mxu0 %v7304
        %7889 = vmatprep.subr.bf16.mxu0 %v7293
        %7890 = vmatpush1.bf16.msra.mxu0 %v7292
        %7891 = vmatprep.subr.bf16.mxu0 %v7281
        %7892 = vmatpush1.bf16.msra.mxu0 %v7280
        %7893 = vmatprep.subr.bf16.mxu0 %v7269
        %7894 = vmatpush1.bf16.msra.mxu0 %v7268
        %7895 = vmatprep.subr.bf16.mxu0 %v7257
        %7896 = vmatpush1.bf16.msra.mxu0 %v7256
        %7897 = vmatprep.subr.bf16.mxu0 %v7245
        %7898 = vmatpush1.bf16.msra.mxu0 %v7244
        %7899 = vmatprep.subr.bf16.mxu0 %v7425
        %7900 = vmatpush2.bf16.msra.mxu0 %v7424
        %7901 = vmatprep.subr.bf16.mxu0 %v7413
        %7902 = vmatpush2.bf16.msra.mxu0 %v7412
        %7903 = vmatprep.subr.bf16.mxu0 %v7401
        %7904 = vmatpush2.bf16.msra.mxu0 %v7400
        %7905 = vmatprep.subr.bf16.mxu0 %v7389
        %7906 = vmatpush2.bf16.msra.mxu0 %v7388
        %7907 = vmatprep.subr.bf16.mxu0 %v7377
        %7908 = vmatpush2.bf16.msra.mxu0 %v7376
        %7909 = vmatprep.subr.bf16.mxu0 %v7365
        %7910 = vmatpush2.bf16.msra.mxu0 %v7364
        %7911 = vmatprep.subr.bf16.mxu0 %v7353
        %7912 = vmatpush2.bf16.msra.mxu0 %v7352
        %7913 = vmatprep.subr.bf16.mxu0 %v7341
        %7914 = vmatpush2.bf16.msra.mxu0 %v7340
        %7915 = vmatprep.mubr.bf16.mxu0 %v6463
        %7916 = vmatmul.mubr.bf16.gmra.mxu0 %v6462
        %v7917 = vpop.f32.mrf.mxu0
        %v7918 = vadd.f32 0.0, %v7917
        %v7919 = vpop.f32.mrf.mxu0
        %v7920 = vadd.f32 0.0, %v7919
        %v7921 = vpop.f32.mrf.mxu0
        %v7922 = vadd.f32 0.0, %v7921
        %v7923 = vpop.f32.mrf.mxu0
        %v7924 = vadd.f32 0.0, %v7923
        %7925 = vmatprep.mubr.bf16.mxu0 %v6465
        %7926 = vmatmul.mubr.bf16.gmra.mxu0 %v6464
        %v7927 = vpop.f32.mrf.mxu0
        %v7928 = vadd.f32 0.0, %v7927
        %v7929 = vpop.f32.mrf.mxu0
        %v7930 = vadd.f32 0.0, %v7929
        %v7931 = vpop.f32.mrf.mxu0
        %v7932 = vadd.f32 0.0, %v7931
        %v7933 = vpop.f32.mrf.mxu0
        %v7934 = vadd.f32 0.0, %v7933
        %7935 = vdwg.mxu0
        %v7936 = vld [vmem:[#allocation14] sm:$0xff]
        %v7937 = vld [vmem:[#allocation14 + $0x8] sm:$0xff]
        %v7938 = vld [vmem:[#allocation14 + $0x10] sm:$0xff]
        %v7939 = vld [vmem:[#allocation14 + $0x18] sm:$0xff]
        %v7940 = vld [vmem:[#allocation14 + $0x20] sm:$0xff]
        %v7941 = vld [vmem:[#allocation14 + $0x28] sm:$0xff]
        %v7942 = vld [vmem:[#allocation14 + $0x30] sm:$0xff]
        %v7943 = vld [vmem:[#allocation14 + $0x38] sm:$0xff]
        %v7944 = vld [vmem:[#allocation14 + $0x40] sm:$0xff]
        %v7945 = vld [vmem:[#allocation14 + $0x48] sm:$0xff]
        %v7946 = vld [vmem:[#allocation14 + $0x50] sm:$0xff]
        %v7947 = vld [vmem:[#allocation14 + $0x58] sm:$0xff]
        %v7948 = vld [vmem:[#allocation14 + $0x60] sm:$0xff]
        %v7949 = vld [vmem:[#allocation14 + $0x68] sm:$0xff]
        %v7950 = vld [vmem:[#allocation14 + $0x70] sm:$0xff]
        %v7951 = vld [vmem:[#allocation14 + $0x78] sm:$0xff]
        %v7952 = vld [vmem:[#allocation16] sm:$0xff]
        %v7953 = vld [vmem:[#allocation16 + $0x8] sm:$0xff]
        %v7954 = vld [vmem:[#allocation16 + $0x10] sm:$0xff]
        %v7955 = vld [vmem:[#allocation16 + $0x18] sm:$0xff]
        %v7956 = vld [vmem:[#allocation16 + $0x20] sm:$0xff]
        %v7957 = vld [vmem:[#allocation16 + $0x28] sm:$0xff]
        %v7958 = vld [vmem:[#allocation16 + $0x30] sm:$0xff]
        %v7959 = vld [vmem:[#allocation16 + $0x38] sm:$0xff]
        %v7960 = vld [vmem:[#allocation16 + $0x40] sm:$0xff]
        %v7961 = vld [vmem:[#allocation16 + $0x48] sm:$0xff]
        %v7962 = vld [vmem:[#allocation16 + $0x50] sm:$0xff]
        %v7963 = vld [vmem:[#allocation16 + $0x58] sm:$0xff]
        %v7964 = vld [vmem:[#allocation16 + $0x60] sm:$0xff]
        %v7965 = vld [vmem:[#allocation16 + $0x68] sm:$0xff]
        %v7966 = vld [vmem:[#allocation16 + $0x70] sm:$0xff]
        %v7967 = vld [vmem:[#allocation16 + $0x78] sm:$0xff]
        %vm7968 = vcmask 523264
        %v7970 = vsel %vm7968, %v7937, 0
        %v7973 = vsel %vm7968, %v7939, 0
        %v7976 = vsel %vm7968, %v7941, 0
        %v7979 = vsel %vm7968, %v7943, 0
        %v7982 = vsel %vm7968, %v7945, 0
        %v7985 = vsel %vm7968, %v7947, 0
        %v7988 = vsel %vm7968, %v7949, 0
        %v7991 = vsel %vm7968, %v7951, 0
        %7993 = vmatprep.subr.mxu0 %v7828
        %7994 = vmatpush1.msra.mxu0 %v7826
        %7995 = vmatprep.subr.mxu0 %v7824
        %7996 = vmatpush1.msra.mxu0 %v7822
        %7997 = vmatprep.subr.mxu0 %v7818
        %7998 = vmatpush1.msra.mxu0 %v7816
        %7999 = vmatprep.subr.mxu0 %v7814
        %8000 = vmatpush1.msra.mxu0 %v7812
        %8001 = vmatprep.subr.mxu0 %v7775
        %8002 = vmatpush1.msra.mxu0 %v7773
        %8003 = vmatprep.subr.mxu0 %v7771
        %8004 = vmatpush1.msra.mxu0 %v7769
        %8005 = vmatprep.subr.mxu0 %v7765
        %8006 = vmatpush1.msra.mxu0 %v7763
        %8007 = vmatprep.subr.mxu0 %v7761
        %8008 = vmatpush1.msra.mxu0 %v7759
        %8009 = vmatprep.subr.mxu0 %v7722
        %8010 = vmatpush1.msra.mxu0 %v7720
        %8011 = vmatprep.subr.mxu0 %v7718
        %8012 = vmatpush1.msra.mxu0 %v7716
        %8013 = vmatprep.subr.mxu0 %v7712
        %8014 = vmatpush1.msra.mxu0 %v7710
        %8015 = vmatprep.subr.mxu0 %v7708
        %8016 = vmatpush1.msra.mxu0 %v7706
        %8017 = vmatprep.subr.mxu0 %v7669
        %8018 = vmatpush1.msra.mxu0 %v7667
        %8019 = vmatprep.subr.mxu0 %v7665
        %8020 = vmatpush1.msra.mxu0 %v7663
        %8021 = vmatprep.subr.mxu0 %v7659
        %8022 = vmatpush1.msra.mxu0 %v7657
        %8023 = vmatprep.subr.mxu0 %v7655
        %8024 = vmatpush1.msra.mxu0 %v7653
        %8025 = vmatprep.subr.mxu0 0.0
        %8026 = vmatpush2.msra.mxu0 0.0
        %8027 = vmatprep.subr.mxu0 0.0
        %8028 = vmatpush2.msra.mxu0 0.0
        %8029 = vmatprep.subr.mxu0 0.0
        %8030 = vmatpush2.msra.mxu0 0.0
        %8031 = vmatprep.subr.mxu0 0.0
        %8032 = vmatpush2.msra.mxu0 0.0
        %8033 = vmatprep.subr.mxu0 0.0
        %8034 = vmatpush2.msra.mxu0 0.0
        %8035 = vmatprep.subr.mxu0 0.0
        %8036 = vmatpush2.msra.mxu0 0.0
        %8037 = vmatprep.subr.mxu0 0.0
        %8038 = vmatpush2.msra.mxu0 0.0
        %8039 = vmatprep.subr.mxu0 0.0
        %8040 = vmatpush2.msra.mxu0 0.0
        %8041 = vmatprep.subr.mxu0 %v7934
        %8042 = vmatpush2.msra.mxu0 %v7932
        %8043 = vmatprep.subr.mxu0 %v7930
        %8044 = vmatpush2.msra.mxu0 %v7928
        %8045 = vmatprep.subr.mxu0 %v7924
        %8046 = vmatpush2.msra.mxu0 %v7922
        %8047 = vmatprep.subr.mxu0 %v7920
        %8048 = vmatpush2.msra.mxu0 %v7918
        %8049 = vmatprep.subr.mxu0 %v7881
        %8050 = vmatpush2.msra.mxu0 %v7879
        %8051 = vmatprep.subr.mxu0 %v7877
        %8052 = vmatpush2.msra.mxu0 %v7875
        %8053 = vmatprep.subr.mxu0 %v7871
        %8054 = vmatpush2.msra.mxu0 %v7869
        %8055 = vmatprep.subr.mxu0 %v7867
        %8056 = vmatpush2.msra.mxu0 %v7865
        %8057 = vmatprep.mubr.f32.mxu0 %v7970
        %8058 = vmatmul.mubr.f32.gmra.mxu0 %v7936
        %v8059 = vpop.f32.mrf.mxu0
        %v8060 = vadd.f32 %v7952, %v8059
        %v8061 = vpop.f32.mrf.mxu0
        %v8062 = vadd.f32 %v7953, %v8061
        %8063 = vmatprep.mubr.f32.mxu0 %v7973
        %8064 = vmatmul.mubr.f32.gmra.mxu0 %v7938
        %v8065 = vpop.f32.mrf.mxu0
        %v8066 = vadd.f32 %v7954, %v8065
        %v8067 = vpop.f32.mrf.mxu0
        %v8068 = vadd.f32 %v7955, %v8067
        %8069 = vmatprep.mubr.f32.mxu0 %v7976
        %8070 = vmatmul.mubr.f32.gmra.mxu0 %v7940
        %v8071 = vpop.f32.mrf.mxu0
        %v8072 = vadd.f32 %v7956, %v8071
        %v8073 = vpop.f32.mrf.mxu0
        %v8074 = vadd.f32 %v7957, %v8073
        %8075 = vmatprep.mubr.f32.mxu0 %v7979
        %8076 = vmatmul.mubr.f32.gmra.mxu0 %v7942
        %v8077 = vpop.f32.mrf.mxu0
        %v8078 = vadd.f32 %v7958, %v8077
        %v8079 = vpop.f32.mrf.mxu0
        %v8080 = vadd.f32 %v7959, %v8079
        %8081 = vmatprep.mubr.f32.mxu0 %v7982
        %8082 = vmatmul.mubr.f32.gmra.mxu0 %v7944
        %v8083 = vpop.f32.mrf.mxu0
        %v8084 = vadd.f32 %v7960, %v8083
        %v8085 = vpop.f32.mrf.mxu0
        %v8086 = vadd.f32 %v7961, %v8085
        %8087 = vmatprep.mubr.f32.mxu0 %v7985
        %8088 = vmatmul.mubr.f32.gmra.mxu0 %v7946
        %v8089 = vpop.f32.mrf.mxu0
        %v8090 = vadd.f32 %v7962, %v8089
        %v8091 = vpop.f32.mrf.mxu0
        %v8092 = vadd.f32 %v7963, %v8091
        %8093 = vmatprep.mubr.f32.mxu0 %v7988
        %8094 = vmatmul.mubr.f32.gmra.mxu0 %v7948
        %v8095 = vpop.f32.mrf.mxu0
        %v8096 = vadd.f32 %v7964, %v8095
        %v8097 = vpop.f32.mrf.mxu0
        %v8098 = vadd.f32 %v7965, %v8097
        %8099 = vmatprep.mubr.f32.mxu0 %v7991
        %8100 = vmatmul.mubr.f32.gmra.mxu0 %v7950
        %v8101 = vpop.f32.mrf.mxu0
        %v8102 = vadd.f32 %v7966, %v8101
        %v8103 = vpop.f32.mrf.mxu0
        %v8104 = vadd.f32 %v7967, %v8103
        %8105 = vdwg.mxu0
        %v8106 = vpack.c.bf16 %v8066, %v8060
        %v8107 = vpack.c.bf16 %v8068, %v8062
        %v8108 = vpack.c.bf16 %v8078, %v8072
        %v8109 = vpack.c.bf16 %v8080, %v8074
        %v8110 = vpack.c.bf16 %v8090, %v8084
        %v8111 = vpack.c.bf16 %v8092, %v8086
        %v8112 = vpack.c.bf16 %v8102, %v8096
        %v8113 = vpack.c.bf16 %v8104, %v8098
        %v8114 = vld [vmem:[#allocation17] sm:$0xff]
        %v8115 = vld [vmem:[#allocation17 + $0x8] sm:$0xff]
        %v8116 = vld [vmem:[#allocation17 + $0x10] sm:$0xff]
        %v8117 = vld [vmem:[#allocation17 + $0x18] sm:$0xff]
        %v8118 = vld [vmem:[#allocation17 + $0x20] sm:$0xff]
        %v8119 = vld [vmem:[#allocation17 + $0x28] sm:$0xff]
        %v8120 = vld [vmem:[#allocation17 + $0x30] sm:$0xff]
        %v8121 = vld [vmem:[#allocation17 + $0x38] sm:$0xff]
        %v8122 = vld [vmem:[#allocation17 + $0x40] sm:$0xff]
        %v8123 = vld [vmem:[#allocation17 + $0x48] sm:$0xff]
        %v8124 = vld [vmem:[#allocation17 + $0x50] sm:$0xff]
        %v8125 = vld [vmem:[#allocation17 + $0x58] sm:$0xff]
        %v8126 = vld [vmem:[#allocation17 + $0x60] sm:$0xff]
        %v8127 = vld [vmem:[#allocation17 + $0x68] sm:$0xff]
        %v8128 = vld [vmem:[#allocation17 + $0x70] sm:$0xff]
        %v8129 = vld [vmem:[#allocation17 + $0x78] sm:$0xff]
        %v8130 = vld [vmem:[#allocation17 + $0x80] sm:$0xff]
        %v8131 = vld [vmem:[#allocation17 + $0x88] sm:$0xff]
        %v8132 = vld [vmem:[#allocation17 + $0x90] sm:$0xff]
        %v8133 = vld [vmem:[#allocation17 + $0x98] sm:$0xff]
        %v8134 = vld [vmem:[#allocation17 + $0xa0] sm:$0xff]
        %v8135 = vld [vmem:[#allocation17 + $0xa8] sm:$0xff]
        %v8136 = vld [vmem:[#allocation17 + $0xb0] sm:$0xff]
        %v8137 = vld [vmem:[#allocation17 + $0xb8] sm:$0xff]
        %v8138 = vld [vmem:[#allocation17 + $0xc0] sm:$0xff]
        %v8139 = vld [vmem:[#allocation17 + $0xc8] sm:$0xff]
        %v8140 = vld [vmem:[#allocation17 + $0xd0] sm:$0xff]
        %v8141 = vld [vmem:[#allocation17 + $0xd8] sm:$0xff]
        %v8142 = vld [vmem:[#allocation17 + $0xe0] sm:$0xff]
        %v8143 = vld [vmem:[#allocation17 + $0xe8] sm:$0xff]
        %v8144 = vld [vmem:[#allocation17 + $0xf0] sm:$0xff]
        %v8145 = vld [vmem:[#allocation17 + $0xf8] sm:$0xff]
        %v8146 = vld [vmem:[#allocation17 + $0x100] sm:$0xff]
        %v8147 = vld [vmem:[#allocation17 + $0x108] sm:$0xff]
        %v8148 = vld [vmem:[#allocation17 + $0x110] sm:$0xff]
        %v8149 = vld [vmem:[#allocation17 + $0x118] sm:$0xff]
        %v8150 = vld [vmem:[#allocation17 + $0x120] sm:$0xff]
        %v8151 = vld [vmem:[#allocation17 + $0x128] sm:$0xff]
        %v8152 = vld [vmem:[#allocation17 + $0x130] sm:$0xff]
        %v8153 = vld [vmem:[#allocation17 + $0x138] sm:$0xff]
        %v8154 = vld [vmem:[#allocation17 + $0x140] sm:$0xff]
        %v8155 = vld [vmem:[#allocation17 + $0x148] sm:$0xff]
        %v8156 = vld [vmem:[#allocation17 + $0x150] sm:$0xff]
        %v8157 = vld [vmem:[#allocation17 + $0x158] sm:$0xff]
        %v8158 = vld [vmem:[#allocation17 + $0x160] sm:$0xff]
        %v8159 = vld [vmem:[#allocation17 + $0x168] sm:$0xff]
        %v8160 = vld [vmem:[#allocation17 + $0x170] sm:$0xff]
        %v8161 = vld [vmem:[#allocation17 + $0x178] sm:$0xff]
        %v8162 = vld [vmem:[#allocation17 + $0x180] sm:$0xff]
        %v8163 = vld [vmem:[#allocation17 + $0x188] sm:$0xff]
        %v8164 = vld [vmem:[#allocation17 + $0x190] sm:$0xff]
        %v8165 = vld [vmem:[#allocation17 + $0x198] sm:$0xff]
        %v8166 = vld [vmem:[#allocation17 + $0x1a0] sm:$0xff]
        %v8167 = vld [vmem:[#allocation17 + $0x1a8] sm:$0xff]
        %v8168 = vld [vmem:[#allocation17 + $0x1b0] sm:$0xff]
        %v8169 = vld [vmem:[#allocation17 + $0x1b8] sm:$0xff]
        %v8170 = vld [vmem:[#allocation17 + $0x1c0] sm:$0xff]
        %v8171 = vld [vmem:[#allocation17 + $0x1c8] sm:$0xff]
        %v8172 = vld [vmem:[#allocation17 + $0x1d0] sm:$0xff]
        %v8173 = vld [vmem:[#allocation17 + $0x1d8] sm:$0xff]
        %v8174 = vld [vmem:[#allocation17 + $0x1e0] sm:$0xff]
        %v8175 = vld [vmem:[#allocation17 + $0x1e8] sm:$0xff]
        %v8176 = vld [vmem:[#allocation17 + $0x1f0] sm:$0xff]
        %v8177 = vld [vmem:[#allocation17 + $0x1f8] sm:$0xff]
        %v8178 = vld [vmem:[#allocation17 + $0x200] sm:$0xff]
        %v8179 = vld [vmem:[#allocation17 + $0x208] sm:$0xff]
        %v8180 = vld [vmem:[#allocation17 + $0x210] sm:$0xff]
        %v8181 = vld [vmem:[#allocation17 + $0x218] sm:$0xff]
        %v8182 = vld [vmem:[#allocation17 + $0x220] sm:$0xff]
        %v8183 = vld [vmem:[#allocation17 + $0x228] sm:$0xff]
        %v8184 = vld [vmem:[#allocation17 + $0x230] sm:$0xff]
        %v8185 = vld [vmem:[#allocation17 + $0x238] sm:$0xff]
        %v8186 = vld [vmem:[#allocation17 + $0x240] sm:$0xff]
        %v8187 = vld [vmem:[#allocation17 + $0x248] sm:$0xff]
        %v8188 = vld [vmem:[#allocation17 + $0x250] sm:$0xff]
        %v8189 = vld [vmem:[#allocation17 + $0x258] sm:$0xff]
        %v8190 = vld [vmem:[#allocation17 + $0x260] sm:$0xff]
        %v8191 = vld [vmem:[#allocation17 + $0x268] sm:$0xff]
        %v8192 = vld [vmem:[#allocation17 + $0x270] sm:$0xff]
        %v8193 = vld [vmem:[#allocation17 + $0x278] sm:$0xff]
        %v8194 = vld [vmem:[#allocation17 + $0x280] sm:$0xff]
        %v8195 = vld [vmem:[#allocation17 + $0x288] sm:$0xff]
        %v8196 = vld [vmem:[#allocation17 + $0x290] sm:$0xff]
        %v8197 = vld [vmem:[#allocation17 + $0x298] sm:$0xff]
        %v8198 = vld [vmem:[#allocation17 + $0x2a0] sm:$0xff]
        %v8199 = vld [vmem:[#allocation17 + $0x2a8] sm:$0xff]
        %v8200 = vld [vmem:[#allocation17 + $0x2b0] sm:$0xff]
        %v8201 = vld [vmem:[#allocation17 + $0x2b8] sm:$0xff]
        %v8202 = vld [vmem:[#allocation17 + $0x2c0] sm:$0xff]
        %v8203 = vld [vmem:[#allocation17 + $0x2c8] sm:$0xff]
        %v8204 = vld [vmem:[#allocation17 + $0x2d0] sm:$0xff]
        %v8205 = vld [vmem:[#allocation17 + $0x2d8] sm:$0xff]
        %v8206 = vld [vmem:[#allocation17 + $0x2e0] sm:$0xff]
        %v8207 = vld [vmem:[#allocation17 + $0x2e8] sm:$0xff]
        %v8208 = vld [vmem:[#allocation17 + $0x2f0] sm:$0xff]
        %v8209 = vld [vmem:[#allocation17 + $0x2f8] sm:$0xff]
        %v8306 = vunpack.c.l.b16 %v8114
        %v8307 = vunpack.c.h.b16 %v8114
        %v8308 = vunpack.c.l.b16 %v8115
        %v8309 = vunpack.c.h.b16 %v8115
        %v8310 = vunpack.c.l.b16 %v8116
        %v8311 = vunpack.c.h.b16 %v8116
        %v8312 = vunpack.c.l.b16 %v8117
        %v8313 = vunpack.c.h.b16 %v8117
        %v8314 = vunpack.c.l.b16 %v8118
        %v8315 = vunpack.c.h.b16 %v8118
        %v8316 = vunpack.c.l.b16 %v8119
        %v8317 = vunpack.c.h.b16 %v8119
        %v8318 = vunpack.c.l.b16 %v8120
        %v8319 = vunpack.c.h.b16 %v8120
        %v8320 = vunpack.c.l.b16 %v8121
        %v8321 = vunpack.c.h.b16 %v8121
        %v8322 = vunpack.c.l.b16 %v8122
        %v8323 = vunpack.c.h.b16 %v8122
        %v8324 = vunpack.c.l.b16 %v8123
        %v8325 = vunpack.c.h.b16 %v8123
        %v8326 = vunpack.c.l.b16 %v8124
        %v8327 = vunpack.c.h.b16 %v8124
        %v8328 = vunpack.c.l.b16 %v8125
        %v8329 = vunpack.c.h.b16 %v8125
        %v8330 = vunpack.c.l.b16 %v8126
        %v8331 = vunpack.c.h.b16 %v8126
        %v8332 = vunpack.c.l.b16 %v8127
        %v8333 = vunpack.c.h.b16 %v8127
        %v8334 = vunpack.c.l.b16 %v8128
        %v8335 = vunpack.c.h.b16 %v8128
        %v8336 = vunpack.c.l.b16 %v8129
        %v8337 = vunpack.c.h.b16 %v8129
        %v8338 = vunpack.c.l.b16 %v8130
        %v8339 = vunpack.c.h.b16 %v8130
        %v8340 = vunpack.c.l.b16 %v8131
        %v8341 = vunpack.c.h.b16 %v8131
        %v8342 = vunpack.c.l.b16 %v8132
        %v8343 = vunpack.c.h.b16 %v8132
        %v8344 = vunpack.c.l.b16 %v8133
        %v8345 = vunpack.c.h.b16 %v8133
        %v8346 = vunpack.c.l.b16 %v8134
        %v8347 = vunpack.c.h.b16 %v8134
        %v8348 = vunpack.c.l.b16 %v8135
        %v8349 = vunpack.c.h.b16 %v8135
        %v8350 = vunpack.c.l.b16 %v8136
        %v8351 = vunpack.c.h.b16 %v8136
        %v8352 = vunpack.c.l.b16 %v8137
        %v8353 = vunpack.c.h.b16 %v8137
        %v8354 = vunpack.c.l.b16 %v8138
        %v8355 = vunpack.c.h.b16 %v8138
        %v8356 = vunpack.c.l.b16 %v8139
        %v8357 = vunpack.c.h.b16 %v8139
        %v8358 = vunpack.c.l.b16 %v8140
        %v8359 = vunpack.c.h.b16 %v8140
        %v8360 = vunpack.c.l.b16 %v8141
        %v8361 = vunpack.c.h.b16 %v8141
        %v8362 = vunpack.c.l.b16 %v8142
        %v8363 = vunpack.c.h.b16 %v8142
        %v8364 = vunpack.c.l.b16 %v8143
        %v8365 = vunpack.c.h.b16 %v8143
        %v8366 = vunpack.c.l.b16 %v8144
        %v8367 = vunpack.c.h.b16 %v8144
        %v8368 = vunpack.c.l.b16 %v8145
        %v8369 = vunpack.c.h.b16 %v8145
        %v8370 = vunpack.c.l.b16 %v8146
        %v8371 = vunpack.c.h.b16 %v8146
        %v8372 = vunpack.c.l.b16 %v8147
        %v8373 = vunpack.c.h.b16 %v8147
        %v8374 = vunpack.c.l.b16 %v8148
        %v8375 = vunpack.c.h.b16 %v8148
        %v8376 = vunpack.c.l.b16 %v8149
        %v8377 = vunpack.c.h.b16 %v8149
        %v8378 = vunpack.c.l.b16 %v8150
        %v8379 = vunpack.c.h.b16 %v8150
        %v8380 = vunpack.c.l.b16 %v8151
        %v8381 = vunpack.c.h.b16 %v8151
        %v8382 = vunpack.c.l.b16 %v8152
        %v8383 = vunpack.c.h.b16 %v8152
        %v8384 = vunpack.c.l.b16 %v8153
        %v8385 = vunpack.c.h.b16 %v8153
        %v8386 = vunpack.c.l.b16 %v8154
        %v8387 = vunpack.c.h.b16 %v8154
        %v8388 = vunpack.c.l.b16 %v8155
        %v8389 = vunpack.c.h.b16 %v8155
        %v8390 = vunpack.c.l.b16 %v8156
        %v8391 = vunpack.c.h.b16 %v8156
        %v8392 = vunpack.c.l.b16 %v8157
        %v8393 = vunpack.c.h.b16 %v8157
        %v8394 = vunpack.c.l.b16 %v8158
        %v8395 = vunpack.c.h.b16 %v8158
        %v8396 = vunpack.c.l.b16 %v8159
        %v8397 = vunpack.c.h.b16 %v8159
        %v8398 = vunpack.c.l.b16 %v8160
        %v8399 = vunpack.c.h.b16 %v8160
        %v8400 = vunpack.c.l.b16 %v8161
        %v8401 = vunpack.c.h.b16 %v8161
        %v8402 = vunpack.c.l.b16 %v8162
        %v8403 = vunpack.c.h.b16 %v8162
        %v8404 = vunpack.c.l.b16 %v8163
        %v8405 = vunpack.c.h.b16 %v8163
        %v8406 = vunpack.c.l.b16 %v8164
        %v8407 = vunpack.c.h.b16 %v8164
        %v8408 = vunpack.c.l.b16 %v8165
        %v8409 = vunpack.c.h.b16 %v8165
        %v8410 = vunpack.c.l.b16 %v8166
        %v8411 = vunpack.c.h.b16 %v8166
        %v8412 = vunpack.c.l.b16 %v8167
        %v8413 = vunpack.c.h.b16 %v8167
        %v8414 = vunpack.c.l.b16 %v8168
        %v8415 = vunpack.c.h.b16 %v8168
        %v8416 = vunpack.c.l.b16 %v8169
        %v8417 = vunpack.c.h.b16 %v8169
        %v8418 = vunpack.c.l.b16 %v8170
        %v8419 = vunpack.c.h.b16 %v8170
        %v8420 = vunpack.c.l.b16 %v8171
        %v8421 = vunpack.c.h.b16 %v8171
        %v8422 = vunpack.c.l.b16 %v8172
        %v8423 = vunpack.c.h.b16 %v8172
        %v8424 = vunpack.c.l.b16 %v8173
        %v8425 = vunpack.c.h.b16 %v8173
        %v8426 = vunpack.c.l.b16 %v8174
        %v8427 = vunpack.c.h.b16 %v8174
        %v8428 = vunpack.c.l.b16 %v8175
        %v8429 = vunpack.c.h.b16 %v8175
        %v8430 = vunpack.c.l.b16 %v8176
        %v8431 = vunpack.c.h.b16 %v8176
        %v8432 = vunpack.c.l.b16 %v8177
        %v8433 = vunpack.c.h.b16 %v8177
        %v8434 = vunpack.c.l.b16 %v8178
        %v8435 = vunpack.c.h.b16 %v8178
        %v8436 = vunpack.c.l.b16 %v8179
        %v8437 = vunpack.c.h.b16 %v8179
        %v8438 = vunpack.c.l.b16 %v8180
        %v8439 = vunpack.c.h.b16 %v8180
        %v8440 = vunpack.c.l.b16 %v8181
        %v8441 = vunpack.c.h.b16 %v8181
        %v8442 = vunpack.c.l.b16 %v8182
        %v8443 = vunpack.c.h.b16 %v8182
        %v8444 = vunpack.c.l.b16 %v8183
        %v8445 = vunpack.c.h.b16 %v8183
        %v8446 = vunpack.c.l.b16 %v8184
        %v8447 = vunpack.c.h.b16 %v8184
        %v8448 = vunpack.c.l.b16 %v8185
        %v8449 = vunpack.c.h.b16 %v8185
        %v8450 = vunpack.c.l.b16 %v8186
        %v8451 = vunpack.c.h.b16 %v8186
        %v8452 = vunpack.c.l.b16 %v8187
        %v8453 = vunpack.c.h.b16 %v8187
        %v8454 = vunpack.c.l.b16 %v8188
        %v8455 = vunpack.c.h.b16 %v8188
        %v8456 = vunpack.c.l.b16 %v8189
        %v8457 = vunpack.c.h.b16 %v8189
        %v8458 = vunpack.c.l.b16 %v8190
        %v8459 = vunpack.c.h.b16 %v8190
        %v8460 = vunpack.c.l.b16 %v8191
        %v8461 = vunpack.c.h.b16 %v8191
        %v8462 = vunpack.c.l.b16 %v8192
        %v8463 = vunpack.c.h.b16 %v8192
        %v8464 = vunpack.c.l.b16 %v8193
        %v8465 = vunpack.c.h.b16 %v8193
        %v8466 = vunpack.c.l.b16 %v8194
        %v8467 = vunpack.c.h.b16 %v8194
        %v8468 = vunpack.c.l.b16 %v8195
        %v8469 = vunpack.c.h.b16 %v8195
        %v8470 = vunpack.c.l.b16 %v8196
        %v8471 = vunpack.c.h.b16 %v8196
        %v8472 = vunpack.c.l.b16 %v8197
        %v8473 = vunpack.c.h.b16 %v8197
        %v8474 = vunpack.c.l.b16 %v8198
        %v8475 = vunpack.c.h.b16 %v8198
        %v8476 = vunpack.c.l.b16 %v8199
        %v8477 = vunpack.c.h.b16 %v8199
        %v8478 = vunpack.c.l.b16 %v8200
        %v8479 = vunpack.c.h.b16 %v8200
        %v8480 = vunpack.c.l.b16 %v8201
        %v8481 = vunpack.c.h.b16 %v8201
        %v8482 = vunpack.c.l.b16 %v8202
        %v8483 = vunpack.c.h.b16 %v8202
        %v8484 = vunpack.c.l.b16 %v8203
        %v8485 = vunpack.c.h.b16 %v8203
        %v8486 = vunpack.c.l.b16 %v8204
        %v8487 = vunpack.c.h.b16 %v8204
        %v8488 = vunpack.c.l.b16 %v8205
        %v8489 = vunpack.c.h.b16 %v8205
        %v8490 = vunpack.c.l.b16 %v8206
        %v8491 = vunpack.c.h.b16 %v8206
        %v8492 = vunpack.c.l.b16 %v8207
        %v8493 = vunpack.c.h.b16 %v8207
        %v8494 = vunpack.c.l.b16 %v8208
        %v8495 = vunpack.c.h.b16 %v8208
        %v8496 = vunpack.c.l.b16 %v8209
        %v8497 = vunpack.c.h.b16 %v8209
        %v8498 = vpack.c.b16 %v8312, %v8306
        %v8499 = vpack.c.b16 %v8313, %v8307
        %v8500 = vpack.c.b16 %v8314, %v8308
        %v8501 = vpack.c.b16 %v8315, %v8309
        %v8502 = vpack.c.b16 %v8316, %v8310
        %v8503 = vpack.c.b16 %v8317, %v8311
        %v8504 = vpack.c.b16 %v8324, %v8318
        %v8505 = vpack.c.b16 %v8325, %v8319
        %v8506 = vpack.c.b16 %v8326, %v8320
        %v8507 = vpack.c.b16 %v8327, %v8321
        %v8508 = vpack.c.b16 %v8328, %v8322
        %v8509 = vpack.c.b16 %v8329, %v8323
        %v8510 = vpack.c.b16 %v8336, %v8330
        %v8511 = vpack.c.b16 %v8337, %v8331
        %v8512 = vpack.c.b16 %v8338, %v8332
        %v8513 = vpack.c.b16 %v8339, %v8333
        %v8514 = vpack.c.b16 %v8340, %v8334
        %v8515 = vpack.c.b16 %v8341, %v8335
        %v8516 = vpack.c.b16 %v8348, %v8342
        %v8517 = vpack.c.b16 %v8349, %v8343
        %v8518 = vpack.c.b16 %v8350, %v8344
        %v8519 = vpack.c.b16 %v8351, %v8345
        %v8520 = vpack.c.b16 %v8352, %v8346
        %v8521 = vpack.c.b16 %v8353, %v8347
        %v8522 = vpack.c.b16 %v8360, %v8354
        %v8523 = vpack.c.b16 %v8361, %v8355
        %v8524 = vpack.c.b16 %v8362, %v8356
        %v8525 = vpack.c.b16 %v8363, %v8357
        %v8526 = vpack.c.b16 %v8364, %v8358
        %v8527 = vpack.c.b16 %v8365, %v8359
        %v8528 = vpack.c.b16 %v8372, %v8366
        %v8529 = vpack.c.b16 %v8373, %v8367
        %v8530 = vpack.c.b16 %v8374, %v8368
        %v8531 = vpack.c.b16 %v8375, %v8369
        %v8532 = vpack.c.b16 %v8376, %v8370
        %v8533 = vpack.c.b16 %v8377, %v8371
        %v8534 = vpack.c.b16 %v8384, %v8378
        %v8535 = vpack.c.b16 %v8385, %v8379
        %v8536 = vpack.c.b16 %v8386, %v8380
        %v8537 = vpack.c.b16 %v8387, %v8381
        %v8538 = vpack.c.b16 %v8388, %v8382
        %v8539 = vpack.c.b16 %v8389, %v8383
        %v8540 = vpack.c.b16 %v8396, %v8390
        %v8541 = vpack.c.b16 %v8397, %v8391
        %v8542 = vpack.c.b16 %v8398, %v8392
        %v8543 = vpack.c.b16 %v8399, %v8393
        %v8544 = vpack.c.b16 %v8400, %v8394
        %v8545 = vpack.c.b16 %v8401, %v8395
        %v8546 = vpack.c.b16 %v8408, %v8402
        %v8547 = vpack.c.b16 %v8409, %v8403
        %v8548 = vpack.c.b16 %v8410, %v8404
        %v8549 = vpack.c.b16 %v8411, %v8405
        %v8550 = vpack.c.b16 %v8412, %v8406
        %v8551 = vpack.c.b16 %v8413, %v8407
        %v8552 = vpack.c.b16 %v8420, %v8414
        %v8553 = vpack.c.b16 %v8421, %v8415
        %v8554 = vpack.c.b16 %v8422, %v8416
        %v8555 = vpack.c.b16 %v8423, %v8417
        %v8556 = vpack.c.b16 %v8424, %v8418
        %v8557 = vpack.c.b16 %v8425, %v8419
        %v8558 = vpack.c.b16 %v8432, %v8426
        %v8559 = vpack.c.b16 %v8433, %v8427
        %v8560 = vpack.c.b16 %v8434, %v8428
        %v8561 = vpack.c.b16 %v8435, %v8429
        %v8562 = vpack.c.b16 %v8436, %v8430
        %v8563 = vpack.c.b16 %v8437, %v8431
        %v8564 = vpack.c.b16 %v8444, %v8438
        %v8565 = vpack.c.b16 %v8445, %v8439
        %v8566 = vpack.c.b16 %v8446, %v8440
        %v8567 = vpack.c.b16 %v8447, %v8441
        %v8568 = vpack.c.b16 %v8448, %v8442
        %v8569 = vpack.c.b16 %v8449, %v8443
        %v8570 = vpack.c.b16 %v8456, %v8450
        %v8571 = vpack.c.b16 %v8457, %v8451
        %v8572 = vpack.c.b16 %v8458, %v8452
        %v8573 = vpack.c.b16 %v8459, %v8453
        %v8574 = vpack.c.b16 %v8460, %v8454
        %v8575 = vpack.c.b16 %v8461, %v8455
        %v8576 = vpack.c.b16 %v8468, %v8462
        %v8577 = vpack.c.b16 %v8469, %v8463
        %v8578 = vpack.c.b16 %v8470, %v8464
        %v8579 = vpack.c.b16 %v8471, %v8465
        %v8580 = vpack.c.b16 %v8472, %v8466
        %v8581 = vpack.c.b16 %v8473, %v8467
        %v8582 = vpack.c.b16 %v8480, %v8474
        %v8583 = vpack.c.b16 %v8481, %v8475
        %v8584 = vpack.c.b16 %v8482, %v8476
        %v8585 = vpack.c.b16 %v8483, %v8477
        %v8586 = vpack.c.b16 %v8484, %v8478
        %v8587 = vpack.c.b16 %v8485, %v8479
        %v8588 = vpack.c.b16 %v8492, %v8486
        %v8589 = vpack.c.b16 %v8493, %v8487
        %v8590 = vpack.c.b16 %v8494, %v8488
        %v8591 = vpack.c.b16 %v8495, %v8489
        %v8592 = vpack.c.b16 %v8496, %v8490
        %v8593 = vpack.c.b16 %v8497, %v8491
        %8690 = vmatprep.subr.bf16.mxu0 %v8541
        %8691 = vmatpush1.bf16.msra.mxu0 %v8540
        %8692 = vmatprep.subr.bf16.mxu0 %v8535
        %8693 = vmatpush1.bf16.msra.mxu0 %v8534
        %8694 = vmatprep.subr.bf16.mxu0 %v8529
        %8695 = vmatpush1.bf16.msra.mxu0 %v8528
        %8696 = vmatprep.subr.bf16.mxu0 %v8523
        %8697 = vmatpush1.bf16.msra.mxu0 %v8522
        %8698 = vmatprep.subr.bf16.mxu0 %v8517
        %8699 = vmatpush1.bf16.msra.mxu0 %v8516
        %8700 = vmatprep.subr.bf16.mxu0 %v8511
        %8701 = vmatpush1.bf16.msra.mxu0 %v8510
        %8702 = vmatprep.subr.bf16.mxu0 %v8505
        %8703 = vmatpush1.bf16.msra.mxu0 %v8504
        %8704 = vmatprep.subr.bf16.mxu0 %v8499
        %8705 = vmatpush1.bf16.msra.mxu0 %v8498
        %8706 = vmatprep.subr.bf16.mxu0 %v8589
        %8707 = vmatpush2.bf16.msra.mxu0 %v8588
        %8708 = vmatprep.subr.bf16.mxu0 %v8583
        %8709 = vmatpush2.bf16.msra.mxu0 %v8582
        %8710 = vmatprep.subr.bf16.mxu0 %v8577
        %8711 = vmatpush2.bf16.msra.mxu0 %v8576
        %8712 = vmatprep.subr.bf16.mxu0 %v8571
        %8713 = vmatpush2.bf16.msra.mxu0 %v8570
        %8714 = vmatprep.subr.bf16.mxu0 %v8565
        %8715 = vmatpush2.bf16.msra.mxu0 %v8564
        %8716 = vmatprep.subr.bf16.mxu0 %v8559
        %8717 = vmatpush2.bf16.msra.mxu0 %v8558
        %8718 = vmatprep.subr.bf16.mxu0 %v8553
        %8719 = vmatpush2.bf16.msra.mxu0 %v8552
        %8720 = vmatprep.subr.bf16.mxu0 %v8547
        %8721 = vmatpush2.bf16.msra.mxu0 %v8546
        %8722 = vmatprep.mubr.bf16.mxu0 %v8107
        %8723 = vmatmul.mubr.bf16.gmra.mxu0 %v8106
        %v8724 = vpop.f32.mrf.mxu0
        %v8725 = vadd.f32 0.0, %v8724
        %v8726 = vpop.f32.mrf.mxu0
        %v8727 = vadd.f32 0.0, %v8726
        %v8728 = vpop.f32.mrf.mxu0
        %v8729 = vadd.f32 0.0, %v8728
        %v8730 = vpop.f32.mrf.mxu0
        %v8731 = vadd.f32 0.0, %v8730
        %8732 = vmatprep.mubr.bf16.mxu0 %v8109
        %8733 = vmatmul.mubr.bf16.gmra.mxu0 %v8108
        %v8734 = vpop.f32.mrf.mxu0
        %v8735 = vadd.f32 0.0, %v8734
        %v8736 = vpop.f32.mrf.mxu0
        %v8737 = vadd.f32 0.0, %v8736
        %v8738 = vpop.f32.mrf.mxu0
        %v8739 = vadd.f32 0.0, %v8738
        %v8740 = vpop.f32.mrf.mxu0
        %v8741 = vadd.f32 0.0, %v8740
        %8742 = vmatprep.mubr.bf16.mxu0 %v8111
        %8743 = vmatmul.mubr.bf16.gmra.mxu0 %v8110
        %v8744 = vpop.f32.mrf.mxu0
        %v8745 = vadd.f32 0.0, %v8744
        %v8746 = vpop.f32.mrf.mxu0
        %v8747 = vadd.f32 0.0, %v8746
        %v8748 = vpop.f32.mrf.mxu0
        %v8749 = vadd.f32 0.0, %v8748
        %v8750 = vpop.f32.mrf.mxu0
        %v8751 = vadd.f32 0.0, %v8750
        %8752 = vmatprep.mubr.bf16.mxu0 %v8113
        %8753 = vmatmul.mubr.bf16.gmra.mxu0 %v8112
        %v8754 = vpop.f32.mrf.mxu0
        %v8755 = vadd.f32 0.0, %v8754
        %v8756 = vpop.f32.mrf.mxu0
        %v8757 = vadd.f32 0.0, %v8756
        %v8758 = vpop.f32.mrf.mxu0
        %v8759 = vadd.f32 0.0, %v8758
        %v8760 = vpop.f32.mrf.mxu0
        %v8761 = vadd.f32 0.0, %v8760
        %8762 = vdwg.mxu0
        %8763 = vmatprep.subr.bf16.mxu0 %v8543
        %8764 = vmatpush1.bf16.msra.mxu0 %v8542
        %8765 = vmatprep.subr.bf16.mxu0 %v8537
        %8766 = vmatpush1.bf16.msra.mxu0 %v8536
        %8767 = vmatprep.subr.bf16.mxu0 %v8531
        %8768 = vmatpush1.bf16.msra.mxu0 %v8530
        %8769 = vmatprep.subr.bf16.mxu0 %v8525
        %8770 = vmatpush1.bf16.msra.mxu0 %v8524
        %8771 = vmatprep.subr.bf16.mxu0 %v8519
        %8772 = vmatpush1.bf16.msra.mxu0 %v8518
        %8773 = vmatprep.subr.bf16.mxu0 %v8513
        %8774 = vmatpush1.bf16.msra.mxu0 %v8512
        %8775 = vmatprep.subr.bf16.mxu0 %v8507
        %8776 = vmatpush1.bf16.msra.mxu0 %v8506
        %8777 = vmatprep.subr.bf16.mxu0 %v8501
        %8778 = vmatpush1.bf16.msra.mxu0 %v8500
        %8779 = vmatprep.subr.bf16.mxu0 %v8591
        %8780 = vmatpush2.bf16.msra.mxu0 %v8590
        %8781 = vmatprep.subr.bf16.mxu0 %v8585
        %8782 = vmatpush2.bf16.msra.mxu0 %v8584
        %8783 = vmatprep.subr.bf16.mxu0 %v8579
        %8784 = vmatpush2.bf16.msra.mxu0 %v8578
        %8785 = vmatprep.subr.bf16.mxu0 %v8573
        %8786 = vmatpush2.bf16.msra.mxu0 %v8572
        %8787 = vmatprep.subr.bf16.mxu0 %v8567
        %8788 = vmatpush2.bf16.msra.mxu0 %v8566
        %8789 = vmatprep.subr.bf16.mxu0 %v8561
        %8790 = vmatpush2.bf16.msra.mxu0 %v8560
        %8791 = vmatprep.subr.bf16.mxu0 %v8555
        %8792 = vmatpush2.bf16.msra.mxu0 %v8554
        %8793 = vmatprep.subr.bf16.mxu0 %v8549
        %8794 = vmatpush2.bf16.msra.mxu0 %v8548
        %8795 = vmatprep.mubr.bf16.mxu0 %v8107
        %8796 = vmatmul.mubr.bf16.gmra.mxu0 %v8106
        %v8797 = vpop.f32.mrf.mxu0
        %v8798 = vadd.f32 0.0, %v8797
        %v8799 = vpop.f32.mrf.mxu0
        %v8800 = vadd.f32 0.0, %v8799
        %v8801 = vpop.f32.mrf.mxu0
        %v8802 = vadd.f32 0.0, %v8801
        %v8803 = vpop.f32.mrf.mxu0
        %v8804 = vadd.f32 0.0, %v8803
        %8805 = vmatprep.mubr.bf16.mxu0 %v8109
        %8806 = vmatmul.mubr.bf16.gmra.mxu0 %v8108
        %v8807 = vpop.f32.mrf.mxu0
        %v8808 = vadd.f32 0.0, %v8807
        %v8809 = vpop.f32.mrf.mxu0
        %v8810 = vadd.f32 0.0, %v8809
        %v8811 = vpop.f32.mrf.mxu0
        %v8812 = vadd.f32 0.0, %v8811
        %v8813 = vpop.f32.mrf.mxu0
        %v8814 = vadd.f32 0.0, %v8813
        %8815 = vmatprep.mubr.bf16.mxu0 %v8111
        %8816 = vmatmul.mubr.bf16.gmra.mxu0 %v8110
        %v8817 = vpop.f32.mrf.mxu0
        %v8818 = vadd.f32 0.0, %v8817
        %v8819 = vpop.f32.mrf.mxu0
        %v8820 = vadd.f32 0.0, %v8819
        %v8821 = vpop.f32.mrf.mxu0
        %v8822 = vadd.f32 0.0, %v8821
        %v8823 = vpop.f32.mrf.mxu0
        %v8824 = vadd.f32 0.0, %v8823
        %8825 = vmatprep.mubr.bf16.mxu0 %v8113
        %8826 = vmatmul.mubr.bf16.gmra.mxu0 %v8112
        %v8827 = vpop.f32.mrf.mxu0
        %v8828 = vadd.f32 0.0, %v8827
        %v8829 = vpop.f32.mrf.mxu0
        %v8830 = vadd.f32 0.0, %v8829
        %v8831 = vpop.f32.mrf.mxu0
        %v8832 = vadd.f32 0.0, %v8831
        %v8833 = vpop.f32.mrf.mxu0
        %v8834 = vadd.f32 0.0, %v8833
        %8835 = vdwg.mxu0
        %8836 = vmatprep.subr.bf16.mxu0 %v8545
        %8837 = vmatpush1.bf16.msra.mxu0 %v8544
        %8838 = vmatprep.subr.bf16.mxu0 %v8539
        %8839 = vmatpush1.bf16.msra.mxu0 %v8538
        %8840 = vmatprep.subr.bf16.mxu0 %v8533
        %8841 = vmatpush1.bf16.msra.mxu0 %v8532
        %8842 = vmatprep.subr.bf16.mxu0 %v8527
        %8843 = vmatpush1.bf16.msra.mxu0 %v8526
        %8844 = vmatprep.subr.bf16.mxu0 %v8521
        %8845 = vmatpush1.bf16.msra.mxu0 %v8520
        %8846 = vmatprep.subr.bf16.mxu0 %v8515
        %8847 = vmatpush1.bf16.msra.mxu0 %v8514
        %8848 = vmatprep.subr.bf16.mxu0 %v8509
        %8849 = vmatpush1.bf16.msra.mxu0 %v8508
        %8850 = vmatprep.subr.bf16.mxu0 %v8503
        %8851 = vmatpush1.bf16.msra.mxu0 %v8502
        %8852 = vmatprep.subr.bf16.mxu0 %v8593
        %8853 = vmatpush2.bf16.msra.mxu0 %v8592
        %8854 = vmatprep.subr.bf16.mxu0 %v8587
        %8855 = vmatpush2.bf16.msra.mxu0 %v8586
        %8856 = vmatprep.subr.bf16.mxu0 %v8581
        %8857 = vmatpush2.bf16.msra.mxu0 %v8580
        %8858 = vmatprep.subr.bf16.mxu0 %v8575
        %8859 = vmatpush2.bf16.msra.mxu0 %v8574
        %8860 = vmatprep.subr.bf16.mxu0 %v8569
        %8861 = vmatpush2.bf16.msra.mxu0 %v8568
        %8862 = vmatprep.subr.bf16.mxu0 %v8563
        %8863 = vmatpush2.bf16.msra.mxu0 %v8562
        %8864 = vmatprep.subr.bf16.mxu0 %v8557
        %8865 = vmatpush2.bf16.msra.mxu0 %v8556
        %8866 = vmatprep.subr.bf16.mxu0 %v8551
        %8867 = vmatpush2.bf16.msra.mxu0 %v8550
        %8868 = vmatprep.mubr.bf16.mxu0 %v8107
        %8869 = vmatmul.mubr.bf16.gmra.mxu0 %v8106
        %v8870 = vpop.f32.mrf.mxu0
        %v8871 = vadd.f32 0.0, %v8870
        %v8872 = vpop.f32.mrf.mxu0
        %v8873 = vadd.f32 0.0, %v8872
        %v8874 = vpop.f32.mrf.mxu0
        %v8875 = vadd.f32 0.0, %v8874
        %v8876 = vpop.f32.mrf.mxu0
        %v8877 = vadd.f32 0.0, %v8876
        %8878 = vmatprep.mubr.bf16.mxu0 %v8109
        %8879 = vmatmul.mubr.bf16.gmra.mxu0 %v8108
        %v8880 = vpop.f32.mrf.mxu0
        %v8881 = vadd.f32 0.0, %v8880
        %v8882 = vpop.f32.mrf.mxu0
        %v8883 = vadd.f32 0.0, %v8882
        %v8884 = vpop.f32.mrf.mxu0
        %v8885 = vadd.f32 0.0, %v8884
        %v8886 = vpop.f32.mrf.mxu0
        %v8887 = vadd.f32 0.0, %v8886
        %8888 = vmatprep.mubr.bf16.mxu0 %v8111
        %8889 = vmatmul.mubr.bf16.gmra.mxu0 %v8110
        %v8890 = vpop.f32.mrf.mxu0
        %v8891 = vadd.f32 0.0, %v8890
        %v8892 = vpop.f32.mrf.mxu0
        %v8893 = vadd.f32 0.0, %v8892
        %v8894 = vpop.f32.mrf.mxu0
        %v8895 = vadd.f32 0.0, %v8894
        %v8896 = vpop.f32.mrf.mxu0
        %v8897 = vadd.f32 0.0, %v8896
        %8898 = vmatprep.mubr.bf16.mxu0 %v8113
        %8899 = vmatmul.mubr.bf16.gmra.mxu0 %v8112
        %v8900 = vpop.f32.mrf.mxu0
        %v8901 = vadd.f32 0.0, %v8900
        %v8902 = vpop.f32.mrf.mxu0
        %v8903 = vadd.f32 0.0, %v8902
        %v8904 = vpop.f32.mrf.mxu0
        %v8905 = vadd.f32 0.0, %v8904
        %v8906 = vpop.f32.mrf.mxu0
        %v8907 = vadd.f32 0.0, %v8906
        %8908 = vdwg.mxu0
        %v8909 = vld [vmem:[#allocation19] sm:$0xff]
        %v8910 = vld [vmem:[#allocation19 + $0x8] sm:$0xff]
        %v8911 = vld [vmem:[#allocation19 + $0x10] sm:$0xff]
        %v8912 = vld [vmem:[#allocation19 + $0x18] sm:$0xff]
        %v8913 = vld [vmem:[#allocation19 + $0x20] sm:$0xff]
        %v8914 = vld [vmem:[#allocation19 + $0x28] sm:$0xff]
        %v8915 = vld [vmem:[#allocation19 + $0x30] sm:$0xff]
        %v8916 = vld [vmem:[#allocation19 + $0x38] sm:$0xff]
        %v8917 = vld [vmem:[#allocation19 + $0x40] sm:$0xff]
        %v8918 = vld [vmem:[#allocation19 + $0x48] sm:$0xff]
        %v8919 = vld [vmem:[#allocation19 + $0x50] sm:$0xff]
        %v8920 = vld [vmem:[#allocation19 + $0x58] sm:$0xff]
        %v8921 = vld [vmem:[#allocation19 + $0x60] sm:$0xff]
        %v8922 = vld [vmem:[#allocation19 + $0x68] sm:$0xff]
        %v8923 = vld [vmem:[#allocation19 + $0x70] sm:$0xff]
        %v8924 = vld [vmem:[#allocation19 + $0x78] sm:$0xff]
        %v8925 = vld [vmem:[#allocation20] sm:$0x3]
        %v8927 = vlaneseq
        %v8928 = vshrl.u32 %v8927, 7
        %v8929 = vsub.s32 0, %v8928
        %v8930 = vrot.slane %v8925, %v8929
        %v8931 = vlaneseq
        %v8932 = vshrl.u32 %v8931, 7
        %v8933 = vsub.s32 1, %v8932
        %v8934 = vrot.slane %v8925, %v8933
        %v8938 = vsel %vm7968, %v8910, 0
        %v8941 = vsel %vm7968, %v8912, 0
        %v8944 = vsel %vm7968, %v8914, 0
        %v8947 = vsel %vm7968, %v8916, 0
        %v8950 = vsel %vm7968, %v8918, 0
        %v8953 = vsel %vm7968, %v8920, 0
        %v8956 = vsel %vm7968, %v8922, 0
        %v8959 = vsel %vm7968, %v8924, 0
        %8961 = vmatprep.subr.mxu0 %v8834
        %8962 = vmatpush1.msra.mxu0 %v8832
        %8963 = vmatprep.subr.mxu0 %v8830
        %8964 = vmatpush1.msra.mxu0 %v8828
        %8965 = vmatprep.subr.mxu0 %v8824
        %8966 = vmatpush1.msra.mxu0 %v8822
        %8967 = vmatprep.subr.mxu0 %v8820
        %8968 = vmatpush1.msra.mxu0 %v8818
        %8969 = vmatprep.subr.mxu0 %v8814
        %8970 = vmatpush1.msra.mxu0 %v8812
        %8971 = vmatprep.subr.mxu0 %v8810
        %8972 = vmatpush1.msra.mxu0 %v8808
        %8973 = vmatprep.subr.mxu0 %v8804
        %8974 = vmatpush1.msra.mxu0 %v8802
        %8975 = vmatprep.subr.mxu0 %v8800
        %8976 = vmatpush1.msra.mxu0 %v8798
        %8977 = vmatprep.subr.mxu0 %v8761
        %8978 = vmatpush1.msra.mxu0 %v8759
        %8979 = vmatprep.subr.mxu0 %v8757
        %8980 = vmatpush1.msra.mxu0 %v8755
        %8981 = vmatprep.subr.mxu0 %v8751
        %8982 = vmatpush1.msra.mxu0 %v8749
        %8983 = vmatprep.subr.mxu0 %v8747
        %8984 = vmatpush1.msra.mxu0 %v8745
        %8985 = vmatprep.subr.mxu0 %v8741
        %8986 = vmatpush1.msra.mxu0 %v8739
        %8987 = vmatprep.subr.mxu0 %v8737
        %8988 = vmatpush1.msra.mxu0 %v8735
        %8989 = vmatprep.subr.mxu0 %v8731
        %8990 = vmatpush1.msra.mxu0 %v8729
        %8991 = vmatprep.subr.mxu0 %v8727
        %8992 = vmatpush1.msra.mxu0 %v8725
        %8993 = vmatprep.subr.mxu0 0.0
        %8994 = vmatpush2.msra.mxu0 0.0
        %8995 = vmatprep.subr.mxu0 0.0
        %8996 = vmatpush2.msra.mxu0 0.0
        %8997 = vmatprep.subr.mxu0 0.0
        %8998 = vmatpush2.msra.mxu0 0.0
        %8999 = vmatprep.subr.mxu0 0.0
        %9000 = vmatpush2.msra.mxu0 0.0
        %9001 = vmatprep.subr.mxu0 0.0
        %9002 = vmatpush2.msra.mxu0 0.0
        %9003 = vmatprep.subr.mxu0 0.0
        %9004 = vmatpush2.msra.mxu0 0.0
        %9005 = vmatprep.subr.mxu0 0.0
        %9006 = vmatpush2.msra.mxu0 0.0
        %9007 = vmatprep.subr.mxu0 0.0
        %9008 = vmatpush2.msra.mxu0 0.0
        %9009 = vmatprep.subr.mxu0 %v8907
        %9010 = vmatpush2.msra.mxu0 %v8905
        %9011 = vmatprep.subr.mxu0 %v8903
        %9012 = vmatpush2.msra.mxu0 %v8901
        %9013 = vmatprep.subr.mxu0 %v8897
        %9014 = vmatpush2.msra.mxu0 %v8895
        %9015 = vmatprep.subr.mxu0 %v8893
        %9016 = vmatpush2.msra.mxu0 %v8891
        %9017 = vmatprep.subr.mxu0 %v8887
        %9018 = vmatpush2.msra.mxu0 %v8885
        %9019 = vmatprep.subr.mxu0 %v8883
        %9020 = vmatpush2.msra.mxu0 %v8881
        %9021 = vmatprep.subr.mxu0 %v8877
        %9022 = vmatpush2.msra.mxu0 %v8875
        %9023 = vmatprep.subr.mxu0 %v8873
        %9024 = vmatpush2.msra.mxu0 %v8871
        %9025 = vmatprep.mubr.f32.mxu0 %v8938
        %9026 = vmatmul.mubr.f32.gmra.mxu0 %v8909
        %v9027 = vpop.f32.mrf.mxu0
        %v9028 = vadd.f32 %v8930, %v9027
        %v9029 = vpop.f32.mrf.mxu0
        %v9030 = vadd.f32 %v8934, %v9029
        %9031 = vmatprep.mubr.f32.mxu0 %v8941
        %9032 = vmatmul.mubr.f32.gmra.mxu0 %v8911
        %v9033 = vpop.f32.mrf.mxu0
        %v9034 = vadd.f32 %v8930, %v9033
        %v9035 = vpop.f32.mrf.mxu0
        %v9036 = vadd.f32 %v8934, %v9035
        %9037 = vmatprep.mubr.f32.mxu0 %v8944
        %9038 = vmatmul.mubr.f32.gmra.mxu0 %v8913
        %v9039 = vpop.f32.mrf.mxu0
        %v9040 = vadd.f32 %v8930, %v9039
        %v9041 = vpop.f32.mrf.mxu0
        %v9042 = vadd.f32 %v8934, %v9041
        %9043 = vmatprep.mubr.f32.mxu0 %v8947
        %9044 = vmatmul.mubr.f32.gmra.mxu0 %v8915
        %v9045 = vpop.f32.mrf.mxu0
        %v9046 = vadd.f32 %v8930, %v9045
        %v9047 = vpop.f32.mrf.mxu0
        %v9048 = vadd.f32 %v8934, %v9047
        %9049 = vmatprep.mubr.f32.mxu0 %v8950
        %9050 = vmatmul.mubr.f32.gmra.mxu0 %v8917
        %v9051 = vpop.f32.mrf.mxu0
        %v9052 = vadd.f32 %v8930, %v9051
        %v9053 = vpop.f32.mrf.mxu0
        %v9054 = vadd.f32 %v8934, %v9053
        %9055 = vmatprep.mubr.f32.mxu0 %v8953
        %9056 = vmatmul.mubr.f32.gmra.mxu0 %v8919
        %v9057 = vpop.f32.mrf.mxu0
        %v9058 = vadd.f32 %v8930, %v9057
        %v9059 = vpop.f32.mrf.mxu0
        %v9060 = vadd.f32 %v8934, %v9059
        %9061 = vmatprep.mubr.f32.mxu0 %v8956
        %9062 = vmatmul.mubr.f32.gmra.mxu0 %v8921
        %v9063 = vpop.f32.mrf.mxu0
        %v9064 = vadd.f32 %v8930, %v9063
        %v9065 = vpop.f32.mrf.mxu0
        %v9066 = vadd.f32 %v8934, %v9065
        %9067 = vmatprep.mubr.f32.mxu0 %v8959
        %9068 = vmatmul.mubr.f32.gmra.mxu0 %v8923
        %v9069 = vpop.f32.mrf.mxu0
        %v9070 = vadd.f32 %v8930, %v9069
        %v9071 = vpop.f32.mrf.mxu0
        %v9072 = vadd.f32 %v8934, %v9071
        %9073 = vdwg.mxu0
        %v9074 = vpack.c.bf16 %v9034, %v9028
        %v9075 = vpack.c.bf16 %v9036, %v9030
        %v9076 = vpack.c.bf16 %v9046, %v9040
        %v9077 = vpack.c.bf16 %v9048, %v9042
        %v9078 = vpack.c.bf16 %v9058, %v9052
        %v9079 = vpack.c.bf16 %v9060, %v9054
        %v9080 = vpack.c.bf16 %v9070, %v9064
        %v9081 = vpack.c.bf16 %v9072, %v9066
        %v9082 = vld [vmem:[%s13] sm:$0xf]
        %v9083 = vld [vmem:[%s13 + $0x4] sm:$0xf]
        %v9084 = vld [vmem:[%s13 + $0x8] sm:$0xf]
        %v9085 = vld [vmem:[%s13 + $0xc] sm:$0xf]
        %v9086 = vld [vmem:[%s13 + $0x10] sm:$0xf]
        %v9087 = vld [vmem:[%s13 + $0x14] sm:$0xf]
        %v9088 = vld [vmem:[%s13 + $0x18] sm:$0xf]
        %v9089 = vld [vmem:[%s13 + $0x1c] sm:$0xf]
        %v9098 = vunpack.c.l.b16 %v9082
        %v9099 = vunpack.c.l.b16 %v9083
        %v9100 = vunpack.c.l.b16 %v9084
        %v9101 = vunpack.c.l.b16 %v9085
        %v9102 = vunpack.c.l.b16 %v9086
        %v9103 = vunpack.c.l.b16 %v9087
        %v9104 = vunpack.c.l.b16 %v9088
        %v9105 = vunpack.c.l.b16 %v9089
        %v9106 = vpack.c.b16 %v9099, %v9098
        %v9107 = vpack.c.b16 %v9101, %v9100
        %v9108 = vpack.c.b16 %v9103, %v9102
        %v9109 = vpack.c.b16 %v9105, %v9104
        %v9111 = vsel %vm7968, %v9106, 0
        %v9114 = vsel %vm7968, %v9107, 0
        %v9117 = vsel %vm7968, %v9108, 0
        %v9120 = vsel %vm7968, %v9109, 0
        %9122 = vmatprep.subr.bf16.mxu0 0
        %9123 = vmatpush1.bf16.msra.mxu0 0
        %9124 = vmatprep.subr.bf16.mxu0 0
        %9125 = vmatpush1.bf16.msra.mxu0 0
        %9126 = vmatprep.subr.bf16.mxu0 0
        %9127 = vmatpush1.bf16.msra.mxu0 0
        %9128 = vmatprep.subr.bf16.mxu0 0
        %9129 = vmatpush1.bf16.msra.mxu0 0
        %9130 = vmatprep.subr.bf16.mxu0 %v9081
        %9131 = vmatpush1.bf16.msra.mxu0 %v9080
        %9132 = vmatprep.subr.bf16.mxu0 %v9079
        %9133 = vmatpush1.bf16.msra.mxu0 %v9078
        %9134 = vmatprep.subr.bf16.mxu0 %v9077
        %9135 = vmatpush1.bf16.msra.mxu0 %v9076
        %9136 = vmatprep.subr.bf16.mxu0 %v9075
        %9137 = vmatpush1.bf16.msra.mxu0 %v9074
        %9138 = vmatprep.subr.bf16.mxu0 0
        %9139 = vmatpush2.bf16.msra.mxu0 0
        %9140 = vmatprep.subr.bf16.mxu0 0
        %9141 = vmatpush2.bf16.msra.mxu0 0
        %9142 = vmatprep.subr.bf16.mxu0 0
        %9143 = vmatpush2.bf16.msra.mxu0 0
        %9144 = vmatprep.subr.bf16.mxu0 0
        %9145 = vmatpush2.bf16.msra.mxu0 0
        %9146 = vmatprep.subr.bf16.mxu0 0
        %9147 = vmatpush2.bf16.msra.mxu0 0
        %9148 = vmatprep.subr.bf16.mxu0 0
        %9149 = vmatpush2.bf16.msra.mxu0 0
        %9150 = vmatprep.subr.bf16.mxu0 0
        %9151 = vmatpush2.bf16.msra.mxu0 0
        %9152 = vmatprep.subr.bf16.mxu0 0
        %9153 = vmatpush2.bf16.msra.mxu0 0
        %9154 = vmatprep.mubr.bf16.mxu0 0
        %9155 = vmatmul.mubr.bf16.gmra.mxu0 %v9111
        %v9156 = vpop.f32.mrf.mxu0
        %v9157 = vadd.f32 0.0, %v9156
        %v9158 = vpop.f32.mrf.mxu0
        %v9159 = vadd.f32 0.0, %v9158
        %v9160 = vpop.f32.mrf.mxu0
        %v9161 = vadd.f32 0.0, %v9160
        %v9162 = vpop.f32.mrf.mxu0
        %v9163 = vadd.f32 0.0, %v9162
        %9164 = vmatprep.mubr.bf16.mxu0 0
        %9165 = vmatmul.mubr.bf16.gmra.mxu0 %v9114
        %v9166 = vpop.f32.mrf.mxu0
        %v9167 = vadd.f32 0.0, %v9166
        %v9168 = vpop.f32.mrf.mxu0
        %v9169 = vadd.f32 0.0, %v9168
        %v9170 = vpop.f32.mrf.mxu0
        %v9171 = vadd.f32 0.0, %v9170
        %v9172 = vpop.f32.mrf.mxu0
        %v9173 = vadd.f32 0.0, %v9172
        %9174 = vmatprep.mubr.bf16.mxu0 0
        %9175 = vmatmul.mubr.bf16.gmra.mxu0 %v9117
        %v9176 = vpop.f32.mrf.mxu0
        %v9177 = vadd.f32 0.0, %v9176
        %v9178 = vpop.f32.mrf.mxu0
        %v9179 = vadd.f32 0.0, %v9178
        %v9180 = vpop.f32.mrf.mxu0
        %v9181 = vadd.f32 0.0, %v9180
        %v9182 = vpop.f32.mrf.mxu0
        %v9183 = vadd.f32 0.0, %v9182
        %9184 = vmatprep.mubr.bf16.mxu0 0
        %9185 = vmatmul.mubr.bf16.gmra.mxu0 %v9120
        %v9186 = vpop.f32.mrf.mxu0
        %v9187 = vadd.f32 0.0, %v9186
        %v9188 = vpop.f32.mrf.mxu0
        %v9189 = vadd.f32 0.0, %v9188
        %v9190 = vpop.f32.mrf.mxu0
        %v9191 = vadd.f32 0.0, %v9190
        %v9192 = vpop.f32.mrf.mxu0
        %v9193 = vadd.f32 0.0, %v9192
        %9194 = vdwg.mxu0
        %9195 = vst [vmem:[%s633] sm:$0xff] %v9157
        %9196 = vst [vmem:[%s633 + $0x8] sm:$0xff] %v9159
        %9197 = vst [vmem:[%s633 + $0x10] sm:$0xff] %v9161
        %9198 = vst [vmem:[%s633 + $0x18] sm:$0xff] %v9163
        %9199 = vst [vmem:[%s633 + $0x20] sm:$0xff] %v9167
        %9200 = vst [vmem:[%s633 + $0x28] sm:$0xff] %v9169
        %9201 = vst [vmem:[%s633 + $0x30] sm:$0xff] %v9171
        %9202 = vst [vmem:[%s633 + $0x38] sm:$0xff] %v9173
        %9203 = vst [vmem:[%s633 + $0x40] sm:$0xff] %v9177
        %9204 = vst [vmem:[%s633 + $0x48] sm:$0xff] %v9179
        %9205 = vst [vmem:[%s633 + $0x50] sm:$0xff] %v9181
        %9206 = vst [vmem:[%s633 + $0x58] sm:$0xff] %v9183
        %9207 = vst [vmem:[%s633 + $0x60] sm:$0xff] %v9187
        %9208 = vst [vmem:[%s633 + $0x68] sm:$0xff] %v9189
        %9209 = vst [vmem:[%s633 + $0x70] sm:$0xff] %v9191
        %9210 = vst [vmem:[%s633 + $0x78] sm:$0xff] %v9193
        %v9211 = vld [vmem:[%s13 + $0x20] sm:$0xf]
        %v9212 = vld [vmem:[%s13 + $0x24] sm:$0xf]
        %v9213 = vld [vmem:[%s13 + $0x28] sm:$0xf]
        %v9214 = vld [vmem:[%s13 + $0x2c] sm:$0xf]
        %v9215 = vld [vmem:[%s13 + $0x30] sm:$0xf]
        %v9216 = vld [vmem:[%s13 + $0x34] sm:$0xf]
        %v9217 = vld [vmem:[%s13 + $0x38] sm:$0xf]
        %v9218 = vld [vmem:[%s13 + $0x3c] sm:$0xf]
        %v9227 = vunpack.c.l.b16 %v9211
        %v9228 = vunpack.c.l.b16 %v9212
        %v9229 = vunpack.c.l.b16 %v9213
        %v9230 = vunpack.c.l.b16 %v9214
        %v9231 = vunpack.c.l.b16 %v9215
        %v9232 = vunpack.c.l.b16 %v9216
        %v9233 = vunpack.c.l.b16 %v9217
        %v9234 = vunpack.c.l.b16 %v9218
        %v9235 = vpack.c.b16 %v9228, %v9227
        %v9236 = vpack.c.b16 %v9230, %v9229
        %v9237 = vpack.c.b16 %v9232, %v9231
        %v9238 = vpack.c.b16 %v9234, %v9233
        %v9240 = vsel %vm7968, %v9235, 0
        %v9243 = vsel %vm7968, %v9236, 0
        %v9246 = vsel %vm7968, %v9237, 0
        %v9249 = vsel %vm7968, %v9238, 0
        %9251 = vmatprep.subr.bf16.mxu0 0
        %9252 = vmatpush1.bf16.msra.mxu0 0
        %9253 = vmatprep.subr.bf16.mxu0 0
        %9254 = vmatpush1.bf16.msra.mxu0 0
        %9255 = vmatprep.subr.bf16.mxu0 0
        %9256 = vmatpush1.bf16.msra.mxu0 0
        %9257 = vmatprep.subr.bf16.mxu0 0
        %9258 = vmatpush1.bf16.msra.mxu0 0
        %9259 = vmatprep.subr.bf16.mxu0 %v9081
        %9260 = vmatpush1.bf16.msra.mxu0 %v9080
        %9261 = vmatprep.subr.bf16.mxu0 %v9079
        %9262 = vmatpush1.bf16.msra.mxu0 %v9078
        %9263 = vmatprep.subr.bf16.mxu0 %v9077
        %9264 = vmatpush1.bf16.msra.mxu0 %v9076
        %9265 = vmatprep.subr.bf16.mxu0 %v9075
        %9266 = vmatpush1.bf16.msra.mxu0 %v9074
        %9267 = vmatprep.subr.bf16.mxu0 0
        %9268 = vmatpush2.bf16.msra.mxu0 0
        %9269 = vmatprep.subr.bf16.mxu0 0
        %9270 = vmatpush2.bf16.msra.mxu0 0
        %9271 = vmatprep.subr.bf16.mxu0 0
        %9272 = vmatpush2.bf16.msra.mxu0 0
        %9273 = vmatprep.subr.bf16.mxu0 0
        %9274 = vmatpush2.bf16.msra.mxu0 0
        %9275 = vmatprep.subr.bf16.mxu0 0
        %9276 = vmatpush2.bf16.msra.mxu0 0
        %9277 = vmatprep.subr.bf16.mxu0 0
        %9278 = vmatpush2.bf16.msra.mxu0 0
        %9279 = vmatprep.subr.bf16.mxu0 0
        %9280 = vmatpush2.bf16.msra.mxu0 0
        %9281 = vmatprep.subr.bf16.mxu0 0
        %9282 = vmatpush2.bf16.msra.mxu0 0
        %9283 = vmatprep.mubr.bf16.mxu0 0
        %9284 = vmatmul.mubr.bf16.gmra.mxu0 %v9240
        %v9285 = vpop.f32.mrf.mxu0
        %v9286 = vadd.f32 0.0, %v9285
        %v9287 = vpop.f32.mrf.mxu0
        %v9288 = vadd.f32 0.0, %v9287
        %v9289 = vpop.f32.mrf.mxu0
        %v9290 = vadd.f32 0.0, %v9289
        %v9291 = vpop.f32.mrf.mxu0
        %v9292 = vadd.f32 0.0, %v9291
        %9293 = vmatprep.mubr.bf16.mxu0 0
        %9294 = vmatmul.mubr.bf16.gmra.mxu0 %v9243
        %v9295 = vpop.f32.mrf.mxu0
        %v9296 = vadd.f32 0.0, %v9295
        %v9297 = vpop.f32.mrf.mxu0
        %v9298 = vadd.f32 0.0, %v9297
        %v9299 = vpop.f32.mrf.mxu0
        %v9300 = vadd.f32 0.0, %v9299
        %v9301 = vpop.f32.mrf.mxu0
        %v9302 = vadd.f32 0.0, %v9301
        %9303 = vmatprep.mubr.bf16.mxu0 0
        %9304 = vmatmul.mubr.bf16.gmra.mxu0 %v9246
        %v9305 = vpop.f32.mrf.mxu0
        %v9306 = vadd.f32 0.0, %v9305
        %v9307 = vpop.f32.mrf.mxu0
        %v9308 = vadd.f32 0.0, %v9307
        %v9309 = vpop.f32.mrf.mxu0
        %v9310 = vadd.f32 0.0, %v9309
        %v9311 = vpop.f32.mrf.mxu0
        %v9312 = vadd.f32 0.0, %v9311
        %9313 = vmatprep.mubr.bf16.mxu0 0
        %9314 = vmatmul.mubr.bf16.gmra.mxu0 %v9249
        %v9315 = vpop.f32.mrf.mxu0
        %v9316 = vadd.f32 0.0, %v9315
        %v9317 = vpop.f32.mrf.mxu0
        %v9318 = vadd.f32 0.0, %v9317
        %v9319 = vpop.f32.mrf.mxu0
        %v9320 = vadd.f32 0.0, %v9319
        %v9321 = vpop.f32.mrf.mxu0
        %v9322 = vadd.f32 0.0, %v9321
        %9323 = vdwg.mxu0
        %9324 = vst [vmem:[%s633 + $0x80] sm:$0xff] %v9286
        %9325 = vst [vmem:[%s633 + $0x88] sm:$0xff] %v9288
        %9326 = vst [vmem:[%s633 + $0x90] sm:$0xff] %v9290
        %9327 = vst [vmem:[%s633 + $0x98] sm:$0xff] %v9292
        %9328 = vst [vmem:[%s633 + $0xa0] sm:$0xff] %v9296
        %9329 = vst [vmem:[%s633 + $0xa8] sm:$0xff] %v9298
        %9330 = vst [vmem:[%s633 + $0xb0] sm:$0xff] %v9300
        %9331 = vst [vmem:[%s633 + $0xb8] sm:$0xff] %v9302
        %9332 = vst [vmem:[%s633 + $0xc0] sm:$0xff] %v9306
        %9333 = vst [vmem:[%s633 + $0xc8] sm:$0xff] %v9308
        %9334 = vst [vmem:[%s633 + $0xd0] sm:$0xff] %v9310
        %9335 = vst [vmem:[%s633 + $0xd8] sm:$0xff] %v9312
        %9336 = vst [vmem:[%s633 + $0xe0] sm:$0xff] %v9316
        %9337 = vst [vmem:[%s633 + $0xe8] sm:$0xff] %v9318
        %9338 = vst [vmem:[%s633 + $0xf0] sm:$0xff] %v9320
        %9339 = vst [vmem:[%s633 + $0xf8] sm:$0xff] %v9322
        %v9340 = vld [vmem:[%s13 + $0x40] sm:$0xf]
        %v9341 = vld [vmem:[%s13 + $0x44] sm:$0xf]
        %v9342 = vld [vmem:[%s13 + $0x48] sm:$0xf]
        %v9343 = vld [vmem:[%s13 + $0x4c] sm:$0xf]
        %v9344 = vld [vmem:[%s13 + $0x50] sm:$0xf]
        %v9345 = vld [vmem:[%s13 + $0x54] sm:$0xf]
        %v9346 = vld [vmem:[%s13 + $0x58] sm:$0xf]
        %v9347 = vld [vmem:[%s13 + $0x5c] sm:$0xf]
        %v9356 = vunpack.c.l.b16 %v9340
        %v9357 = vunpack.c.l.b16 %v9341
        %v9358 = vunpack.c.l.b16 %v9342
        %v9359 = vunpack.c.l.b16 %v9343
        %v9360 = vunpack.c.l.b16 %v9344
        %v9361 = vunpack.c.l.b16 %v9345
        %v9362 = vunpack.c.l.b16 %v9346
        %v9363 = vunpack.c.l.b16 %v9347
        %v9364 = vpack.c.b16 %v9357, %v9356
        %v9365 = vpack.c.b16 %v9359, %v9358
        %v9366 = vpack.c.b16 %v9361, %v9360
        %v9367 = vpack.c.b16 %v9363, %v9362
        %v9369 = vsel %vm7968, %v9364, 0
        %v9372 = vsel %vm7968, %v9365, 0
        %v9375 = vsel %vm7968, %v9366, 0
        %v9378 = vsel %vm7968, %v9367, 0
        %9380 = vmatprep.subr.bf16.mxu0 0
        %9381 = vmatpush1.bf16.msra.mxu0 0
        %9382 = vmatprep.subr.bf16.mxu0 0
        %9383 = vmatpush1.bf16.msra.mxu0 0
        %9384 = vmatprep.subr.bf16.mxu0 0
        %9385 = vmatpush1.bf16.msra.mxu0 0
        %9386 = vmatprep.subr.bf16.mxu0 0
        %9387 = vmatpush1.bf16.msra.mxu0 0
        %9388 = vmatprep.subr.bf16.mxu0 %v9081
        %9389 = vmatpush1.bf16.msra.mxu0 %v9080
        %9390 = vmatprep.subr.bf16.mxu0 %v9079
        %9391 = vmatpush1.bf16.msra.mxu0 %v9078
        %9392 = vmatprep.subr.bf16.mxu0 %v9077
        %9393 = vmatpush1.bf16.msra.mxu0 %v9076
        %9394 = vmatprep.subr.bf16.mxu0 %v9075
        %9395 = vmatpush1.bf16.msra.mxu0 %v9074
        %9396 = vmatprep.subr.bf16.mxu0 0
        %9397 = vmatpush2.bf16.msra.mxu0 0
        %9398 = vmatprep.subr.bf16.mxu0 0
        %9399 = vmatpush2.bf16.msra.mxu0 0
        %9400 = vmatprep.subr.bf16.mxu0 0
        %9401 = vmatpush2.bf16.msra.mxu0 0
        %9402 = vmatprep.subr.bf16.mxu0 0
        %9403 = vmatpush2.bf16.msra.mxu0 0
        %9404 = vmatprep.subr.bf16.mxu0 0
        %9405 = vmatpush2.bf16.msra.mxu0 0
        %9406 = vmatprep.subr.bf16.mxu0 0
        %9407 = vmatpush2.bf16.msra.mxu0 0
        %9408 = vmatprep.subr.bf16.mxu0 0
        %9409 = vmatpush2.bf16.msra.mxu0 0
        %9410 = vmatprep.subr.bf16.mxu0 0
        %9411 = vmatpush2.bf16.msra.mxu0 0
        %9412 = vmatprep.mubr.bf16.mxu0 0
        %9413 = vmatmul.mubr.bf16.gmra.mxu0 %v9369
        %v9414 = vpop.f32.mrf.mxu0
        %v9415 = vadd.f32 0.0, %v9414
        %v9416 = vpop.f32.mrf.mxu0
        %v9417 = vadd.f32 0.0, %v9416
        %v9418 = vpop.f32.mrf.mxu0
        %v9419 = vadd.f32 0.0, %v9418
        %v9420 = vpop.f32.mrf.mxu0
        %v9421 = vadd.f32 0.0, %v9420
        %9422 = vmatprep.mubr.bf16.mxu0 0
        %9423 = vmatmul.mubr.bf16.gmra.mxu0 %v9372
        %v9424 = vpop.f32.mrf.mxu0
        %v9425 = vadd.f32 0.0, %v9424
        %v9426 = vpop.f32.mrf.mxu0
        %v9427 = vadd.f32 0.0, %v9426
        %v9428 = vpop.f32.mrf.mxu0
        %v9429 = vadd.f32 0.0, %v9428
        %v9430 = vpop.f32.mrf.mxu0
        %v9431 = vadd.f32 0.0, %v9430
        %9432 = vmatprep.mubr.bf16.mxu0 0
        %9433 = vmatmul.mubr.bf16.gmra.mxu0 %v9375
        %v9434 = vpop.f32.mrf.mxu0
        %v9435 = vadd.f32 0.0, %v9434
        %v9436 = vpop.f32.mrf.mxu0
        %v9437 = vadd.f32 0.0, %v9436
        %v9438 = vpop.f32.mrf.mxu0
        %v9439 = vadd.f32 0.0, %v9438
        %v9440 = vpop.f32.mrf.mxu0
        %v9441 = vadd.f32 0.0, %v9440
        %9442 = vmatprep.mubr.bf16.mxu0 0
        %9443 = vmatmul.mubr.bf16.gmra.mxu0 %v9378
        %v9444 = vpop.f32.mrf.mxu0
        %v9445 = vadd.f32 0.0, %v9444
        %v9446 = vpop.f32.mrf.mxu0
        %v9447 = vadd.f32 0.0, %v9446
        %v9448 = vpop.f32.mrf.mxu0
        %v9449 = vadd.f32 0.0, %v9448
        %v9450 = vpop.f32.mrf.mxu0
        %v9451 = vadd.f32 0.0, %v9450
        %9452 = vdwg.mxu0
        %9453 = vst [vmem:[%s633 + $0x100] sm:$0xff] %v9415
        %9454 = vst [vmem:[%s633 + $0x108] sm:$0xff] %v9417
        %9455 = vst [vmem:[%s633 + $0x110] sm:$0xff] %v9419
        %9456 = vst [vmem:[%s633 + $0x118] sm:$0xff] %v9421
        %9457 = vst [vmem:[%s633 + $0x120] sm:$0xff] %v9425
        %9458 = vst [vmem:[%s633 + $0x128] sm:$0xff] %v9427
        %9459 = vst [vmem:[%s633 + $0x130] sm:$0xff] %v9429
        %9460 = vst [vmem:[%s633 + $0x138] sm:$0xff] %v9431
        %9461 = vst [vmem:[%s633 + $0x140] sm:$0xff] %v9435
        %9462 = vst [vmem:[%s633 + $0x148] sm:$0xff] %v9437
        %9463 = vst [vmem:[%s633 + $0x150] sm:$0xff] %v9439
        %9464 = vst [vmem:[%s633 + $0x158] sm:$0xff] %v9441
        %9465 = vst [vmem:[%s633 + $0x160] sm:$0xff] %v9445
        %9466 = vst [vmem:[%s633 + $0x168] sm:$0xff] %v9447
        %9467 = vst [vmem:[%s633 + $0x170] sm:$0xff] %v9449
        %9468 = vst [vmem:[%s633 + $0x178] sm:$0xff] %v9451
        %v9469 = vld [vmem:[%s13 + $0x60] sm:$0xf]
        %v9470 = vld [vmem:[%s13 + $0x64] sm:$0xf]
        %v9471 = vld [vmem:[%s13 + $0x68] sm:$0xf]
        %v9472 = vld [vmem:[%s13 + $0x6c] sm:$0xf]
        %v9473 = vld [vmem:[%s13 + $0x70] sm:$0xf]
        %v9474 = vld [vmem:[%s13 + $0x74] sm:$0xf]
        %v9475 = vld [vmem:[%s13 + $0x78] sm:$0xf]
        %v9476 = vld [vmem:[%s13 + $0x7c] sm:$0xf]
        %v9485 = vunpack.c.l.b16 %v9469
        %v9486 = vunpack.c.l.b16 %v9470
        %v9487 = vunpack.c.l.b16 %v9471
        %v9488 = vunpack.c.l.b16 %v9472
        %v9489 = vunpack.c.l.b16 %v9473
        %v9490 = vunpack.c.l.b16 %v9474
        %v9491 = vunpack.c.l.b16 %v9475
        %v9492 = vunpack.c.l.b16 %v9476
        %v9493 = vpack.c.b16 %v9486, %v9485
        %v9494 = vpack.c.b16 %v9488, %v9487
        %v9495 = vpack.c.b16 %v9490, %v9489
        %v9496 = vpack.c.b16 %v9492, %v9491
        %v9498 = vsel %vm7968, %v9493, 0
        %v9501 = vsel %vm7968, %v9494, 0
        %v9504 = vsel %vm7968, %v9495, 0
        %v9507 = vsel %vm7968, %v9496, 0
        %9509 = vmatprep.subr.bf16.mxu0 0
        %9510 = vmatpush1.bf16.msra.mxu0 0
        %9511 = vmatprep.subr.bf16.mxu0 0
        %9512 = vmatpush1.bf16.msra.mxu0 0
        %9513 = vmatprep.subr.bf16.mxu0 0
        %9514 = vmatpush1.bf16.msra.mxu0 0
        %9515 = vmatprep.subr.bf16.mxu0 0
        %9516 = vmatpush1.bf16.msra.mxu0 0
        %9517 = vmatprep.subr.bf16.mxu0 %v9081
        %9518 = vmatpush1.bf16.msra.mxu0 %v9080
        %9519 = vmatprep.subr.bf16.mxu0 %v9079
        %9520 = vmatpush1.bf16.msra.mxu0 %v9078
        %9521 = vmatprep.subr.bf16.mxu0 %v9077
        %9522 = vmatpush1.bf16.msra.mxu0 %v9076
        %9523 = vmatprep.subr.bf16.mxu0 %v9075
        %9524 = vmatpush1.bf16.msra.mxu0 %v9074
        %9525 = vmatprep.subr.bf16.mxu0 0
        %9526 = vmatpush2.bf16.msra.mxu0 0
        %9527 = vmatprep.subr.bf16.mxu0 0
        %9528 = vmatpush2.bf16.msra.mxu0 0
        %9529 = vmatprep.subr.bf16.mxu0 0
        %9530 = vmatpush2.bf16.msra.mxu0 0
        %9531 = vmatprep.subr.bf16.mxu0 0
        %9532 = vmatpush2.bf16.msra.mxu0 0
        %9533 = vmatprep.subr.bf16.mxu0 0
        %9534 = vmatpush2.bf16.msra.mxu0 0
        %9535 = vmatprep.subr.bf16.mxu0 0
        %9536 = vmatpush2.bf16.msra.mxu0 0
        %9537 = vmatprep.subr.bf16.mxu0 0
        %9538 = vmatpush2.bf16.msra.mxu0 0
        %9539 = vmatprep.subr.bf16.mxu0 0
        %9540 = vmatpush2.bf16.msra.mxu0 0
        %9541 = vmatprep.mubr.bf16.mxu0 0
        %9542 = vmatmul.mubr.bf16.gmra.mxu0 %v9498
        %v9543 = vpop.f32.mrf.mxu0
        %v9544 = vadd.f32 0.0, %v9543
        %v9545 = vpop.f32.mrf.mxu0
        %v9546 = vadd.f32 0.0, %v9545
        %v9547 = vpop.f32.mrf.mxu0
        %v9548 = vadd.f32 0.0, %v9547
        %v9549 = vpop.f32.mrf.mxu0
        %v9550 = vadd.f32 0.0, %v9549
        %9551 = vmatprep.mubr.bf16.mxu0 0
        %9552 = vmatmul.mubr.bf16.gmra.mxu0 %v9501
        %v9553 = vpop.f32.mrf.mxu0
        %v9554 = vadd.f32 0.0, %v9553
        %v9555 = vpop.f32.mrf.mxu0
        %v9556 = vadd.f32 0.0, %v9555
        %v9557 = vpop.f32.mrf.mxu0
        %v9558 = vadd.f32 0.0, %v9557
        %v9559 = vpop.f32.mrf.mxu0
        %v9560 = vadd.f32 0.0, %v9559
        %9561 = vmatprep.mubr.bf16.mxu0 0
        %9562 = vmatmul.mubr.bf16.gmra.mxu0 %v9504
        %v9563 = vpop.f32.mrf.mxu0
        %v9564 = vadd.f32 0.0, %v9563
        %v9565 = vpop.f32.mrf.mxu0
        %v9566 = vadd.f32 0.0, %v9565
        %v9567 = vpop.f32.mrf.mxu0
        %v9568 = vadd.f32 0.0, %v9567
        %v9569 = vpop.f32.mrf.mxu0
        %v9570 = vadd.f32 0.0, %v9569
        %9571 = vmatprep.mubr.bf16.mxu0 0
        %9572 = vmatmul.mubr.bf16.gmra.mxu0 %v9507
        %v9573 = vpop.f32.mrf.mxu0
        %v9574 = vadd.f32 0.0, %v9573
        %v9575 = vpop.f32.mrf.mxu0
        %v9576 = vadd.f32 0.0, %v9575
        %v9577 = vpop.f32.mrf.mxu0
        %v9578 = vadd.f32 0.0, %v9577
        %v9579 = vpop.f32.mrf.mxu0
        %v9580 = vadd.f32 0.0, %v9579
        %9581 = vdwg.mxu0
        %9582 = vst [vmem:[%s633 + $0x180] sm:$0xff] %v9544
        %9583 = vst [vmem:[%s633 + $0x188] sm:$0xff] %v9546
        %9584 = vst [vmem:[%s633 + $0x190] sm:$0xff] %v9548
        %9585 = vst [vmem:[%s633 + $0x198] sm:$0xff] %v9550
        %9586 = vst [vmem:[%s633 + $0x1a0] sm:$0xff] %v9554
        %9587 = vst [vmem:[%s633 + $0x1a8] sm:$0xff] %v9556
        %9588 = vst [vmem:[%s633 + $0x1b0] sm:$0xff] %v9558
        %9589 = vst [vmem:[%s633 + $0x1b8] sm:$0xff] %v9560
        %9590 = vst [vmem:[%s633 + $0x1c0] sm:$0xff] %v9564
        %9591 = vst [vmem:[%s633 + $0x1c8] sm:$0xff] %v9566
        %9592 = vst [vmem:[%s633 + $0x1d0] sm:$0xff] %v9568
        %9593 = vst [vmem:[%s633 + $0x1d8] sm:$0xff] %v9570
        %9594 = vst [vmem:[%s633 + $0x1e0] sm:$0xff] %v9574
        %9595 = vst [vmem:[%s633 + $0x1e8] sm:$0xff] %v9576
        %9596 = vst [vmem:[%s633 + $0x1f0] sm:$0xff] %v9578
        %9597 = vst [vmem:[%s633 + $0x1f8] sm:$0xff] %v9580
        %s9598 = sand.u32 %s342, 1
        %s9599 = scalar_lea.sflag [#allocation4], %s9598
        %s9600 = sand.u32 %s342, 1
        %s9601 = smul.addr %s9600, 512
        %s9602 = scalar_lea.vmem [#allocation22], %s9601
        // Predicated region
        $region125: #{swin_upsample_forward.1} parent=75 // pred_check
          %p9603 = pneg %p352
        $region126: #{swin_upsample_forward.1} parent=75 // pred_check_branch
          %9605 = sbr.rel (%p9603) target = $region128
        $region127: #{swin_upsample_forward.1} parent=75 // pred_region
          %s9607 = ssub.s32 8192, 8192
          %9608 = vsyncadd %s9599, %s9607
          %s9609 = smul.addr %s35, 64
          %s9610 = smul.addr %s9609, 128
          %s9611 = scalar_lea.hbm %s14, %s9610
          %s9612 = sshll.u32 %s9602, 4
          %s9613 = int_to_ptr.vmem [resolvable:$true] %s9612
          %9618 = dma.vmem_to_hbm [thread:$0]  %s9613, 8192, %s9611, %s9599, 256, 256, 16
        $region128: #{swin_upsample_forward.1} parent=75 // pred_fallthru
          _
      $region76: #{swin_upsample_forward.1} parent=5 // pred_fallthru
        _
      %p9619 = scmp.le.s32.totalorder 2, %s30
      // Predicated region
      $region129: #{swin_upsample_forward.1} parent=5 // pred_check
        %p9620 = pneg %p9619
      $region130: #{swin_upsample_forward.1} parent=5 // pred_check_branch
        %9622 = sbr.rel (%p9620) target = $region132
      $region131: #{swin_upsample_forward.1} parent=5 // pred_region
        %s9623 = ssub.s32 %s30, 2
        // Predicated region
        $region133: #{swin_upsample_forward.1} parent=131 // pred_check
          %p9624 = pneg %p358
        $region134: #{swin_upsample_forward.1} parent=131 // pred_check_branch
          %9626 = sbr.rel (%p9624) target = $region136
        $region135: #{swin_upsample_forward.1} parent=131 // pred_region
          %s9627 = sand.u32 %s343, 1
          %s9628 = scalar_lea.sflag [#allocation4], %s9627
          %s9629 = sand.u32 %s343, 1
          %s9630 = smul.addr %s9629, 512
          %s9631 = scalar_lea.vmem [#allocation22], %s9630
          %9632 = dma.done %s9628, 8192
        $region136: #{swin_upsample_forward.1} parent=131 // pred_fallthru
          _
      $region132: #{swin_upsample_forward.1} parent=5 // pred_fallthru
        _
    $region6: #{swin_upsample_forward.1} parent=1 // loop_footer
      %s34 = sadd.s32 1, %s30
    $region7: #{swin_upsample_forward.1} parent=1 // loop_footer_branch
      %29 = sbr.rel target = $region3
    $region8: #{swin_upsample_forward.1} parent=1 // loop_exit
      _
    %9633 = vsyncpa [#allocation3], 1
    %s9634 = scalar_lea.sflag [#allocation3], 1
    %9635 = vsyncpa %s9634, 1
    %9636 = vsyncpa [#allocation6], 1
    %9637 = vsyncpa [#allocation9], 1
    %9638 = vsyncpa [#allocation12], 1
    %9639 = vsyncpa [#allocation15], 1
    %9640 = vsyncpa [#allocation18], 1
    %9641 = vsyncpa [#allocation21], 1
    %9642 = vsyncpa [#allocation4], 1
    %s9643 = scalar_lea.sflag [#allocation4], 1
    %9644 = vsyncpa %s9643, 1

</llo_original>
